<compile_context>
chip_gen: v7x
topology: tpu7x:2x2x1
jax: 0.10.0
libtpu: 0.0.40
codegen_flags: <defaults>
</compile_context>

<pallas_src>
import functools
import math

import jax
import jax.numpy as jnp
from jax import lax
from jax.experimental import pallas as pl
from jax.experimental.pallas import tpu as pltpu

_FUSE_MIN_K = 256  # use the fused single-dot path only when n_taps*C >= this.


def _shift_replicate(x, offset, axis):
    """x shifted by `offset` in {-1, 0, +1} along `axis` with replicate padding."""
    if offset == 0:
        return x
    n = x.shape[axis]
    if offset < 0:  # result[i] = x[max(i - 1, 0)]
        head = lax.slice_in_dim(x, 0, 1, axis=axis)
        body = lax.slice_in_dim(x, 0, n - 1, axis=axis)
        return jnp.concatenate([head, body], axis=axis)
    # result[i] = x[min(i + 1, n - 1)]
    body = lax.slice_in_dim(x, 1, n, axis=axis)
    tail = lax.slice_in_dim(x, n - 1, n, axis=axis)
    return jnp.concatenate([body, tail], axis=axis)


def _iter_taps(x, space_num, axis=1):
    """Yield the 3**space_num replicate-shifted copies of x in
    itertools.product((-1, 0, 1), repeat=space_num) order (first axis slowest).
    Only `space_num` partially-shifted copies are live at any time."""
    if axis > space_num:
        yield x
        return
    for off in (-1, 0, 1):
        yield from _iter_taps(_shift_replicate(x, off, axis), space_num, axis + 1)


def _convnd_replicate_kernel(x_ref, w_ref, o_ref, *, space_num, fuse):
    """x_ref: (tb, *spatial, tt, C); w_ref: (3^n*C, D); o_ref: (tb, *spatial, tt, D)."""
    x = x_ref[...]
    c = x.shape[-1]
    d = o_ref.shape[-1]
    m = math.prod(x.shape[:-1])
    if fuse:
        # Large contraction: one wide MXU dot over all taps.
        cols = [xs.reshape(m, c) for xs in _iter_taps(x, space_num)]
        y = jnp.dot(jnp.concatenate(cols, axis=-1), w_ref[...],
                    preferred_element_type=jnp.float32)
    else:
        # Per-tap accumulation: at most one shifted copy + f32 accumulator live.
        y = jnp.zeros((m, d), jnp.float32)
        for k, xs in enumerate(_iter_taps(x, space_num)):
            y = y + jnp.dot(xs.reshape(m, c), w_ref[k * c:(k + 1) * c, :],
                            preferred_element_type=jnp.float32)
    o_ref[...] = y.reshape(o_ref.shape).astype(o_ref.dtype)  # one whole-tile store


def _tpu_vmem_and_cores():
    """Best-effort (VMEM bytes, #TensorCores).  Falls back to the most
    conservative assumption (64 MiB VMEM, 1 core)."""
    vmem, cores = 64 << 20, 1
    try:
        info = pltpu.get_tpu_info()
        v = getattr(info, "vmem_capacity_bytes", None)
        if isinstance(v, int) and v > 0:
            vmem = v
        for name in ("num_cores", "core_count", "num_tensorcores", "tensorcore_count"):
            cval = getattr(info, name, None)
            if isinstance(cval, int) and cval > 0:
                cores = cval
                break
    except Exception:
        pass
    return vmem, cores


def _divisors_desc(n):
    return [d for d in range(n, 0, -1) if n % d == 0]


def _choose_tiles(batch, spatial, seq, c_in, d_model, itemsize):
    """Pick (batch tile, T tile, vmem_limit_bytes) from padded-VMEM accounting."""
    vmem_cap, cores = _tpu_vmem_and_cores()
    # Headroom for Mosaic internal scratch / semaphores; ~48 MiB on 64-MiB parts,
    # up to 96 MiB on 128-MiB parts.
    vmem_limit = int(min(max(vmem_cap - (16 << 20), 16 << 20), 96 << 20))
    budget = int(vmem_limit * 0.7)

    sp = math.prod(spatial) if spatial else 1
    lanes_in = -(-c_in // 128) * 128
    lanes_out = -(-d_model // 128) * 128

    def footprint(tb, tt):
        rows = tb * sp * (-(-tt // 8) * 8)          # sublane-padded rows / step
        # double-buffered input block + ~2 live shifted copies  -> 4x input lanes
        # double-buffered output block + f32 accumulator        -> 2x out + 4B acc
        return rows * (lanes_in * itemsize * 4 + lanes_out * (itemsize * 2 + 4))

    # T tiles must be multiples of 8 sublanes (copy-free (M, C) merge) or full T.
    tt_cands = [d for d in _divisors_desc(seq) if d % 8 == 0 or d == seq]
    tb_cands = _divisors_desc(batch)

    tb, tt = 1, tt_cands[-1]                        # fallback: smallest tile
    for cand_tt in tt_cands:                        # prefer large, contiguous T tiles
        fit_tb = next((b for b in tb_cands if footprint(b, cand_tt) <= budget), None)
        if fit_tb is not None:
            tb, tt = fit_tb, cand_tt
            break

    # On multi-TensorCore parts make sure every core gets >= 2 pipelined steps.
    if cores >= 2:
        target = 2 * cores
        while (batch // tb) * (seq // tt) < target:
            smaller_tb = next((d for d in tb_cands if d < tb), None)
            if smaller_tb is not None:
                tb = smaller_tb
                continue
            smaller_tt = next((d for d in tt_cands if d < tt), None)
            if smaller_tt is not None:
                tt = smaller_tt
                continue
            break
    return tb, tt, vmem_limit


def space_l_embedding(x, conv_weight, space_num=2):
    """Pallas implementation of SpaceLEmbedding.forward.

    x:           (B, S_1, ..., S_n, T, C) with ndim == space_num + 3
    conv_weight: (d_model, c_in, 3, ..., 3)  -- PyTorch ConvNd layout
    returns:     (B, S_1, ..., S_n, T, d_model)
    """
    assert space_num > 1
    assert x.ndim == space_num + 3, x.shape
    batch = x.shape[0]
    spatial = x.shape[1:1 + space_num]
    seq, c_in = x.shape[-2], x.shape[-1]
    d_model = conv_weight.shape[0]
    n_taps = 3 ** space_num
    assert conv_weight.shape == (d_model, c_in) + (3,) * space_num

    # Per-tap weights so row k*C + c  <->  conv_weight[:, c, *tap_k]
    # (taps in itertools.product((-1,0,1), repeat=n) order, matching _iter_taps).
    w_cat = jnp.transpose(conv_weight.reshape(d_model, c_in, n_taps),
                          (2, 1, 0)).reshape(n_taps * c_in, d_model)
    w_cat = w_cat.astype(x.dtype)

    tb, tt, vmem_limit = _choose_tiles(batch, spatial, seq, c_in, d_model,
                                       jnp.dtype(x.dtype).itemsize)
    grid = (batch // tb, seq // tt)

    zeros_sp = (0,) * space_num
    block_in = (tb,) + spatial + (tt, c_in)
    block_out = (tb,) + spatial + (tt, d_model)
    fuse = n_taps * c_in >= _FUSE_MIN_K

    kernel = functools.partial(_convnd_replicate_kernel,
                               space_num=space_num, fuse=fuse)
    return pl.pallas_call(
        kernel,
        out_shape=jax.ShapeDtypeStruct(x.shape[:-1] + (d_model,), x.dtype),
        grid=grid,
        in_specs=[
            pl.BlockSpec(block_in, lambda i, j: (i,) + zeros_sp + (j, 0)),
            pl.BlockSpec((n_taps * c_in, d_model), lambda i, j: (0, 0)),
        ],
        out_specs=pl.BlockSpec(block_out, lambda i, j: (i,) + zeros_sp + (j, 0)),
        compiler_params=pltpu.CompilerParams(
            dimension_semantics=("parallel", "parallel"),
            vmem_limit_bytes=vmem_limit),
    )(x, w_cat)


def _reference(x, conv_weight, space_num=2):
    """Pure-JAX reference mirroring the PyTorch forward literally."""
    batch = x.shape[0]
    spatial = x.shape[1:1 + space_num]
    seq, c_in = x.shape[-2], x.shape[-1]
    d_model = conv_weight.shape[0]
    nd = x.ndim
    xt = jnp.transpose(x, (0, nd - 2, nd - 1) + tuple(range(1, space_num + 1)))
    xt = xt.reshape((batch * seq, c_in) + spatial)
    xt = jnp.pad(xt, [(0, 0), (0, 0)] + [(1, 1)] * space_num, mode='edge')
    dnums = ('NCHW', 'OIHW', 'NCHW') if space_num == 2 else ('NCDHW', 'OIDHW', 'NCDHW')
    y = lax.conv_general_dilated(
        xt, conv_weight, window_strides=(1,) * space_num, padding='VALID',
        dimension_numbers=lax.conv_dimension_numbers(xt.shape, conv_weight.shape, dnums))
    y = y.reshape((batch, seq, d_model) + spatial)
    return jnp.transpose(y, (0,) + tuple(range(3, space_num + 3)) + (1, 2))


if __name__ == "__main__":
    space_num = 2
    c_in = 4
    d_model = 32
    batch, s1, s2, seq = 2, 8, 8, 8

    key = jax.random.PRNGKey(0)
    kx, kw = jax.random.split(key)
    x = jax.random.normal(kx, (batch, s1, s2, seq, c_in), dtype=jnp.float32)

    # Deterministic stand-in for ConvNd weight init (bias=False in the module).
    fan_in = c_in * 3 ** space_num
    std = math.sqrt(2.0 / (1.0 + 5.0)) / math.sqrt(fan_in)
    conv_weight = std * jax.random.normal(
        kw, (d_model, c_in) + (3,) * space_num, dtype=jnp.float32)

    out = jax.block_until_ready(space_l_embedding(x, conv_weight, space_num))
    ref = _reference(x, conv_weight, space_num)

    assert out.shape == (batch, s1, s2, seq, d_model), out.shape
    assert jnp.allclose(out, ref, atol=1e-5, rtol=1e-5), \
        float(jnp.max(jnp.abs(out - ref)))
    print("KERNEL_OK")
</pallas_src>

<mosaic_0001>
module attributes {stable_mosaic.version = 11 : i64} {
  func.func @_convnd_replicate_kernel(%arg0: i32, %arg1: i32, %arg2: memref<2x8x8x8x4xf32, #tpu.memory_space<vmem>>, %arg3: memref<36x32xf32, #tpu.memory_space<vmem>>, %arg4: memref<2x8x8x8x32xf32, #tpu.memory_space<vmem>>) attributes {dimension_semantics = [#tpu.dimension_semantics<parallel>, #tpu.dimension_semantics<parallel>], iteration_bounds = array<i64: 1, 1>, scalar_prefetch = 0 : i64, scratch_operands = 0 : i64, tpu.core_type = #tpu.core_type<tc>, window_params = [{transform_indices = @transform_0, window_bounds = array<i64: 2, 8, 8, 8, 4>}, {pipeline_mode = #tpu.pipeline_mode<synchronous>, transform_indices = @transform_1, window_bounds = array<i64: 36, 32>}, {transform_indices = @transform_2, window_bounds = array<i64: 2, 8, 8, 8, 32>}]} {
    %c0 = arith.constant 0 : index
    %c0_0 = arith.constant 0 : index
    %c0_1 = arith.constant 0 : index
    %c0_2 = arith.constant 0 : index
    %c0_3 = arith.constant 0 : index
    %0 = vector.load %arg2[%c0, %c0_0, %c0_1, %c0_2, %c0_3] : memref<2x8x8x8x4xf32, #tpu.memory_space<vmem>>, vector<2x8x8x8x4xf32>
    %cst = arith.constant 0.000000e+00 : f32
    %1 = vector.broadcast %cst : f32 to vector<1024x32xf32>
    %2 = vector.extract_strided_slice %0 {offsets = [0, 0, 0, 0, 0], sizes = [2, 1, 8, 8, 4], strides = [1, 1, 1, 1, 1]} : vector<2x8x8x8x4xf32> to vector<2x1x8x8x4xf32>
    %3 = vector.extract_strided_slice %0 {offsets = [0, 0, 0, 0, 0], sizes = [2, 7, 8, 8, 4], strides = [1, 1, 1, 1, 1]} : vector<2x8x8x8x4xf32> to vector<2x7x8x8x4xf32>
    %4 = tpu.concatenate %2, %3 in 1 : vector<2x1x8x8x4xf32>, vector<2x7x8x8x4xf32> -> vector<2x8x8x8x4xf32>
    %5 = vector.extract_strided_slice %4 {offsets = [0, 0, 0, 0, 0], sizes = [2, 8, 1, 8, 4], strides = [1, 1, 1, 1, 1]} : vector<2x8x8x8x4xf32> to vector<2x8x1x8x4xf32>
    %6 = vector.extract_strided_slice %4 {offsets = [0, 0, 0, 0, 0], sizes = [2, 8, 7, 8, 4], strides = [1, 1, 1, 1, 1]} : vector<2x8x8x8x4xf32> to vector<2x8x7x8x4xf32>
    %7 = tpu.concatenate %5, %6 in 2 : vector<2x8x1x8x4xf32>, vector<2x8x7x8x4xf32> -> vector<2x8x8x8x4xf32>
    %8 = vector.shape_cast %7 : vector<2x8x8x8x4xf32> to vector<1024x4xf32>
    %c0_4 = arith.constant 0 : index
    %c0_5 = arith.constant 0 : index
    %9 = vector.load %arg3[%c0_4, %c0_5] : memref<36x32xf32, #tpu.memory_space<vmem>>, vector<4x32xf32>
    %cst_6 = arith.constant dense<0.000000e+00> : vector<1024x32xf32>
    %10 = tpu.matmul %8, %9, %cst_6 {dimension_numbers = #tpu.dot_dimension_numbers<[1], [0], [0], [1], [0, 0, 1, 1], [], []>} : vector<1024x4xf32>, vector<4x32xf32>, vector<1024x32xf32> -> vector<1024x32xf32>
    %11 = arith.addf %1, %10 : vector<1024x32xf32>
    %12 = vector.shape_cast %4 : vector<2x8x8x8x4xf32> to vector<1024x4xf32>
    %c4 = arith.constant 4 : index
    %c0_7 = arith.constant 0 : index
    %13 = vector.load %arg3[%c4, %c0_7] : memref<36x32xf32, #tpu.memory_space<vmem>>, vector<4x32xf32>
    %cst_8 = arith.constant dense<0.000000e+00> : vector<1024x32xf32>
    %14 = tpu.matmul %12, %13, %cst_8 {dimension_numbers = #tpu.dot_dimension_numbers<[1], [0], [0], [1], [0, 0, 1, 1], [], []>} : vector<1024x4xf32>, vector<4x32xf32>, vector<1024x32xf32> -> vector<1024x32xf32>
    %15 = arith.addf %11, %14 : vector<1024x32xf32>
    %16 = vector.extract_strided_slice %4 {offsets = [0, 0, 1, 0, 0], sizes = [2, 8, 7, 8, 4], strides = [1, 1, 1, 1, 1]} : vector<2x8x8x8x4xf32> to vector<2x8x7x8x4xf32>
    %17 = vector.extract_strided_slice %4 {offsets = [0, 0, 7, 0, 0], sizes = [2, 8, 1, 8, 4], strides = [1, 1, 1, 1, 1]} : vector<2x8x8x8x4xf32> to vector<2x8x1x8x4xf32>
    %18 = tpu.concatenate %16, %17 in 2 : vector<2x8x7x8x4xf32>, vector<2x8x1x8x4xf32> -> vector<2x8x8x8x4xf32>
    %19 = vector.shape_cast %18 : vector<2x8x8x8x4xf32> to vector<1024x4xf32>
    %c8 = arith.constant 8 : index
    %c0_9 = arith.constant 0 : index
    %20 = vector.load %arg3[%c8, %c0_9] : memref<36x32xf32, #tpu.memory_space<vmem>>, vector<4x32xf32>
    %cst_10 = arith.constant dense<0.000000e+00> : vector<1024x32xf32>
    %21 = tpu.matmul %19, %20, %cst_10 {dimension_numbers = #tpu.dot_dimension_numbers<[1], [0], [0], [1], [0, 0, 1, 1], [], []>} : vector<1024x4xf32>, vector<4x32xf32>, vector<1024x32xf32> -> vector<1024x32xf32>
    %22 = arith.addf %15, %21 : vector<1024x32xf32>
    %23 = vector.extract_strided_slice %0 {offsets = [0, 0, 0, 0, 0], sizes = [2, 8, 1, 8, 4], strides = [1, 1, 1, 1, 1]} : vector<2x8x8x8x4xf32> to vector<2x8x1x8x4xf32>
    %24 = vector.extract_strided_slice %0 {offsets = [0, 0, 0, 0, 0], sizes = [2, 8, 7, 8, 4], strides = [1, 1, 1, 1, 1]} : vector<2x8x8x8x4xf32> to vector<2x8x7x8x4xf32>
    %25 = tpu.concatenate %23, %24 in 2 : vector<2x8x1x8x4xf32>, vector<2x8x7x8x4xf32> -> vector<2x8x8x8x4xf32>
    %26 = vector.shape_cast %25 : vector<2x8x8x8x4xf32> to vector<1024x4xf32>
    %c12 = arith.constant 12 : index
    %c0_11 = arith.constant 0 : index
    %27 = vector.load %arg3[%c12, %c0_11] : memref<36x32xf32, #tpu.memory_space<vmem>>, vector<4x32xf32>
    %cst_12 = arith.constant dense<0.000000e+00> : vector<1024x32xf32>
    %28 = tpu.matmul %26, %27, %cst_12 {dimension_numbers = #tpu.dot_dimension_numbers<[1], [0], [0], [1], [0, 0, 1, 1], [], []>} : vector<1024x4xf32>, vector<4x32xf32>, vector<1024x32xf32> -> vector<1024x32xf32>
    %29 = arith.addf %22, %28 : vector<1024x32xf32>
    %30 = vector.shape_cast %0 : vector<2x8x8x8x4xf32> to vector<1024x4xf32>
    %c16 = arith.constant 16 : index
    %c0_13 = arith.constant 0 : index
    %31 = vector.load %arg3[%c16, %c0_13] : memref<36x32xf32, #tpu.memory_space<vmem>>, vector<4x32xf32>
    %cst_14 = arith.constant dense<0.000000e+00> : vector<1024x32xf32>
    %32 = tpu.matmul %30, %31, %cst_14 {dimension_numbers = #tpu.dot_dimension_numbers<[1], [0], [0], [1], [0, 0, 1, 1], [], []>} : vector<1024x4xf32>, vector<4x32xf32>, vector<1024x32xf32> -> vector<1024x32xf32>
    %33 = arith.addf %29, %32 : vector<1024x32xf32>
    %34 = vector.extract_strided_slice %0 {offsets = [0, 0, 1, 0, 0], sizes = [2, 8, 7, 8, 4], strides = [1, 1, 1, 1, 1]} : vector<2x8x8x8x4xf32> to vector<2x8x7x8x4xf32>
    %35 = vector.extract_strided_slice %0 {offsets = [0, 0, 7, 0, 0], sizes = [2, 8, 1, 8, 4], strides = [1, 1, 1, 1, 1]} : vector<2x8x8x8x4xf32> to vector<2x8x1x8x4xf32>
    %36 = tpu.concatenate %34, %35 in 2 : vector<2x8x7x8x4xf32>, vector<2x8x1x8x4xf32> -> vector<2x8x8x8x4xf32>
    %37 = vector.shape_cast %36 : vector<2x8x8x8x4xf32> to vector<1024x4xf32>
    %c20 = arith.constant 20 : index
    %c0_15 = arith.constant 0 : index
    %38 = vector.load %arg3[%c20, %c0_15] : memref<36x32xf32, #tpu.memory_space<vmem>>, vector<4x32xf32>
    %cst_16 = arith.constant dense<0.000000e+00> : vector<1024x32xf32>
    %39 = tpu.matmul %37, %38, %cst_16 {dimension_numbers = #tpu.dot_dimension_numbers<[1], [0], [0], [1], [0, 0, 1, 1], [], []>} : vector<1024x4xf32>, vector<4x32xf32>, vector<1024x32xf32> -> vector<1024x32xf32>
    %40 = arith.addf %33, %39 : vector<1024x32xf32>
    %41 = vector.extract_strided_slice %0 {offsets = [0, 1, 0, 0, 0], sizes = [2, 7, 8, 8, 4], strides = [1, 1, 1, 1, 1]} : vector<2x8x8x8x4xf32> to vector<2x7x8x8x4xf32>
    %42 = vector.extract_strided_slice %0 {offsets = [0, 7, 0, 0, 0], sizes = [2, 1, 8, 8, 4], strides = [1, 1, 1, 1, 1]} : vector<2x8x8x8x4xf32> to vector<2x1x8x8x4xf32>
    %43 = tpu.concatenate %41, %42 in 1 : vector<2x7x8x8x4xf32>, vector<2x1x8x8x4xf32> -> vector<2x8x8x8x4xf32>
    %44 = vector.extract_strided_slice %43 {offsets = [0, 0, 0, 0, 0], sizes = [2, 8, 1, 8, 4], strides = [1, 1, 1, 1, 1]} : vector<2x8x8x8x4xf32> to vector<2x8x1x8x4xf32>
    %45 = vector.extract_strided_slice %43 {offsets = [0, 0, 0, 0, 0], sizes = [2, 8, 7, 8, 4], strides = [1, 1, 1, 1, 1]} : vector<2x8x8x8x4xf32> to vector<2x8x7x8x4xf32>
    %46 = tpu.concatenate %44, %45 in 2 : vector<2x8x1x8x4xf32>, vector<2x8x7x8x4xf32> -> vector<2x8x8x8x4xf32>
    %47 = vector.shape_cast %46 : vector<2x8x8x8x4xf32> to vector<1024x4xf32>
    %c24 = arith.constant 24 : index
    %c0_17 = arith.constant 0 : index
    %48 = vector.load %arg3[%c24, %c0_17] : memref<36x32xf32, #tpu.memory_space<vmem>>, vector<4x32xf32>
    %cst_18 = arith.constant dense<0.000000e+00> : vector<1024x32xf32>
    %49 = tpu.matmul %47, %48, %cst_18 {dimension_numbers = #tpu.dot_dimension_numbers<[1], [0], [0], [1], [0, 0, 1, 1], [], []>} : vector<1024x4xf32>, vector<4x32xf32>, vector<1024x32xf32> -> vector<1024x32xf32>
    %50 = arith.addf %40, %49 : vector<1024x32xf32>
    %51 = vector.shape_cast %43 : vector<2x8x8x8x4xf32> to vector<1024x4xf32>
    %c28 = arith.constant 28 : index
    %c0_19 = arith.constant 0 : index
    %52 = vector.load %arg3[%c28, %c0_19] : memref<36x32xf32, #tpu.memory_space<vmem>>, vector<4x32xf32>
    %cst_20 = arith.constant dense<0.000000e+00> : vector<1024x32xf32>
    %53 = tpu.matmul %51, %52, %cst_20 {dimension_numbers = #tpu.dot_dimension_numbers<[1], [0], [0], [1], [0, 0, 1, 1], [], []>} : vector<1024x4xf32>, vector<4x32xf32>, vector<1024x32xf32> -> vector<1024x32xf32>
    %54 = arith.addf %50, %53 : vector<1024x32xf32>
    %55 = vector.extract_strided_slice %43 {offsets = [0, 0, 1, 0, 0], sizes = [2, 8, 7, 8, 4], strides = [1, 1, 1, 1, 1]} : vector<2x8x8x8x4xf32> to vector<2x8x7x8x4xf32>
    %56 = vector.extract_strided_slice %43 {offsets = [0, 0, 7, 0, 0], sizes = [2, 8, 1, 8, 4], strides = [1, 1, 1, 1, 1]} : vector<2x8x8x8x4xf32> to vector<2x8x1x8x4xf32>
    %57 = tpu.concatenate %55, %56 in 2 : vector<2x8x7x8x4xf32>, vector<2x8x1x8x4xf32> -> vector<2x8x8x8x4xf32>
    %58 = vector.shape_cast %57 : vector<2x8x8x8x4xf32> to vector<1024x4xf32>
    %c32 = arith.constant 32 : index
    %c0_21 = arith.constant 0 : index
    %59 = vector.load %arg3[%c32, %c0_21] : memref<36x32xf32, #tpu.memory_space<vmem>>, vector<4x32xf32>
    %cst_22 = arith.constant dense<0.000000e+00> : vector<1024x32xf32>
    %60 = tpu.matmul %58, %59, %cst_22 {dimension_numbers = #tpu.dot_dimension_numbers<[1], [0], [0], [1], [0, 0, 1, 1], [], []>} : vector<1024x4xf32>, vector<4x32xf32>, vector<1024x32xf32> -> vector<1024x32xf32>
    %61 = arith.addf %54, %60 : vector<1024x32xf32>
    %62 = vector.shape_cast %61 : vector<1024x32xf32> to vector<2x8x8x8x32xf32>
    %c0_23 = arith.constant 0 : index
    %c0_24 = arith.constant 0 : index
    %c0_25 = arith.constant 0 : index
    %c0_26 = arith.constant 0 : index
    %c0_27 = arith.constant 0 : index
    %63 = vector.load %arg4[%c0_23, %c0_24, %c0_25, %c0_26, %c0_27] : memref<2x8x8x8x32xf32, #tpu.memory_space<vmem>>, vector<2x8x8x8x32xf32>
    tpu.vector_store %arg4[%c0_23, %c0_24, %c0_25, %c0_26, %c0_27], %62 {strides = array<i32>} : memref<2x8x8x8x32xf32, #tpu.memory_space<vmem>>, vector<2x8x8x8x32xf32>,
    return
  }
  func.func @transform_0(%arg0: i32, %arg1: i32) -> (i32, i32, i32, i32, i32) {
    %c0_i32 = arith.constant 0 : i32
    %c0_i32_0 = arith.constant 0 : i32
    %c0_i32_1 = arith.constant 0 : i32
    %c0_i32_2 = arith.constant 0 : i32
    return %arg0, %c0_i32, %c0_i32_0, %arg1, %c0_i32_1 : i32, i32, i32, i32, i32
  }
  func.func @transform_1(%arg0: i32, %arg1: i32) -> (i32, i32) {
    %c0_i32 = arith.constant 0 : i32
    %c0_i32_0 = arith.constant 0 : i32
    %c0_i32_1 = arith.constant 0 : i32
    return %c0_i32, %c0_i32_0 : i32, i32
  }
  func.func @transform_2(%arg0: i32, %arg1: i32) -> (i32, i32, i32, i32, i32) {
    %c0_i32 = arith.constant 0 : i32
    %c0_i32_0 = arith.constant 0 : i32
    %c0_i32_1 = arith.constant 0 : i32
    %c0_i32_2 = arith.constant 0 : i32
    return %arg0, %c0_i32, %c0_i32_0, %arg1, %c0_i32_1 : i32, i32, i32, i32, i32
  }
}

</mosaic_0001>

<llo_original>
// kernel: tpu_custom_call.1
$region0: #{tpu_custom_call.1}
  #allocation0 [shape = 'u32[]', space=smem, size = 0x4, offset = 0x4, fixed_abs, tag = 'smem constant byte address 0x4 - core index']
  #allocation1 [shape = 'u32[144,128]{1,0:T(1,128)}', space=vmem, size = 0x12000, scoped, tag = 'internal scratch']
  %s0 = inlined_call_operand.vmem [shape: f32[2,8,8,8,4], index: 0, kind: input, shape index: {}]
  %s1 = inlined_call_operand.vmem [shape: f32[36,32], index: 1, kind: input, shape index: {}]
  %s2 = inlined_call_operand.hbm [shape: f32[2,8,8,8,32], index: 2, kind: output, shape index: {}]
  %s3 = sld [smem:[#allocation0]]
  $region18: #{tpu_custom_call.1} parent=0
    _
  %s5 = ssub.s32 1, %s3
  %s6 = scalar_select 0, %s5, %s3
  $region1: #{tpu_custom_call.1} parent=0
    #allocation2 [shape = 'u8[524288]{0}', space=vmem, size = 0x80000, scoped, tag = 'output window, operand 0, single buffered']
    #allocation3 [shape = 's32[1]{0}', space=sflag, size = 0x4, scoped, tag = 'scoped memory for tpu_custom_call.1']
    %7 = vsyncpa [#allocation3], 0
    // Predicated region
    $region2: #{tpu_custom_call.1} parent=1 // pred_check
      _
    $region3: #{tpu_custom_call.1} parent=1 // pred_check_branch
      %9 = sbr.rel (0) target = $region5
    $region4: #{tpu_custom_call.1} parent=1 // pred_region
      _
    $region5: #{tpu_custom_call.1} parent=1 // pred_fallthru
      _
    // Predicated region
    $region6: #{tpu_custom_call.1} parent=1 // pred_check
      _
    $region7: #{tpu_custom_call.1} parent=1 // pred_check_branch
      %11 = sbr.rel (0) target = $region9
    $region8: #{tpu_custom_call.1} parent=1 // pred_region
      _
    $region9: #{tpu_custom_call.1} parent=1 // pred_fallthru
      _
    %v12 = vld [vmem:[%s0] sm:$0xff]
    %v13 = vld [vmem:[%s0 + $0x8] sm:$0xff]
    %v14 = vld [vmem:[%s0 + $0x10] sm:$0xff]
    %v15 = vld [vmem:[%s0 + $0x18] sm:$0xff]
    %v16 = vld [vmem:[%s0 + $0x20] sm:$0xff]
    %v17 = vld [vmem:[%s0 + $0x28] sm:$0xff]
    %v18 = vld [vmem:[%s0 + $0x30] sm:$0xff]
    %v19 = vld [vmem:[%s0 + $0x38] sm:$0xff]
    %v20 = vld [vmem:[%s0 + $0x40] sm:$0xff]
    %v21 = vld [vmem:[%s0 + $0x48] sm:$0xff]
    %v22 = vld [vmem:[%s0 + $0x50] sm:$0xff]
    %v23 = vld [vmem:[%s0 + $0x58] sm:$0xff]
    %v24 = vld [vmem:[%s0 + $0x60] sm:$0xff]
    %v25 = vld [vmem:[%s0 + $0x68] sm:$0xff]
    %v26 = vld [vmem:[%s0 + $0x70] sm:$0xff]
    %v27 = vld [vmem:[%s0 + $0x78] sm:$0xff]
    %v28 = vld [vmem:[%s0 + $0x80] sm:$0xff]
    %v29 = vld [vmem:[%s0 + $0x88] sm:$0xff]
    %v30 = vld [vmem:[%s0 + $0x90] sm:$0xff]
    %v31 = vld [vmem:[%s0 + $0x98] sm:$0xff]
    %v32 = vld [vmem:[%s0 + $0xa0] sm:$0xff]
    %v33 = vld [vmem:[%s0 + $0xa8] sm:$0xff]
    %v34 = vld [vmem:[%s0 + $0xb0] sm:$0xff]
    %v35 = vld [vmem:[%s0 + $0xb8] sm:$0xff]
    %v36 = vld [vmem:[%s0 + $0xc0] sm:$0xff]
    %v37 = vld [vmem:[%s0 + $0xc8] sm:$0xff]
    %v38 = vld [vmem:[%s0 + $0xd0] sm:$0xff]
    %v39 = vld [vmem:[%s0 + $0xd8] sm:$0xff]
    %v40 = vld [vmem:[%s0 + $0xe0] sm:$0xff]
    %v41 = vld [vmem:[%s0 + $0xe8] sm:$0xff]
    %v42 = vld [vmem:[%s0 + $0xf0] sm:$0xff]
    %v43 = vld [vmem:[%s0 + $0xf8] sm:$0xff]
    %v44 = vld [vmem:[%s0 + $0x100] sm:$0xff]
    %v45 = vld [vmem:[%s0 + $0x108] sm:$0xff]
    %v46 = vld [vmem:[%s0 + $0x110] sm:$0xff]
    %v47 = vld [vmem:[%s0 + $0x118] sm:$0xff]
    %v48 = vld [vmem:[%s0 + $0x120] sm:$0xff]
    %v49 = vld [vmem:[%s0 + $0x128] sm:$0xff]
    %v50 = vld [vmem:[%s0 + $0x130] sm:$0xff]
    %v51 = vld [vmem:[%s0 + $0x138] sm:$0xff]
    %v52 = vld [vmem:[%s0 + $0x140] sm:$0xff]
    %v53 = vld [vmem:[%s0 + $0x148] sm:$0xff]
    %v54 = vld [vmem:[%s0 + $0x150] sm:$0xff]
    %v55 = vld [vmem:[%s0 + $0x158] sm:$0xff]
    %v56 = vld [vmem:[%s0 + $0x160] sm:$0xff]
    %v57 = vld [vmem:[%s0 + $0x168] sm:$0xff]
    %v58 = vld [vmem:[%s0 + $0x170] sm:$0xff]
    %v59 = vld [vmem:[%s0 + $0x178] sm:$0xff]
    %v60 = vld [vmem:[%s0 + $0x180] sm:$0xff]
    %v61 = vld [vmem:[%s0 + $0x188] sm:$0xff]
    %v62 = vld [vmem:[%s0 + $0x190] sm:$0xff]
    %v63 = vld [vmem:[%s0 + $0x198] sm:$0xff]
    %v64 = vld [vmem:[%s0 + $0x1a0] sm:$0xff]
    %v65 = vld [vmem:[%s0 + $0x1a8] sm:$0xff]
    %v66 = vld [vmem:[%s0 + $0x1b0] sm:$0xff]
    %v67 = vld [vmem:[%s0 + $0x1b8] sm:$0xff]
    %v68 = vld [vmem:[%s0 + $0x1c0] sm:$0xff]
    %v69 = vld [vmem:[%s0 + $0x1c8] sm:$0xff]
    %v70 = vld [vmem:[%s0 + $0x1d0] sm:$0xff]
    %v71 = vld [vmem:[%s0 + $0x1d8] sm:$0xff]
    %v72 = vld [vmem:[%s0 + $0x1e0] sm:$0xff]
    %v73 = vld [vmem:[%s0 + $0x1e8] sm:$0xff]
    %v74 = vld [vmem:[%s0 + $0x1f0] sm:$0xff]
    %v75 = vld [vmem:[%s0 + $0x1f8] sm:$0xff]
    %v76 = vld [vmem:[%s0 + $0x200] sm:$0xff]
    %v77 = vld [vmem:[%s0 + $0x208] sm:$0xff]
    %v78 = vld [vmem:[%s0 + $0x210] sm:$0xff]
    %v79 = vld [vmem:[%s0 + $0x218] sm:$0xff]
    %v80 = vld [vmem:[%s0 + $0x220] sm:$0xff]
    %v81 = vld [vmem:[%s0 + $0x228] sm:$0xff]
    %v82 = vld [vmem:[%s0 + $0x230] sm:$0xff]
    %v83 = vld [vmem:[%s0 + $0x238] sm:$0xff]
    %v84 = vld [vmem:[%s0 + $0x240] sm:$0xff]
    %v85 = vld [vmem:[%s0 + $0x248] sm:$0xff]
    %v86 = vld [vmem:[%s0 + $0x250] sm:$0xff]
    %v87 = vld [vmem:[%s0 + $0x258] sm:$0xff]
    %v88 = vld [vmem:[%s0 + $0x260] sm:$0xff]
    %v89 = vld [vmem:[%s0 + $0x268] sm:$0xff]
    %v90 = vld [vmem:[%s0 + $0x270] sm:$0xff]
    %v91 = vld [vmem:[%s0 + $0x278] sm:$0xff]
    %v92 = vld [vmem:[%s0 + $0x280] sm:$0xff]
    %v93 = vld [vmem:[%s0 + $0x288] sm:$0xff]
    %v94 = vld [vmem:[%s0 + $0x290] sm:$0xff]
    %v95 = vld [vmem:[%s0 + $0x298] sm:$0xff]
    %v96 = vld [vmem:[%s0 + $0x2a0] sm:$0xff]
    %v97 = vld [vmem:[%s0 + $0x2a8] sm:$0xff]
    %v98 = vld [vmem:[%s0 + $0x2b0] sm:$0xff]
    %v99 = vld [vmem:[%s0 + $0x2b8] sm:$0xff]
    %v100 = vld [vmem:[%s0 + $0x2c0] sm:$0xff]
    %v101 = vld [vmem:[%s0 + $0x2c8] sm:$0xff]
    %v102 = vld [vmem:[%s0 + $0x2d0] sm:$0xff]
    %v103 = vld [vmem:[%s0 + $0x2d8] sm:$0xff]
    %v104 = vld [vmem:[%s0 + $0x2e0] sm:$0xff]
    %v105 = vld [vmem:[%s0 + $0x2e8] sm:$0xff]
    %v106 = vld [vmem:[%s0 + $0x2f0] sm:$0xff]
    %v107 = vld [vmem:[%s0 + $0x2f8] sm:$0xff]
    %v108 = vld [vmem:[%s0 + $0x300] sm:$0xff]
    %v109 = vld [vmem:[%s0 + $0x308] sm:$0xff]
    %v110 = vld [vmem:[%s0 + $0x310] sm:$0xff]
    %v111 = vld [vmem:[%s0 + $0x318] sm:$0xff]
    %v112 = vld [vmem:[%s0 + $0x320] sm:$0xff]
    %v113 = vld [vmem:[%s0 + $0x328] sm:$0xff]
    %v114 = vld [vmem:[%s0 + $0x330] sm:$0xff]
    %v115 = vld [vmem:[%s0 + $0x338] sm:$0xff]
    %v116 = vld [vmem:[%s0 + $0x340] sm:$0xff]
    %v117 = vld [vmem:[%s0 + $0x348] sm:$0xff]
    %v118 = vld [vmem:[%s0 + $0x350] sm:$0xff]
    %v119 = vld [vmem:[%s0 + $0x358] sm:$0xff]
    %v120 = vld [vmem:[%s0 + $0x360] sm:$0xff]
    %v121 = vld [vmem:[%s0 + $0x368] sm:$0xff]
    %v122 = vld [vmem:[%s0 + $0x370] sm:$0xff]
    %v123 = vld [vmem:[%s0 + $0x378] sm:$0xff]
    %v124 = vld [vmem:[%s0 + $0x380] sm:$0xff]
    %v125 = vld [vmem:[%s0 + $0x388] sm:$0xff]
    %v126 = vld [vmem:[%s0 + $0x390] sm:$0xff]
    %v127 = vld [vmem:[%s0 + $0x398] sm:$0xff]
    %v128 = vld [vmem:[%s0 + $0x3a0] sm:$0xff]
    %v129 = vld [vmem:[%s0 + $0x3a8] sm:$0xff]
    %v130 = vld [vmem:[%s0 + $0x3b0] sm:$0xff]
    %v131 = vld [vmem:[%s0 + $0x3b8] sm:$0xff]
    %v132 = vld [vmem:[%s0 + $0x3c0] sm:$0xff]
    %v133 = vld [vmem:[%s0 + $0x3c8] sm:$0xff]
    %v134 = vld [vmem:[%s0 + $0x3d0] sm:$0xff]
    %v135 = vld [vmem:[%s0 + $0x3d8] sm:$0xff]
    %v136 = vld [vmem:[%s0 + $0x3e0] sm:$0xff]
    %v137 = vld [vmem:[%s0 + $0x3e8] sm:$0xff]
    %v138 = vld [vmem:[%s0 + $0x3f0] sm:$0xff]
    %v139 = vld [vmem:[%s0 + $0x3f8] sm:$0xff]
    %v140 = vld [vmem:[%s1] sm:$0xf]
    %v141 = vld [vmem:[%s1 + $0x4] sm:$0xf]
    %vm142 = vcmask 31744
    %v144 = vsel %vm142, %v12, 0
    %v147 = vsel %vm142, %v13, 0
    %v150 = vsel %vm142, %v14, 0
    %v153 = vsel %vm142, %v15, 0
    %v156 = vsel %vm142, %v16, 0
    %v159 = vsel %vm142, %v17, 0
    %v162 = vsel %vm142, %v18, 0
    %v165 = vsel %vm142, %v19, 0
    %v168 = vsel %vm142, %v20, 0
    %v171 = vsel %vm142, %v21, 0
    %v174 = vsel %vm142, %v22, 0
    %v177 = vsel %vm142, %v23, 0
    %v180 = vsel %vm142, %v24, 0
    %v183 = vsel %vm142, %v25, 0
    %v186 = vsel %vm142, %v26, 0
    %v189 = vsel %vm142, %v27, 0
    %v192 = vsel %vm142, %v28, 0
    %v195 = vsel %vm142, %v29, 0
    %v198 = vsel %vm142, %v30, 0
    %v201 = vsel %vm142, %v31, 0
    %v204 = vsel %vm142, %v32, 0
    %v207 = vsel %vm142, %v33, 0
    %v210 = vsel %vm142, %v34, 0
    %v213 = vsel %vm142, %v35, 0
    %v216 = vsel %vm142, %v36, 0
    %v219 = vsel %vm142, %v37, 0
    %v222 = vsel %vm142, %v38, 0
    %v225 = vsel %vm142, %v39, 0
    %v228 = vsel %vm142, %v40, 0
    %v231 = vsel %vm142, %v41, 0
    %v234 = vsel %vm142, %v42, 0
    %v237 = vsel %vm142, %v43, 0
    %v240 = vsel %vm142, %v44, 0
    %v243 = vsel %vm142, %v45, 0
    %v246 = vsel %vm142, %v46, 0
    %v249 = vsel %vm142, %v47, 0
    %v252 = vsel %vm142, %v48, 0
    %v255 = vsel %vm142, %v49, 0
    %v258 = vsel %vm142, %v50, 0
    %v261 = vsel %vm142, %v51, 0
    %v264 = vsel %vm142, %v52, 0
    %v267 = vsel %vm142, %v53, 0
    %v270 = vsel %vm142, %v54, 0
    %v273 = vsel %vm142, %v55, 0
    %v276 = vsel %vm142, %v56, 0
    %v279 = vsel %vm142, %v57, 0
    %v282 = vsel %vm142, %v58, 0
    %v285 = vsel %vm142, %v59, 0
    %v288 = vsel %vm142, %v60, 0
    %v291 = vsel %vm142, %v61, 0
    %v294 = vsel %vm142, %v62, 0
    %v297 = vsel %vm142, %v63, 0
    %v300 = vsel %vm142, %v64, 0
    %v303 = vsel %vm142, %v65, 0
    %v306 = vsel %vm142, %v66, 0
    %v309 = vsel %vm142, %v67, 0
    %v312 = vsel %vm142, %v76, 0
    %v315 = vsel %vm142, %v77, 0
    %v318 = vsel %vm142, %v78, 0
    %v321 = vsel %vm142, %v79, 0
    %v324 = vsel %vm142, %v80, 0
    %v327 = vsel %vm142, %v81, 0
    %v330 = vsel %vm142, %v82, 0
    %v333 = vsel %vm142, %v83, 0
    %v336 = vsel %vm142, %v84, 0
    %v339 = vsel %vm142, %v85, 0
    %v342 = vsel %vm142, %v86, 0
    %v345 = vsel %vm142, %v87, 0
    %v348 = vsel %vm142, %v88, 0
    %v351 = vsel %vm142, %v89, 0
    %v354 = vsel %vm142, %v90, 0
    %v357 = vsel %vm142, %v91, 0
    %v360 = vsel %vm142, %v92, 0
    %v363 = vsel %vm142, %v93, 0
    %v366 = vsel %vm142, %v94, 0
    %v369 = vsel %vm142, %v95, 0
    %v372 = vsel %vm142, %v96, 0
    %v375 = vsel %vm142, %v97, 0
    %v378 = vsel %vm142, %v98, 0
    %v381 = vsel %vm142, %v99, 0
    %v384 = vsel %vm142, %v100, 0
    %v387 = vsel %vm142, %v101, 0
    %v390 = vsel %vm142, %v102, 0
    %v393 = vsel %vm142, %v103, 0
    %v396 = vsel %vm142, %v104, 0
    %v399 = vsel %vm142, %v105, 0
    %v402 = vsel %vm142, %v106, 0
    %v405 = vsel %vm142, %v107, 0
    %v408 = vsel %vm142, %v108, 0
    %v411 = vsel %vm142, %v109, 0
    %v414 = vsel %vm142, %v110, 0
    %v417 = vsel %vm142, %v111, 0
    %v420 = vsel %vm142, %v112, 0
    %v423 = vsel %vm142, %v113, 0
    %v426 = vsel %vm142, %v114, 0
    %v429 = vsel %vm142, %v115, 0
    %v432 = vsel %vm142, %v116, 0
    %v435 = vsel %vm142, %v117, 0
    %v438 = vsel %vm142, %v118, 0
    %v441 = vsel %vm142, %v119, 0
    %v444 = vsel %vm142, %v120, 0
    %v447 = vsel %vm142, %v121, 0
    %v450 = vsel %vm142, %v122, 0
    %v453 = vsel %vm142, %v123, 0
    %v456 = vsel %vm142, %v124, 0
    %v459 = vsel %vm142, %v125, 0
    %v462 = vsel %vm142, %v126, 0
    %v465 = vsel %vm142, %v127, 0
    %v468 = vsel %vm142, %v128, 0
    %v471 = vsel %vm142, %v129, 0
    %v474 = vsel %vm142, %v130, 0
    %v477 = vsel %vm142, %v131, 0
    %vm479 = vcmask 1043456
    %v481 = vsel %vm479, %v141, 0
    %483 = vmatprep.subr.mxu0 0.0
    %484 = vmatpush1.msra.mxu0 %v481
    %485 = vmatprep.subr.mxu0 0.0
    %486 = vmatpush1.msra.mxu0 0.0
    %487 = vmatprep.subr.mxu0 0.0
    %488 = vmatpush1.msra.mxu0 0.0
    %489 = vmatprep.subr.mxu0 0.0
    %490 = vmatpush1.msra.mxu0 0.0
    %491 = vmatprep.subr.mxu0 0.0
    %492 = vmatpush1.msra.mxu0 0.0
    %493 = vmatprep.subr.mxu0 0.0
    %494 = vmatpush1.msra.mxu0 0.0
    %495 = vmatprep.subr.mxu0 0.0
    %496 = vmatpush1.msra.mxu0 0.0
    %497 = vmatprep.subr.mxu0 0.0
    %498 = vmatpush1.msra.mxu0 0.0
    %499 = vmatprep.subr.mxu0 0.0
    %500 = vmatpush1.msra.mxu0 0.0
    %501 = vmatprep.subr.mxu0 0.0
    %502 = vmatpush1.msra.mxu0 0.0
    %503 = vmatprep.subr.mxu0 0.0
    %504 = vmatpush1.msra.mxu0 0.0
    %505 = vmatprep.subr.mxu0 0.0
    %506 = vmatpush1.msra.mxu0 0.0
    %507 = vmatprep.subr.mxu0 0.0
    %508 = vmatpush1.msra.mxu0 0.0
    %509 = vmatprep.subr.mxu0 0.0
    %510 = vmatpush1.msra.mxu0 0.0
    %511 = vmatprep.subr.mxu0 0.0
    %512 = vmatpush1.msra.mxu0 0.0
    %513 = vmatprep.subr.mxu0 0.0
    %514 = vmatpush1.msra.mxu0 0.0
    %515 = vmatprep.subr.mxu0 0.0
    %516 = vmatpush1.msra.mxu0 0.0
    %517 = vmatprep.subr.mxu0 0.0
    %518 = vmatpush1.msra.mxu0 0.0
    %519 = vmatprep.subr.mxu0 0.0
    %520 = vmatpush1.msra.mxu0 0.0
    %521 = vmatprep.subr.mxu0 0.0
    %522 = vmatpush1.msra.mxu0 0.0
    %523 = vmatprep.subr.mxu0 0.0
    %524 = vmatpush1.msra.mxu0 0.0
    %525 = vmatprep.subr.mxu0 0.0
    %526 = vmatpush1.msra.mxu0 0.0
    %527 = vmatprep.subr.mxu0 0.0
    %528 = vmatpush1.msra.mxu0 0.0
    %529 = vmatprep.subr.mxu0 0.0
    %530 = vmatpush1.msra.mxu0 0.0
    %531 = vmatprep.subr.mxu0 0.0
    %532 = vmatpush1.msra.mxu0 0.0
    %533 = vmatprep.subr.mxu0 0.0
    %534 = vmatpush1.msra.mxu0 0.0
    %535 = vmatprep.subr.mxu0 0.0
    %536 = vmatpush1.msra.mxu0 0.0
    %537 = vmatprep.subr.mxu0 0.0
    %538 = vmatpush1.msra.mxu0 0.0
    %539 = vmatprep.subr.mxu0 0.0
    %540 = vmatpush1.msra.mxu0 0.0
    %541 = vmatprep.subr.mxu0 0.0
    %542 = vmatpush1.msra.mxu0 0.0
    %543 = vmatprep.subr.mxu0 0.0
    %544 = vmatpush1.msra.mxu0 0.0
    %545 = vmatprep.subr.mxu0 0.0
    %546 = vmatpush1.msra.mxu0 0.0
    %547 = vmatprep.mubr.f32.mxu0 0.0
    %548 = vmatmul.mubr.f32.gmra.mrb[0].mxu0 %v144
    %v549 = vpop.f32.mrb[0].mxu0
    %v550 = vadd.f32 0.0, %v549
    %v551 = vpop.f32.mrb[0].mxu0
    %552 = vmatprep.mubr.f32.mxu0 0.0
    %553 = vmatmul.mubr.f32.gmra.mrb[0].mxu0 %v147
    %v554 = vpop.f32.mrb[0].mxu0
    %v555 = vadd.f32 0.0, %v554
    %v556 = vpop.f32.mrb[0].mxu0
    %557 = vmatprep.mubr.f32.mxu0 0.0
    %558 = vmatmul.mubr.f32.gmra.mrb[0].mxu0 %v150
    %v559 = vpop.f32.mrb[0].mxu0
    %v560 = vadd.f32 0.0, %v559
    %v561 = vpop.f32.mrb[0].mxu0
    %562 = vmatprep.mubr.f32.mxu0 0.0
    %563 = vmatmul.mubr.f32.gmra.mrb[0].mxu0 %v153
    %v564 = vpop.f32.mrb[0].mxu0
    %v565 = vadd.f32 0.0, %v564
    %v566 = vpop.f32.mrb[0].mxu0
    %567 = vmatprep.mubr.f32.mxu0 0.0
    %568 = vmatmul.mubr.f32.gmra.mrb[0].mxu0 %v156
    %v569 = vpop.f32.mrb[0].mxu0
    %v570 = vadd.f32 0.0, %v569
    %v571 = vpop.f32.mrb[0].mxu0
    %572 = vmatprep.mubr.f32.mxu0 0.0
    %573 = vmatmul.mubr.f32.gmra.mrb[0].mxu0 %v159
    %v574 = vpop.f32.mrb[0].mxu0
    %v575 = vadd.f32 0.0, %v574
    %v576 = vpop.f32.mrb[0].mxu0
    %577 = vmatprep.mubr.f32.mxu0 0.0
    %578 = vmatmul.mubr.f32.gmra.mrb[0].mxu0 %v162
    %v579 = vpop.f32.mrb[0].mxu0
    %v580 = vadd.f32 0.0, %v579
    %v581 = vpop.f32.mrb[0].mxu0
    %582 = vmatprep.mubr.f32.mxu0 0.0
    %583 = vmatmul.mubr.f32.gmra.mrb[0].mxu0 %v165
    %v584 = vpop.f32.mrb[0].mxu0
    %v585 = vadd.f32 0.0, %v584
    %v586 = vpop.f32.mrb[0].mxu0
    %587 = vmatprep.mubr.f32.mxu0 0.0
    %588 = vmatmul.mubr.f32.gmra.mrb[0].mxu0 %v144
    %v589 = vpop.f32.mrb[0].mxu0
    %v590 = vadd.f32 0.0, %v589
    %v591 = vpop.f32.mrb[0].mxu0
    %592 = vmatprep.mubr.f32.mxu0 0.0
    %593 = vmatmul.mubr.f32.gmra.mrb[0].mxu0 %v147
    %v594 = vpop.f32.mrb[0].mxu0
    %v595 = vadd.f32 0.0, %v594
    %v596 = vpop.f32.mrb[0].mxu0
    %597 = vmatprep.mubr.f32.mxu0 0.0
    %598 = vmatmul.mubr.f32.gmra.mrb[0].mxu0 %v150
    %v599 = vpop.f32.mrb[0].mxu0
    %v600 = vadd.f32 0.0, %v599
    %v601 = vpop.f32.mrb[0].mxu0
    %602 = vmatprep.mubr.f32.mxu0 0.0
    %603 = vmatmul.mubr.f32.gmra.mrb[0].mxu0 %v153
    %v604 = vpop.f32.mrb[0].mxu0
    %v605 = vadd.f32 0.0, %v604
    %v606 = vpop.f32.mrb[0].mxu0
    %607 = vmatprep.mubr.f32.mxu0 0.0
    %608 = vmatmul.mubr.f32.gmra.mrb[0].mxu0 %v156
    %v609 = vpop.f32.mrb[0].mxu0
    %v610 = vadd.f32 0.0, %v609
    %v611 = vpop.f32.mrb[0].mxu0
    %612 = vmatprep.mubr.f32.mxu0 0.0
    %613 = vmatmul.mubr.f32.gmra.mrb[0].mxu0 %v159
    %v614 = vpop.f32.mrb[0].mxu0
    %v615 = vadd.f32 0.0, %v614
    %v616 = vpop.f32.mrb[0].mxu0
    %617 = vmatprep.mubr.f32.mxu0 0.0
    %618 = vmatmul.mubr.f32.gmra.mrb[0].mxu0 %v162
    %v619 = vpop.f32.mrb[0].mxu0
    %v620 = vadd.f32 0.0, %v619
    %v621 = vpop.f32.mrb[0].mxu0
    %622 = vmatprep.mubr.f32.mxu0 0.0
    %623 = vmatmul.mubr.f32.gmra.mrb[0].mxu0 %v165
    %v624 = vpop.f32.mrb[0].mxu0
    %v625 = vadd.f32 0.0, %v624
    %v626 = vpop.f32.mrb[0].mxu0
    %627 = vmatprep.mubr.f32.mxu0 0.0
    %628 = vmatmul.mubr.f32.gmra.mrb[0].mxu0 %v168
    %v629 = vpop.f32.mrb[0].mxu0
    %v630 = vadd.f32 0.0, %v629
    %v631 = vpop.f32.mrb[0].mxu0
    %632 = vmatprep.mubr.f32.mxu0 0.0
    %633 = vmatmul.mubr.f32.gmra.mrb[0].mxu0 %v171
    %v634 = vpop.f32.mrb[0].mxu0
    %v635 = vadd.f32 0.0, %v634
    %v636 = vpop.f32.mrb[0].mxu0
    %637 = vmatprep.mubr.f32.mxu0 0.0
    %638 = vmatmul.mubr.f32.gmra.mrb[0].mxu0 %v174
    %v639 = vpop.f32.mrb[0].mxu0
    %v640 = vadd.f32 0.0, %v639
    %v641 = vpop.f32.mrb[0].mxu0
    %642 = vmatprep.mubr.f32.mxu0 0.0
    %643 = vmatmul.mubr.f32.gmra.mrb[0].mxu0 %v177
    %v644 = vpop.f32.mrb[0].mxu0
    %v645 = vadd.f32 0.0, %v644
    %v646 = vpop.f32.mrb[0].mxu0
    %647 = vmatprep.mubr.f32.mxu0 0.0
    %648 = vmatmul.mubr.f32.gmra.mrb[0].mxu0 %v180
    %v649 = vpop.f32.mrb[0].mxu0
    %v650 = vadd.f32 0.0, %v649
    %v651 = vpop.f32.mrb[0].mxu0
    %652 = vmatprep.mubr.f32.mxu0 0.0
    %653 = vmatmul.mubr.f32.gmra.mrb[0].mxu0 %v183
    %v654 = vpop.f32.mrb[0].mxu0
    %v655 = vadd.f32 0.0, %v654
    %v656 = vpop.f32.mrb[0].mxu0
    %657 = vmatprep.mubr.f32.mxu0 0.0
    %658 = vmatmul.mubr.f32.gmra.mrb[0].mxu0 %v186
    %v659 = vpop.f32.mrb[0].mxu0
    %v660 = vadd.f32 0.0, %v659
    %v661 = vpop.f32.mrb[0].mxu0
    %662 = vmatprep.mubr.f32.mxu0 0.0
    %663 = vmatmul.mubr.f32.gmra.mrb[0].mxu0 %v189
    %v664 = vpop.f32.mrb[0].mxu0
    %v665 = vadd.f32 0.0, %v664
    %v666 = vpop.f32.mrb[0].mxu0
    %667 = vmatprep.mubr.f32.mxu0 0.0
    %668 = vmatmul.mubr.f32.gmra.mrb[0].mxu0 %v192
    %v669 = vpop.f32.mrb[0].mxu0
    %v670 = vadd.f32 0.0, %v669
    %v671 = vpop.f32.mrb[0].mxu0
    %672 = vmatprep.mubr.f32.mxu0 0.0
    %673 = vmatmul.mubr.f32.gmra.mrb[0].mxu0 %v195
    %v674 = vpop.f32.mrb[0].mxu0
    %v675 = vadd.f32 0.0, %v674
    %v676 = vpop.f32.mrb[0].mxu0
    %677 = vmatprep.mubr.f32.mxu0 0.0
    %678 = vmatmul.mubr.f32.gmra.mrb[0].mxu0 %v198
    %v679 = vpop.f32.mrb[0].mxu0
    %v680 = vadd.f32 0.0, %v679
    %v681 = vpop.f32.mrb[0].mxu0
    %682 = vmatprep.mubr.f32.mxu0 0.0
    %683 = vmatmul.mubr.f32.gmra.mrb[0].mxu0 %v201
    %v684 = vpop.f32.mrb[0].mxu0
    %v685 = vadd.f32 0.0, %v684
    %v686 = vpop.f32.mrb[0].mxu0
    %687 = vmatprep.mubr.f32.mxu0 0.0
    %688 = vmatmul.mubr.f32.gmra.mrb[0].mxu0 %v204
    %v689 = vpop.f32.mrb[0].mxu0
    %v690 = vadd.f32 0.0, %v689
    %v691 = vpop.f32.mrb[0].mxu0
    %692 = vmatprep.mubr.f32.mxu0 0.0
    %693 = vmatmul.mubr.f32.gmra.mrb[0].mxu0 %v207
    %v694 = vpop.f32.mrb[0].mxu0
    %v695 = vadd.f32 0.0, %v694
    %v696 = vpop.f32.mrb[0].mxu0
    %697 = vmatprep.mubr.f32.mxu0 0.0
    %698 = vmatmul.mubr.f32.gmra.mrb[0].mxu0 %v210
    %v699 = vpop.f32.mrb[0].mxu0
    %v700 = vadd.f32 0.0, %v699
    %v701 = vpop.f32.mrb[0].mxu0
    %702 = vmatprep.mubr.f32.mxu0 0.0
    %703 = vmatmul.mubr.f32.gmra.mrb[0].mxu0 %v213
    %v704 = vpop.f32.mrb[0].mxu0
    %v705 = vadd.f32 0.0, %v704
    %v706 = vpop.f32.mrb[0].mxu0
    %707 = vmatprep.mubr.f32.mxu0 0.0
    %708 = vmatmul.mubr.f32.gmra.mrb[0].mxu0 %v216
    %v709 = vpop.f32.mrb[0].mxu0
    %v710 = vadd.f32 0.0, %v709
    %v711 = vpop.f32.mrb[0].mxu0
    %712 = vmatprep.mubr.f32.mxu0 0.0
    %713 = vmatmul.mubr.f32.gmra.mrb[0].mxu0 %v219
    %v714 = vpop.f32.mrb[0].mxu0
    %v715 = vadd.f32 0.0, %v714
    %v716 = vpop.f32.mrb[0].mxu0
    %717 = vmatprep.mubr.f32.mxu0 0.0
    %718 = vmatmul.mubr.f32.gmra.mrb[0].mxu0 %v222
    %v719 = vpop.f32.mrb[0].mxu0
    %v720 = vadd.f32 0.0, %v719
    %v721 = vpop.f32.mrb[0].mxu0
    %722 = vmatprep.mubr.f32.mxu0 0.0
    %723 = vmatmul.mubr.f32.gmra.mrb[0].mxu0 %v225
    %v724 = vpop.f32.mrb[0].mxu0
    %v725 = vadd.f32 0.0, %v724
    %v726 = vpop.f32.mrb[0].mxu0
    %727 = vmatprep.mubr.f32.mxu0 0.0
    %728 = vmatmul.mubr.f32.gmra.mrb[0].mxu0 %v228
    %v729 = vpop.f32.mrb[0].mxu0
    %v730 = vadd.f32 0.0, %v729
    %v731 = vpop.f32.mrb[0].mxu0
    %732 = vmatprep.mubr.f32.mxu0 0.0
    %733 = vmatmul.mubr.f32.gmra.mrb[0].mxu0 %v231
    %v734 = vpop.f32.mrb[0].mxu0
    %v735 = vadd.f32 0.0, %v734
    %v736 = vpop.f32.mrb[0].mxu0
    %737 = vmatprep.mubr.f32.mxu0 0.0
    %738 = vmatmul.mubr.f32.gmra.mrb[0].mxu0 %v234
    %v739 = vpop.f32.mrb[0].mxu0
    %v740 = vadd.f32 0.0, %v739
    %v741 = vpop.f32.mrb[0].mxu0
    %742 = vmatprep.mubr.f32.mxu0 0.0
    %743 = vmatmul.mubr.f32.gmra.mrb[0].mxu0 %v237
    %v744 = vpop.f32.mrb[0].mxu0
    %v745 = vadd.f32 0.0, %v744
    %v746 = vpop.f32.mrb[0].mxu0
    %747 = vmatprep.mubr.f32.mxu0 0.0
    %748 = vmatmul.mubr.f32.gmra.mrb[0].mxu0 %v240
    %v749 = vpop.f32.mrb[0].mxu0
    %v750 = vadd.f32 0.0, %v749
    %v751 = vpop.f32.mrb[0].mxu0
    %752 = vmatprep.mubr.f32.mxu0 0.0
    %753 = vmatmul.mubr.f32.gmra.mrb[0].mxu0 %v243
    %v754 = vpop.f32.mrb[0].mxu0
    %v755 = vadd.f32 0.0, %v754
    %v756 = vpop.f32.mrb[0].mxu0
    %757 = vmatprep.mubr.f32.mxu0 0.0
    %758 = vmatmul.mubr.f32.gmra.mrb[0].mxu0 %v246
    %v759 = vpop.f32.mrb[0].mxu0
    %v760 = vadd.f32 0.0, %v759
    %v761 = vpop.f32.mrb[0].mxu0
    %762 = vmatprep.mubr.f32.mxu0 0.0
    %763 = vmatmul.mubr.f32.gmra.mrb[0].mxu0 %v249
    %v764 = vpop.f32.mrb[0].mxu0
    %v765 = vadd.f32 0.0, %v764
    %v766 = vpop.f32.mrb[0].mxu0
    %767 = vmatprep.mubr.f32.mxu0 0.0
    %768 = vmatmul.mubr.f32.gmra.mrb[0].mxu0 %v252
    %v769 = vpop.f32.mrb[0].mxu0
    %v770 = vadd.f32 0.0, %v769
    %v771 = vpop.f32.mrb[0].mxu0
    %772 = vmatprep.mubr.f32.mxu0 0.0
    %773 = vmatmul.mubr.f32.gmra.mrb[0].mxu0 %v255
    %v774 = vpop.f32.mrb[0].mxu0
    %v775 = vadd.f32 0.0, %v774
    %v776 = vpop.f32.mrb[0].mxu0
    %777 = vmatprep.mubr.f32.mxu0 0.0
    %778 = vmatmul.mubr.f32.gmra.mrb[0].mxu0 %v258
    %v779 = vpop.f32.mrb[0].mxu0
    %v780 = vadd.f32 0.0, %v779
    %v781 = vpop.f32.mrb[0].mxu0
    %782 = vmatprep.mubr.f32.mxu0 0.0
    %783 = vmatmul.mubr.f32.gmra.mrb[0].mxu0 %v261
    %v784 = vpop.f32.mrb[0].mxu0
    %v785 = vadd.f32 0.0, %v784
    %v786 = vpop.f32.mrb[0].mxu0
    %787 = vmatprep.mubr.f32.mxu0 0.0
    %788 = vmatmul.mubr.f32.gmra.mrb[0].mxu0 %v264
    %v789 = vpop.f32.mrb[0].mxu0
    %v790 = vadd.f32 0.0, %v789
    %v791 = vpop.f32.mrb[0].mxu0
    %792 = vmatprep.mubr.f32.mxu0 0.0
    %793 = vmatmul.mubr.f32.gmra.mrb[0].mxu0 %v267
    %v794 = vpop.f32.mrb[0].mxu0
    %v795 = vadd.f32 0.0, %v794
    %v796 = vpop.f32.mrb[0].mxu0
    %797 = vmatprep.mubr.f32.mxu0 0.0
    %798 = vmatmul.mubr.f32.gmra.mrb[0].mxu0 %v270
    %v799 = vpop.f32.mrb[0].mxu0
    %v800 = vadd.f32 0.0, %v799
    %v801 = vpop.f32.mrb[0].mxu0
    %802 = vmatprep.mubr.f32.mxu0 0.0
    %803 = vmatmul.mubr.f32.gmra.mrb[0].mxu0 %v273
    %v804 = vpop.f32.mrb[0].mxu0
    %v805 = vadd.f32 0.0, %v804
    %v806 = vpop.f32.mrb[0].mxu0
    %807 = vmatprep.mubr.f32.mxu0 0.0
    %808 = vmatmul.mubr.f32.gmra.mrb[0].mxu0 %v276
    %v809 = vpop.f32.mrb[0].mxu0
    %v810 = vadd.f32 0.0, %v809
    %v811 = vpop.f32.mrb[0].mxu0
    %812 = vmatprep.mubr.f32.mxu0 0.0
    %813 = vmatmul.mubr.f32.gmra.mrb[0].mxu0 %v279
    %v814 = vpop.f32.mrb[0].mxu0
    %v815 = vadd.f32 0.0, %v814
    %v816 = vpop.f32.mrb[0].mxu0
    %817 = vmatprep.mubr.f32.mxu0 0.0
    %818 = vmatmul.mubr.f32.gmra.mrb[0].mxu0 %v282
    %v819 = vpop.f32.mrb[0].mxu0
    %v820 = vadd.f32 0.0, %v819
    %v821 = vpop.f32.mrb[0].mxu0
    %822 = vmatprep.mubr.f32.mxu0 0.0
    %823 = vmatmul.mubr.f32.gmra.mrb[0].mxu0 %v285
    %v824 = vpop.f32.mrb[0].mxu0
    %v825 = vadd.f32 0.0, %v824
    %v826 = vpop.f32.mrb[0].mxu0
    %827 = vmatprep.mubr.f32.mxu0 0.0
    %828 = vmatmul.mubr.f32.gmra.mrb[0].mxu0 %v288
    %v829 = vpop.f32.mrb[0].mxu0
    %v830 = vadd.f32 0.0, %v829
    %v831 = vpop.f32.mrb[0].mxu0
    %832 = vmatprep.mubr.f32.mxu0 0.0
    %833 = vmatmul.mubr.f32.gmra.mrb[0].mxu0 %v291
    %v834 = vpop.f32.mrb[0].mxu0
    %v835 = vadd.f32 0.0, %v834
    %v836 = vpop.f32.mrb[0].mxu0
    %837 = vmatprep.mubr.f32.mxu0 0.0
    %838 = vmatmul.mubr.f32.gmra.mrb[0].mxu0 %v294
    %v839 = vpop.f32.mrb[0].mxu0
    %v840 = vadd.f32 0.0, %v839
    %v841 = vpop.f32.mrb[0].mxu0
    %842 = vmatprep.mubr.f32.mxu0 0.0
    %843 = vmatmul.mubr.f32.gmra.mrb[0].mxu0 %v297
    %v844 = vpop.f32.mrb[0].mxu0
    %v845 = vadd.f32 0.0, %v844
    %v846 = vpop.f32.mrb[0].mxu0
    %847 = vmatprep.mubr.f32.mxu0 0.0
    %848 = vmatmul.mubr.f32.gmra.mrb[0].mxu0 %v300
    %v849 = vpop.f32.mrb[0].mxu0
    %v850 = vadd.f32 0.0, %v849
    %v851 = vpop.f32.mrb[0].mxu0
    %852 = vmatprep.mubr.f32.mxu0 0.0
    %853 = vmatmul.mubr.f32.gmra.mrb[0].mxu0 %v303
    %v854 = vpop.f32.mrb[0].mxu0
    %v855 = vadd.f32 0.0, %v854
    %v856 = vpop.f32.mrb[0].mxu0
    %857 = vmatprep.mubr.f32.mxu0 0.0
    %858 = vmatmul.mubr.f32.gmra.mrb[0].mxu0 %v306
    %v859 = vpop.f32.mrb[0].mxu0
    %v860 = vadd.f32 0.0, %v859
    %v861 = vpop.f32.mrb[0].mxu0
    %862 = vmatprep.mubr.f32.mxu0 0.0
    %863 = vmatmul.mubr.f32.gmra.mrb[0].mxu0 %v309
    %v864 = vpop.f32.mrb[0].mxu0
    %v865 = vadd.f32 0.0, %v864
    %v866 = vpop.f32.mrb[0].mxu0
    %867 = vmatprep.mubr.f32.mxu0 0.0
    %868 = vmatmul.mubr.f32.gmra.mrb[0].mxu0 %v312
    %v869 = vpop.f32.mrb[0].mxu0
    %v870 = vadd.f32 0.0, %v869
    %v871 = vpop.f32.mrb[0].mxu0
    %872 = vmatprep.mubr.f32.mxu0 0.0
    %873 = vmatmul.mubr.f32.gmra.mrb[0].mxu0 %v315
    %v874 = vpop.f32.mrb[0].mxu0
    %v875 = vadd.f32 0.0, %v874
    %v876 = vpop.f32.mrb[0].mxu0
    %877 = vmatprep.mubr.f32.mxu0 0.0
    %878 = vmatmul.mubr.f32.gmra.mrb[0].mxu0 %v318
    %v879 = vpop.f32.mrb[0].mxu0
    %v880 = vadd.f32 0.0, %v879
    %v881 = vpop.f32.mrb[0].mxu0
    %882 = vmatprep.mubr.f32.mxu0 0.0
    %883 = vmatmul.mubr.f32.gmra.mrb[0].mxu0 %v321
    %v884 = vpop.f32.mrb[0].mxu0
    %v885 = vadd.f32 0.0, %v884
    %v886 = vpop.f32.mrb[0].mxu0
    %887 = vmatprep.mubr.f32.mxu0 0.0
    %888 = vmatmul.mubr.f32.gmra.mrb[0].mxu0 %v324
    %v889 = vpop.f32.mrb[0].mxu0
    %v890 = vadd.f32 0.0, %v889
    %v891 = vpop.f32.mrb[0].mxu0
    %892 = vmatprep.mubr.f32.mxu0 0.0
    %893 = vmatmul.mubr.f32.gmra.mrb[0].mxu0 %v327
    %v894 = vpop.f32.mrb[0].mxu0
    %v895 = vadd.f32 0.0, %v894
    %v896 = vpop.f32.mrb[0].mxu0
    %897 = vmatprep.mubr.f32.mxu0 0.0
    %898 = vmatmul.mubr.f32.gmra.mrb[0].mxu0 %v330
    %v899 = vpop.f32.mrb[0].mxu0
    %v900 = vadd.f32 0.0, %v899
    %v901 = vpop.f32.mrb[0].mxu0
    %902 = vmatprep.mubr.f32.mxu0 0.0
    %903 = vmatmul.mubr.f32.gmra.mrb[0].mxu0 %v333
    %v904 = vpop.f32.mrb[0].mxu0
    %v905 = vadd.f32 0.0, %v904
    %v906 = vpop.f32.mrb[0].mxu0
    %907 = vmatprep.mubr.f32.mxu0 0.0
    %908 = vmatmul.mubr.f32.gmra.mrb[0].mxu0 %v312
    %v909 = vpop.f32.mrb[0].mxu0
    %v910 = vadd.f32 0.0, %v909
    %v911 = vpop.f32.mrb[0].mxu0
    %912 = vmatprep.mubr.f32.mxu0 0.0
    %913 = vmatmul.mubr.f32.gmra.mrb[0].mxu0 %v315
    %v914 = vpop.f32.mrb[0].mxu0
    %v915 = vadd.f32 0.0, %v914
    %v916 = vpop.f32.mrb[0].mxu0
    %917 = vmatprep.mubr.f32.mxu0 0.0
    %918 = vmatmul.mubr.f32.gmra.mrb[0].mxu0 %v318
    %v919 = vpop.f32.mrb[0].mxu0
    %v920 = vadd.f32 0.0, %v919
    %v921 = vpop.f32.mrb[0].mxu0
    %922 = vmatprep.mubr.f32.mxu0 0.0
    %923 = vmatmul.mubr.f32.gmra.mrb[0].mxu0 %v321
    %v924 = vpop.f32.mrb[0].mxu0
    %v925 = vadd.f32 0.0, %v924
    %v926 = vpop.f32.mrb[0].mxu0
    %927 = vmatprep.mubr.f32.mxu0 0.0
    %928 = vmatmul.mubr.f32.gmra.mrb[0].mxu0 %v324
    %v929 = vpop.f32.mrb[0].mxu0
    %v930 = vadd.f32 0.0, %v929
    %v931 = vpop.f32.mrb[0].mxu0
    %932 = vmatprep.mubr.f32.mxu0 0.0
    %933 = vmatmul.mubr.f32.gmra.mrb[0].mxu0 %v327
    %v934 = vpop.f32.mrb[0].mxu0
    %v935 = vadd.f32 0.0, %v934
    %v936 = vpop.f32.mrb[0].mxu0
    %937 = vmatprep.mubr.f32.mxu0 0.0
    %938 = vmatmul.mubr.f32.gmra.mrb[0].mxu0 %v330
    %v939 = vpop.f32.mrb[0].mxu0
    %v940 = vadd.f32 0.0, %v939
    %v941 = vpop.f32.mrb[0].mxu0
    %942 = vmatprep.mubr.f32.mxu0 0.0
    %943 = vmatmul.mubr.f32.gmra.mrb[0].mxu0 %v333
    %v944 = vpop.f32.mrb[0].mxu0
    %v945 = vadd.f32 0.0, %v944
    %v946 = vpop.f32.mrb[0].mxu0
    %947 = vmatprep.mubr.f32.mxu0 0.0
    %948 = vmatmul.mubr.f32.gmra.mrb[0].mxu0 %v336
    %v949 = vpop.f32.mrb[0].mxu0
    %v950 = vadd.f32 0.0, %v949
    %v951 = vpop.f32.mrb[0].mxu0
    %952 = vmatprep.mubr.f32.mxu0 0.0
    %953 = vmatmul.mubr.f32.gmra.mrb[0].mxu0 %v339
    %v954 = vpop.f32.mrb[0].mxu0
    %v955 = vadd.f32 0.0, %v954
    %v956 = vpop.f32.mrb[0].mxu0
    %957 = vmatprep.mubr.f32.mxu0 0.0
    %958 = vmatmul.mubr.f32.gmra.mrb[0].mxu0 %v342
    %v959 = vpop.f32.mrb[0].mxu0
    %v960 = vadd.f32 0.0, %v959
    %v961 = vpop.f32.mrb[0].mxu0
    %962 = vmatprep.mubr.f32.mxu0 0.0
    %963 = vmatmul.mubr.f32.gmra.mrb[0].mxu0 %v345
    %v964 = vpop.f32.mrb[0].mxu0
    %v965 = vadd.f32 0.0, %v964
    %v966 = vpop.f32.mrb[0].mxu0
    %967 = vmatprep.mubr.f32.mxu0 0.0
    %968 = vmatmul.mubr.f32.gmra.mrb[0].mxu0 %v348
    %v969 = vpop.f32.mrb[0].mxu0
    %v970 = vadd.f32 0.0, %v969
    %v971 = vpop.f32.mrb[0].mxu0
    %972 = vmatprep.mubr.f32.mxu0 0.0
    %973 = vmatmul.mubr.f32.gmra.mrb[0].mxu0 %v351
    %v974 = vpop.f32.mrb[0].mxu0
    %v975 = vadd.f32 0.0, %v974
    %v976 = vpop.f32.mrb[0].mxu0
    %977 = vmatprep.mubr.f32.mxu0 0.0
    %978 = vmatmul.mubr.f32.gmra.mrb[0].mxu0 %v354
    %v979 = vpop.f32.mrb[0].mxu0
    %v980 = vadd.f32 0.0, %v979
    %v981 = vpop.f32.mrb[0].mxu0
    %982 = vmatprep.mubr.f32.mxu0 0.0
    %983 = vmatmul.mubr.f32.gmra.mrb[0].mxu0 %v357
    %v984 = vpop.f32.mrb[0].mxu0
    %v985 = vadd.f32 0.0, %v984
    %v986 = vpop.f32.mrb[0].mxu0
    %987 = vmatprep.mubr.f32.mxu0 0.0
    %988 = vmatmul.mubr.f32.gmra.mrb[0].mxu0 %v360
    %v989 = vpop.f32.mrb[0].mxu0
    %v990 = vadd.f32 0.0, %v989
    %v991 = vpop.f32.mrb[0].mxu0
    %992 = vmatprep.mubr.f32.mxu0 0.0
    %993 = vmatmul.mubr.f32.gmra.mrb[0].mxu0 %v363
    %v994 = vpop.f32.mrb[0].mxu0
    %v995 = vadd.f32 0.0, %v994
    %v996 = vpop.f32.mrb[0].mxu0
    %997 = vmatprep.mubr.f32.mxu0 0.0
    %998 = vmatmul.mubr.f32.gmra.mrb[0].mxu0 %v366
    %v999 = vpop.f32.mrb[0].mxu0
    %v1000 = vadd.f32 0.0, %v999
    %v1001 = vpop.f32.mrb[0].mxu0
    %1002 = vmatprep.mubr.f32.mxu0 0.0
    %1003 = vmatmul.mubr.f32.gmra.mrb[0].mxu0 %v369
    %v1004 = vpop.f32.mrb[0].mxu0
    %v1005 = vadd.f32 0.0, %v1004
    %v1006 = vpop.f32.mrb[0].mxu0
    %1007 = vmatprep.mubr.f32.mxu0 0.0
    %1008 = vmatmul.mubr.f32.gmra.mrb[0].mxu0 %v372
    %v1009 = vpop.f32.mrb[0].mxu0
    %v1010 = vadd.f32 0.0, %v1009
    %v1011 = vpop.f32.mrb[0].mxu0
    %1012 = vmatprep.mubr.f32.mxu0 0.0
    %1013 = vmatmul.mubr.f32.gmra.mrb[0].mxu0 %v375
    %v1014 = vpop.f32.mrb[0].mxu0
    %v1015 = vadd.f32 0.0, %v1014
    %v1016 = vpop.f32.mrb[0].mxu0
    %1017 = vmatprep.mubr.f32.mxu0 0.0
    %1018 = vmatmul.mubr.f32.gmra.mrb[0].mxu0 %v378
    %v1019 = vpop.f32.mrb[0].mxu0
    %v1020 = vadd.f32 0.0, %v1019
    %v1021 = vpop.f32.mrb[0].mxu0
    %1022 = vmatprep.mubr.f32.mxu0 0.0
    %1023 = vmatmul.mubr.f32.gmra.mrb[0].mxu0 %v381
    %v1024 = vpop.f32.mrb[0].mxu0
    %v1025 = vadd.f32 0.0, %v1024
    %v1026 = vpop.f32.mrb[0].mxu0
    %1027 = vmatprep.mubr.f32.mxu0 0.0
    %1028 = vmatmul.mubr.f32.gmra.mrb[0].mxu0 %v384
    %v1029 = vpop.f32.mrb[0].mxu0
    %v1030 = vadd.f32 0.0, %v1029
    %v1031 = vpop.f32.mrb[0].mxu0
    %1032 = vmatprep.mubr.f32.mxu0 0.0
    %1033 = vmatmul.mubr.f32.gmra.mrb[0].mxu0 %v387
    %v1034 = vpop.f32.mrb[0].mxu0
    %v1035 = vadd.f32 0.0, %v1034
    %v1036 = vpop.f32.mrb[0].mxu0
    %1037 = vmatprep.mubr.f32.mxu0 0.0
    %1038 = vmatmul.mubr.f32.gmra.mrb[0].mxu0 %v390
    %v1039 = vpop.f32.mrb[0].mxu0
    %v1040 = vadd.f32 0.0, %v1039
    %v1041 = vpop.f32.mrb[0].mxu0
    %1042 = vmatprep.mubr.f32.mxu0 0.0
    %1043 = vmatmul.mubr.f32.gmra.mrb[0].mxu0 %v393
    %v1044 = vpop.f32.mrb[0].mxu0
    %v1045 = vadd.f32 0.0, %v1044
    %v1046 = vpop.f32.mrb[0].mxu0
    %1047 = vmatprep.mubr.f32.mxu0 0.0
    %1048 = vmatmul.mubr.f32.gmra.mrb[0].mxu0 %v396
    %v1049 = vpop.f32.mrb[0].mxu0
    %v1050 = vadd.f32 0.0, %v1049
    %v1051 = vpop.f32.mrb[0].mxu0
    %1052 = vmatprep.mubr.f32.mxu0 0.0
    %1053 = vmatmul.mubr.f32.gmra.mrb[0].mxu0 %v399
    %v1054 = vpop.f32.mrb[0].mxu0
    %v1055 = vadd.f32 0.0, %v1054
    %v1056 = vpop.f32.mrb[0].mxu0
    %1057 = vmatprep.mubr.f32.mxu0 0.0
    %1058 = vmatmul.mubr.f32.gmra.mrb[0].mxu0 %v402
    %v1059 = vpop.f32.mrb[0].mxu0
    %v1060 = vadd.f32 0.0, %v1059
    %v1061 = vpop.f32.mrb[0].mxu0
    %1062 = vmatprep.mubr.f32.mxu0 0.0
    %1063 = vmatmul.mubr.f32.gmra.mrb[0].mxu0 %v405
    %v1064 = vpop.f32.mrb[0].mxu0
    %v1065 = vadd.f32 0.0, %v1064
    %v1066 = vpop.f32.mrb[0].mxu0
    %1067 = vmatprep.mubr.f32.mxu0 0.0
    %1068 = vmatmul.mubr.f32.gmra.mrb[0].mxu0 %v408
    %v1069 = vpop.f32.mrb[0].mxu0
    %v1070 = vadd.f32 0.0, %v1069
    %v1071 = vpop.f32.mrb[0].mxu0
    %1072 = vmatprep.mubr.f32.mxu0 0.0
    %1073 = vmatmul.mubr.f32.gmra.mrb[0].mxu0 %v411
    %v1074 = vpop.f32.mrb[0].mxu0
    %v1075 = vadd.f32 0.0, %v1074
    %v1076 = vpop.f32.mrb[0].mxu0
    %1077 = vmatprep.mubr.f32.mxu0 0.0
    %1078 = vmatmul.mubr.f32.gmra.mrb[0].mxu0 %v414
    %v1079 = vpop.f32.mrb[0].mxu0
    %v1080 = vadd.f32 0.0, %v1079
    %v1081 = vpop.f32.mrb[0].mxu0
    %1082 = vmatprep.mubr.f32.mxu0 0.0
    %1083 = vmatmul.mubr.f32.gmra.mrb[0].mxu0 %v417
    %v1084 = vpop.f32.mrb[0].mxu0
    %v1085 = vadd.f32 0.0, %v1084
    %v1086 = vpop.f32.mrb[0].mxu0
    %1087 = vmatprep.mubr.f32.mxu0 0.0
    %1088 = vmatmul.mubr.f32.gmra.mrb[0].mxu0 %v420
    %v1089 = vpop.f32.mrb[0].mxu0
    %v1090 = vadd.f32 0.0, %v1089
    %v1091 = vpop.f32.mrb[0].mxu0
    %1092 = vmatprep.mubr.f32.mxu0 0.0
    %1093 = vmatmul.mubr.f32.gmra.mrb[0].mxu0 %v423
    %v1094 = vpop.f32.mrb[0].mxu0
    %v1095 = vadd.f32 0.0, %v1094
    %v1096 = vpop.f32.mrb[0].mxu0
    %1097 = vmatprep.mubr.f32.mxu0 0.0
    %1098 = vmatmul.mubr.f32.gmra.mrb[0].mxu0 %v426
    %v1099 = vpop.f32.mrb[0].mxu0
    %v1100 = vadd.f32 0.0, %v1099
    %v1101 = vpop.f32.mrb[0].mxu0
    %1102 = vmatprep.mubr.f32.mxu0 0.0
    %1103 = vmatmul.mubr.f32.gmra.mrb[0].mxu0 %v429
    %v1104 = vpop.f32.mrb[0].mxu0
    %v1105 = vadd.f32 0.0, %v1104
    %v1106 = vpop.f32.mrb[0].mxu0
    %1107 = vmatprep.mubr.f32.mxu0 0.0
    %1108 = vmatmul.mubr.f32.gmra.mrb[0].mxu0 %v432
    %v1109 = vpop.f32.mrb[0].mxu0
    %v1110 = vadd.f32 0.0, %v1109
    %v1111 = vpop.f32.mrb[0].mxu0
    %1112 = vmatprep.mubr.f32.mxu0 0.0
    %1113 = vmatmul.mubr.f32.gmra.mrb[0].mxu0 %v435
    %v1114 = vpop.f32.mrb[0].mxu0
    %v1115 = vadd.f32 0.0, %v1114
    %v1116 = vpop.f32.mrb[0].mxu0
    %1117 = vmatprep.mubr.f32.mxu0 0.0
    %1118 = vmatmul.mubr.f32.gmra.mrb[0].mxu0 %v438
    %v1119 = vpop.f32.mrb[0].mxu0
    %v1120 = vadd.f32 0.0, %v1119
    %v1121 = vpop.f32.mrb[0].mxu0
    %1122 = vmatprep.mubr.f32.mxu0 0.0
    %1123 = vmatmul.mubr.f32.gmra.mrb[0].mxu0 %v441
    %v1124 = vpop.f32.mrb[0].mxu0
    %v1125 = vadd.f32 0.0, %v1124
    %v1126 = vpop.f32.mrb[0].mxu0
    %1127 = vmatprep.mubr.f32.mxu0 0.0
    %1128 = vmatmul.mubr.f32.gmra.mrb[0].mxu0 %v444
    %v1129 = vpop.f32.mrb[0].mxu0
    %v1130 = vadd.f32 0.0, %v1129
    %v1131 = vpop.f32.mrb[0].mxu0
    %1132 = vmatprep.mubr.f32.mxu0 0.0
    %1133 = vmatmul.mubr.f32.gmra.mrb[0].mxu0 %v447
    %v1134 = vpop.f32.mrb[0].mxu0
    %v1135 = vadd.f32 0.0, %v1134
    %v1136 = vpop.f32.mrb[0].mxu0
    %1137 = vmatprep.mubr.f32.mxu0 0.0
    %1138 = vmatmul.mubr.f32.gmra.mrb[0].mxu0 %v450
    %v1139 = vpop.f32.mrb[0].mxu0
    %v1140 = vadd.f32 0.0, %v1139
    %v1141 = vpop.f32.mrb[0].mxu0
    %1142 = vmatprep.mubr.f32.mxu0 0.0
    %1143 = vmatmul.mubr.f32.gmra.mrb[0].mxu0 %v453
    %v1144 = vpop.f32.mrb[0].mxu0
    %v1145 = vadd.f32 0.0, %v1144
    %v1146 = vpop.f32.mrb[0].mxu0
    %1147 = vmatprep.mubr.f32.mxu0 0.0
    %1148 = vmatmul.mubr.f32.gmra.mrb[0].mxu0 %v456
    %v1149 = vpop.f32.mrb[0].mxu0
    %v1150 = vadd.f32 0.0, %v1149
    %v1151 = vpop.f32.mrb[0].mxu0
    %1152 = vmatprep.mubr.f32.mxu0 0.0
    %1153 = vmatmul.mubr.f32.gmra.mrb[0].mxu0 %v459
    %v1154 = vpop.f32.mrb[0].mxu0
    %v1155 = vadd.f32 0.0, %v1154
    %v1156 = vpop.f32.mrb[0].mxu0
    %1157 = vmatprep.mubr.f32.mxu0 0.0
    %1158 = vmatmul.mubr.f32.gmra.mrb[0].mxu0 %v462
    %v1159 = vpop.f32.mrb[0].mxu0
    %v1160 = vadd.f32 0.0, %v1159
    %v1161 = vpop.f32.mrb[0].mxu0
    %1162 = vmatprep.mubr.f32.mxu0 0.0
    %1163 = vmatmul.mubr.f32.gmra.mrb[0].mxu0 %v465
    %v1164 = vpop.f32.mrb[0].mxu0
    %v1165 = vadd.f32 0.0, %v1164
    %v1166 = vpop.f32.mrb[0].mxu0
    %1167 = vmatprep.mubr.f32.mxu0 0.0
    %1168 = vmatmul.mubr.f32.gmra.mrb[0].mxu0 %v468
    %v1169 = vpop.f32.mrb[0].mxu0
    %v1170 = vadd.f32 0.0, %v1169
    %v1171 = vpop.f32.mrb[0].mxu0
    %1172 = vmatprep.mubr.f32.mxu0 0.0
    %1173 = vmatmul.mubr.f32.gmra.mrb[0].mxu0 %v471
    %v1174 = vpop.f32.mrb[0].mxu0
    %v1175 = vadd.f32 0.0, %v1174
    %v1176 = vpop.f32.mrb[0].mxu0
    %1177 = vmatprep.mubr.f32.mxu0 0.0
    %1178 = vmatmul.mubr.f32.gmra.mrb[0].mxu0 %v474
    %v1179 = vpop.f32.mrb[0].mxu0
    %v1180 = vadd.f32 0.0, %v1179
    %v1181 = vpop.f32.mrb[0].mxu0
    %1182 = vmatprep.mubr.f32.mxu0 0.0
    %1183 = vmatmul.mubr.f32.gmra.mrb[0].mxu0 %v477
    %v1184 = vpop.f32.mrb[0].mxu0
    %v1185 = vadd.f32 0.0, %v1184
    %v1186 = vpop.f32.mrb[0].mxu0
    %1187 = vdwg.mxu0
    %v1189 = vsel %vm479, %v140, 0
    %1191 = vmatprep.subr.mxu0 0.0
    %1192 = vmatpush1.msra.mxu0 %v1189
    %1193 = vmatprep.subr.mxu0 0.0
    %1194 = vmatpush1.msra.mxu0 0.0
    %1195 = vmatprep.subr.mxu0 0.0
    %1196 = vmatpush1.msra.mxu0 0.0
    %1197 = vmatprep.subr.mxu0 0.0
    %1198 = vmatpush1.msra.mxu0 0.0
    %1199 = vmatprep.subr.mxu0 0.0
    %1200 = vmatpush1.msra.mxu0 0.0
    %1201 = vmatprep.subr.mxu0 0.0
    %1202 = vmatpush1.msra.mxu0 0.0
    %1203 = vmatprep.subr.mxu0 0.0
    %1204 = vmatpush1.msra.mxu0 0.0
    %1205 = vmatprep.subr.mxu0 0.0
    %1206 = vmatpush1.msra.mxu0 0.0
    %1207 = vmatprep.subr.mxu0 0.0
    %1208 = vmatpush1.msra.mxu0 0.0
    %1209 = vmatprep.subr.mxu0 0.0
    %1210 = vmatpush1.msra.mxu0 0.0
    %1211 = vmatprep.subr.mxu0 0.0
    %1212 = vmatpush1.msra.mxu0 0.0
    %1213 = vmatprep.subr.mxu0 0.0
    %1214 = vmatpush1.msra.mxu0 0.0
    %1215 = vmatprep.subr.mxu0 0.0
    %1216 = vmatpush1.msra.mxu0 0.0
    %1217 = vmatprep.subr.mxu0 0.0
    %1218 = vmatpush1.msra.mxu0 0.0
    %1219 = vmatprep.subr.mxu0 0.0
    %1220 = vmatpush1.msra.mxu0 0.0
    %1221 = vmatprep.subr.mxu0 0.0
    %1222 = vmatpush1.msra.mxu0 0.0
    %1223 = vmatprep.subr.mxu0 0.0
    %1224 = vmatpush1.msra.mxu0 0.0
    %1225 = vmatprep.subr.mxu0 0.0
    %1226 = vmatpush1.msra.mxu0 0.0
    %1227 = vmatprep.subr.mxu0 0.0
    %1228 = vmatpush1.msra.mxu0 0.0
    %1229 = vmatprep.subr.mxu0 0.0
    %1230 = vmatpush1.msra.mxu0 0.0
    %1231 = vmatprep.subr.mxu0 0.0
    %1232 = vmatpush1.msra.mxu0 0.0
    %1233 = vmatprep.subr.mxu0 0.0
    %1234 = vmatpush1.msra.mxu0 0.0
    %1235 = vmatprep.subr.mxu0 0.0
    %1236 = vmatpush1.msra.mxu0 0.0
    %1237 = vmatprep.subr.mxu0 0.0
    %1238 = vmatpush1.msra.mxu0 0.0
    %1239 = vmatprep.subr.mxu0 0.0
    %1240 = vmatpush1.msra.mxu0 0.0
    %1241 = vmatprep.subr.mxu0 0.0
    %1242 = vmatpush1.msra.mxu0 0.0
    %1243 = vmatprep.subr.mxu0 0.0
    %1244 = vmatpush1.msra.mxu0 0.0
    %1245 = vmatprep.subr.mxu0 0.0
    %1246 = vmatpush1.msra.mxu0 0.0
    %1247 = vmatprep.subr.mxu0 0.0
    %1248 = vmatpush1.msra.mxu0 0.0
    %1249 = vmatprep.subr.mxu0 0.0
    %1250 = vmatpush1.msra.mxu0 0.0
    %1251 = vmatprep.subr.mxu0 0.0
    %1252 = vmatpush1.msra.mxu0 0.0
    %1253 = vmatprep.subr.mxu0 0.0
    %1254 = vmatpush1.msra.mxu0 0.0
    %1255 = vmatprep.mubr.f32.mxu0 0.0
    %1256 = vmatmul.mubr.f32.gmra.mrb[0].mxu0 %v144
    %v1257 = vpop.f32.mrb[0].mxu0
    %v1258 = vadd.f32 %v550, %v1257
    %v1259 = vpop.f32.mrb[0].mxu0
    %1260 = vmatprep.mubr.f32.mxu0 0.0
    %1261 = vmatmul.mubr.f32.gmra.mrb[0].mxu0 %v144
    %v1262 = vpop.f32.mrb[0].mxu0
    %v1263 = vadd.f32 %v555, %v1262
    %v1264 = vpop.f32.mrb[0].mxu0
    %1265 = vmatprep.mubr.f32.mxu0 0.0
    %1266 = vmatmul.mubr.f32.gmra.mrb[0].mxu0 %v147
    %v1267 = vpop.f32.mrb[0].mxu0
    %v1268 = vadd.f32 %v560, %v1267
    %v1269 = vpop.f32.mrb[0].mxu0
    %1270 = vmatprep.mubr.f32.mxu0 0.0
    %1271 = vmatmul.mubr.f32.gmra.mrb[0].mxu0 %v150
    %v1272 = vpop.f32.mrb[0].mxu0
    %v1273 = vadd.f32 %v565, %v1272
    %v1274 = vpop.f32.mrb[0].mxu0
    %1275 = vmatprep.mubr.f32.mxu0 0.0
    %1276 = vmatmul.mubr.f32.gmra.mrb[0].mxu0 %v153
    %v1277 = vpop.f32.mrb[0].mxu0
    %v1278 = vadd.f32 %v570, %v1277
    %v1279 = vpop.f32.mrb[0].mxu0
    %1280 = vmatprep.mubr.f32.mxu0 0.0
    %1281 = vmatmul.mubr.f32.gmra.mrb[0].mxu0 %v156
    %v1282 = vpop.f32.mrb[0].mxu0
    %v1283 = vadd.f32 %v575, %v1282
    %v1284 = vpop.f32.mrb[0].mxu0
    %1285 = vmatprep.mubr.f32.mxu0 0.0
    %1286 = vmatmul.mubr.f32.gmra.mrb[0].mxu0 %v159
    %v1287 = vpop.f32.mrb[0].mxu0
    %v1288 = vadd.f32 %v580, %v1287
    %v1289 = vpop.f32.mrb[0].mxu0
    %1290 = vmatprep.mubr.f32.mxu0 0.0
    %1291 = vmatmul.mubr.f32.gmra.mrb[0].mxu0 %v162
    %v1292 = vpop.f32.mrb[0].mxu0
    %v1293 = vadd.f32 %v585, %v1292
    %v1294 = vpop.f32.mrb[0].mxu0
    %1295 = vmatprep.mubr.f32.mxu0 0.0
    %1296 = vmatmul.mubr.f32.gmra.mrb[0].mxu0 %v144
    %v1297 = vpop.f32.mrb[0].mxu0
    %v1298 = vadd.f32 %v590, %v1297
    %v1299 = vpop.f32.mrb[0].mxu0
    %1300 = vmatprep.mubr.f32.mxu0 0.0
    %1301 = vmatmul.mubr.f32.gmra.mrb[0].mxu0 %v144
    %v1302 = vpop.f32.mrb[0].mxu0
    %v1303 = vadd.f32 %v595, %v1302
    %v1304 = vpop.f32.mrb[0].mxu0
    %1305 = vmatprep.mubr.f32.mxu0 0.0
    %1306 = vmatmul.mubr.f32.gmra.mrb[0].mxu0 %v147
    %v1307 = vpop.f32.mrb[0].mxu0
    %v1308 = vadd.f32 %v600, %v1307
    %v1309 = vpop.f32.mrb[0].mxu0
    %1310 = vmatprep.mubr.f32.mxu0 0.0
    %1311 = vmatmul.mubr.f32.gmra.mrb[0].mxu0 %v150
    %v1312 = vpop.f32.mrb[0].mxu0
    %v1313 = vadd.f32 %v605, %v1312
    %v1314 = vpop.f32.mrb[0].mxu0
    %1315 = vmatprep.mubr.f32.mxu0 0.0
    %1316 = vmatmul.mubr.f32.gmra.mrb[0].mxu0 %v153
    %v1317 = vpop.f32.mrb[0].mxu0
    %v1318 = vadd.f32 %v610, %v1317
    %v1319 = vpop.f32.mrb[0].mxu0
    %1320 = vmatprep.mubr.f32.mxu0 0.0
    %1321 = vmatmul.mubr.f32.gmra.mrb[0].mxu0 %v156
    %v1322 = vpop.f32.mrb[0].mxu0
    %v1323 = vadd.f32 %v615, %v1322
    %v1324 = vpop.f32.mrb[0].mxu0
    %1325 = vmatprep.mubr.f32.mxu0 0.0
    %1326 = vmatmul.mubr.f32.gmra.mrb[0].mxu0 %v159
    %v1327 = vpop.f32.mrb[0].mxu0
    %v1328 = vadd.f32 %v620, %v1327
    %v1329 = vpop.f32.mrb[0].mxu0
    %1330 = vmatprep.mubr.f32.mxu0 0.0
    %1331 = vmatmul.mubr.f32.gmra.mrb[0].mxu0 %v162
    %v1332 = vpop.f32.mrb[0].mxu0
    %v1333 = vadd.f32 %v625, %v1332
    %v1334 = vpop.f32.mrb[0].mxu0
    %1335 = vmatprep.mubr.f32.mxu0 0.0
    %1336 = vmatmul.mubr.f32.gmra.mrb[0].mxu0 %v168
    %v1337 = vpop.f32.mrb[0].mxu0
    %v1338 = vadd.f32 %v630, %v1337
    %v1339 = vpop.f32.mrb[0].mxu0
    %1340 = vmatprep.mubr.f32.mxu0 0.0
    %1341 = vmatmul.mubr.f32.gmra.mrb[0].mxu0 %v168
    %v1342 = vpop.f32.mrb[0].mxu0
    %v1343 = vadd.f32 %v635, %v1342
    %v1344 = vpop.f32.mrb[0].mxu0
    %1345 = vmatprep.mubr.f32.mxu0 0.0
    %1346 = vmatmul.mubr.f32.gmra.mrb[0].mxu0 %v171
    %v1347 = vpop.f32.mrb[0].mxu0
    %v1348 = vadd.f32 %v640, %v1347
    %v1349 = vpop.f32.mrb[0].mxu0
    %1350 = vmatprep.mubr.f32.mxu0 0.0
    %1351 = vmatmul.mubr.f32.gmra.mrb[0].mxu0 %v174
    %v1352 = vpop.f32.mrb[0].mxu0
    %v1353 = vadd.f32 %v645, %v1352
    %v1354 = vpop.f32.mrb[0].mxu0
    %1355 = vmatprep.mubr.f32.mxu0 0.0
    %1356 = vmatmul.mubr.f32.gmra.mrb[0].mxu0 %v177
    %v1357 = vpop.f32.mrb[0].mxu0
    %v1358 = vadd.f32 %v650, %v1357
    %v1359 = vpop.f32.mrb[0].mxu0
    %1360 = vmatprep.mubr.f32.mxu0 0.0
    %1361 = vmatmul.mubr.f32.gmra.mrb[0].mxu0 %v180
    %v1362 = vpop.f32.mrb[0].mxu0
    %v1363 = vadd.f32 %v655, %v1362
    %v1364 = vpop.f32.mrb[0].mxu0
    %1365 = vmatprep.mubr.f32.mxu0 0.0
    %1366 = vmatmul.mubr.f32.gmra.mrb[0].mxu0 %v183
    %v1367 = vpop.f32.mrb[0].mxu0
    %v1368 = vadd.f32 %v660, %v1367
    %v1369 = vpop.f32.mrb[0].mxu0
    %1370 = vmatprep.mubr.f32.mxu0 0.0
    %1371 = vmatmul.mubr.f32.gmra.mrb[0].mxu0 %v186
    %v1372 = vpop.f32.mrb[0].mxu0
    %v1373 = vadd.f32 %v665, %v1372
    %v1374 = vpop.f32.mrb[0].mxu0
    %1375 = vmatprep.mubr.f32.mxu0 0.0
    %1376 = vmatmul.mubr.f32.gmra.mrb[0].mxu0 %v192
    %v1377 = vpop.f32.mrb[0].mxu0
    %v1378 = vadd.f32 %v670, %v1377
    %v1379 = vpop.f32.mrb[0].mxu0
    %1380 = vmatprep.mubr.f32.mxu0 0.0
    %1381 = vmatmul.mubr.f32.gmra.mrb[0].mxu0 %v192
    %v1382 = vpop.f32.mrb[0].mxu0
    %v1383 = vadd.f32 %v675, %v1382
    %v1384 = vpop.f32.mrb[0].mxu0
    %1385 = vmatprep.mubr.f32.mxu0 0.0
    %1386 = vmatmul.mubr.f32.gmra.mrb[0].mxu0 %v195
    %v1387 = vpop.f32.mrb[0].mxu0
    %v1388 = vadd.f32 %v680, %v1387
    %v1389 = vpop.f32.mrb[0].mxu0
    %1390 = vmatprep.mubr.f32.mxu0 0.0
    %1391 = vmatmul.mubr.f32.gmra.mrb[0].mxu0 %v198
    %v1392 = vpop.f32.mrb[0].mxu0
    %v1393 = vadd.f32 %v685, %v1392
    %v1394 = vpop.f32.mrb[0].mxu0
    %1395 = vmatprep.mubr.f32.mxu0 0.0
    %1396 = vmatmul.mubr.f32.gmra.mrb[0].mxu0 %v201
    %v1397 = vpop.f32.mrb[0].mxu0
    %v1398 = vadd.f32 %v690, %v1397
    %v1399 = vpop.f32.mrb[0].mxu0
    %1400 = vmatprep.mubr.f32.mxu0 0.0
    %1401 = vmatmul.mubr.f32.gmra.mrb[0].mxu0 %v204
    %v1402 = vpop.f32.mrb[0].mxu0
    %v1403 = vadd.f32 %v695, %v1402
    %v1404 = vpop.f32.mrb[0].mxu0
    %1405 = vmatprep.mubr.f32.mxu0 0.0
    %1406 = vmatmul.mubr.f32.gmra.mrb[0].mxu0 %v207
    %v1407 = vpop.f32.mrb[0].mxu0
    %v1408 = vadd.f32 %v700, %v1407
    %v1409 = vpop.f32.mrb[0].mxu0
    %1410 = vmatprep.mubr.f32.mxu0 0.0
    %1411 = vmatmul.mubr.f32.gmra.mrb[0].mxu0 %v210
    %v1412 = vpop.f32.mrb[0].mxu0
    %v1413 = vadd.f32 %v705, %v1412
    %v1414 = vpop.f32.mrb[0].mxu0
    %1415 = vmatprep.mubr.f32.mxu0 0.0
    %1416 = vmatmul.mubr.f32.gmra.mrb[0].mxu0 %v216
    %v1417 = vpop.f32.mrb[0].mxu0
    %v1418 = vadd.f32 %v710, %v1417
    %v1419 = vpop.f32.mrb[0].mxu0
    %1420 = vmatprep.mubr.f32.mxu0 0.0
    %1421 = vmatmul.mubr.f32.gmra.mrb[0].mxu0 %v216
    %v1422 = vpop.f32.mrb[0].mxu0
    %v1423 = vadd.f32 %v715, %v1422
    %v1424 = vpop.f32.mrb[0].mxu0
    %1425 = vmatprep.mubr.f32.mxu0 0.0
    %1426 = vmatmul.mubr.f32.gmra.mrb[0].mxu0 %v219
    %v1427 = vpop.f32.mrb[0].mxu0
    %v1428 = vadd.f32 %v720, %v1427
    %v1429 = vpop.f32.mrb[0].mxu0
    %1430 = vmatprep.mubr.f32.mxu0 0.0
    %1431 = vmatmul.mubr.f32.gmra.mrb[0].mxu0 %v222
    %v1432 = vpop.f32.mrb[0].mxu0
    %v1433 = vadd.f32 %v725, %v1432
    %v1434 = vpop.f32.mrb[0].mxu0
    %1435 = vmatprep.mubr.f32.mxu0 0.0
    %1436 = vmatmul.mubr.f32.gmra.mrb[0].mxu0 %v225
    %v1437 = vpop.f32.mrb[0].mxu0
    %v1438 = vadd.f32 %v730, %v1437
    %v1439 = vpop.f32.mrb[0].mxu0
    %1440 = vmatprep.mubr.f32.mxu0 0.0
    %1441 = vmatmul.mubr.f32.gmra.mrb[0].mxu0 %v228
    %v1442 = vpop.f32.mrb[0].mxu0
    %v1443 = vadd.f32 %v735, %v1442
    %v1444 = vpop.f32.mrb[0].mxu0
    %1445 = vmatprep.mubr.f32.mxu0 0.0
    %1446 = vmatmul.mubr.f32.gmra.mrb[0].mxu0 %v231
    %v1447 = vpop.f32.mrb[0].mxu0
    %v1448 = vadd.f32 %v740, %v1447
    %v1449 = vpop.f32.mrb[0].mxu0
    %1450 = vmatprep.mubr.f32.mxu0 0.0
    %1451 = vmatmul.mubr.f32.gmra.mrb[0].mxu0 %v234
    %v1452 = vpop.f32.mrb[0].mxu0
    %v1453 = vadd.f32 %v745, %v1452
    %v1454 = vpop.f32.mrb[0].mxu0
    %1455 = vmatprep.mubr.f32.mxu0 0.0
    %1456 = vmatmul.mubr.f32.gmra.mrb[0].mxu0 %v240
    %v1457 = vpop.f32.mrb[0].mxu0
    %v1458 = vadd.f32 %v750, %v1457
    %v1459 = vpop.f32.mrb[0].mxu0
    %1460 = vmatprep.mubr.f32.mxu0 0.0
    %1461 = vmatmul.mubr.f32.gmra.mrb[0].mxu0 %v240
    %v1462 = vpop.f32.mrb[0].mxu0
    %v1463 = vadd.f32 %v755, %v1462
    %v1464 = vpop.f32.mrb[0].mxu0
    %1465 = vmatprep.mubr.f32.mxu0 0.0
    %1466 = vmatmul.mubr.f32.gmra.mrb[0].mxu0 %v243
    %v1467 = vpop.f32.mrb[0].mxu0
    %v1468 = vadd.f32 %v760, %v1467
    %v1469 = vpop.f32.mrb[0].mxu0
    %1470 = vmatprep.mubr.f32.mxu0 0.0
    %1471 = vmatmul.mubr.f32.gmra.mrb[0].mxu0 %v246
    %v1472 = vpop.f32.mrb[0].mxu0
    %v1473 = vadd.f32 %v765, %v1472
    %v1474 = vpop.f32.mrb[0].mxu0
    %1475 = vmatprep.mubr.f32.mxu0 0.0
    %1476 = vmatmul.mubr.f32.gmra.mrb[0].mxu0 %v249
    %v1477 = vpop.f32.mrb[0].mxu0
    %v1478 = vadd.f32 %v770, %v1477
    %v1479 = vpop.f32.mrb[0].mxu0
    %1480 = vmatprep.mubr.f32.mxu0 0.0
    %1481 = vmatmul.mubr.f32.gmra.mrb[0].mxu0 %v252
    %v1482 = vpop.f32.mrb[0].mxu0
    %v1483 = vadd.f32 %v775, %v1482
    %v1484 = vpop.f32.mrb[0].mxu0
    %1485 = vmatprep.mubr.f32.mxu0 0.0
    %1486 = vmatmul.mubr.f32.gmra.mrb[0].mxu0 %v255
    %v1487 = vpop.f32.mrb[0].mxu0
    %v1488 = vadd.f32 %v780, %v1487
    %v1489 = vpop.f32.mrb[0].mxu0
    %1490 = vmatprep.mubr.f32.mxu0 0.0
    %1491 = vmatmul.mubr.f32.gmra.mrb[0].mxu0 %v258
    %v1492 = vpop.f32.mrb[0].mxu0
    %v1493 = vadd.f32 %v785, %v1492
    %v1494 = vpop.f32.mrb[0].mxu0
    %1495 = vmatprep.mubr.f32.mxu0 0.0
    %1496 = vmatmul.mubr.f32.gmra.mrb[0].mxu0 %v264
    %v1497 = vpop.f32.mrb[0].mxu0
    %v1498 = vadd.f32 %v790, %v1497
    %v1499 = vpop.f32.mrb[0].mxu0
    %1500 = vmatprep.mubr.f32.mxu0 0.0
    %1501 = vmatmul.mubr.f32.gmra.mrb[0].mxu0 %v264
    %v1502 = vpop.f32.mrb[0].mxu0
    %v1503 = vadd.f32 %v795, %v1502
    %v1504 = vpop.f32.mrb[0].mxu0
    %1505 = vmatprep.mubr.f32.mxu0 0.0
    %1506 = vmatmul.mubr.f32.gmra.mrb[0].mxu0 %v267
    %v1507 = vpop.f32.mrb[0].mxu0
    %v1508 = vadd.f32 %v800, %v1507
    %v1509 = vpop.f32.mrb[0].mxu0
    %1510 = vmatprep.mubr.f32.mxu0 0.0
    %1511 = vmatmul.mubr.f32.gmra.mrb[0].mxu0 %v270
    %v1512 = vpop.f32.mrb[0].mxu0
    %v1513 = vadd.f32 %v805, %v1512
    %v1514 = vpop.f32.mrb[0].mxu0
    %1515 = vmatprep.mubr.f32.mxu0 0.0
    %1516 = vmatmul.mubr.f32.gmra.mrb[0].mxu0 %v273
    %v1517 = vpop.f32.mrb[0].mxu0
    %v1518 = vadd.f32 %v810, %v1517
    %v1519 = vpop.f32.mrb[0].mxu0
    %1520 = vmatprep.mubr.f32.mxu0 0.0
    %1521 = vmatmul.mubr.f32.gmra.mrb[0].mxu0 %v276
    %v1522 = vpop.f32.mrb[0].mxu0
    %v1523 = vadd.f32 %v815, %v1522
    %v1524 = vpop.f32.mrb[0].mxu0
    %1525 = vmatprep.mubr.f32.mxu0 0.0
    %1526 = vmatmul.mubr.f32.gmra.mrb[0].mxu0 %v279
    %v1527 = vpop.f32.mrb[0].mxu0
    %v1528 = vadd.f32 %v820, %v1527
    %v1529 = vpop.f32.mrb[0].mxu0
    %1530 = vmatprep.mubr.f32.mxu0 0.0
    %1531 = vmatmul.mubr.f32.gmra.mrb[0].mxu0 %v282
    %v1532 = vpop.f32.mrb[0].mxu0
    %v1533 = vadd.f32 %v825, %v1532
    %v1534 = vpop.f32.mrb[0].mxu0
    %1535 = vmatprep.mubr.f32.mxu0 0.0
    %1536 = vmatmul.mubr.f32.gmra.mrb[0].mxu0 %v288
    %v1537 = vpop.f32.mrb[0].mxu0
    %v1538 = vadd.f32 %v830, %v1537
    %v1539 = vpop.f32.mrb[0].mxu0
    %1540 = vmatprep.mubr.f32.mxu0 0.0
    %1541 = vmatmul.mubr.f32.gmra.mrb[0].mxu0 %v288
    %v1542 = vpop.f32.mrb[0].mxu0
    %v1543 = vadd.f32 %v835, %v1542
    %v1544 = vpop.f32.mrb[0].mxu0
    %1545 = vmatprep.mubr.f32.mxu0 0.0
    %1546 = vmatmul.mubr.f32.gmra.mrb[0].mxu0 %v291
    %v1547 = vpop.f32.mrb[0].mxu0
    %v1548 = vadd.f32 %v840, %v1547
    %v1549 = vpop.f32.mrb[0].mxu0
    %1550 = vmatprep.mubr.f32.mxu0 0.0
    %1551 = vmatmul.mubr.f32.gmra.mrb[0].mxu0 %v294
    %v1552 = vpop.f32.mrb[0].mxu0
    %v1553 = vadd.f32 %v845, %v1552
    %v1554 = vpop.f32.mrb[0].mxu0
    %1555 = vmatprep.mubr.f32.mxu0 0.0
    %1556 = vmatmul.mubr.f32.gmra.mrb[0].mxu0 %v297
    %v1557 = vpop.f32.mrb[0].mxu0
    %v1558 = vadd.f32 %v850, %v1557
    %v1559 = vpop.f32.mrb[0].mxu0
    %1560 = vmatprep.mubr.f32.mxu0 0.0
    %1561 = vmatmul.mubr.f32.gmra.mrb[0].mxu0 %v300
    %v1562 = vpop.f32.mrb[0].mxu0
    %v1563 = vadd.f32 %v855, %v1562
    %v1564 = vpop.f32.mrb[0].mxu0
    %1565 = vmatprep.mubr.f32.mxu0 0.0
    %1566 = vmatmul.mubr.f32.gmra.mrb[0].mxu0 %v303
    %v1567 = vpop.f32.mrb[0].mxu0
    %v1568 = vadd.f32 %v860, %v1567
    %v1569 = vpop.f32.mrb[0].mxu0
    %1570 = vmatprep.mubr.f32.mxu0 0.0
    %1571 = vmatmul.mubr.f32.gmra.mrb[0].mxu0 %v306
    %v1572 = vpop.f32.mrb[0].mxu0
    %v1573 = vadd.f32 %v865, %v1572
    %v1574 = vpop.f32.mrb[0].mxu0
    %1575 = vmatprep.mubr.f32.mxu0 0.0
    %1576 = vmatmul.mubr.f32.gmra.mrb[0].mxu0 %v312
    %v1577 = vpop.f32.mrb[0].mxu0
    %v1578 = vadd.f32 %v870, %v1577
    %v1579 = vpop.f32.mrb[0].mxu0
    %1580 = vmatprep.mubr.f32.mxu0 0.0
    %1581 = vmatmul.mubr.f32.gmra.mrb[0].mxu0 %v312
    %v1582 = vpop.f32.mrb[0].mxu0
    %v1583 = vadd.f32 %v875, %v1582
    %v1584 = vpop.f32.mrb[0].mxu0
    %1585 = vmatprep.mubr.f32.mxu0 0.0
    %1586 = vmatmul.mubr.f32.gmra.mrb[0].mxu0 %v315
    %v1587 = vpop.f32.mrb[0].mxu0
    %v1588 = vadd.f32 %v880, %v1587
    %v1589 = vpop.f32.mrb[0].mxu0
    %1590 = vmatprep.mubr.f32.mxu0 0.0
    %1591 = vmatmul.mubr.f32.gmra.mrb[0].mxu0 %v318
    %v1592 = vpop.f32.mrb[0].mxu0
    %v1593 = vadd.f32 %v885, %v1592
    %v1594 = vpop.f32.mrb[0].mxu0
    %1595 = vmatprep.mubr.f32.mxu0 0.0
    %1596 = vmatmul.mubr.f32.gmra.mrb[0].mxu0 %v321
    %v1597 = vpop.f32.mrb[0].mxu0
    %v1598 = vadd.f32 %v890, %v1597
    %v1599 = vpop.f32.mrb[0].mxu0
    %1600 = vmatprep.mubr.f32.mxu0 0.0
    %1601 = vmatmul.mubr.f32.gmra.mrb[0].mxu0 %v324
    %v1602 = vpop.f32.mrb[0].mxu0
    %v1603 = vadd.f32 %v895, %v1602
    %v1604 = vpop.f32.mrb[0].mxu0
    %1605 = vmatprep.mubr.f32.mxu0 0.0
    %1606 = vmatmul.mubr.f32.gmra.mrb[0].mxu0 %v327
    %v1607 = vpop.f32.mrb[0].mxu0
    %v1608 = vadd.f32 %v900, %v1607
    %v1609 = vpop.f32.mrb[0].mxu0
    %1610 = vmatprep.mubr.f32.mxu0 0.0
    %1611 = vmatmul.mubr.f32.gmra.mrb[0].mxu0 %v330
    %v1612 = vpop.f32.mrb[0].mxu0
    %v1613 = vadd.f32 %v905, %v1612
    %v1614 = vpop.f32.mrb[0].mxu0
    %1615 = vmatprep.mubr.f32.mxu0 0.0
    %1616 = vmatmul.mubr.f32.gmra.mrb[0].mxu0 %v312
    %v1617 = vpop.f32.mrb[0].mxu0
    %v1618 = vadd.f32 %v910, %v1617
    %v1619 = vpop.f32.mrb[0].mxu0
    %1620 = vmatprep.mubr.f32.mxu0 0.0
    %1621 = vmatmul.mubr.f32.gmra.mrb[0].mxu0 %v312
    %v1622 = vpop.f32.mrb[0].mxu0
    %v1623 = vadd.f32 %v915, %v1622
    %v1624 = vpop.f32.mrb[0].mxu0
    %1625 = vmatprep.mubr.f32.mxu0 0.0
    %1626 = vmatmul.mubr.f32.gmra.mrb[0].mxu0 %v315
    %v1627 = vpop.f32.mrb[0].mxu0
    %v1628 = vadd.f32 %v920, %v1627
    %v1629 = vpop.f32.mrb[0].mxu0
    %1630 = vmatprep.mubr.f32.mxu0 0.0
    %1631 = vmatmul.mubr.f32.gmra.mrb[0].mxu0 %v318
    %v1632 = vpop.f32.mrb[0].mxu0
    %v1633 = vadd.f32 %v925, %v1632
    %v1634 = vpop.f32.mrb[0].mxu0
    %1635 = vmatprep.mubr.f32.mxu0 0.0
    %1636 = vmatmul.mubr.f32.gmra.mrb[0].mxu0 %v321
    %v1637 = vpop.f32.mrb[0].mxu0
    %v1638 = vadd.f32 %v930, %v1637
    %v1639 = vpop.f32.mrb[0].mxu0
    %1640 = vmatprep.mubr.f32.mxu0 0.0
    %1641 = vmatmul.mubr.f32.gmra.mrb[0].mxu0 %v324
    %v1642 = vpop.f32.mrb[0].mxu0
    %v1643 = vadd.f32 %v935, %v1642
    %v1644 = vpop.f32.mrb[0].mxu0
    %1645 = vmatprep.mubr.f32.mxu0 0.0
    %1646 = vmatmul.mubr.f32.gmra.mrb[0].mxu0 %v327
    %v1647 = vpop.f32.mrb[0].mxu0
    %v1648 = vadd.f32 %v940, %v1647
    %v1649 = vpop.f32.mrb[0].mxu0
    %1650 = vmatprep.mubr.f32.mxu0 0.0
    %1651 = vmatmul.mubr.f32.gmra.mrb[0].mxu0 %v330
    %v1652 = vpop.f32.mrb[0].mxu0
    %v1653 = vadd.f32 %v945, %v1652
    %v1654 = vpop.f32.mrb[0].mxu0
    %1655 = vmatprep.mubr.f32.mxu0 0.0
    %1656 = vmatmul.mubr.f32.gmra.mrb[0].mxu0 %v336
    %v1657 = vpop.f32.mrb[0].mxu0
    %v1658 = vadd.f32 %v950, %v1657
    %v1659 = vpop.f32.mrb[0].mxu0
    %1660 = vmatprep.mubr.f32.mxu0 0.0
    %1661 = vmatmul.mubr.f32.gmra.mrb[0].mxu0 %v336
    %v1662 = vpop.f32.mrb[0].mxu0
    %v1663 = vadd.f32 %v955, %v1662
    %v1664 = vpop.f32.mrb[0].mxu0
    %1665 = vmatprep.mubr.f32.mxu0 0.0
    %1666 = vmatmul.mubr.f32.gmra.mrb[0].mxu0 %v339
    %v1667 = vpop.f32.mrb[0].mxu0
    %v1668 = vadd.f32 %v960, %v1667
    %v1669 = vpop.f32.mrb[0].mxu0
    %1670 = vmatprep.mubr.f32.mxu0 0.0
    %1671 = vmatmul.mubr.f32.gmra.mrb[0].mxu0 %v342
    %v1672 = vpop.f32.mrb[0].mxu0
    %v1673 = vadd.f32 %v965, %v1672
    %v1674 = vpop.f32.mrb[0].mxu0
    %1675 = vmatprep.mubr.f32.mxu0 0.0
    %1676 = vmatmul.mubr.f32.gmra.mrb[0].mxu0 %v345
    %v1677 = vpop.f32.mrb[0].mxu0
    %v1678 = vadd.f32 %v970, %v1677
    %v1679 = vpop.f32.mrb[0].mxu0
    %1680 = vmatprep.mubr.f32.mxu0 0.0
    %1681 = vmatmul.mubr.f32.gmra.mrb[0].mxu0 %v348
    %v1682 = vpop.f32.mrb[0].mxu0
    %v1683 = vadd.f32 %v975, %v1682
    %v1684 = vpop.f32.mrb[0].mxu0
    %1685 = vmatprep.mubr.f32.mxu0 0.0
    %1686 = vmatmul.mubr.f32.gmra.mrb[0].mxu0 %v351
    %v1687 = vpop.f32.mrb[0].mxu0
    %v1688 = vadd.f32 %v980, %v1687
    %v1689 = vpop.f32.mrb[0].mxu0
    %1690 = vmatprep.mubr.f32.mxu0 0.0
    %1691 = vmatmul.mubr.f32.gmra.mrb[0].mxu0 %v354
    %v1692 = vpop.f32.mrb[0].mxu0
    %v1693 = vadd.f32 %v985, %v1692
    %v1694 = vpop.f32.mrb[0].mxu0
    %1695 = vmatprep.mubr.f32.mxu0 0.0
    %1696 = vmatmul.mubr.f32.gmra.mrb[0].mxu0 %v360
    %v1697 = vpop.f32.mrb[0].mxu0
    %v1698 = vadd.f32 %v990, %v1697
    %v1699 = vpop.f32.mrb[0].mxu0
    %1700 = vmatprep.mubr.f32.mxu0 0.0
    %1701 = vmatmul.mubr.f32.gmra.mrb[0].mxu0 %v360
    %v1702 = vpop.f32.mrb[0].mxu0
    %v1703 = vadd.f32 %v995, %v1702
    %v1704 = vpop.f32.mrb[0].mxu0
    %1705 = vmatprep.mubr.f32.mxu0 0.0
    %1706 = vmatmul.mubr.f32.gmra.mrb[0].mxu0 %v363
    %v1707 = vpop.f32.mrb[0].mxu0
    %v1708 = vadd.f32 %v1000, %v1707
    %v1709 = vpop.f32.mrb[0].mxu0
    %1710 = vmatprep.mubr.f32.mxu0 0.0
    %1711 = vmatmul.mubr.f32.gmra.mrb[0].mxu0 %v366
    %v1712 = vpop.f32.mrb[0].mxu0
    %v1713 = vadd.f32 %v1005, %v1712
    %v1714 = vpop.f32.mrb[0].mxu0
    %1715 = vmatprep.mubr.f32.mxu0 0.0
    %1716 = vmatmul.mubr.f32.gmra.mrb[0].mxu0 %v369
    %v1717 = vpop.f32.mrb[0].mxu0
    %v1718 = vadd.f32 %v1010, %v1717
    %v1719 = vpop.f32.mrb[0].mxu0
    %1720 = vmatprep.mubr.f32.mxu0 0.0
    %1721 = vmatmul.mubr.f32.gmra.mrb[0].mxu0 %v372
    %v1722 = vpop.f32.mrb[0].mxu0
    %v1723 = vadd.f32 %v1015, %v1722
    %v1724 = vpop.f32.mrb[0].mxu0
    %1725 = vmatprep.mubr.f32.mxu0 0.0
    %1726 = vmatmul.mubr.f32.gmra.mrb[0].mxu0 %v375
    %v1727 = vpop.f32.mrb[0].mxu0
    %v1728 = vadd.f32 %v1020, %v1727
    %v1729 = vpop.f32.mrb[0].mxu0
    %1730 = vmatprep.mubr.f32.mxu0 0.0
    %1731 = vmatmul.mubr.f32.gmra.mrb[0].mxu0 %v378
    %v1732 = vpop.f32.mrb[0].mxu0
    %v1733 = vadd.f32 %v1025, %v1732
    %v1734 = vpop.f32.mrb[0].mxu0
    %1735 = vmatprep.mubr.f32.mxu0 0.0
    %1736 = vmatmul.mubr.f32.gmra.mrb[0].mxu0 %v384
    %v1737 = vpop.f32.mrb[0].mxu0
    %v1738 = vadd.f32 %v1030, %v1737
    %v1739 = vpop.f32.mrb[0].mxu0
    %1740 = vmatprep.mubr.f32.mxu0 0.0
    %1741 = vmatmul.mubr.f32.gmra.mrb[0].mxu0 %v384
    %v1742 = vpop.f32.mrb[0].mxu0
    %v1743 = vadd.f32 %v1035, %v1742
    %v1744 = vpop.f32.mrb[0].mxu0
    %1745 = vmatprep.mubr.f32.mxu0 0.0
    %1746 = vmatmul.mubr.f32.gmra.mrb[0].mxu0 %v387
    %v1747 = vpop.f32.mrb[0].mxu0
    %v1748 = vadd.f32 %v1040, %v1747
    %v1749 = vpop.f32.mrb[0].mxu0
    %1750 = vmatprep.mubr.f32.mxu0 0.0
    %1751 = vmatmul.mubr.f32.gmra.mrb[0].mxu0 %v390
    %v1752 = vpop.f32.mrb[0].mxu0
    %v1753 = vadd.f32 %v1045, %v1752
    %v1754 = vpop.f32.mrb[0].mxu0
    %1755 = vmatprep.mubr.f32.mxu0 0.0
    %1756 = vmatmul.mubr.f32.gmra.mrb[0].mxu0 %v393
    %v1757 = vpop.f32.mrb[0].mxu0
    %v1758 = vadd.f32 %v1050, %v1757
    %v1759 = vpop.f32.mrb[0].mxu0
    %1760 = vmatprep.mubr.f32.mxu0 0.0
    %1761 = vmatmul.mubr.f32.gmra.mrb[0].mxu0 %v396
    %v1762 = vpop.f32.mrb[0].mxu0
    %v1763 = vadd.f32 %v1055, %v1762
    %v1764 = vpop.f32.mrb[0].mxu0
    %1765 = vmatprep.mubr.f32.mxu0 0.0
    %1766 = vmatmul.mubr.f32.gmra.mrb[0].mxu0 %v399
    %v1767 = vpop.f32.mrb[0].mxu0
    %v1768 = vadd.f32 %v1060, %v1767
    %v1769 = vpop.f32.mrb[0].mxu0
    %1770 = vmatprep.mubr.f32.mxu0 0.0
    %1771 = vmatmul.mubr.f32.gmra.mrb[0].mxu0 %v402
    %v1772 = vpop.f32.mrb[0].mxu0
    %v1773 = vadd.f32 %v1065, %v1772
    %v1774 = vpop.f32.mrb[0].mxu0
    %1775 = vmatprep.mubr.f32.mxu0 0.0
    %1776 = vmatmul.mubr.f32.gmra.mrb[0].mxu0 %v408
    %v1777 = vpop.f32.mrb[0].mxu0
    %v1778 = vadd.f32 %v1070, %v1777
    %v1779 = vpop.f32.mrb[0].mxu0
    %1780 = vmatprep.mubr.f32.mxu0 0.0
    %1781 = vmatmul.mubr.f32.gmra.mrb[0].mxu0 %v408
    %v1782 = vpop.f32.mrb[0].mxu0
    %v1783 = vadd.f32 %v1075, %v1782
    %v1784 = vpop.f32.mrb[0].mxu0
    %1785 = vmatprep.mubr.f32.mxu0 0.0
    %1786 = vmatmul.mubr.f32.gmra.mrb[0].mxu0 %v411
    %v1787 = vpop.f32.mrb[0].mxu0
    %v1788 = vadd.f32 %v1080, %v1787
    %v1789 = vpop.f32.mrb[0].mxu0
    %1790 = vmatprep.mubr.f32.mxu0 0.0
    %1791 = vmatmul.mubr.f32.gmra.mrb[0].mxu0 %v414
    %v1792 = vpop.f32.mrb[0].mxu0
    %v1793 = vadd.f32 %v1085, %v1792
    %v1794 = vpop.f32.mrb[0].mxu0
    %1795 = vmatprep.mubr.f32.mxu0 0.0
    %1796 = vmatmul.mubr.f32.gmra.mrb[0].mxu0 %v417
    %v1797 = vpop.f32.mrb[0].mxu0
    %v1798 = vadd.f32 %v1090, %v1797
    %v1799 = vpop.f32.mrb[0].mxu0
    %1800 = vmatprep.mubr.f32.mxu0 0.0
    %1801 = vmatmul.mubr.f32.gmra.mrb[0].mxu0 %v420
    %v1802 = vpop.f32.mrb[0].mxu0
    %v1803 = vadd.f32 %v1095, %v1802
    %v1804 = vpop.f32.mrb[0].mxu0
    %1805 = vmatprep.mubr.f32.mxu0 0.0
    %1806 = vmatmul.mubr.f32.gmra.mrb[0].mxu0 %v423
    %v1807 = vpop.f32.mrb[0].mxu0
    %v1808 = vadd.f32 %v1100, %v1807
    %v1809 = vpop.f32.mrb[0].mxu0
    %1810 = vmatprep.mubr.f32.mxu0 0.0
    %1811 = vmatmul.mubr.f32.gmra.mrb[0].mxu0 %v426
    %v1812 = vpop.f32.mrb[0].mxu0
    %v1813 = vadd.f32 %v1105, %v1812
    %v1814 = vpop.f32.mrb[0].mxu0
    %1815 = vmatprep.mubr.f32.mxu0 0.0
    %1816 = vmatmul.mubr.f32.gmra.mrb[0].mxu0 %v432
    %v1817 = vpop.f32.mrb[0].mxu0
    %v1818 = vadd.f32 %v1110, %v1817
    %v1819 = vpop.f32.mrb[0].mxu0
    %1820 = vmatprep.mubr.f32.mxu0 0.0
    %1821 = vmatmul.mubr.f32.gmra.mrb[0].mxu0 %v432
    %v1822 = vpop.f32.mrb[0].mxu0
    %v1823 = vadd.f32 %v1115, %v1822
    %v1824 = vpop.f32.mrb[0].mxu0
    %1825 = vmatprep.mubr.f32.mxu0 0.0
    %1826 = vmatmul.mubr.f32.gmra.mrb[0].mxu0 %v435
    %v1827 = vpop.f32.mrb[0].mxu0
    %v1828 = vadd.f32 %v1120, %v1827
    %v1829 = vpop.f32.mrb[0].mxu0
    %1830 = vmatprep.mubr.f32.mxu0 0.0
    %1831 = vmatmul.mubr.f32.gmra.mrb[0].mxu0 %v438
    %v1832 = vpop.f32.mrb[0].mxu0
    %v1833 = vadd.f32 %v1125, %v1832
    %v1834 = vpop.f32.mrb[0].mxu0
    %1835 = vmatprep.mubr.f32.mxu0 0.0
    %1836 = vmatmul.mubr.f32.gmra.mrb[0].mxu0 %v441
    %v1837 = vpop.f32.mrb[0].mxu0
    %v1838 = vadd.f32 %v1130, %v1837
    %v1839 = vpop.f32.mrb[0].mxu0
    %1840 = vmatprep.mubr.f32.mxu0 0.0
    %1841 = vmatmul.mubr.f32.gmra.mrb[0].mxu0 %v444
    %v1842 = vpop.f32.mrb[0].mxu0
    %v1843 = vadd.f32 %v1135, %v1842
    %v1844 = vpop.f32.mrb[0].mxu0
    %1845 = vmatprep.mubr.f32.mxu0 0.0
    %1846 = vmatmul.mubr.f32.gmra.mrb[0].mxu0 %v447
    %v1847 = vpop.f32.mrb[0].mxu0
    %v1848 = vadd.f32 %v1140, %v1847
    %v1849 = vpop.f32.mrb[0].mxu0
    %1850 = vmatprep.mubr.f32.mxu0 0.0
    %1851 = vmatmul.mubr.f32.gmra.mrb[0].mxu0 %v450
    %v1852 = vpop.f32.mrb[0].mxu0
    %v1853 = vadd.f32 %v1145, %v1852
    %v1854 = vpop.f32.mrb[0].mxu0
    %1855 = vmatprep.mubr.f32.mxu0 0.0
    %1856 = vmatmul.mubr.f32.gmra.mrb[0].mxu0 %v456
    %v1857 = vpop.f32.mrb[0].mxu0
    %v1858 = vadd.f32 %v1150, %v1857
    %v1859 = vpop.f32.mrb[0].mxu0
    %1860 = vmatprep.mubr.f32.mxu0 0.0
    %1861 = vmatmul.mubr.f32.gmra.mrb[0].mxu0 %v456
    %v1862 = vpop.f32.mrb[0].mxu0
    %v1863 = vadd.f32 %v1155, %v1862
    %v1864 = vpop.f32.mrb[0].mxu0
    %1865 = vmatprep.mubr.f32.mxu0 0.0
    %1866 = vmatmul.mubr.f32.gmra.mrb[0].mxu0 %v459
    %v1867 = vpop.f32.mrb[0].mxu0
    %v1868 = vadd.f32 %v1160, %v1867
    %v1869 = vpop.f32.mrb[0].mxu0
    %1870 = vmatprep.mubr.f32.mxu0 0.0
    %1871 = vmatmul.mubr.f32.gmra.mrb[0].mxu0 %v462
    %v1872 = vpop.f32.mrb[0].mxu0
    %v1873 = vadd.f32 %v1165, %v1872
    %v1874 = vpop.f32.mrb[0].mxu0
    %1875 = vmatprep.mubr.f32.mxu0 0.0
    %1876 = vmatmul.mubr.f32.gmra.mrb[0].mxu0 %v465
    %v1877 = vpop.f32.mrb[0].mxu0
    %v1878 = vadd.f32 %v1170, %v1877
    %v1879 = vpop.f32.mrb[0].mxu0
    %1880 = vmatprep.mubr.f32.mxu0 0.0
    %1881 = vmatmul.mubr.f32.gmra.mrb[0].mxu0 %v468
    %v1882 = vpop.f32.mrb[0].mxu0
    %v1883 = vadd.f32 %v1175, %v1882
    %v1884 = vpop.f32.mrb[0].mxu0
    %1885 = vmatprep.mubr.f32.mxu0 0.0
    %1886 = vmatmul.mubr.f32.gmra.mrb[0].mxu0 %v471
    %v1887 = vpop.f32.mrb[0].mxu0
    %v1888 = vadd.f32 %v1180, %v1887
    %v1889 = vpop.f32.mrb[0].mxu0
    %1890 = vmatprep.mubr.f32.mxu0 0.0
    %1891 = vmatmul.mubr.f32.gmra.mrb[0].mxu0 %v474
    %v1892 = vpop.f32.mrb[0].mxu0
    %v1893 = vadd.f32 %v1185, %v1892
    %v1894 = vpop.f32.mrb[0].mxu0
    %1895 = vdwg.mxu0
    %v1896 = vld [vmem:[%s1 + $0x8] sm:$0xf]
    %v1898 = vsel %vm479, %v1896, 0
    %1900 = vmatprep.subr.mxu0 0.0
    %1901 = vmatpush1.msra.mxu0 %v1898
    %1902 = vmatprep.subr.mxu0 0.0
    %1903 = vmatpush1.msra.mxu0 0.0
    %1904 = vmatprep.subr.mxu0 0.0
    %1905 = vmatpush1.msra.mxu0 0.0
    %1906 = vmatprep.subr.mxu0 0.0
    %1907 = vmatpush1.msra.mxu0 0.0
    %1908 = vmatprep.subr.mxu0 0.0
    %1909 = vmatpush1.msra.mxu0 0.0
    %1910 = vmatprep.subr.mxu0 0.0
    %1911 = vmatpush1.msra.mxu0 0.0
    %1912 = vmatprep.subr.mxu0 0.0
    %1913 = vmatpush1.msra.mxu0 0.0
    %1914 = vmatprep.subr.mxu0 0.0
    %1915 = vmatpush1.msra.mxu0 0.0
    %1916 = vmatprep.subr.mxu0 0.0
    %1917 = vmatpush1.msra.mxu0 0.0
    %1918 = vmatprep.subr.mxu0 0.0
    %1919 = vmatpush1.msra.mxu0 0.0
    %1920 = vmatprep.subr.mxu0 0.0
    %1921 = vmatpush1.msra.mxu0 0.0
    %1922 = vmatprep.subr.mxu0 0.0
    %1923 = vmatpush1.msra.mxu0 0.0
    %1924 = vmatprep.subr.mxu0 0.0
    %1925 = vmatpush1.msra.mxu0 0.0
    %1926 = vmatprep.subr.mxu0 0.0
    %1927 = vmatpush1.msra.mxu0 0.0
    %1928 = vmatprep.subr.mxu0 0.0
    %1929 = vmatpush1.msra.mxu0 0.0
    %1930 = vmatprep.subr.mxu0 0.0
    %1931 = vmatpush1.msra.mxu0 0.0
    %1932 = vmatprep.subr.mxu0 0.0
    %1933 = vmatpush1.msra.mxu0 0.0
    %1934 = vmatprep.subr.mxu0 0.0
    %1935 = vmatpush1.msra.mxu0 0.0
    %1936 = vmatprep.subr.mxu0 0.0
    %1937 = vmatpush1.msra.mxu0 0.0
    %1938 = vmatprep.subr.mxu0 0.0
    %1939 = vmatpush1.msra.mxu0 0.0
    %1940 = vmatprep.subr.mxu0 0.0
    %1941 = vmatpush1.msra.mxu0 0.0
    %1942 = vmatprep.subr.mxu0 0.0
    %1943 = vmatpush1.msra.mxu0 0.0
    %1944 = vmatprep.subr.mxu0 0.0
    %1945 = vmatpush1.msra.mxu0 0.0
    %1946 = vmatprep.subr.mxu0 0.0
    %1947 = vmatpush1.msra.mxu0 0.0
    %1948 = vmatprep.subr.mxu0 0.0
    %1949 = vmatpush1.msra.mxu0 0.0
    %1950 = vmatprep.subr.mxu0 0.0
    %1951 = vmatpush1.msra.mxu0 0.0
    %1952 = vmatprep.subr.mxu0 0.0
    %1953 = vmatpush1.msra.mxu0 0.0
    %1954 = vmatprep.subr.mxu0 0.0
    %1955 = vmatpush1.msra.mxu0 0.0
    %1956 = vmatprep.subr.mxu0 0.0
    %1957 = vmatpush1.msra.mxu0 0.0
    %1958 = vmatprep.subr.mxu0 0.0
    %1959 = vmatpush1.msra.mxu0 0.0
    %1960 = vmatprep.subr.mxu0 0.0
    %1961 = vmatpush1.msra.mxu0 0.0
    %1962 = vmatprep.subr.mxu0 0.0
    %1963 = vmatpush1.msra.mxu0 0.0
    %1964 = vmatprep.mubr.f32.mxu0 0.0
    %1965 = vmatmul.mubr.f32.gmra.mrb[0].mxu0 %v147
    %v1966 = vpop.f32.mrb[0].mxu0
    %v1967 = vadd.f32 0.0, %v1966
    %v1968 = vpop.f32.mrb[0].mxu0
    %1969 = vmatprep.mubr.f32.mxu0 0.0
    %1970 = vmatmul.mubr.f32.gmra.mrb[0].mxu0 %v150
    %v1971 = vpop.f32.mrb[0].mxu0
    %v1972 = vadd.f32 0.0, %v1971
    %v1973 = vpop.f32.mrb[0].mxu0
    %1974 = vmatprep.mubr.f32.mxu0 0.0
    %1975 = vmatmul.mubr.f32.gmra.mrb[0].mxu0 %v153
    %v1976 = vpop.f32.mrb[0].mxu0
    %v1977 = vadd.f32 0.0, %v1976
    %v1978 = vpop.f32.mrb[0].mxu0
    %1979 = vmatprep.mubr.f32.mxu0 0.0
    %1980 = vmatmul.mubr.f32.gmra.mrb[0].mxu0 %v156
    %v1981 = vpop.f32.mrb[0].mxu0
    %v1982 = vadd.f32 0.0, %v1981
    %v1983 = vpop.f32.mrb[0].mxu0
    %1984 = vmatprep.mubr.f32.mxu0 0.0
    %1985 = vmatmul.mubr.f32.gmra.mrb[0].mxu0 %v159
    %v1986 = vpop.f32.mrb[0].mxu0
    %v1987 = vadd.f32 0.0, %v1986
    %v1988 = vpop.f32.mrb[0].mxu0
    %1989 = vmatprep.mubr.f32.mxu0 0.0
    %1990 = vmatmul.mubr.f32.gmra.mrb[0].mxu0 %v162
    %v1991 = vpop.f32.mrb[0].mxu0
    %v1992 = vadd.f32 0.0, %v1991
    %v1993 = vpop.f32.mrb[0].mxu0
    %1994 = vmatprep.mubr.f32.mxu0 0.0
    %1995 = vmatmul.mubr.f32.gmra.mrb[0].mxu0 %v165
    %v1996 = vpop.f32.mrb[0].mxu0
    %v1997 = vadd.f32 0.0, %v1996
    %v1998 = vpop.f32.mrb[0].mxu0
    %1999 = vmatprep.mubr.f32.mxu0 0.0
    %2000 = vmatmul.mubr.f32.gmra.mrb[0].mxu0 %v165
    %v2001 = vpop.f32.mrb[0].mxu0
    %v2002 = vadd.f32 0.0, %v2001
    %v2003 = vpop.f32.mrb[0].mxu0
    %2004 = vmatprep.mubr.f32.mxu0 0.0
    %2005 = vmatmul.mubr.f32.gmra.mrb[0].mxu0 %v147
    %v2006 = vpop.f32.mrb[0].mxu0
    %v2007 = vadd.f32 0.0, %v2006
    %v2008 = vpop.f32.mrb[0].mxu0
    %2009 = vmatprep.mubr.f32.mxu0 0.0
    %2010 = vmatmul.mubr.f32.gmra.mrb[0].mxu0 %v150
    %v2011 = vpop.f32.mrb[0].mxu0
    %v2012 = vadd.f32 0.0, %v2011
    %v2013 = vpop.f32.mrb[0].mxu0
    %2014 = vmatprep.mubr.f32.mxu0 0.0
    %2015 = vmatmul.mubr.f32.gmra.mrb[0].mxu0 %v153
    %v2016 = vpop.f32.mrb[0].mxu0
    %v2017 = vadd.f32 0.0, %v2016
    %v2018 = vpop.f32.mrb[0].mxu0
    %2019 = vmatprep.mubr.f32.mxu0 0.0
    %2020 = vmatmul.mubr.f32.gmra.mrb[0].mxu0 %v156
    %v2021 = vpop.f32.mrb[0].mxu0
    %v2022 = vadd.f32 0.0, %v2021
    %v2023 = vpop.f32.mrb[0].mxu0
    %2024 = vmatprep.mubr.f32.mxu0 0.0
    %2025 = vmatmul.mubr.f32.gmra.mrb[0].mxu0 %v159
    %v2026 = vpop.f32.mrb[0].mxu0
    %v2027 = vadd.f32 0.0, %v2026
    %v2028 = vpop.f32.mrb[0].mxu0
    %2029 = vmatprep.mubr.f32.mxu0 0.0
    %2030 = vmatmul.mubr.f32.gmra.mrb[0].mxu0 %v162
    %v2031 = vpop.f32.mrb[0].mxu0
    %v2032 = vadd.f32 0.0, %v2031
    %v2033 = vpop.f32.mrb[0].mxu0
    %2034 = vmatprep.mubr.f32.mxu0 0.0
    %2035 = vmatmul.mubr.f32.gmra.mrb[0].mxu0 %v165
    %v2036 = vpop.f32.mrb[0].mxu0
    %v2037 = vadd.f32 0.0, %v2036
    %v2038 = vpop.f32.mrb[0].mxu0
    %2039 = vmatprep.mubr.f32.mxu0 0.0
    %2040 = vmatmul.mubr.f32.gmra.mrb[0].mxu0 %v165
    %v2041 = vpop.f32.mrb[0].mxu0
    %v2042 = vadd.f32 0.0, %v2041
    %v2043 = vpop.f32.mrb[0].mxu0
    %2044 = vmatprep.mubr.f32.mxu0 0.0
    %2045 = vmatmul.mubr.f32.gmra.mrb[0].mxu0 %v171
    %v2046 = vpop.f32.mrb[0].mxu0
    %v2047 = vadd.f32 0.0, %v2046
    %v2048 = vpop.f32.mrb[0].mxu0
    %2049 = vmatprep.mubr.f32.mxu0 0.0
    %2050 = vmatmul.mubr.f32.gmra.mrb[0].mxu0 %v174
    %v2051 = vpop.f32.mrb[0].mxu0
    %v2052 = vadd.f32 0.0, %v2051
    %v2053 = vpop.f32.mrb[0].mxu0
    %2054 = vmatprep.mubr.f32.mxu0 0.0
    %2055 = vmatmul.mubr.f32.gmra.mrb[0].mxu0 %v177
    %v2056 = vpop.f32.mrb[0].mxu0
    %v2057 = vadd.f32 0.0, %v2056
    %v2058 = vpop.f32.mrb[0].mxu0
    %2059 = vmatprep.mubr.f32.mxu0 0.0
    %2060 = vmatmul.mubr.f32.gmra.mrb[0].mxu0 %v180
    %v2061 = vpop.f32.mrb[0].mxu0
    %v2062 = vadd.f32 0.0, %v2061
    %v2063 = vpop.f32.mrb[0].mxu0
    %2064 = vmatprep.mubr.f32.mxu0 0.0
    %2065 = vmatmul.mubr.f32.gmra.mrb[0].mxu0 %v183
    %v2066 = vpop.f32.mrb[0].mxu0
    %v2067 = vadd.f32 0.0, %v2066
    %v2068 = vpop.f32.mrb[0].mxu0
    %2069 = vmatprep.mubr.f32.mxu0 0.0
    %2070 = vmatmul.mubr.f32.gmra.mrb[0].mxu0 %v186
    %v2071 = vpop.f32.mrb[0].mxu0
    %v2072 = vadd.f32 0.0, %v2071
    %v2073 = vpop.f32.mrb[0].mxu0
    %2074 = vmatprep.mubr.f32.mxu0 0.0
    %2075 = vmatmul.mubr.f32.gmra.mrb[0].mxu0 %v189
    %v2076 = vpop.f32.mrb[0].mxu0
    %v2077 = vadd.f32 0.0, %v2076
    %v2078 = vpop.f32.mrb[0].mxu0
    %2079 = vmatprep.mubr.f32.mxu0 0.0
    %2080 = vmatmul.mubr.f32.gmra.mrb[0].mxu0 %v189
    %v2081 = vpop.f32.mrb[0].mxu0
    %v2082 = vadd.f32 0.0, %v2081
    %v2083 = vpop.f32.mrb[0].mxu0
    %2084 = vmatprep.mubr.f32.mxu0 0.0
    %2085 = vmatmul.mubr.f32.gmra.mrb[0].mxu0 %v195
    %v2086 = vpop.f32.mrb[0].mxu0
    %v2087 = vadd.f32 0.0, %v2086
    %v2088 = vpop.f32.mrb[0].mxu0
    %2089 = vmatprep.mubr.f32.mxu0 0.0
    %2090 = vmatmul.mubr.f32.gmra.mrb[0].mxu0 %v198
    %v2091 = vpop.f32.mrb[0].mxu0
    %v2092 = vadd.f32 0.0, %v2091
    %v2093 = vpop.f32.mrb[0].mxu0
    %2094 = vmatprep.mubr.f32.mxu0 0.0
    %2095 = vmatmul.mubr.f32.gmra.mrb[0].mxu0 %v201
    %v2096 = vpop.f32.mrb[0].mxu0
    %v2097 = vadd.f32 0.0, %v2096
    %v2098 = vpop.f32.mrb[0].mxu0
    %2099 = vmatprep.mubr.f32.mxu0 0.0
    %2100 = vmatmul.mubr.f32.gmra.mrb[0].mxu0 %v204
    %v2101 = vpop.f32.mrb[0].mxu0
    %v2102 = vadd.f32 0.0, %v2101
    %v2103 = vpop.f32.mrb[0].mxu0
    %2104 = vmatprep.mubr.f32.mxu0 0.0
    %2105 = vmatmul.mubr.f32.gmra.mrb[0].mxu0 %v207
    %v2106 = vpop.f32.mrb[0].mxu0
    %v2107 = vadd.f32 0.0, %v2106
    %v2108 = vpop.f32.mrb[0].mxu0
    %2109 = vmatprep.mubr.f32.mxu0 0.0
    %2110 = vmatmul.mubr.f32.gmra.mrb[0].mxu0 %v210
    %v2111 = vpop.f32.mrb[0].mxu0
    %v2112 = vadd.f32 0.0, %v2111
    %v2113 = vpop.f32.mrb[0].mxu0
    %2114 = vmatprep.mubr.f32.mxu0 0.0
    %2115 = vmatmul.mubr.f32.gmra.mrb[0].mxu0 %v213
    %v2116 = vpop.f32.mrb[0].mxu0
    %v2117 = vadd.f32 0.0, %v2116
    %v2118 = vpop.f32.mrb[0].mxu0
    %2119 = vmatprep.mubr.f32.mxu0 0.0
    %2120 = vmatmul.mubr.f32.gmra.mrb[0].mxu0 %v213
    %v2121 = vpop.f32.mrb[0].mxu0
    %v2122 = vadd.f32 0.0, %v2121
    %v2123 = vpop.f32.mrb[0].mxu0
    %2124 = vmatprep.mubr.f32.mxu0 0.0
    %2125 = vmatmul.mubr.f32.gmra.mrb[0].mxu0 %v219
    %v2126 = vpop.f32.mrb[0].mxu0
    %v2127 = vadd.f32 0.0, %v2126
    %v2128 = vpop.f32.mrb[0].mxu0
    %2129 = vmatprep.mubr.f32.mxu0 0.0
    %2130 = vmatmul.mubr.f32.gmra.mrb[0].mxu0 %v222
    %v2131 = vpop.f32.mrb[0].mxu0
    %v2132 = vadd.f32 0.0, %v2131
    %v2133 = vpop.f32.mrb[0].mxu0
    %2134 = vmatprep.mubr.f32.mxu0 0.0
    %2135 = vmatmul.mubr.f32.gmra.mrb[0].mxu0 %v225
    %v2136 = vpop.f32.mrb[0].mxu0
    %v2137 = vadd.f32 0.0, %v2136
    %v2138 = vpop.f32.mrb[0].mxu0
    %2139 = vmatprep.mubr.f32.mxu0 0.0
    %2140 = vmatmul.mubr.f32.gmra.mrb[0].mxu0 %v228
    %v2141 = vpop.f32.mrb[0].mxu0
    %v2142 = vadd.f32 0.0, %v2141
    %v2143 = vpop.f32.mrb[0].mxu0
    %2144 = vmatprep.mubr.f32.mxu0 0.0
    %2145 = vmatmul.mubr.f32.gmra.mrb[0].mxu0 %v231
    %v2146 = vpop.f32.mrb[0].mxu0
    %v2147 = vadd.f32 0.0, %v2146
    %v2148 = vpop.f32.mrb[0].mxu0
    %2149 = vmatprep.mubr.f32.mxu0 0.0
    %2150 = vmatmul.mubr.f32.gmra.mrb[0].mxu0 %v234
    %v2151 = vpop.f32.mrb[0].mxu0
    %v2152 = vadd.f32 0.0, %v2151
    %v2153 = vpop.f32.mrb[0].mxu0
    %2154 = vmatprep.mubr.f32.mxu0 0.0
    %2155 = vmatmul.mubr.f32.gmra.mrb[0].mxu0 %v237
    %v2156 = vpop.f32.mrb[0].mxu0
    %v2157 = vadd.f32 0.0, %v2156
    %v2158 = vpop.f32.mrb[0].mxu0
    %2159 = vmatprep.mubr.f32.mxu0 0.0
    %2160 = vmatmul.mubr.f32.gmra.mrb[0].mxu0 %v237
    %v2161 = vpop.f32.mrb[0].mxu0
    %v2162 = vadd.f32 0.0, %v2161
    %v2163 = vpop.f32.mrb[0].mxu0
    %2164 = vmatprep.mubr.f32.mxu0 0.0
    %2165 = vmatmul.mubr.f32.gmra.mrb[0].mxu0 %v243
    %v2166 = vpop.f32.mrb[0].mxu0
    %v2167 = vadd.f32 0.0, %v2166
    %v2168 = vpop.f32.mrb[0].mxu0
    %2169 = vmatprep.mubr.f32.mxu0 0.0
    %2170 = vmatmul.mubr.f32.gmra.mrb[0].mxu0 %v246
    %v2171 = vpop.f32.mrb[0].mxu0
    %v2172 = vadd.f32 0.0, %v2171
    %v2173 = vpop.f32.mrb[0].mxu0
    %2174 = vmatprep.mubr.f32.mxu0 0.0
    %2175 = vmatmul.mubr.f32.gmra.mrb[0].mxu0 %v249
    %v2176 = vpop.f32.mrb[0].mxu0
    %v2177 = vadd.f32 0.0, %v2176
    %v2178 = vpop.f32.mrb[0].mxu0
    %2179 = vmatprep.mubr.f32.mxu0 0.0
    %2180 = vmatmul.mubr.f32.gmra.mrb[0].mxu0 %v252
    %v2181 = vpop.f32.mrb[0].mxu0
    %v2182 = vadd.f32 0.0, %v2181
    %v2183 = vpop.f32.mrb[0].mxu0
    %2184 = vmatprep.mubr.f32.mxu0 0.0
    %2185 = vmatmul.mubr.f32.gmra.mrb[0].mxu0 %v255
    %v2186 = vpop.f32.mrb[0].mxu0
    %v2187 = vadd.f32 0.0, %v2186
    %v2188 = vpop.f32.mrb[0].mxu0
    %2189 = vmatprep.mubr.f32.mxu0 0.0
    %2190 = vmatmul.mubr.f32.gmra.mrb[0].mxu0 %v258
    %v2191 = vpop.f32.mrb[0].mxu0
    %v2192 = vadd.f32 0.0, %v2191
    %v2193 = vpop.f32.mrb[0].mxu0
    %2194 = vmatprep.mubr.f32.mxu0 0.0
    %2195 = vmatmul.mubr.f32.gmra.mrb[0].mxu0 %v261
    %v2196 = vpop.f32.mrb[0].mxu0
    %v2197 = vadd.f32 0.0, %v2196
    %v2198 = vpop.f32.mrb[0].mxu0
    %2199 = vmatprep.mubr.f32.mxu0 0.0
    %2200 = vmatmul.mubr.f32.gmra.mrb[0].mxu0 %v261
    %v2201 = vpop.f32.mrb[0].mxu0
    %v2202 = vadd.f32 0.0, %v2201
    %v2203 = vpop.f32.mrb[0].mxu0
    %2204 = vmatprep.mubr.f32.mxu0 0.0
    %2205 = vmatmul.mubr.f32.gmra.mrb[0].mxu0 %v267
    %v2206 = vpop.f32.mrb[0].mxu0
    %v2207 = vadd.f32 0.0, %v2206
    %v2208 = vpop.f32.mrb[0].mxu0
    %2209 = vmatprep.mubr.f32.mxu0 0.0
    %2210 = vmatmul.mubr.f32.gmra.mrb[0].mxu0 %v270
    %v2211 = vpop.f32.mrb[0].mxu0
    %v2212 = vadd.f32 0.0, %v2211
    %v2213 = vpop.f32.mrb[0].mxu0
    %2214 = vmatprep.mubr.f32.mxu0 0.0
    %2215 = vmatmul.mubr.f32.gmra.mrb[0].mxu0 %v273
    %v2216 = vpop.f32.mrb[0].mxu0
    %v2217 = vadd.f32 0.0, %v2216
    %v2218 = vpop.f32.mrb[0].mxu0
    %2219 = vmatprep.mubr.f32.mxu0 0.0
    %2220 = vmatmul.mubr.f32.gmra.mrb[0].mxu0 %v276
    %v2221 = vpop.f32.mrb[0].mxu0
    %v2222 = vadd.f32 0.0, %v2221
    %v2223 = vpop.f32.mrb[0].mxu0
    %2224 = vmatprep.mubr.f32.mxu0 0.0
    %2225 = vmatmul.mubr.f32.gmra.mrb[0].mxu0 %v279
    %v2226 = vpop.f32.mrb[0].mxu0
    %v2227 = vadd.f32 0.0, %v2226
    %v2228 = vpop.f32.mrb[0].mxu0
    %2229 = vmatprep.mubr.f32.mxu0 0.0
    %2230 = vmatmul.mubr.f32.gmra.mrb[0].mxu0 %v282
    %v2231 = vpop.f32.mrb[0].mxu0
    %v2232 = vadd.f32 0.0, %v2231
    %v2233 = vpop.f32.mrb[0].mxu0
    %2234 = vmatprep.mubr.f32.mxu0 0.0
    %2235 = vmatmul.mubr.f32.gmra.mrb[0].mxu0 %v285
    %v2236 = vpop.f32.mrb[0].mxu0
    %v2237 = vadd.f32 0.0, %v2236
    %v2238 = vpop.f32.mrb[0].mxu0
    %2239 = vmatprep.mubr.f32.mxu0 0.0
    %2240 = vmatmul.mubr.f32.gmra.mrb[0].mxu0 %v285
    %v2241 = vpop.f32.mrb[0].mxu0
    %v2242 = vadd.f32 0.0, %v2241
    %v2243 = vpop.f32.mrb[0].mxu0
    %2244 = vmatprep.mubr.f32.mxu0 0.0
    %2245 = vmatmul.mubr.f32.gmra.mrb[0].mxu0 %v291
    %v2246 = vpop.f32.mrb[0].mxu0
    %v2247 = vadd.f32 0.0, %v2246
    %v2248 = vpop.f32.mrb[0].mxu0
    %2249 = vmatprep.mubr.f32.mxu0 0.0
    %2250 = vmatmul.mubr.f32.gmra.mrb[0].mxu0 %v294
    %v2251 = vpop.f32.mrb[0].mxu0
    %v2252 = vadd.f32 0.0, %v2251
    %v2253 = vpop.f32.mrb[0].mxu0
    %2254 = vmatprep.mubr.f32.mxu0 0.0
    %2255 = vmatmul.mubr.f32.gmra.mrb[0].mxu0 %v297
    %v2256 = vpop.f32.mrb[0].mxu0
    %v2257 = vadd.f32 0.0, %v2256
    %v2258 = vpop.f32.mrb[0].mxu0
    %2259 = vmatprep.mubr.f32.mxu0 0.0
    %2260 = vmatmul.mubr.f32.gmra.mrb[0].mxu0 %v300
    %v2261 = vpop.f32.mrb[0].mxu0
    %v2262 = vadd.f32 0.0, %v2261
    %v2263 = vpop.f32.mrb[0].mxu0
    %2264 = vmatprep.mubr.f32.mxu0 0.0
    %2265 = vmatmul.mubr.f32.gmra.mrb[0].mxu0 %v303
    %v2266 = vpop.f32.mrb[0].mxu0
    %v2267 = vadd.f32 0.0, %v2266
    %v2268 = vpop.f32.mrb[0].mxu0
    %2269 = vmatprep.mubr.f32.mxu0 0.0
    %2270 = vmatmul.mubr.f32.gmra.mrb[0].mxu0 %v306
    %v2271 = vpop.f32.mrb[0].mxu0
    %v2272 = vadd.f32 0.0, %v2271
    %v2273 = vpop.f32.mrb[0].mxu0
    %2274 = vmatprep.mubr.f32.mxu0 0.0
    %2275 = vmatmul.mubr.f32.gmra.mrb[0].mxu0 %v309
    %v2276 = vpop.f32.mrb[0].mxu0
    %v2277 = vadd.f32 0.0, %v2276
    %v2278 = vpop.f32.mrb[0].mxu0
    %2279 = vmatprep.mubr.f32.mxu0 0.0
    %2280 = vmatmul.mubr.f32.gmra.mrb[0].mxu0 %v309
    %v2281 = vpop.f32.mrb[0].mxu0
    %v2282 = vadd.f32 0.0, %v2281
    %v2283 = vpop.f32.mrb[0].mxu0
    %2284 = vmatprep.mubr.f32.mxu0 0.0
    %2285 = vmatmul.mubr.f32.gmra.mrb[0].mxu0 %v315
    %v2286 = vpop.f32.mrb[0].mxu0
    %v2287 = vadd.f32 0.0, %v2286
    %v2288 = vpop.f32.mrb[0].mxu0
    %2289 = vmatprep.mubr.f32.mxu0 0.0
    %2290 = vmatmul.mubr.f32.gmra.mrb[0].mxu0 %v318
    %v2291 = vpop.f32.mrb[0].mxu0
    %v2292 = vadd.f32 0.0, %v2291
    %v2293 = vpop.f32.mrb[0].mxu0
    %2294 = vmatprep.mubr.f32.mxu0 0.0
    %2295 = vmatmul.mubr.f32.gmra.mrb[0].mxu0 %v321
    %v2296 = vpop.f32.mrb[0].mxu0
    %v2297 = vadd.f32 0.0, %v2296
    %v2298 = vpop.f32.mrb[0].mxu0
    %2299 = vmatprep.mubr.f32.mxu0 0.0
    %2300 = vmatmul.mubr.f32.gmra.mrb[0].mxu0 %v324
    %v2301 = vpop.f32.mrb[0].mxu0
    %v2302 = vadd.f32 0.0, %v2301
    %v2303 = vpop.f32.mrb[0].mxu0
    %2304 = vmatprep.mubr.f32.mxu0 0.0
    %2305 = vmatmul.mubr.f32.gmra.mrb[0].mxu0 %v327
    %v2306 = vpop.f32.mrb[0].mxu0
    %v2307 = vadd.f32 0.0, %v2306
    %v2308 = vpop.f32.mrb[0].mxu0
    %2309 = vmatprep.mubr.f32.mxu0 0.0
    %2310 = vmatmul.mubr.f32.gmra.mrb[0].mxu0 %v330
    %v2311 = vpop.f32.mrb[0].mxu0
    %v2312 = vadd.f32 0.0, %v2311
    %v2313 = vpop.f32.mrb[0].mxu0
    %2314 = vmatprep.mubr.f32.mxu0 0.0
    %2315 = vmatmul.mubr.f32.gmra.mrb[0].mxu0 %v333
    %v2316 = vpop.f32.mrb[0].mxu0
    %v2317 = vadd.f32 0.0, %v2316
    %v2318 = vpop.f32.mrb[0].mxu0
    %2319 = vmatprep.mubr.f32.mxu0 0.0
    %2320 = vmatmul.mubr.f32.gmra.mrb[0].mxu0 %v333
    %v2321 = vpop.f32.mrb[0].mxu0
    %v2322 = vadd.f32 0.0, %v2321
    %v2323 = vpop.f32.mrb[0].mxu0
    %2324 = vmatprep.mubr.f32.mxu0 0.0
    %2325 = vmatmul.mubr.f32.gmra.mrb[0].mxu0 %v315
    %v2326 = vpop.f32.mrb[0].mxu0
    %v2327 = vadd.f32 0.0, %v2326
    %v2328 = vpop.f32.mrb[0].mxu0
    %2329 = vmatprep.mubr.f32.mxu0 0.0
    %2330 = vmatmul.mubr.f32.gmra.mrb[0].mxu0 %v318
    %v2331 = vpop.f32.mrb[0].mxu0
    %v2332 = vadd.f32 0.0, %v2331
    %v2333 = vpop.f32.mrb[0].mxu0
    %2334 = vmatprep.mubr.f32.mxu0 0.0
    %2335 = vmatmul.mubr.f32.gmra.mrb[0].mxu0 %v321
    %v2336 = vpop.f32.mrb[0].mxu0
    %v2337 = vadd.f32 0.0, %v2336
    %v2338 = vpop.f32.mrb[0].mxu0
    %2339 = vmatprep.mubr.f32.mxu0 0.0
    %2340 = vmatmul.mubr.f32.gmra.mrb[0].mxu0 %v324
    %v2341 = vpop.f32.mrb[0].mxu0
    %v2342 = vadd.f32 0.0, %v2341
    %v2343 = vpop.f32.mrb[0].mxu0
    %2344 = vmatprep.mubr.f32.mxu0 0.0
    %2345 = vmatmul.mubr.f32.gmra.mrb[0].mxu0 %v327
    %v2346 = vpop.f32.mrb[0].mxu0
    %v2347 = vadd.f32 0.0, %v2346
    %v2348 = vpop.f32.mrb[0].mxu0
    %2349 = vmatprep.mubr.f32.mxu0 0.0
    %2350 = vmatmul.mubr.f32.gmra.mrb[0].mxu0 %v330
    %v2351 = vpop.f32.mrb[0].mxu0
    %v2352 = vadd.f32 0.0, %v2351
    %v2353 = vpop.f32.mrb[0].mxu0
    %2354 = vmatprep.mubr.f32.mxu0 0.0
    %2355 = vmatmul.mubr.f32.gmra.mrb[0].mxu0 %v333
    %v2356 = vpop.f32.mrb[0].mxu0
    %v2357 = vadd.f32 0.0, %v2356
    %v2358 = vpop.f32.mrb[0].mxu0
    %2359 = vmatprep.mubr.f32.mxu0 0.0
    %2360 = vmatmul.mubr.f32.gmra.mrb[0].mxu0 %v333
    %v2361 = vpop.f32.mrb[0].mxu0
    %v2362 = vadd.f32 0.0, %v2361
    %v2363 = vpop.f32.mrb[0].mxu0
    %2364 = vmatprep.mubr.f32.mxu0 0.0
    %2365 = vmatmul.mubr.f32.gmra.mrb[0].mxu0 %v339
    %v2366 = vpop.f32.mrb[0].mxu0
    %v2367 = vadd.f32 0.0, %v2366
    %v2368 = vpop.f32.mrb[0].mxu0
    %2369 = vmatprep.mubr.f32.mxu0 0.0
    %2370 = vmatmul.mubr.f32.gmra.mrb[0].mxu0 %v342
    %v2371 = vpop.f32.mrb[0].mxu0
    %v2372 = vadd.f32 0.0, %v2371
    %v2373 = vpop.f32.mrb[0].mxu0
    %2374 = vmatprep.mubr.f32.mxu0 0.0
    %2375 = vmatmul.mubr.f32.gmra.mrb[0].mxu0 %v345
    %v2376 = vpop.f32.mrb[0].mxu0
    %v2377 = vadd.f32 0.0, %v2376
    %v2378 = vpop.f32.mrb[0].mxu0
    %2379 = vmatprep.mubr.f32.mxu0 0.0
    %2380 = vmatmul.mubr.f32.gmra.mrb[0].mxu0 %v348
    %v2381 = vpop.f32.mrb[0].mxu0
    %v2382 = vadd.f32 0.0, %v2381
    %v2383 = vpop.f32.mrb[0].mxu0
    %2384 = vmatprep.mubr.f32.mxu0 0.0
    %2385 = vmatmul.mubr.f32.gmra.mrb[0].mxu0 %v351
    %v2386 = vpop.f32.mrb[0].mxu0
    %v2387 = vadd.f32 0.0, %v2386
    %v2388 = vpop.f32.mrb[0].mxu0
    %2389 = vmatprep.mubr.f32.mxu0 0.0
    %2390 = vmatmul.mubr.f32.gmra.mrb[0].mxu0 %v354
    %v2391 = vpop.f32.mrb[0].mxu0
    %v2392 = vadd.f32 0.0, %v2391
    %v2393 = vpop.f32.mrb[0].mxu0
    %2394 = vmatprep.mubr.f32.mxu0 0.0
    %2395 = vmatmul.mubr.f32.gmra.mrb[0].mxu0 %v357
    %v2396 = vpop.f32.mrb[0].mxu0
    %v2397 = vadd.f32 0.0, %v2396
    %v2398 = vpop.f32.mrb[0].mxu0
    %2399 = vmatprep.mubr.f32.mxu0 0.0
    %2400 = vmatmul.mubr.f32.gmra.mrb[0].mxu0 %v357
    %v2401 = vpop.f32.mrb[0].mxu0
    %v2402 = vadd.f32 0.0, %v2401
    %v2403 = vpop.f32.mrb[0].mxu0
    %2404 = vmatprep.mubr.f32.mxu0 0.0
    %2405 = vmatmul.mubr.f32.gmra.mrb[0].mxu0 %v363
    %v2406 = vpop.f32.mrb[0].mxu0
    %v2407 = vadd.f32 0.0, %v2406
    %v2408 = vpop.f32.mrb[0].mxu0
    %2409 = vmatprep.mubr.f32.mxu0 0.0
    %2410 = vmatmul.mubr.f32.gmra.mrb[0].mxu0 %v366
    %v2411 = vpop.f32.mrb[0].mxu0
    %v2412 = vadd.f32 0.0, %v2411
    %v2413 = vpop.f32.mrb[0].mxu0
    %2414 = vmatprep.mubr.f32.mxu0 0.0
    %2415 = vmatmul.mubr.f32.gmra.mrb[0].mxu0 %v369
    %v2416 = vpop.f32.mrb[0].mxu0
    %v2417 = vadd.f32 0.0, %v2416
    %v2418 = vpop.f32.mrb[0].mxu0
    %2419 = vmatprep.mubr.f32.mxu0 0.0
    %2420 = vmatmul.mubr.f32.gmra.mrb[0].mxu0 %v372
    %v2421 = vpop.f32.mrb[0].mxu0
    %v2422 = vadd.f32 0.0, %v2421
    %v2423 = vpop.f32.mrb[0].mxu0
    %2424 = vmatprep.mubr.f32.mxu0 0.0
    %2425 = vmatmul.mubr.f32.gmra.mrb[0].mxu0 %v375
    %v2426 = vpop.f32.mrb[0].mxu0
    %v2427 = vadd.f32 0.0, %v2426
    %v2428 = vpop.f32.mrb[0].mxu0
    %2429 = vmatprep.mubr.f32.mxu0 0.0
    %2430 = vmatmul.mubr.f32.gmra.mrb[0].mxu0 %v378
    %v2431 = vpop.f32.mrb[0].mxu0
    %v2432 = vadd.f32 0.0, %v2431
    %v2433 = vpop.f32.mrb[0].mxu0
    %2434 = vmatprep.mubr.f32.mxu0 0.0
    %2435 = vmatmul.mubr.f32.gmra.mrb[0].mxu0 %v381
    %v2436 = vpop.f32.mrb[0].mxu0
    %v2437 = vadd.f32 0.0, %v2436
    %v2438 = vpop.f32.mrb[0].mxu0
    %2439 = vmatprep.mubr.f32.mxu0 0.0
    %2440 = vmatmul.mubr.f32.gmra.mrb[0].mxu0 %v381
    %v2441 = vpop.f32.mrb[0].mxu0
    %v2442 = vadd.f32 0.0, %v2441
    %v2443 = vpop.f32.mrb[0].mxu0
    %2444 = vmatprep.mubr.f32.mxu0 0.0
    %2445 = vmatmul.mubr.f32.gmra.mrb[0].mxu0 %v387
    %v2446 = vpop.f32.mrb[0].mxu0
    %v2447 = vadd.f32 0.0, %v2446
    %v2448 = vpop.f32.mrb[0].mxu0
    %2449 = vmatprep.mubr.f32.mxu0 0.0
    %2450 = vmatmul.mubr.f32.gmra.mrb[0].mxu0 %v390
    %v2451 = vpop.f32.mrb[0].mxu0
    %v2452 = vadd.f32 0.0, %v2451
    %v2453 = vpop.f32.mrb[0].mxu0
    %2454 = vmatprep.mubr.f32.mxu0 0.0
    %2455 = vmatmul.mubr.f32.gmra.mrb[0].mxu0 %v393
    %v2456 = vpop.f32.mrb[0].mxu0
    %v2457 = vadd.f32 0.0, %v2456
    %v2458 = vpop.f32.mrb[0].mxu0
    %2459 = vmatprep.mubr.f32.mxu0 0.0
    %2460 = vmatmul.mubr.f32.gmra.mrb[0].mxu0 %v396
    %v2461 = vpop.f32.mrb[0].mxu0
    %v2462 = vadd.f32 0.0, %v2461
    %v2463 = vpop.f32.mrb[0].mxu0
    %2464 = vmatprep.mubr.f32.mxu0 0.0
    %2465 = vmatmul.mubr.f32.gmra.mrb[0].mxu0 %v399
    %v2466 = vpop.f32.mrb[0].mxu0
    %v2467 = vadd.f32 0.0, %v2466
    %v2468 = vpop.f32.mrb[0].mxu0
    %2469 = vmatprep.mubr.f32.mxu0 0.0
    %2470 = vmatmul.mubr.f32.gmra.mrb[0].mxu0 %v402
    %v2471 = vpop.f32.mrb[0].mxu0
    %v2472 = vadd.f32 0.0, %v2471
    %v2473 = vpop.f32.mrb[0].mxu0
    %2474 = vmatprep.mubr.f32.mxu0 0.0
    %2475 = vmatmul.mubr.f32.gmra.mrb[0].mxu0 %v405
    %v2476 = vpop.f32.mrb[0].mxu0
    %v2477 = vadd.f32 0.0, %v2476
    %v2478 = vpop.f32.mrb[0].mxu0
    %2479 = vmatprep.mubr.f32.mxu0 0.0
    %2480 = vmatmul.mubr.f32.gmra.mrb[0].mxu0 %v405
    %v2481 = vpop.f32.mrb[0].mxu0
    %v2482 = vadd.f32 0.0, %v2481
    %v2483 = vpop.f32.mrb[0].mxu0
    %2484 = vmatprep.mubr.f32.mxu0 0.0
    %2485 = vmatmul.mubr.f32.gmra.mrb[0].mxu0 %v411
    %v2486 = vpop.f32.mrb[0].mxu0
    %v2487 = vadd.f32 0.0, %v2486
    %v2488 = vpop.f32.mrb[0].mxu0
    %2489 = vmatprep.mubr.f32.mxu0 0.0
    %2490 = vmatmul.mubr.f32.gmra.mrb[0].mxu0 %v414
    %v2491 = vpop.f32.mrb[0].mxu0
    %v2492 = vadd.f32 0.0, %v2491
    %v2493 = vpop.f32.mrb[0].mxu0
    %2494 = vmatprep.mubr.f32.mxu0 0.0
    %2495 = vmatmul.mubr.f32.gmra.mrb[0].mxu0 %v417
    %v2496 = vpop.f32.mrb[0].mxu0
    %v2497 = vadd.f32 0.0, %v2496
    %v2498 = vpop.f32.mrb[0].mxu0
    %2499 = vmatprep.mubr.f32.mxu0 0.0
    %2500 = vmatmul.mubr.f32.gmra.mrb[0].mxu0 %v420
    %v2501 = vpop.f32.mrb[0].mxu0
    %v2502 = vadd.f32 0.0, %v2501
    %v2503 = vpop.f32.mrb[0].mxu0
    %2504 = vmatprep.mubr.f32.mxu0 0.0
    %2505 = vmatmul.mubr.f32.gmra.mrb[0].mxu0 %v423
    %v2506 = vpop.f32.mrb[0].mxu0
    %v2507 = vadd.f32 0.0, %v2506
    %v2508 = vpop.f32.mrb[0].mxu0
    %2509 = vmatprep.mubr.f32.mxu0 0.0
    %2510 = vmatmul.mubr.f32.gmra.mrb[0].mxu0 %v426
    %v2511 = vpop.f32.mrb[0].mxu0
    %v2512 = vadd.f32 0.0, %v2511
    %v2513 = vpop.f32.mrb[0].mxu0
    %2514 = vmatprep.mubr.f32.mxu0 0.0
    %2515 = vmatmul.mubr.f32.gmra.mrb[0].mxu0 %v429
    %v2516 = vpop.f32.mrb[0].mxu0
    %v2517 = vadd.f32 0.0, %v2516
    %v2518 = vpop.f32.mrb[0].mxu0
    %2519 = vmatprep.mubr.f32.mxu0 0.0
    %2520 = vmatmul.mubr.f32.gmra.mrb[0].mxu0 %v429
    %v2521 = vpop.f32.mrb[0].mxu0
    %v2522 = vadd.f32 0.0, %v2521
    %v2523 = vpop.f32.mrb[0].mxu0
    %2524 = vmatprep.mubr.f32.mxu0 0.0
    %2525 = vmatmul.mubr.f32.gmra.mrb[0].mxu0 %v435
    %v2526 = vpop.f32.mrb[0].mxu0
    %v2527 = vadd.f32 0.0, %v2526
    %v2528 = vpop.f32.mrb[0].mxu0
    %2529 = vmatprep.mubr.f32.mxu0 0.0
    %2530 = vmatmul.mubr.f32.gmra.mrb[0].mxu0 %v438
    %v2531 = vpop.f32.mrb[0].mxu0
    %v2532 = vadd.f32 0.0, %v2531
    %v2533 = vpop.f32.mrb[0].mxu0
    %2534 = vmatprep.mubr.f32.mxu0 0.0
    %2535 = vmatmul.mubr.f32.gmra.mrb[0].mxu0 %v441
    %v2536 = vpop.f32.mrb[0].mxu0
    %v2537 = vadd.f32 0.0, %v2536
    %v2538 = vpop.f32.mrb[0].mxu0
    %2539 = vmatprep.mubr.f32.mxu0 0.0
    %2540 = vmatmul.mubr.f32.gmra.mrb[0].mxu0 %v444
    %v2541 = vpop.f32.mrb[0].mxu0
    %v2542 = vadd.f32 0.0, %v2541
    %v2543 = vpop.f32.mrb[0].mxu0
    %2544 = vmatprep.mubr.f32.mxu0 0.0
    %2545 = vmatmul.mubr.f32.gmra.mrb[0].mxu0 %v447
    %v2546 = vpop.f32.mrb[0].mxu0
    %v2547 = vadd.f32 0.0, %v2546
    %v2548 = vpop.f32.mrb[0].mxu0
    %2549 = vmatprep.mubr.f32.mxu0 0.0
    %2550 = vmatmul.mubr.f32.gmra.mrb[0].mxu0 %v450
    %v2551 = vpop.f32.mrb[0].mxu0
    %v2552 = vadd.f32 0.0, %v2551
    %v2553 = vpop.f32.mrb[0].mxu0
    %2554 = vmatprep.mubr.f32.mxu0 0.0
    %2555 = vmatmul.mubr.f32.gmra.mrb[0].mxu0 %v453
    %v2556 = vpop.f32.mrb[0].mxu0
    %v2557 = vadd.f32 0.0, %v2556
    %v2558 = vpop.f32.mrb[0].mxu0
    %2559 = vmatprep.mubr.f32.mxu0 0.0
    %2560 = vmatmul.mubr.f32.gmra.mrb[0].mxu0 %v453
    %v2561 = vpop.f32.mrb[0].mxu0
    %v2562 = vadd.f32 0.0, %v2561
    %v2563 = vpop.f32.mrb[0].mxu0
    %2564 = vmatprep.mubr.f32.mxu0 0.0
    %2565 = vmatmul.mubr.f32.gmra.mrb[0].mxu0 %v459
    %v2566 = vpop.f32.mrb[0].mxu0
    %v2567 = vadd.f32 0.0, %v2566
    %v2568 = vpop.f32.mrb[0].mxu0
    %2569 = vmatprep.mubr.f32.mxu0 0.0
    %2570 = vmatmul.mubr.f32.gmra.mrb[0].mxu0 %v462
    %v2571 = vpop.f32.mrb[0].mxu0
    %v2572 = vadd.f32 0.0, %v2571
    %v2573 = vpop.f32.mrb[0].mxu0
    %2574 = vmatprep.mubr.f32.mxu0 0.0
    %2575 = vmatmul.mubr.f32.gmra.mrb[0].mxu0 %v465
    %v2576 = vpop.f32.mrb[0].mxu0
    %v2577 = vadd.f32 0.0, %v2576
    %v2578 = vpop.f32.mrb[0].mxu0
    %2579 = vmatprep.mubr.f32.mxu0 0.0
    %2580 = vmatmul.mubr.f32.gmra.mrb[0].mxu0 %v468
    %v2581 = vpop.f32.mrb[0].mxu0
    %v2582 = vadd.f32 0.0, %v2581
    %v2583 = vpop.f32.mrb[0].mxu0
    %2584 = vmatprep.mubr.f32.mxu0 0.0
    %2585 = vmatmul.mubr.f32.gmra.mrb[0].mxu0 %v471
    %v2586 = vpop.f32.mrb[0].mxu0
    %v2587 = vadd.f32 0.0, %v2586
    %v2588 = vpop.f32.mrb[0].mxu0
    %2589 = vmatprep.mubr.f32.mxu0 0.0
    %2590 = vmatmul.mubr.f32.gmra.mrb[0].mxu0 %v474
    %v2591 = vpop.f32.mrb[0].mxu0
    %v2592 = vadd.f32 0.0, %v2591
    %v2593 = vpop.f32.mrb[0].mxu0
    %2594 = vmatprep.mubr.f32.mxu0 0.0
    %2595 = vmatmul.mubr.f32.gmra.mrb[0].mxu0 %v477
    %v2596 = vpop.f32.mrb[0].mxu0
    %v2597 = vadd.f32 0.0, %v2596
    %v2598 = vpop.f32.mrb[0].mxu0
    %2599 = vmatprep.mubr.f32.mxu0 0.0
    %2600 = vmatmul.mubr.f32.gmra.mrb[0].mxu0 %v477
    %v2601 = vpop.f32.mrb[0].mxu0
    %v2602 = vadd.f32 0.0, %v2601
    %v2603 = vpop.f32.mrb[0].mxu0
    %2604 = vdwg.mxu0
    %v2605 = vadd.f32 %v1258, %v1967
    %v2606 = vadd.f32 %v1263, %v1972
    %v2607 = vadd.f32 %v1268, %v1977
    %v2608 = vadd.f32 %v1273, %v1982
    %v2609 = vadd.f32 %v1278, %v1987
    %v2610 = vadd.f32 %v1283, %v1992
    %v2611 = vadd.f32 %v1288, %v1997
    %v2612 = vadd.f32 %v1293, %v2002
    %v2613 = vadd.f32 %v1298, %v2007
    %v2614 = vadd.f32 %v1303, %v2012
    %v2615 = vadd.f32 %v1308, %v2017
    %v2616 = vadd.f32 %v1313, %v2022
    %v2617 = vadd.f32 %v1318, %v2027
    %v2618 = vadd.f32 %v1323, %v2032
    %v2619 = vadd.f32 %v1328, %v2037
    %v2620 = vadd.f32 %v1333, %v2042
    %v2621 = vadd.f32 %v1338, %v2047
    %v2622 = vadd.f32 %v1343, %v2052
    %v2623 = vadd.f32 %v1348, %v2057
    %v2624 = vadd.f32 %v1353, %v2062
    %v2625 = vadd.f32 %v1358, %v2067
    %v2626 = vadd.f32 %v1363, %v2072
    %v2627 = vadd.f32 %v1368, %v2077
    %v2628 = vadd.f32 %v1373, %v2082
    %v2629 = vadd.f32 %v1378, %v2087
    %v2630 = vadd.f32 %v1383, %v2092
    %v2631 = vadd.f32 %v1388, %v2097
    %v2632 = vadd.f32 %v1393, %v2102
    %v2633 = vadd.f32 %v1398, %v2107
    %v2634 = vadd.f32 %v1403, %v2112
    %v2635 = vadd.f32 %v1408, %v2117
    %v2636 = vadd.f32 %v1413, %v2122
    %v2637 = vadd.f32 %v1418, %v2127
    %v2638 = vadd.f32 %v1423, %v2132
    %v2639 = vadd.f32 %v1428, %v2137
    %v2640 = vadd.f32 %v1433, %v2142
    %v2641 = vadd.f32 %v1438, %v2147
    %v2642 = vadd.f32 %v1443, %v2152
    %v2643 = vadd.f32 %v1448, %v2157
    %v2644 = vadd.f32 %v1453, %v2162
    %v2645 = vadd.f32 %v1458, %v2167
    %v2646 = vadd.f32 %v1463, %v2172
    %v2647 = vadd.f32 %v1468, %v2177
    %v2648 = vadd.f32 %v1473, %v2182
    %v2649 = vadd.f32 %v1478, %v2187
    %v2650 = vadd.f32 %v1483, %v2192
    %v2651 = vadd.f32 %v1488, %v2197
    %v2652 = vadd.f32 %v1493, %v2202
    %v2653 = vadd.f32 %v1498, %v2207
    %v2654 = vadd.f32 %v1503, %v2212
    %v2655 = vadd.f32 %v1508, %v2217
    %v2656 = vadd.f32 %v1513, %v2222
    %v2657 = vadd.f32 %v1518, %v2227
    %v2658 = vadd.f32 %v1523, %v2232
    %v2659 = vadd.f32 %v1528, %v2237
    %v2660 = vadd.f32 %v1533, %v2242
    %v2661 = vadd.f32 %v1538, %v2247
    %v2662 = vadd.f32 %v1543, %v2252
    %v2663 = vadd.f32 %v1548, %v2257
    %v2664 = vadd.f32 %v1553, %v2262
    %v2665 = vadd.f32 %v1558, %v2267
    %v2666 = vadd.f32 %v1563, %v2272
    %v2667 = vadd.f32 %v1568, %v2277
    %v2668 = vadd.f32 %v1573, %v2282
    %v2669 = vadd.f32 %v1578, %v2287
    %v2670 = vadd.f32 %v1583, %v2292
    %v2671 = vadd.f32 %v1588, %v2297
    %v2672 = vadd.f32 %v1593, %v2302
    %v2673 = vadd.f32 %v1598, %v2307
    %v2674 = vadd.f32 %v1603, %v2312
    %v2675 = vadd.f32 %v1608, %v2317
    %v2676 = vadd.f32 %v1613, %v2322
    %v2677 = vadd.f32 %v1618, %v2327
    %v2678 = vadd.f32 %v1623, %v2332
    %v2679 = vadd.f32 %v1628, %v2337
    %v2680 = vadd.f32 %v1633, %v2342
    %v2681 = vadd.f32 %v1638, %v2347
    %v2682 = vadd.f32 %v1643, %v2352
    %v2683 = vadd.f32 %v1648, %v2357
    %v2684 = vadd.f32 %v1653, %v2362
    %v2685 = vadd.f32 %v1658, %v2367
    %v2686 = vadd.f32 %v1663, %v2372
    %v2687 = vadd.f32 %v1668, %v2377
    %v2688 = vadd.f32 %v1673, %v2382
    %v2689 = vadd.f32 %v1678, %v2387
    %v2690 = vadd.f32 %v1683, %v2392
    %v2691 = vadd.f32 %v1688, %v2397
    %v2692 = vadd.f32 %v1693, %v2402
    %v2693 = vadd.f32 %v1698, %v2407
    %v2694 = vadd.f32 %v1703, %v2412
    %v2695 = vadd.f32 %v1708, %v2417
    %v2696 = vadd.f32 %v1713, %v2422
    %v2697 = vadd.f32 %v1718, %v2427
    %v2698 = vadd.f32 %v1723, %v2432
    %v2699 = vadd.f32 %v1728, %v2437
    %v2700 = vadd.f32 %v1733, %v2442
    %v2701 = vadd.f32 %v1738, %v2447
    %v2702 = vadd.f32 %v1743, %v2452
    %v2703 = vadd.f32 %v1748, %v2457
    %v2704 = vadd.f32 %v1753, %v2462
    %v2705 = vadd.f32 %v1758, %v2467
    %v2706 = vadd.f32 %v1763, %v2472
    %v2707 = vadd.f32 %v1768, %v2477
    %v2708 = vadd.f32 %v1773, %v2482
    %v2709 = vadd.f32 %v1778, %v2487
    %v2710 = vadd.f32 %v1783, %v2492
    %v2711 = vadd.f32 %v1788, %v2497
    %v2712 = vadd.f32 %v1793, %v2502
    %v2713 = vadd.f32 %v1798, %v2507
    %v2714 = vadd.f32 %v1803, %v2512
    %v2715 = vadd.f32 %v1808, %v2517
    %v2716 = vadd.f32 %v1813, %v2522
    %v2717 = vadd.f32 %v1818, %v2527
    %v2718 = vadd.f32 %v1823, %v2532
    %v2719 = vadd.f32 %v1828, %v2537
    %v2720 = vadd.f32 %v1833, %v2542
    %v2721 = vadd.f32 %v1838, %v2547
    %v2722 = vadd.f32 %v1843, %v2552
    %v2723 = vadd.f32 %v1848, %v2557
    %v2724 = vadd.f32 %v1853, %v2562
    %v2725 = vadd.f32 %v1858, %v2567
    %v2726 = vadd.f32 %v1863, %v2572
    %v2727 = vadd.f32 %v1868, %v2577
    %v2728 = vadd.f32 %v1873, %v2582
    %v2729 = vadd.f32 %v1878, %v2587
    %v2730 = vadd.f32 %v1883, %v2592
    %v2731 = vadd.f32 %v1888, %v2597
    %v2732 = vadd.f32 %v1893, %v2602
    %v2733 = vld [vmem:[%s1 + $0xc] sm:$0xf]
    %v2735 = vsel %vm142, %v68, 0
    %v2738 = vsel %vm142, %v69, 0
    %v2741 = vsel %vm142, %v70, 0
    %v2744 = vsel %vm142, %v71, 0
    %v2747 = vsel %vm142, %v72, 0
    %v2750 = vsel %vm142, %v73, 0
    %v2753 = vsel %vm142, %v74, 0
    %v2756 = vsel %vm142, %v132, 0
    %v2759 = vsel %vm142, %v133, 0
    %v2762 = vsel %vm142, %v134, 0
    %v2765 = vsel %vm142, %v135, 0
    %v2768 = vsel %vm142, %v136, 0
    %v2771 = vsel %vm142, %v137, 0
    %v2774 = vsel %vm142, %v138, 0
    %v2777 = vsel %vm479, %v2733, 0
    %2779 = vmatprep.subr.mxu0 0.0
    %2780 = vmatpush1.msra.mxu0 %v2777
    %2781 = vmatprep.subr.mxu0 0.0
    %2782 = vmatpush1.msra.mxu0 0.0
    %2783 = vmatprep.subr.mxu0 0.0
    %2784 = vmatpush1.msra.mxu0 0.0
    %2785 = vmatprep.subr.mxu0 0.0
    %2786 = vmatpush1.msra.mxu0 0.0
    %2787 = vmatprep.subr.mxu0 0.0
    %2788 = vmatpush1.msra.mxu0 0.0
    %2789 = vmatprep.subr.mxu0 0.0
    %2790 = vmatpush1.msra.mxu0 0.0
    %2791 = vmatprep.subr.mxu0 0.0
    %2792 = vmatpush1.msra.mxu0 0.0
    %2793 = vmatprep.subr.mxu0 0.0
    %2794 = vmatpush1.msra.mxu0 0.0
    %2795 = vmatprep.subr.mxu0 0.0
    %2796 = vmatpush1.msra.mxu0 0.0
    %2797 = vmatprep.subr.mxu0 0.0
    %2798 = vmatpush1.msra.mxu0 0.0
    %2799 = vmatprep.subr.mxu0 0.0
    %2800 = vmatpush1.msra.mxu0 0.0
    %2801 = vmatprep.subr.mxu0 0.0
    %2802 = vmatpush1.msra.mxu0 0.0
    %2803 = vmatprep.subr.mxu0 0.0
    %2804 = vmatpush1.msra.mxu0 0.0
    %2805 = vmatprep.subr.mxu0 0.0
    %2806 = vmatpush1.msra.mxu0 0.0
    %2807 = vmatprep.subr.mxu0 0.0
    %2808 = vmatpush1.msra.mxu0 0.0
    %2809 = vmatprep.subr.mxu0 0.0
    %2810 = vmatpush1.msra.mxu0 0.0
    %2811 = vmatprep.subr.mxu0 0.0
    %2812 = vmatpush1.msra.mxu0 0.0
    %2813 = vmatprep.subr.mxu0 0.0
    %2814 = vmatpush1.msra.mxu0 0.0
    %2815 = vmatprep.subr.mxu0 0.0
    %2816 = vmatpush1.msra.mxu0 0.0
    %2817 = vmatprep.subr.mxu0 0.0
    %2818 = vmatpush1.msra.mxu0 0.0
    %2819 = vmatprep.subr.mxu0 0.0
    %2820 = vmatpush1.msra.mxu0 0.0
    %2821 = vmatprep.subr.mxu0 0.0
    %2822 = vmatpush1.msra.mxu0 0.0
    %2823 = vmatprep.subr.mxu0 0.0
    %2824 = vmatpush1.msra.mxu0 0.0
    %2825 = vmatprep.subr.mxu0 0.0
    %2826 = vmatpush1.msra.mxu0 0.0
    %2827 = vmatprep.subr.mxu0 0.0
    %2828 = vmatpush1.msra.mxu0 0.0
    %2829 = vmatprep.subr.mxu0 0.0
    %2830 = vmatpush1.msra.mxu0 0.0
    %2831 = vmatprep.subr.mxu0 0.0
    %2832 = vmatpush1.msra.mxu0 0.0
    %2833 = vmatprep.subr.mxu0 0.0
    %2834 = vmatpush1.msra.mxu0 0.0
    %2835 = vmatprep.subr.mxu0 0.0
    %2836 = vmatpush1.msra.mxu0 0.0
    %2837 = vmatprep.subr.mxu0 0.0
    %2838 = vmatpush1.msra.mxu0 0.0
    %2839 = vmatprep.subr.mxu0 0.0
    %2840 = vmatpush1.msra.mxu0 0.0
    %2841 = vmatprep.subr.mxu0 0.0
    %2842 = vmatpush1.msra.mxu0 0.0
    %2843 = vmatprep.mubr.f32.mxu0 0.0
    %2844 = vmatmul.mubr.f32.gmra.mrb[0].mxu0 %v144
    %v2845 = vpop.f32.mrb[0].mxu0
    %v2846 = vadd.f32 0.0, %v2845
    %v2847 = vpop.f32.mrb[0].mxu0
    %2848 = vmatprep.mubr.f32.mxu0 0.0
    %2849 = vmatmul.mubr.f32.gmra.mrb[0].mxu0 %v144
    %v2850 = vpop.f32.mrb[0].mxu0
    %v2851 = vadd.f32 0.0, %v2850
    %v2852 = vpop.f32.mrb[0].mxu0
    %2853 = vmatprep.mubr.f32.mxu0 0.0
    %2854 = vmatmul.mubr.f32.gmra.mrb[0].mxu0 %v147
    %v2855 = vpop.f32.mrb[0].mxu0
    %v2856 = vadd.f32 0.0, %v2855
    %v2857 = vpop.f32.mrb[0].mxu0
    %2858 = vmatprep.mubr.f32.mxu0 0.0
    %2859 = vmatmul.mubr.f32.gmra.mrb[0].mxu0 %v150
    %v2860 = vpop.f32.mrb[0].mxu0
    %v2861 = vadd.f32 0.0, %v2860
    %v2862 = vpop.f32.mrb[0].mxu0
    %2863 = vmatprep.mubr.f32.mxu0 0.0
    %2864 = vmatmul.mubr.f32.gmra.mrb[0].mxu0 %v153
    %v2865 = vpop.f32.mrb[0].mxu0
    %v2866 = vadd.f32 0.0, %v2865
    %v2867 = vpop.f32.mrb[0].mxu0
    %2868 = vmatprep.mubr.f32.mxu0 0.0
    %2869 = vmatmul.mubr.f32.gmra.mrb[0].mxu0 %v156
    %v2870 = vpop.f32.mrb[0].mxu0
    %v2871 = vadd.f32 0.0, %v2870
    %v2872 = vpop.f32.mrb[0].mxu0
    %2873 = vmatprep.mubr.f32.mxu0 0.0
    %2874 = vmatmul.mubr.f32.gmra.mrb[0].mxu0 %v159
    %v2875 = vpop.f32.mrb[0].mxu0
    %v2876 = vadd.f32 0.0, %v2875
    %v2877 = vpop.f32.mrb[0].mxu0
    %2878 = vmatprep.mubr.f32.mxu0 0.0
    %2879 = vmatmul.mubr.f32.gmra.mrb[0].mxu0 %v162
    %v2880 = vpop.f32.mrb[0].mxu0
    %v2881 = vadd.f32 0.0, %v2880
    %v2882 = vpop.f32.mrb[0].mxu0
    %2883 = vmatprep.mubr.f32.mxu0 0.0
    %2884 = vmatmul.mubr.f32.gmra.mrb[0].mxu0 %v168
    %v2885 = vpop.f32.mrb[0].mxu0
    %v2886 = vadd.f32 0.0, %v2885
    %v2887 = vpop.f32.mrb[0].mxu0
    %2888 = vmatprep.mubr.f32.mxu0 0.0
    %2889 = vmatmul.mubr.f32.gmra.mrb[0].mxu0 %v168
    %v2890 = vpop.f32.mrb[0].mxu0
    %v2891 = vadd.f32 0.0, %v2890
    %v2892 = vpop.f32.mrb[0].mxu0
    %2893 = vmatprep.mubr.f32.mxu0 0.0
    %2894 = vmatmul.mubr.f32.gmra.mrb[0].mxu0 %v171
    %v2895 = vpop.f32.mrb[0].mxu0
    %v2896 = vadd.f32 0.0, %v2895
    %v2897 = vpop.f32.mrb[0].mxu0
    %2898 = vmatprep.mubr.f32.mxu0 0.0
    %2899 = vmatmul.mubr.f32.gmra.mrb[0].mxu0 %v174
    %v2900 = vpop.f32.mrb[0].mxu0
    %v2901 = vadd.f32 0.0, %v2900
    %v2902 = vpop.f32.mrb[0].mxu0
    %2903 = vmatprep.mubr.f32.mxu0 0.0
    %2904 = vmatmul.mubr.f32.gmra.mrb[0].mxu0 %v177
    %v2905 = vpop.f32.mrb[0].mxu0
    %v2906 = vadd.f32 0.0, %v2905
    %v2907 = vpop.f32.mrb[0].mxu0
    %2908 = vmatprep.mubr.f32.mxu0 0.0
    %2909 = vmatmul.mubr.f32.gmra.mrb[0].mxu0 %v180
    %v2910 = vpop.f32.mrb[0].mxu0
    %v2911 = vadd.f32 0.0, %v2910
    %v2912 = vpop.f32.mrb[0].mxu0
    %2913 = vmatprep.mubr.f32.mxu0 0.0
    %2914 = vmatmul.mubr.f32.gmra.mrb[0].mxu0 %v183
    %v2915 = vpop.f32.mrb[0].mxu0
    %v2916 = vadd.f32 0.0, %v2915
    %v2917 = vpop.f32.mrb[0].mxu0
    %2918 = vmatprep.mubr.f32.mxu0 0.0
    %2919 = vmatmul.mubr.f32.gmra.mrb[0].mxu0 %v186
    %v2920 = vpop.f32.mrb[0].mxu0
    %v2921 = vadd.f32 0.0, %v2920
    %v2922 = vpop.f32.mrb[0].mxu0
    %2923 = vmatprep.mubr.f32.mxu0 0.0
    %2924 = vmatmul.mubr.f32.gmra.mrb[0].mxu0 %v192
    %v2925 = vpop.f32.mrb[0].mxu0
    %v2926 = vadd.f32 0.0, %v2925
    %v2927 = vpop.f32.mrb[0].mxu0
    %2928 = vmatprep.mubr.f32.mxu0 0.0
    %2929 = vmatmul.mubr.f32.gmra.mrb[0].mxu0 %v192
    %v2930 = vpop.f32.mrb[0].mxu0
    %v2931 = vadd.f32 0.0, %v2930
    %v2932 = vpop.f32.mrb[0].mxu0
    %2933 = vmatprep.mubr.f32.mxu0 0.0
    %2934 = vmatmul.mubr.f32.gmra.mrb[0].mxu0 %v195
    %v2935 = vpop.f32.mrb[0].mxu0
    %v2936 = vadd.f32 0.0, %v2935
    %v2937 = vpop.f32.mrb[0].mxu0
    %2938 = vmatprep.mubr.f32.mxu0 0.0
    %2939 = vmatmul.mubr.f32.gmra.mrb[0].mxu0 %v198
    %v2940 = vpop.f32.mrb[0].mxu0
    %v2941 = vadd.f32 0.0, %v2940
    %v2942 = vpop.f32.mrb[0].mxu0
    %2943 = vmatprep.mubr.f32.mxu0 0.0
    %2944 = vmatmul.mubr.f32.gmra.mrb[0].mxu0 %v201
    %v2945 = vpop.f32.mrb[0].mxu0
    %v2946 = vadd.f32 0.0, %v2945
    %v2947 = vpop.f32.mrb[0].mxu0
    %2948 = vmatprep.mubr.f32.mxu0 0.0
    %2949 = vmatmul.mubr.f32.gmra.mrb[0].mxu0 %v204
    %v2950 = vpop.f32.mrb[0].mxu0
    %v2951 = vadd.f32 0.0, %v2950
    %v2952 = vpop.f32.mrb[0].mxu0
    %2953 = vmatprep.mubr.f32.mxu0 0.0
    %2954 = vmatmul.mubr.f32.gmra.mrb[0].mxu0 %v207
    %v2955 = vpop.f32.mrb[0].mxu0
    %v2956 = vadd.f32 0.0, %v2955
    %v2957 = vpop.f32.mrb[0].mxu0
    %2958 = vmatprep.mubr.f32.mxu0 0.0
    %2959 = vmatmul.mubr.f32.gmra.mrb[0].mxu0 %v210
    %v2960 = vpop.f32.mrb[0].mxu0
    %v2961 = vadd.f32 0.0, %v2960
    %v2962 = vpop.f32.mrb[0].mxu0
    %2963 = vmatprep.mubr.f32.mxu0 0.0
    %2964 = vmatmul.mubr.f32.gmra.mrb[0].mxu0 %v216
    %v2965 = vpop.f32.mrb[0].mxu0
    %v2966 = vadd.f32 0.0, %v2965
    %v2967 = vpop.f32.mrb[0].mxu0
    %2968 = vmatprep.mubr.f32.mxu0 0.0
    %2969 = vmatmul.mubr.f32.gmra.mrb[0].mxu0 %v216
    %v2970 = vpop.f32.mrb[0].mxu0
    %v2971 = vadd.f32 0.0, %v2970
    %v2972 = vpop.f32.mrb[0].mxu0
    %2973 = vmatprep.mubr.f32.mxu0 0.0
    %2974 = vmatmul.mubr.f32.gmra.mrb[0].mxu0 %v219
    %v2975 = vpop.f32.mrb[0].mxu0
    %v2976 = vadd.f32 0.0, %v2975
    %v2977 = vpop.f32.mrb[0].mxu0
    %2978 = vmatprep.mubr.f32.mxu0 0.0
    %2979 = vmatmul.mubr.f32.gmra.mrb[0].mxu0 %v222
    %v2980 = vpop.f32.mrb[0].mxu0
    %v2981 = vadd.f32 0.0, %v2980
    %v2982 = vpop.f32.mrb[0].mxu0
    %2983 = vmatprep.mubr.f32.mxu0 0.0
    %2984 = vmatmul.mubr.f32.gmra.mrb[0].mxu0 %v225
    %v2985 = vpop.f32.mrb[0].mxu0
    %v2986 = vadd.f32 0.0, %v2985
    %v2987 = vpop.f32.mrb[0].mxu0
    %2988 = vmatprep.mubr.f32.mxu0 0.0
    %2989 = vmatmul.mubr.f32.gmra.mrb[0].mxu0 %v228
    %v2990 = vpop.f32.mrb[0].mxu0
    %v2991 = vadd.f32 0.0, %v2990
    %v2992 = vpop.f32.mrb[0].mxu0
    %2993 = vmatprep.mubr.f32.mxu0 0.0
    %2994 = vmatmul.mubr.f32.gmra.mrb[0].mxu0 %v231
    %v2995 = vpop.f32.mrb[0].mxu0
    %v2996 = vadd.f32 0.0, %v2995
    %v2997 = vpop.f32.mrb[0].mxu0
    %2998 = vmatprep.mubr.f32.mxu0 0.0
    %2999 = vmatmul.mubr.f32.gmra.mrb[0].mxu0 %v234
    %v3000 = vpop.f32.mrb[0].mxu0
    %v3001 = vadd.f32 0.0, %v3000
    %v3002 = vpop.f32.mrb[0].mxu0
    %3003 = vmatprep.mubr.f32.mxu0 0.0
    %3004 = vmatmul.mubr.f32.gmra.mrb[0].mxu0 %v240
    %v3005 = vpop.f32.mrb[0].mxu0
    %v3006 = vadd.f32 0.0, %v3005
    %v3007 = vpop.f32.mrb[0].mxu0
    %3008 = vmatprep.mubr.f32.mxu0 0.0
    %3009 = vmatmul.mubr.f32.gmra.mrb[0].mxu0 %v240
    %v3010 = vpop.f32.mrb[0].mxu0
    %v3011 = vadd.f32 0.0, %v3010
    %v3012 = vpop.f32.mrb[0].mxu0
    %3013 = vmatprep.mubr.f32.mxu0 0.0
    %3014 = vmatmul.mubr.f32.gmra.mrb[0].mxu0 %v243
    %v3015 = vpop.f32.mrb[0].mxu0
    %v3016 = vadd.f32 0.0, %v3015
    %v3017 = vpop.f32.mrb[0].mxu0
    %3018 = vmatprep.mubr.f32.mxu0 0.0
    %3019 = vmatmul.mubr.f32.gmra.mrb[0].mxu0 %v246
    %v3020 = vpop.f32.mrb[0].mxu0
    %v3021 = vadd.f32 0.0, %v3020
    %v3022 = vpop.f32.mrb[0].mxu0
    %3023 = vmatprep.mubr.f32.mxu0 0.0
    %3024 = vmatmul.mubr.f32.gmra.mrb[0].mxu0 %v249
    %v3025 = vpop.f32.mrb[0].mxu0
    %v3026 = vadd.f32 0.0, %v3025
    %v3027 = vpop.f32.mrb[0].mxu0
    %3028 = vmatprep.mubr.f32.mxu0 0.0
    %3029 = vmatmul.mubr.f32.gmra.mrb[0].mxu0 %v252
    %v3030 = vpop.f32.mrb[0].mxu0
    %v3031 = vadd.f32 0.0, %v3030
    %v3032 = vpop.f32.mrb[0].mxu0
    %3033 = vmatprep.mubr.f32.mxu0 0.0
    %3034 = vmatmul.mubr.f32.gmra.mrb[0].mxu0 %v255
    %v3035 = vpop.f32.mrb[0].mxu0
    %v3036 = vadd.f32 0.0, %v3035
    %v3037 = vpop.f32.mrb[0].mxu0
    %3038 = vmatprep.mubr.f32.mxu0 0.0
    %3039 = vmatmul.mubr.f32.gmra.mrb[0].mxu0 %v258
    %v3040 = vpop.f32.mrb[0].mxu0
    %v3041 = vadd.f32 0.0, %v3040
    %v3042 = vpop.f32.mrb[0].mxu0
    %3043 = vmatprep.mubr.f32.mxu0 0.0
    %3044 = vmatmul.mubr.f32.gmra.mrb[0].mxu0 %v264
    %v3045 = vpop.f32.mrb[0].mxu0
    %v3046 = vadd.f32 0.0, %v3045
    %v3047 = vpop.f32.mrb[0].mxu0
    %3048 = vmatprep.mubr.f32.mxu0 0.0
    %3049 = vmatmul.mubr.f32.gmra.mrb[0].mxu0 %v264
    %v3050 = vpop.f32.mrb[0].mxu0
    %v3051 = vadd.f32 0.0, %v3050
    %v3052 = vpop.f32.mrb[0].mxu0
    %3053 = vmatprep.mubr.f32.mxu0 0.0
    %3054 = vmatmul.mubr.f32.gmra.mrb[0].mxu0 %v267
    %v3055 = vpop.f32.mrb[0].mxu0
    %v3056 = vadd.f32 0.0, %v3055
    %v3057 = vpop.f32.mrb[0].mxu0
    %3058 = vmatprep.mubr.f32.mxu0 0.0
    %3059 = vmatmul.mubr.f32.gmra.mrb[0].mxu0 %v270
    %v3060 = vpop.f32.mrb[0].mxu0
    %v3061 = vadd.f32 0.0, %v3060
    %v3062 = vpop.f32.mrb[0].mxu0
    %3063 = vmatprep.mubr.f32.mxu0 0.0
    %3064 = vmatmul.mubr.f32.gmra.mrb[0].mxu0 %v273
    %v3065 = vpop.f32.mrb[0].mxu0
    %v3066 = vadd.f32 0.0, %v3065
    %v3067 = vpop.f32.mrb[0].mxu0
    %3068 = vmatprep.mubr.f32.mxu0 0.0
    %3069 = vmatmul.mubr.f32.gmra.mrb[0].mxu0 %v276
    %v3070 = vpop.f32.mrb[0].mxu0
    %v3071 = vadd.f32 0.0, %v3070
    %v3072 = vpop.f32.mrb[0].mxu0
    %3073 = vmatprep.mubr.f32.mxu0 0.0
    %3074 = vmatmul.mubr.f32.gmra.mrb[0].mxu0 %v279
    %v3075 = vpop.f32.mrb[0].mxu0
    %v3076 = vadd.f32 0.0, %v3075
    %v3077 = vpop.f32.mrb[0].mxu0
    %3078 = vmatprep.mubr.f32.mxu0 0.0
    %3079 = vmatmul.mubr.f32.gmra.mrb[0].mxu0 %v282
    %v3080 = vpop.f32.mrb[0].mxu0
    %v3081 = vadd.f32 0.0, %v3080
    %v3082 = vpop.f32.mrb[0].mxu0
    %3083 = vmatprep.mubr.f32.mxu0 0.0
    %3084 = vmatmul.mubr.f32.gmra.mrb[0].mxu0 %v288
    %v3085 = vpop.f32.mrb[0].mxu0
    %v3086 = vadd.f32 0.0, %v3085
    %v3087 = vpop.f32.mrb[0].mxu0
    %3088 = vmatprep.mubr.f32.mxu0 0.0
    %3089 = vmatmul.mubr.f32.gmra.mrb[0].mxu0 %v288
    %v3090 = vpop.f32.mrb[0].mxu0
    %v3091 = vadd.f32 0.0, %v3090
    %v3092 = vpop.f32.mrb[0].mxu0
    %3093 = vmatprep.mubr.f32.mxu0 0.0
    %3094 = vmatmul.mubr.f32.gmra.mrb[0].mxu0 %v291
    %v3095 = vpop.f32.mrb[0].mxu0
    %v3096 = vadd.f32 0.0, %v3095
    %v3097 = vpop.f32.mrb[0].mxu0
    %3098 = vmatprep.mubr.f32.mxu0 0.0
    %3099 = vmatmul.mubr.f32.gmra.mrb[0].mxu0 %v294
    %v3100 = vpop.f32.mrb[0].mxu0
    %v3101 = vadd.f32 0.0, %v3100
    %v3102 = vpop.f32.mrb[0].mxu0
    %3103 = vmatprep.mubr.f32.mxu0 0.0
    %3104 = vmatmul.mubr.f32.gmra.mrb[0].mxu0 %v297
    %v3105 = vpop.f32.mrb[0].mxu0
    %v3106 = vadd.f32 0.0, %v3105
    %v3107 = vpop.f32.mrb[0].mxu0
    %3108 = vmatprep.mubr.f32.mxu0 0.0
    %3109 = vmatmul.mubr.f32.gmra.mrb[0].mxu0 %v300
    %v3110 = vpop.f32.mrb[0].mxu0
    %v3111 = vadd.f32 0.0, %v3110
    %v3112 = vpop.f32.mrb[0].mxu0
    %3113 = vmatprep.mubr.f32.mxu0 0.0
    %3114 = vmatmul.mubr.f32.gmra.mrb[0].mxu0 %v303
    %v3115 = vpop.f32.mrb[0].mxu0
    %v3116 = vadd.f32 0.0, %v3115
    %v3117 = vpop.f32.mrb[0].mxu0
    %3118 = vmatprep.mubr.f32.mxu0 0.0
    %3119 = vmatmul.mubr.f32.gmra.mrb[0].mxu0 %v306
    %v3120 = vpop.f32.mrb[0].mxu0
    %v3121 = vadd.f32 0.0, %v3120
    %v3122 = vpop.f32.mrb[0].mxu0
    %3123 = vmatprep.mubr.f32.mxu0 0.0
    %3124 = vmatmul.mubr.f32.gmra.mrb[0].mxu0 %v2735
    %v3125 = vpop.f32.mrb[0].mxu0
    %v3126 = vadd.f32 0.0, %v3125
    %v3127 = vpop.f32.mrb[0].mxu0
    %3128 = vmatprep.mubr.f32.mxu0 0.0
    %3129 = vmatmul.mubr.f32.gmra.mrb[0].mxu0 %v2735
    %v3130 = vpop.f32.mrb[0].mxu0
    %v3131 = vadd.f32 0.0, %v3130
    %v3132 = vpop.f32.mrb[0].mxu0
    %3133 = vmatprep.mubr.f32.mxu0 0.0
    %3134 = vmatmul.mubr.f32.gmra.mrb[0].mxu0 %v2738
    %v3135 = vpop.f32.mrb[0].mxu0
    %v3136 = vadd.f32 0.0, %v3135
    %v3137 = vpop.f32.mrb[0].mxu0
    %3138 = vmatprep.mubr.f32.mxu0 0.0
    %3139 = vmatmul.mubr.f32.gmra.mrb[0].mxu0 %v2741
    %v3140 = vpop.f32.mrb[0].mxu0
    %v3141 = vadd.f32 0.0, %v3140
    %v3142 = vpop.f32.mrb[0].mxu0
    %3143 = vmatprep.mubr.f32.mxu0 0.0
    %3144 = vmatmul.mubr.f32.gmra.mrb[0].mxu0 %v2744
    %v3145 = vpop.f32.mrb[0].mxu0
    %v3146 = vadd.f32 0.0, %v3145
    %v3147 = vpop.f32.mrb[0].mxu0
    %3148 = vmatprep.mubr.f32.mxu0 0.0
    %3149 = vmatmul.mubr.f32.gmra.mrb[0].mxu0 %v2747
    %v3150 = vpop.f32.mrb[0].mxu0
    %v3151 = vadd.f32 0.0, %v3150
    %v3152 = vpop.f32.mrb[0].mxu0
    %3153 = vmatprep.mubr.f32.mxu0 0.0
    %3154 = vmatmul.mubr.f32.gmra.mrb[0].mxu0 %v2750
    %v3155 = vpop.f32.mrb[0].mxu0
    %v3156 = vadd.f32 0.0, %v3155
    %v3157 = vpop.f32.mrb[0].mxu0
    %3158 = vmatprep.mubr.f32.mxu0 0.0
    %3159 = vmatmul.mubr.f32.gmra.mrb[0].mxu0 %v2753
    %v3160 = vpop.f32.mrb[0].mxu0
    %v3161 = vadd.f32 0.0, %v3160
    %v3162 = vpop.f32.mrb[0].mxu0
    %3163 = vmatprep.mubr.f32.mxu0 0.0
    %3164 = vmatmul.mubr.f32.gmra.mrb[0].mxu0 %v312
    %v3165 = vpop.f32.mrb[0].mxu0
    %v3166 = vadd.f32 0.0, %v3165
    %v3167 = vpop.f32.mrb[0].mxu0
    %3168 = vmatprep.mubr.f32.mxu0 0.0
    %3169 = vmatmul.mubr.f32.gmra.mrb[0].mxu0 %v312
    %v3170 = vpop.f32.mrb[0].mxu0
    %v3171 = vadd.f32 0.0, %v3170
    %v3172 = vpop.f32.mrb[0].mxu0
    %3173 = vmatprep.mubr.f32.mxu0 0.0
    %3174 = vmatmul.mubr.f32.gmra.mrb[0].mxu0 %v315
    %v3175 = vpop.f32.mrb[0].mxu0
    %v3176 = vadd.f32 0.0, %v3175
    %v3177 = vpop.f32.mrb[0].mxu0
    %3178 = vmatprep.mubr.f32.mxu0 0.0
    %3179 = vmatmul.mubr.f32.gmra.mrb[0].mxu0 %v318
    %v3180 = vpop.f32.mrb[0].mxu0
    %v3181 = vadd.f32 0.0, %v3180
    %v3182 = vpop.f32.mrb[0].mxu0
    %3183 = vmatprep.mubr.f32.mxu0 0.0
    %3184 = vmatmul.mubr.f32.gmra.mrb[0].mxu0 %v321
    %v3185 = vpop.f32.mrb[0].mxu0
    %v3186 = vadd.f32 0.0, %v3185
    %v3187 = vpop.f32.mrb[0].mxu0
    %3188 = vmatprep.mubr.f32.mxu0 0.0
    %3189 = vmatmul.mubr.f32.gmra.mrb[0].mxu0 %v324
    %v3190 = vpop.f32.mrb[0].mxu0
    %v3191 = vadd.f32 0.0, %v3190
    %v3192 = vpop.f32.mrb[0].mxu0
    %3193 = vmatprep.mubr.f32.mxu0 0.0
    %3194 = vmatmul.mubr.f32.gmra.mrb[0].mxu0 %v327
    %v3195 = vpop.f32.mrb[0].mxu0
    %v3196 = vadd.f32 0.0, %v3195
    %v3197 = vpop.f32.mrb[0].mxu0
    %3198 = vmatprep.mubr.f32.mxu0 0.0
    %3199 = vmatmul.mubr.f32.gmra.mrb[0].mxu0 %v330
    %v3200 = vpop.f32.mrb[0].mxu0
    %v3201 = vadd.f32 0.0, %v3200
    %v3202 = vpop.f32.mrb[0].mxu0
    %3203 = vmatprep.mubr.f32.mxu0 0.0
    %3204 = vmatmul.mubr.f32.gmra.mrb[0].mxu0 %v336
    %v3205 = vpop.f32.mrb[0].mxu0
    %v3206 = vadd.f32 0.0, %v3205
    %v3207 = vpop.f32.mrb[0].mxu0
    %3208 = vmatprep.mubr.f32.mxu0 0.0
    %3209 = vmatmul.mubr.f32.gmra.mrb[0].mxu0 %v336
    %v3210 = vpop.f32.mrb[0].mxu0
    %v3211 = vadd.f32 0.0, %v3210
    %v3212 = vpop.f32.mrb[0].mxu0
    %3213 = vmatprep.mubr.f32.mxu0 0.0
    %3214 = vmatmul.mubr.f32.gmra.mrb[0].mxu0 %v339
    %v3215 = vpop.f32.mrb[0].mxu0
    %v3216 = vadd.f32 0.0, %v3215
    %v3217 = vpop.f32.mrb[0].mxu0
    %3218 = vmatprep.mubr.f32.mxu0 0.0
    %3219 = vmatmul.mubr.f32.gmra.mrb[0].mxu0 %v342
    %v3220 = vpop.f32.mrb[0].mxu0
    %v3221 = vadd.f32 0.0, %v3220
    %v3222 = vpop.f32.mrb[0].mxu0
    %3223 = vmatprep.mubr.f32.mxu0 0.0
    %3224 = vmatmul.mubr.f32.gmra.mrb[0].mxu0 %v345
    %v3225 = vpop.f32.mrb[0].mxu0
    %v3226 = vadd.f32 0.0, %v3225
    %v3227 = vpop.f32.mrb[0].mxu0
    %3228 = vmatprep.mubr.f32.mxu0 0.0
    %3229 = vmatmul.mubr.f32.gmra.mrb[0].mxu0 %v348
    %v3230 = vpop.f32.mrb[0].mxu0
    %v3231 = vadd.f32 0.0, %v3230
    %v3232 = vpop.f32.mrb[0].mxu0
    %3233 = vmatprep.mubr.f32.mxu0 0.0
    %3234 = vmatmul.mubr.f32.gmra.mrb[0].mxu0 %v351
    %v3235 = vpop.f32.mrb[0].mxu0
    %v3236 = vadd.f32 0.0, %v3235
    %v3237 = vpop.f32.mrb[0].mxu0
    %3238 = vmatprep.mubr.f32.mxu0 0.0
    %3239 = vmatmul.mubr.f32.gmra.mrb[0].mxu0 %v354
    %v3240 = vpop.f32.mrb[0].mxu0
    %v3241 = vadd.f32 0.0, %v3240
    %v3242 = vpop.f32.mrb[0].mxu0
    %3243 = vmatprep.mubr.f32.mxu0 0.0
    %3244 = vmatmul.mubr.f32.gmra.mrb[0].mxu0 %v360
    %v3245 = vpop.f32.mrb[0].mxu0
    %v3246 = vadd.f32 0.0, %v3245
    %v3247 = vpop.f32.mrb[0].mxu0
    %3248 = vmatprep.mubr.f32.mxu0 0.0
    %3249 = vmatmul.mubr.f32.gmra.mrb[0].mxu0 %v360
    %v3250 = vpop.f32.mrb[0].mxu0
    %v3251 = vadd.f32 0.0, %v3250
    %v3252 = vpop.f32.mrb[0].mxu0
    %3253 = vmatprep.mubr.f32.mxu0 0.0
    %3254 = vmatmul.mubr.f32.gmra.mrb[0].mxu0 %v363
    %v3255 = vpop.f32.mrb[0].mxu0
    %v3256 = vadd.f32 0.0, %v3255
    %v3257 = vpop.f32.mrb[0].mxu0
    %3258 = vmatprep.mubr.f32.mxu0 0.0
    %3259 = vmatmul.mubr.f32.gmra.mrb[0].mxu0 %v366
    %v3260 = vpop.f32.mrb[0].mxu0
    %v3261 = vadd.f32 0.0, %v3260
    %v3262 = vpop.f32.mrb[0].mxu0
    %3263 = vmatprep.mubr.f32.mxu0 0.0
    %3264 = vmatmul.mubr.f32.gmra.mrb[0].mxu0 %v369
    %v3265 = vpop.f32.mrb[0].mxu0
    %v3266 = vadd.f32 0.0, %v3265
    %v3267 = vpop.f32.mrb[0].mxu0
    %3268 = vmatprep.mubr.f32.mxu0 0.0
    %3269 = vmatmul.mubr.f32.gmra.mrb[0].mxu0 %v372
    %v3270 = vpop.f32.mrb[0].mxu0
    %v3271 = vadd.f32 0.0, %v3270
    %v3272 = vpop.f32.mrb[0].mxu0
    %3273 = vmatprep.mubr.f32.mxu0 0.0
    %3274 = vmatmul.mubr.f32.gmra.mrb[0].mxu0 %v375
    %v3275 = vpop.f32.mrb[0].mxu0
    %v3276 = vadd.f32 0.0, %v3275
    %v3277 = vpop.f32.mrb[0].mxu0
    %3278 = vmatprep.mubr.f32.mxu0 0.0
    %3279 = vmatmul.mubr.f32.gmra.mrb[0].mxu0 %v378
    %v3280 = vpop.f32.mrb[0].mxu0
    %v3281 = vadd.f32 0.0, %v3280
    %v3282 = vpop.f32.mrb[0].mxu0
    %3283 = vmatprep.mubr.f32.mxu0 0.0
    %3284 = vmatmul.mubr.f32.gmra.mrb[0].mxu0 %v384
    %v3285 = vpop.f32.mrb[0].mxu0
    %v3286 = vadd.f32 0.0, %v3285
    %v3287 = vpop.f32.mrb[0].mxu0
    %3288 = vmatprep.mubr.f32.mxu0 0.0
    %3289 = vmatmul.mubr.f32.gmra.mrb[0].mxu0 %v384
    %v3290 = vpop.f32.mrb[0].mxu0
    %v3291 = vadd.f32 0.0, %v3290
    %v3292 = vpop.f32.mrb[0].mxu0
    %3293 = vmatprep.mubr.f32.mxu0 0.0
    %3294 = vmatmul.mubr.f32.gmra.mrb[0].mxu0 %v387
    %v3295 = vpop.f32.mrb[0].mxu0
    %v3296 = vadd.f32 0.0, %v3295
    %v3297 = vpop.f32.mrb[0].mxu0
    %3298 = vmatprep.mubr.f32.mxu0 0.0
    %3299 = vmatmul.mubr.f32.gmra.mrb[0].mxu0 %v390
    %v3300 = vpop.f32.mrb[0].mxu0
    %v3301 = vadd.f32 0.0, %v3300
    %v3302 = vpop.f32.mrb[0].mxu0
    %3303 = vmatprep.mubr.f32.mxu0 0.0
    %3304 = vmatmul.mubr.f32.gmra.mrb[0].mxu0 %v393
    %v3305 = vpop.f32.mrb[0].mxu0
    %v3306 = vadd.f32 0.0, %v3305
    %v3307 = vpop.f32.mrb[0].mxu0
    %3308 = vmatprep.mubr.f32.mxu0 0.0
    %3309 = vmatmul.mubr.f32.gmra.mrb[0].mxu0 %v396
    %v3310 = vpop.f32.mrb[0].mxu0
    %v3311 = vadd.f32 0.0, %v3310
    %v3312 = vpop.f32.mrb[0].mxu0
    %3313 = vmatprep.mubr.f32.mxu0 0.0
    %3314 = vmatmul.mubr.f32.gmra.mrb[0].mxu0 %v399
    %v3315 = vpop.f32.mrb[0].mxu0
    %v3316 = vadd.f32 0.0, %v3315
    %v3317 = vpop.f32.mrb[0].mxu0
    %3318 = vmatprep.mubr.f32.mxu0 0.0
    %3319 = vmatmul.mubr.f32.gmra.mrb[0].mxu0 %v402
    %v3320 = vpop.f32.mrb[0].mxu0
    %v3321 = vadd.f32 0.0, %v3320
    %v3322 = vpop.f32.mrb[0].mxu0
    %3323 = vmatprep.mubr.f32.mxu0 0.0
    %3324 = vmatmul.mubr.f32.gmra.mrb[0].mxu0 %v408
    %v3325 = vpop.f32.mrb[0].mxu0
    %v3326 = vadd.f32 0.0, %v3325
    %v3327 = vpop.f32.mrb[0].mxu0
    %3328 = vmatprep.mubr.f32.mxu0 0.0
    %3329 = vmatmul.mubr.f32.gmra.mrb[0].mxu0 %v408
    %v3330 = vpop.f32.mrb[0].mxu0
    %v3331 = vadd.f32 0.0, %v3330
    %v3332 = vpop.f32.mrb[0].mxu0
    %3333 = vmatprep.mubr.f32.mxu0 0.0
    %3334 = vmatmul.mubr.f32.gmra.mrb[0].mxu0 %v411
    %v3335 = vpop.f32.mrb[0].mxu0
    %v3336 = vadd.f32 0.0, %v3335
    %v3337 = vpop.f32.mrb[0].mxu0
    %3338 = vmatprep.mubr.f32.mxu0 0.0
    %3339 = vmatmul.mubr.f32.gmra.mrb[0].mxu0 %v414
    %v3340 = vpop.f32.mrb[0].mxu0
    %v3341 = vadd.f32 0.0, %v3340
    %v3342 = vpop.f32.mrb[0].mxu0
    %3343 = vmatprep.mubr.f32.mxu0 0.0
    %3344 = vmatmul.mubr.f32.gmra.mrb[0].mxu0 %v417
    %v3345 = vpop.f32.mrb[0].mxu0
    %v3346 = vadd.f32 0.0, %v3345
    %v3347 = vpop.f32.mrb[0].mxu0
    %3348 = vmatprep.mubr.f32.mxu0 0.0
    %3349 = vmatmul.mubr.f32.gmra.mrb[0].mxu0 %v420
    %v3350 = vpop.f32.mrb[0].mxu0
    %v3351 = vadd.f32 0.0, %v3350
    %v3352 = vpop.f32.mrb[0].mxu0
    %3353 = vmatprep.mubr.f32.mxu0 0.0
    %3354 = vmatmul.mubr.f32.gmra.mrb[0].mxu0 %v423
    %v3355 = vpop.f32.mrb[0].mxu0
    %v3356 = vadd.f32 0.0, %v3355
    %v3357 = vpop.f32.mrb[0].mxu0
    %3358 = vmatprep.mubr.f32.mxu0 0.0
    %3359 = vmatmul.mubr.f32.gmra.mrb[0].mxu0 %v426
    %v3360 = vpop.f32.mrb[0].mxu0
    %v3361 = vadd.f32 0.0, %v3360
    %v3362 = vpop.f32.mrb[0].mxu0
    %3363 = vmatprep.mubr.f32.mxu0 0.0
    %3364 = vmatmul.mubr.f32.gmra.mrb[0].mxu0 %v432
    %v3365 = vpop.f32.mrb[0].mxu0
    %v3366 = vadd.f32 0.0, %v3365
    %v3367 = vpop.f32.mrb[0].mxu0
    %3368 = vmatprep.mubr.f32.mxu0 0.0
    %3369 = vmatmul.mubr.f32.gmra.mrb[0].mxu0 %v432
    %v3370 = vpop.f32.mrb[0].mxu0
    %v3371 = vadd.f32 0.0, %v3370
    %v3372 = vpop.f32.mrb[0].mxu0
    %3373 = vmatprep.mubr.f32.mxu0 0.0
    %3374 = vmatmul.mubr.f32.gmra.mrb[0].mxu0 %v435
    %v3375 = vpop.f32.mrb[0].mxu0
    %v3376 = vadd.f32 0.0, %v3375
    %v3377 = vpop.f32.mrb[0].mxu0
    %3378 = vmatprep.mubr.f32.mxu0 0.0
    %3379 = vmatmul.mubr.f32.gmra.mrb[0].mxu0 %v438
    %v3380 = vpop.f32.mrb[0].mxu0
    %v3381 = vadd.f32 0.0, %v3380
    %v3382 = vpop.f32.mrb[0].mxu0
    %3383 = vmatprep.mubr.f32.mxu0 0.0
    %3384 = vmatmul.mubr.f32.gmra.mrb[0].mxu0 %v441
    %v3385 = vpop.f32.mrb[0].mxu0
    %v3386 = vadd.f32 0.0, %v3385
    %v3387 = vpop.f32.mrb[0].mxu0
    %3388 = vmatprep.mubr.f32.mxu0 0.0
    %3389 = vmatmul.mubr.f32.gmra.mrb[0].mxu0 %v444
    %v3390 = vpop.f32.mrb[0].mxu0
    %v3391 = vadd.f32 0.0, %v3390
    %v3392 = vpop.f32.mrb[0].mxu0
    %3393 = vmatprep.mubr.f32.mxu0 0.0
    %3394 = vmatmul.mubr.f32.gmra.mrb[0].mxu0 %v447
    %v3395 = vpop.f32.mrb[0].mxu0
    %v3396 = vadd.f32 0.0, %v3395
    %v3397 = vpop.f32.mrb[0].mxu0
    %3398 = vmatprep.mubr.f32.mxu0 0.0
    %3399 = vmatmul.mubr.f32.gmra.mrb[0].mxu0 %v450
    %v3400 = vpop.f32.mrb[0].mxu0
    %v3401 = vadd.f32 0.0, %v3400
    %v3402 = vpop.f32.mrb[0].mxu0
    %3403 = vmatprep.mubr.f32.mxu0 0.0
    %3404 = vmatmul.mubr.f32.gmra.mrb[0].mxu0 %v456
    %v3405 = vpop.f32.mrb[0].mxu0
    %v3406 = vadd.f32 0.0, %v3405
    %v3407 = vpop.f32.mrb[0].mxu0
    %3408 = vmatprep.mubr.f32.mxu0 0.0
    %3409 = vmatmul.mubr.f32.gmra.mrb[0].mxu0 %v456
    %v3410 = vpop.f32.mrb[0].mxu0
    %v3411 = vadd.f32 0.0, %v3410
    %v3412 = vpop.f32.mrb[0].mxu0
    %3413 = vmatprep.mubr.f32.mxu0 0.0
    %3414 = vmatmul.mubr.f32.gmra.mrb[0].mxu0 %v459
    %v3415 = vpop.f32.mrb[0].mxu0
    %v3416 = vadd.f32 0.0, %v3415
    %v3417 = vpop.f32.mrb[0].mxu0
    %3418 = vmatprep.mubr.f32.mxu0 0.0
    %3419 = vmatmul.mubr.f32.gmra.mrb[0].mxu0 %v462
    %v3420 = vpop.f32.mrb[0].mxu0
    %v3421 = vadd.f32 0.0, %v3420
    %v3422 = vpop.f32.mrb[0].mxu0
    %3423 = vmatprep.mubr.f32.mxu0 0.0
    %3424 = vmatmul.mubr.f32.gmra.mrb[0].mxu0 %v465
    %v3425 = vpop.f32.mrb[0].mxu0
    %v3426 = vadd.f32 0.0, %v3425
    %v3427 = vpop.f32.mrb[0].mxu0
    %3428 = vmatprep.mubr.f32.mxu0 0.0
    %3429 = vmatmul.mubr.f32.gmra.mrb[0].mxu0 %v468
    %v3430 = vpop.f32.mrb[0].mxu0
    %v3431 = vadd.f32 0.0, %v3430
    %v3432 = vpop.f32.mrb[0].mxu0
    %3433 = vmatprep.mubr.f32.mxu0 0.0
    %3434 = vmatmul.mubr.f32.gmra.mrb[0].mxu0 %v471
    %v3435 = vpop.f32.mrb[0].mxu0
    %v3436 = vadd.f32 0.0, %v3435
    %v3437 = vpop.f32.mrb[0].mxu0
    %3438 = vmatprep.mubr.f32.mxu0 0.0
    %3439 = vmatmul.mubr.f32.gmra.mrb[0].mxu0 %v474
    %v3440 = vpop.f32.mrb[0].mxu0
    %v3441 = vadd.f32 0.0, %v3440
    %v3442 = vpop.f32.mrb[0].mxu0
    %3443 = vmatprep.mubr.f32.mxu0 0.0
    %3444 = vmatmul.mubr.f32.gmra.mrb[0].mxu0 %v2756
    %v3445 = vpop.f32.mrb[0].mxu0
    %v3446 = vadd.f32 0.0, %v3445
    %v3447 = vpop.f32.mrb[0].mxu0
    %3448 = vmatprep.mubr.f32.mxu0 0.0
    %3449 = vmatmul.mubr.f32.gmra.mrb[0].mxu0 %v2756
    %v3450 = vpop.f32.mrb[0].mxu0
    %v3451 = vadd.f32 0.0, %v3450
    %v3452 = vpop.f32.mrb[0].mxu0
    %3453 = vmatprep.mubr.f32.mxu0 0.0
    %3454 = vmatmul.mubr.f32.gmra.mrb[0].mxu0 %v2759
    %v3455 = vpop.f32.mrb[0].mxu0
    %v3456 = vadd.f32 0.0, %v3455
    %v3457 = vpop.f32.mrb[0].mxu0
    %3458 = vmatprep.mubr.f32.mxu0 0.0
    %3459 = vmatmul.mubr.f32.gmra.mrb[0].mxu0 %v2762
    %v3460 = vpop.f32.mrb[0].mxu0
    %v3461 = vadd.f32 0.0, %v3460
    %v3462 = vpop.f32.mrb[0].mxu0
    %3463 = vmatprep.mubr.f32.mxu0 0.0
    %3464 = vmatmul.mubr.f32.gmra.mrb[0].mxu0 %v2765
    %v3465 = vpop.f32.mrb[0].mxu0
    %v3466 = vadd.f32 0.0, %v3465
    %v3467 = vpop.f32.mrb[0].mxu0
    %3468 = vmatprep.mubr.f32.mxu0 0.0
    %3469 = vmatmul.mubr.f32.gmra.mrb[0].mxu0 %v2768
    %v3470 = vpop.f32.mrb[0].mxu0
    %v3471 = vadd.f32 0.0, %v3470
    %v3472 = vpop.f32.mrb[0].mxu0
    %3473 = vmatprep.mubr.f32.mxu0 0.0
    %3474 = vmatmul.mubr.f32.gmra.mrb[0].mxu0 %v2771
    %v3475 = vpop.f32.mrb[0].mxu0
    %v3476 = vadd.f32 0.0, %v3475
    %v3477 = vpop.f32.mrb[0].mxu0
    %3478 = vmatprep.mubr.f32.mxu0 0.0
    %3479 = vmatmul.mubr.f32.gmra.mrb[0].mxu0 %v2774
    %v3480 = vpop.f32.mrb[0].mxu0
    %v3481 = vadd.f32 0.0, %v3480
    %v3482 = vpop.f32.mrb[0].mxu0
    %3483 = vdwg.mxu0
    %v3484 = vadd.f32 %v2605, %v2846
    %v3485 = vadd.f32 %v2606, %v2851
    %v3486 = vadd.f32 %v2607, %v2856
    %v3487 = vadd.f32 %v2608, %v2861
    %v3488 = vadd.f32 %v2609, %v2866
    %v3489 = vadd.f32 %v2610, %v2871
    %v3490 = vadd.f32 %v2611, %v2876
    %v3491 = vadd.f32 %v2612, %v2881
    %v3492 = vadd.f32 %v2613, %v2886
    %v3493 = vadd.f32 %v2614, %v2891
    %v3494 = vadd.f32 %v2615, %v2896
    %v3495 = vadd.f32 %v2616, %v2901
    %v3496 = vadd.f32 %v2617, %v2906
    %v3497 = vadd.f32 %v2618, %v2911
    %v3498 = vadd.f32 %v2619, %v2916
    %v3499 = vadd.f32 %v2620, %v2921
    %v3500 = vadd.f32 %v2621, %v2926
    %v3501 = vadd.f32 %v2622, %v2931
    %v3502 = vadd.f32 %v2623, %v2936
    %v3503 = vadd.f32 %v2624, %v2941
    %v3504 = vadd.f32 %v2625, %v2946
    %v3505 = vadd.f32 %v2626, %v2951
    %v3506 = vadd.f32 %v2627, %v2956
    %v3507 = vadd.f32 %v2628, %v2961
    %v3508 = vadd.f32 %v2629, %v2966
    %v3509 = vadd.f32 %v2630, %v2971
    %v3510 = vadd.f32 %v2631, %v2976
    %v3511 = vadd.f32 %v2632, %v2981
    %v3512 = vadd.f32 %v2633, %v2986
    %v3513 = vadd.f32 %v2634, %v2991
    %v3514 = vadd.f32 %v2635, %v2996
    %v3515 = vadd.f32 %v2636, %v3001
    %v3516 = vadd.f32 %v2637, %v3006
    %v3517 = vadd.f32 %v2638, %v3011
    %v3518 = vadd.f32 %v2639, %v3016
    %v3519 = vadd.f32 %v2640, %v3021
    %v3520 = vadd.f32 %v2641, %v3026
    %v3521 = vadd.f32 %v2642, %v3031
    %v3522 = vadd.f32 %v2643, %v3036
    %v3523 = vadd.f32 %v2644, %v3041
    %v3524 = vadd.f32 %v2645, %v3046
    %v3525 = vadd.f32 %v2646, %v3051
    %v3526 = vadd.f32 %v2647, %v3056
    %v3527 = vadd.f32 %v2648, %v3061
    %v3528 = vadd.f32 %v2649, %v3066
    %v3529 = vadd.f32 %v2650, %v3071
    %v3530 = vadd.f32 %v2651, %v3076
    %v3531 = vadd.f32 %v2652, %v3081
    %v3532 = vadd.f32 %v2653, %v3086
    %v3533 = vadd.f32 %v2654, %v3091
    %v3534 = vadd.f32 %v2655, %v3096
    %v3535 = vadd.f32 %v2656, %v3101
    %v3536 = vadd.f32 %v2657, %v3106
    %v3537 = vadd.f32 %v2658, %v3111
    %v3538 = vadd.f32 %v2659, %v3116
    %v3539 = vadd.f32 %v2660, %v3121
    %v3540 = vadd.f32 %v2661, %v3126
    %v3541 = vadd.f32 %v2662, %v3131
    %v3542 = vadd.f32 %v2663, %v3136
    %v3543 = vadd.f32 %v2664, %v3141
    %v3544 = vadd.f32 %v2665, %v3146
    %v3545 = vadd.f32 %v2666, %v3151
    %v3546 = vadd.f32 %v2667, %v3156
    %v3547 = vadd.f32 %v2668, %v3161
    %v3548 = vadd.f32 %v2669, %v3166
    %v3549 = vadd.f32 %v2670, %v3171
    %v3550 = vadd.f32 %v2671, %v3176
    %v3551 = vadd.f32 %v2672, %v3181
    %v3552 = vadd.f32 %v2673, %v3186
    %v3553 = vadd.f32 %v2674, %v3191
    %v3554 = vadd.f32 %v2675, %v3196
    %v3555 = vadd.f32 %v2676, %v3201
    %v3556 = vadd.f32 %v2677, %v3206
    %v3557 = vadd.f32 %v2678, %v3211
    %v3558 = vadd.f32 %v2679, %v3216
    %v3559 = vadd.f32 %v2680, %v3221
    %v3560 = vadd.f32 %v2681, %v3226
    %v3561 = vadd.f32 %v2682, %v3231
    %v3562 = vadd.f32 %v2683, %v3236
    %v3563 = vadd.f32 %v2684, %v3241
    %v3564 = vadd.f32 %v2685, %v3246
    %v3565 = vadd.f32 %v2686, %v3251
    %v3566 = vadd.f32 %v2687, %v3256
    %v3567 = vadd.f32 %v2688, %v3261
    %v3568 = vadd.f32 %v2689, %v3266
    %v3569 = vadd.f32 %v2690, %v3271
    %v3570 = vadd.f32 %v2691, %v3276
    %v3571 = vadd.f32 %v2692, %v3281
    %v3572 = vadd.f32 %v2693, %v3286
    %v3573 = vadd.f32 %v2694, %v3291
    %v3574 = vadd.f32 %v2695, %v3296
    %v3575 = vadd.f32 %v2696, %v3301
    %v3576 = vadd.f32 %v2697, %v3306
    %v3577 = vadd.f32 %v2698, %v3311
    %v3578 = vadd.f32 %v2699, %v3316
    %v3579 = vadd.f32 %v2700, %v3321
    %v3580 = vadd.f32 %v2701, %v3326
    %v3581 = vadd.f32 %v2702, %v3331
    %v3582 = vadd.f32 %v2703, %v3336
    %v3583 = vadd.f32 %v2704, %v3341
    %v3584 = vadd.f32 %v2705, %v3346
    %v3585 = vadd.f32 %v2706, %v3351
    %v3586 = vadd.f32 %v2707, %v3356
    %v3587 = vadd.f32 %v2708, %v3361
    %v3588 = vadd.f32 %v2709, %v3366
    %v3589 = vadd.f32 %v2710, %v3371
    %v3590 = vadd.f32 %v2711, %v3376
    %v3591 = vadd.f32 %v2712, %v3381
    %v3592 = vadd.f32 %v2713, %v3386
    %v3593 = vadd.f32 %v2714, %v3391
    %v3594 = vadd.f32 %v2715, %v3396
    %v3595 = vadd.f32 %v2716, %v3401
    %v3596 = vadd.f32 %v2717, %v3406
    %v3597 = vadd.f32 %v2718, %v3411
    %v3598 = vadd.f32 %v2719, %v3416
    %v3599 = vadd.f32 %v2720, %v3421
    %v3600 = vadd.f32 %v2721, %v3426
    %v3601 = vadd.f32 %v2722, %v3431
    %v3602 = vadd.f32 %v2723, %v3436
    %v3603 = vadd.f32 %v2724, %v3441
    %v3604 = vadd.f32 %v2725, %v3446
    %v3605 = vadd.f32 %v2726, %v3451
    %v3606 = vadd.f32 %v2727, %v3456
    %v3607 = vadd.f32 %v2728, %v3461
    %v3608 = vadd.f32 %v2729, %v3466
    %v3609 = vadd.f32 %v2730, %v3471
    %v3610 = vadd.f32 %v2731, %v3476
    %v3611 = vadd.f32 %v2732, %v3481
    %v3612 = vld [vmem:[%s1 + $0x10] sm:$0xf]
    %v3614 = vsel %vm142, %v75, 0
    %v3617 = vsel %vm142, %v139, 0
    %v3620 = vsel %vm479, %v3612, 0
    %3622 = vmatprep.subr.mxu0 0.0
    %3623 = vmatpush1.msra.mxu0 %v3620
    %3624 = vmatprep.subr.mxu0 0.0
    %3625 = vmatpush1.msra.mxu0 0.0
    %3626 = vmatprep.subr.mxu0 0.0
    %3627 = vmatpush1.msra.mxu0 0.0
    %3628 = vmatprep.subr.mxu0 0.0
    %3629 = vmatpush1.msra.mxu0 0.0
    %3630 = vmatprep.subr.mxu0 0.0
    %3631 = vmatpush1.msra.mxu0 0.0
    %3632 = vmatprep.subr.mxu0 0.0
    %3633 = vmatpush1.msra.mxu0 0.0
    %3634 = vmatprep.subr.mxu0 0.0
    %3635 = vmatpush1.msra.mxu0 0.0
    %3636 = vmatprep.subr.mxu0 0.0
    %3637 = vmatpush1.msra.mxu0 0.0
    %3638 = vmatprep.subr.mxu0 0.0
    %3639 = vmatpush1.msra.mxu0 0.0
    %3640 = vmatprep.subr.mxu0 0.0
    %3641 = vmatpush1.msra.mxu0 0.0
    %3642 = vmatprep.subr.mxu0 0.0
    %3643 = vmatpush1.msra.mxu0 0.0
    %3644 = vmatprep.subr.mxu0 0.0
    %3645 = vmatpush1.msra.mxu0 0.0
    %3646 = vmatprep.subr.mxu0 0.0
    %3647 = vmatpush1.msra.mxu0 0.0
    %3648 = vmatprep.subr.mxu0 0.0
    %3649 = vmatpush1.msra.mxu0 0.0
    %3650 = vmatprep.subr.mxu0 0.0
    %3651 = vmatpush1.msra.mxu0 0.0
    %3652 = vmatprep.subr.mxu0 0.0
    %3653 = vmatpush1.msra.mxu0 0.0
    %3654 = vmatprep.subr.mxu0 0.0
    %3655 = vmatpush1.msra.mxu0 0.0
    %3656 = vmatprep.subr.mxu0 0.0
    %3657 = vmatpush1.msra.mxu0 0.0
    %3658 = vmatprep.subr.mxu0 0.0
    %3659 = vmatpush1.msra.mxu0 0.0
    %3660 = vmatprep.subr.mxu0 0.0
    %3661 = vmatpush1.msra.mxu0 0.0
    %3662 = vmatprep.subr.mxu0 0.0
    %3663 = vmatpush1.msra.mxu0 0.0
    %3664 = vmatprep.subr.mxu0 0.0
    %3665 = vmatpush1.msra.mxu0 0.0
    %3666 = vmatprep.subr.mxu0 0.0
    %3667 = vmatpush1.msra.mxu0 0.0
    %3668 = vmatprep.subr.mxu0 0.0
    %3669 = vmatpush1.msra.mxu0 0.0
    %3670 = vmatprep.subr.mxu0 0.0
    %3671 = vmatpush1.msra.mxu0 0.0
    %3672 = vmatprep.subr.mxu0 0.0
    %3673 = vmatpush1.msra.mxu0 0.0
    %3674 = vmatprep.subr.mxu0 0.0
    %3675 = vmatpush1.msra.mxu0 0.0
    %3676 = vmatprep.subr.mxu0 0.0
    %3677 = vmatpush1.msra.mxu0 0.0
    %3678 = vmatprep.subr.mxu0 0.0
    %3679 = vmatpush1.msra.mxu0 0.0
    %3680 = vmatprep.subr.mxu0 0.0
    %3681 = vmatpush1.msra.mxu0 0.0
    %3682 = vmatprep.subr.mxu0 0.0
    %3683 = vmatpush1.msra.mxu0 0.0
    %3684 = vmatprep.subr.mxu0 0.0
    %3685 = vmatpush1.msra.mxu0 0.0
    %3686 = vmatprep.mubr.f32.mxu0 0.0
    %3687 = vmatmul.mubr.f32.gmra.mrb[0].mxu0 %v144
    %v3688 = vpop.f32.mrb[0].mxu0
    %v3689 = vadd.f32 0.0, %v3688
    %v3690 = vpop.f32.mrb[0].mxu0
    %3691 = vmatprep.mubr.f32.mxu0 0.0
    %3692 = vmatmul.mubr.f32.gmra.mrb[0].mxu0 %v147
    %v3693 = vpop.f32.mrb[0].mxu0
    %v3694 = vadd.f32 0.0, %v3693
    %v3695 = vpop.f32.mrb[0].mxu0
    %3696 = vmatprep.mubr.f32.mxu0 0.0
    %3697 = vmatmul.mubr.f32.gmra.mrb[0].mxu0 %v150
    %v3698 = vpop.f32.mrb[0].mxu0
    %v3699 = vadd.f32 0.0, %v3698
    %v3700 = vpop.f32.mrb[0].mxu0
    %3701 = vmatprep.mubr.f32.mxu0 0.0
    %3702 = vmatmul.mubr.f32.gmra.mrb[0].mxu0 %v153
    %v3703 = vpop.f32.mrb[0].mxu0
    %v3704 = vadd.f32 0.0, %v3703
    %v3705 = vpop.f32.mrb[0].mxu0
    %3706 = vmatprep.mubr.f32.mxu0 0.0
    %3707 = vmatmul.mubr.f32.gmra.mrb[0].mxu0 %v156
    %v3708 = vpop.f32.mrb[0].mxu0
    %v3709 = vadd.f32 0.0, %v3708
    %v3710 = vpop.f32.mrb[0].mxu0
    %3711 = vmatprep.mubr.f32.mxu0 0.0
    %3712 = vmatmul.mubr.f32.gmra.mrb[0].mxu0 %v159
    %v3713 = vpop.f32.mrb[0].mxu0
    %v3714 = vadd.f32 0.0, %v3713
    %v3715 = vpop.f32.mrb[0].mxu0
    %3716 = vmatprep.mubr.f32.mxu0 0.0
    %3717 = vmatmul.mubr.f32.gmra.mrb[0].mxu0 %v162
    %v3718 = vpop.f32.mrb[0].mxu0
    %v3719 = vadd.f32 0.0, %v3718
    %v3720 = vpop.f32.mrb[0].mxu0
    %3721 = vmatprep.mubr.f32.mxu0 0.0
    %3722 = vmatmul.mubr.f32.gmra.mrb[0].mxu0 %v165
    %v3723 = vpop.f32.mrb[0].mxu0
    %v3724 = vadd.f32 0.0, %v3723
    %v3725 = vpop.f32.mrb[0].mxu0
    %3726 = vmatprep.mubr.f32.mxu0 0.0
    %3727 = vmatmul.mubr.f32.gmra.mrb[0].mxu0 %v168
    %v3728 = vpop.f32.mrb[0].mxu0
    %v3729 = vadd.f32 0.0, %v3728
    %v3730 = vpop.f32.mrb[0].mxu0
    %3731 = vmatprep.mubr.f32.mxu0 0.0
    %3732 = vmatmul.mubr.f32.gmra.mrb[0].mxu0 %v171
    %v3733 = vpop.f32.mrb[0].mxu0
    %v3734 = vadd.f32 0.0, %v3733
    %v3735 = vpop.f32.mrb[0].mxu0
    %3736 = vmatprep.mubr.f32.mxu0 0.0
    %3737 = vmatmul.mubr.f32.gmra.mrb[0].mxu0 %v174
    %v3738 = vpop.f32.mrb[0].mxu0
    %v3739 = vadd.f32 0.0, %v3738
    %v3740 = vpop.f32.mrb[0].mxu0
    %3741 = vmatprep.mubr.f32.mxu0 0.0
    %3742 = vmatmul.mubr.f32.gmra.mrb[0].mxu0 %v177
    %v3743 = vpop.f32.mrb[0].mxu0
    %v3744 = vadd.f32 0.0, %v3743
    %v3745 = vpop.f32.mrb[0].mxu0
    %3746 = vmatprep.mubr.f32.mxu0 0.0
    %3747 = vmatmul.mubr.f32.gmra.mrb[0].mxu0 %v180
    %v3748 = vpop.f32.mrb[0].mxu0
    %v3749 = vadd.f32 0.0, %v3748
    %v3750 = vpop.f32.mrb[0].mxu0
    %3751 = vmatprep.mubr.f32.mxu0 0.0
    %3752 = vmatmul.mubr.f32.gmra.mrb[0].mxu0 %v183
    %v3753 = vpop.f32.mrb[0].mxu0
    %v3754 = vadd.f32 0.0, %v3753
    %v3755 = vpop.f32.mrb[0].mxu0
    %3756 = vmatprep.mubr.f32.mxu0 0.0
    %3757 = vmatmul.mubr.f32.gmra.mrb[0].mxu0 %v186
    %v3758 = vpop.f32.mrb[0].mxu0
    %v3759 = vadd.f32 0.0, %v3758
    %v3760 = vpop.f32.mrb[0].mxu0
    %3761 = vmatprep.mubr.f32.mxu0 0.0
    %3762 = vmatmul.mubr.f32.gmra.mrb[0].mxu0 %v189
    %v3763 = vpop.f32.mrb[0].mxu0
    %v3764 = vadd.f32 0.0, %v3763
    %v3765 = vpop.f32.mrb[0].mxu0
    %3766 = vmatprep.mubr.f32.mxu0 0.0
    %3767 = vmatmul.mubr.f32.gmra.mrb[0].mxu0 %v192
    %v3768 = vpop.f32.mrb[0].mxu0
    %v3769 = vadd.f32 0.0, %v3768
    %v3770 = vpop.f32.mrb[0].mxu0
    %3771 = vmatprep.mubr.f32.mxu0 0.0
    %3772 = vmatmul.mubr.f32.gmra.mrb[0].mxu0 %v195
    %v3773 = vpop.f32.mrb[0].mxu0
    %v3774 = vadd.f32 0.0, %v3773
    %v3775 = vpop.f32.mrb[0].mxu0
    %3776 = vmatprep.mubr.f32.mxu0 0.0
    %3777 = vmatmul.mubr.f32.gmra.mrb[0].mxu0 %v198
    %v3778 = vpop.f32.mrb[0].mxu0
    %v3779 = vadd.f32 0.0, %v3778
    %v3780 = vpop.f32.mrb[0].mxu0
    %3781 = vmatprep.mubr.f32.mxu0 0.0
    %3782 = vmatmul.mubr.f32.gmra.mrb[0].mxu0 %v201
    %v3783 = vpop.f32.mrb[0].mxu0
    %v3784 = vadd.f32 0.0, %v3783
    %v3785 = vpop.f32.mrb[0].mxu0
    %3786 = vmatprep.mubr.f32.mxu0 0.0
    %3787 = vmatmul.mubr.f32.gmra.mrb[0].mxu0 %v204
    %v3788 = vpop.f32.mrb[0].mxu0
    %v3789 = vadd.f32 0.0, %v3788
    %v3790 = vpop.f32.mrb[0].mxu0
    %3791 = vmatprep.mubr.f32.mxu0 0.0
    %3792 = vmatmul.mubr.f32.gmra.mrb[0].mxu0 %v207
    %v3793 = vpop.f32.mrb[0].mxu0
    %v3794 = vadd.f32 0.0, %v3793
    %v3795 = vpop.f32.mrb[0].mxu0
    %3796 = vmatprep.mubr.f32.mxu0 0.0
    %3797 = vmatmul.mubr.f32.gmra.mrb[0].mxu0 %v210
    %v3798 = vpop.f32.mrb[0].mxu0
    %v3799 = vadd.f32 0.0, %v3798
    %v3800 = vpop.f32.mrb[0].mxu0
    %3801 = vmatprep.mubr.f32.mxu0 0.0
    %3802 = vmatmul.mubr.f32.gmra.mrb[0].mxu0 %v213
    %v3803 = vpop.f32.mrb[0].mxu0
    %v3804 = vadd.f32 0.0, %v3803
    %v3805 = vpop.f32.mrb[0].mxu0
    %3806 = vmatprep.mubr.f32.mxu0 0.0
    %3807 = vmatmul.mubr.f32.gmra.mrb[0].mxu0 %v216
    %v3808 = vpop.f32.mrb[0].mxu0
    %v3809 = vadd.f32 0.0, %v3808
    %v3810 = vpop.f32.mrb[0].mxu0
    %3811 = vmatprep.mubr.f32.mxu0 0.0
    %3812 = vmatmul.mubr.f32.gmra.mrb[0].mxu0 %v219
    %v3813 = vpop.f32.mrb[0].mxu0
    %v3814 = vadd.f32 0.0, %v3813
    %v3815 = vpop.f32.mrb[0].mxu0
    %3816 = vmatprep.mubr.f32.mxu0 0.0
    %3817 = vmatmul.mubr.f32.gmra.mrb[0].mxu0 %v222
    %v3818 = vpop.f32.mrb[0].mxu0
    %v3819 = vadd.f32 0.0, %v3818
    %v3820 = vpop.f32.mrb[0].mxu0
    %3821 = vmatprep.mubr.f32.mxu0 0.0
    %3822 = vmatmul.mubr.f32.gmra.mrb[0].mxu0 %v225
    %v3823 = vpop.f32.mrb[0].mxu0
    %v3824 = vadd.f32 0.0, %v3823
    %v3825 = vpop.f32.mrb[0].mxu0
    %3826 = vmatprep.mubr.f32.mxu0 0.0
    %3827 = vmatmul.mubr.f32.gmra.mrb[0].mxu0 %v228
    %v3828 = vpop.f32.mrb[0].mxu0
    %v3829 = vadd.f32 0.0, %v3828
    %v3830 = vpop.f32.mrb[0].mxu0
    %3831 = vmatprep.mubr.f32.mxu0 0.0
    %3832 = vmatmul.mubr.f32.gmra.mrb[0].mxu0 %v231
    %v3833 = vpop.f32.mrb[0].mxu0
    %v3834 = vadd.f32 0.0, %v3833
    %v3835 = vpop.f32.mrb[0].mxu0
    %3836 = vmatprep.mubr.f32.mxu0 0.0
    %3837 = vmatmul.mubr.f32.gmra.mrb[0].mxu0 %v234
    %v3838 = vpop.f32.mrb[0].mxu0
    %v3839 = vadd.f32 0.0, %v3838
    %v3840 = vpop.f32.mrb[0].mxu0
    %3841 = vmatprep.mubr.f32.mxu0 0.0
    %3842 = vmatmul.mubr.f32.gmra.mrb[0].mxu0 %v237
    %v3843 = vpop.f32.mrb[0].mxu0
    %v3844 = vadd.f32 0.0, %v3843
    %v3845 = vpop.f32.mrb[0].mxu0
    %3846 = vmatprep.mubr.f32.mxu0 0.0
    %3847 = vmatmul.mubr.f32.gmra.mrb[0].mxu0 %v240
    %v3848 = vpop.f32.mrb[0].mxu0
    %v3849 = vadd.f32 0.0, %v3848
    %v3850 = vpop.f32.mrb[0].mxu0
    %3851 = vmatprep.mubr.f32.mxu0 0.0
    %3852 = vmatmul.mubr.f32.gmra.mrb[0].mxu0 %v243
    %v3853 = vpop.f32.mrb[0].mxu0
    %v3854 = vadd.f32 0.0, %v3853
    %v3855 = vpop.f32.mrb[0].mxu0
    %3856 = vmatprep.mubr.f32.mxu0 0.0
    %3857 = vmatmul.mubr.f32.gmra.mrb[0].mxu0 %v246
    %v3858 = vpop.f32.mrb[0].mxu0
    %v3859 = vadd.f32 0.0, %v3858
    %v3860 = vpop.f32.mrb[0].mxu0
    %3861 = vmatprep.mubr.f32.mxu0 0.0
    %3862 = vmatmul.mubr.f32.gmra.mrb[0].mxu0 %v249
    %v3863 = vpop.f32.mrb[0].mxu0
    %v3864 = vadd.f32 0.0, %v3863
    %v3865 = vpop.f32.mrb[0].mxu0
    %3866 = vmatprep.mubr.f32.mxu0 0.0
    %3867 = vmatmul.mubr.f32.gmra.mrb[0].mxu0 %v252
    %v3868 = vpop.f32.mrb[0].mxu0
    %v3869 = vadd.f32 0.0, %v3868
    %v3870 = vpop.f32.mrb[0].mxu0
    %3871 = vmatprep.mubr.f32.mxu0 0.0
    %3872 = vmatmul.mubr.f32.gmra.mrb[0].mxu0 %v255
    %v3873 = vpop.f32.mrb[0].mxu0
    %v3874 = vadd.f32 0.0, %v3873
    %v3875 = vpop.f32.mrb[0].mxu0
    %3876 = vmatprep.mubr.f32.mxu0 0.0
    %3877 = vmatmul.mubr.f32.gmra.mrb[0].mxu0 %v258
    %v3878 = vpop.f32.mrb[0].mxu0
    %v3879 = vadd.f32 0.0, %v3878
    %v3880 = vpop.f32.mrb[0].mxu0
    %3881 = vmatprep.mubr.f32.mxu0 0.0
    %3882 = vmatmul.mubr.f32.gmra.mrb[0].mxu0 %v261
    %v3883 = vpop.f32.mrb[0].mxu0
    %v3884 = vadd.f32 0.0, %v3883
    %v3885 = vpop.f32.mrb[0].mxu0
    %3886 = vmatprep.mubr.f32.mxu0 0.0
    %3887 = vmatmul.mubr.f32.gmra.mrb[0].mxu0 %v264
    %v3888 = vpop.f32.mrb[0].mxu0
    %v3889 = vadd.f32 0.0, %v3888
    %v3890 = vpop.f32.mrb[0].mxu0
    %3891 = vmatprep.mubr.f32.mxu0 0.0
    %3892 = vmatmul.mubr.f32.gmra.mrb[0].mxu0 %v267
    %v3893 = vpop.f32.mrb[0].mxu0
    %v3894 = vadd.f32 0.0, %v3893
    %v3895 = vpop.f32.mrb[0].mxu0
    %3896 = vmatprep.mubr.f32.mxu0 0.0
    %3897 = vmatmul.mubr.f32.gmra.mrb[0].mxu0 %v270
    %v3898 = vpop.f32.mrb[0].mxu0
    %v3899 = vadd.f32 0.0, %v3898
    %v3900 = vpop.f32.mrb[0].mxu0
    %3901 = vmatprep.mubr.f32.mxu0 0.0
    %3902 = vmatmul.mubr.f32.gmra.mrb[0].mxu0 %v273
    %v3903 = vpop.f32.mrb[0].mxu0
    %v3904 = vadd.f32 0.0, %v3903
    %v3905 = vpop.f32.mrb[0].mxu0
    %3906 = vmatprep.mubr.f32.mxu0 0.0
    %3907 = vmatmul.mubr.f32.gmra.mrb[0].mxu0 %v276
    %v3908 = vpop.f32.mrb[0].mxu0
    %v3909 = vadd.f32 0.0, %v3908
    %v3910 = vpop.f32.mrb[0].mxu0
    %3911 = vmatprep.mubr.f32.mxu0 0.0
    %3912 = vmatmul.mubr.f32.gmra.mrb[0].mxu0 %v279
    %v3913 = vpop.f32.mrb[0].mxu0
    %v3914 = vadd.f32 0.0, %v3913
    %v3915 = vpop.f32.mrb[0].mxu0
    %3916 = vmatprep.mubr.f32.mxu0 0.0
    %3917 = vmatmul.mubr.f32.gmra.mrb[0].mxu0 %v282
    %v3918 = vpop.f32.mrb[0].mxu0
    %v3919 = vadd.f32 0.0, %v3918
    %v3920 = vpop.f32.mrb[0].mxu0
    %3921 = vmatprep.mubr.f32.mxu0 0.0
    %3922 = vmatmul.mubr.f32.gmra.mrb[0].mxu0 %v285
    %v3923 = vpop.f32.mrb[0].mxu0
    %v3924 = vadd.f32 0.0, %v3923
    %v3925 = vpop.f32.mrb[0].mxu0
    %3926 = vmatprep.mubr.f32.mxu0 0.0
    %3927 = vmatmul.mubr.f32.gmra.mrb[0].mxu0 %v288
    %v3928 = vpop.f32.mrb[0].mxu0
    %v3929 = vadd.f32 0.0, %v3928
    %v3930 = vpop.f32.mrb[0].mxu0
    %3931 = vmatprep.mubr.f32.mxu0 0.0
    %3932 = vmatmul.mubr.f32.gmra.mrb[0].mxu0 %v291
    %v3933 = vpop.f32.mrb[0].mxu0
    %v3934 = vadd.f32 0.0, %v3933
    %v3935 = vpop.f32.mrb[0].mxu0
    %3936 = vmatprep.mubr.f32.mxu0 0.0
    %3937 = vmatmul.mubr.f32.gmra.mrb[0].mxu0 %v294
    %v3938 = vpop.f32.mrb[0].mxu0
    %v3939 = vadd.f32 0.0, %v3938
    %v3940 = vpop.f32.mrb[0].mxu0
    %3941 = vmatprep.mubr.f32.mxu0 0.0
    %3942 = vmatmul.mubr.f32.gmra.mrb[0].mxu0 %v297
    %v3943 = vpop.f32.mrb[0].mxu0
    %v3944 = vadd.f32 0.0, %v3943
    %v3945 = vpop.f32.mrb[0].mxu0
    %3946 = vmatprep.mubr.f32.mxu0 0.0
    %3947 = vmatmul.mubr.f32.gmra.mrb[0].mxu0 %v300
    %v3948 = vpop.f32.mrb[0].mxu0
    %v3949 = vadd.f32 0.0, %v3948
    %v3950 = vpop.f32.mrb[0].mxu0
    %3951 = vmatprep.mubr.f32.mxu0 0.0
    %3952 = vmatmul.mubr.f32.gmra.mrb[0].mxu0 %v303
    %v3953 = vpop.f32.mrb[0].mxu0
    %v3954 = vadd.f32 0.0, %v3953
    %v3955 = vpop.f32.mrb[0].mxu0
    %3956 = vmatprep.mubr.f32.mxu0 0.0
    %3957 = vmatmul.mubr.f32.gmra.mrb[0].mxu0 %v306
    %v3958 = vpop.f32.mrb[0].mxu0
    %v3959 = vadd.f32 0.0, %v3958
    %v3960 = vpop.f32.mrb[0].mxu0
    %3961 = vmatprep.mubr.f32.mxu0 0.0
    %3962 = vmatmul.mubr.f32.gmra.mrb[0].mxu0 %v309
    %v3963 = vpop.f32.mrb[0].mxu0
    %v3964 = vadd.f32 0.0, %v3963
    %v3965 = vpop.f32.mrb[0].mxu0
    %3966 = vmatprep.mubr.f32.mxu0 0.0
    %3967 = vmatmul.mubr.f32.gmra.mrb[0].mxu0 %v2735
    %v3968 = vpop.f32.mrb[0].mxu0
    %v3969 = vadd.f32 0.0, %v3968
    %v3970 = vpop.f32.mrb[0].mxu0
    %3971 = vmatprep.mubr.f32.mxu0 0.0
    %3972 = vmatmul.mubr.f32.gmra.mrb[0].mxu0 %v2738
    %v3973 = vpop.f32.mrb[0].mxu0
    %v3974 = vadd.f32 0.0, %v3973
    %v3975 = vpop.f32.mrb[0].mxu0
    %3976 = vmatprep.mubr.f32.mxu0 0.0
    %3977 = vmatmul.mubr.f32.gmra.mrb[0].mxu0 %v2741
    %v3978 = vpop.f32.mrb[0].mxu0
    %v3979 = vadd.f32 0.0, %v3978
    %v3980 = vpop.f32.mrb[0].mxu0
    %3981 = vmatprep.mubr.f32.mxu0 0.0
    %3982 = vmatmul.mubr.f32.gmra.mrb[0].mxu0 %v2744
    %v3983 = vpop.f32.mrb[0].mxu0
    %v3984 = vadd.f32 0.0, %v3983
    %v3985 = vpop.f32.mrb[0].mxu0
    %3986 = vmatprep.mubr.f32.mxu0 0.0
    %3987 = vmatmul.mubr.f32.gmra.mrb[0].mxu0 %v2747
    %v3988 = vpop.f32.mrb[0].mxu0
    %v3989 = vadd.f32 0.0, %v3988
    %v3990 = vpop.f32.mrb[0].mxu0
    %3991 = vmatprep.mubr.f32.mxu0 0.0
    %3992 = vmatmul.mubr.f32.gmra.mrb[0].mxu0 %v2750
    %v3993 = vpop.f32.mrb[0].mxu0
    %v3994 = vadd.f32 0.0, %v3993
    %v3995 = vpop.f32.mrb[0].mxu0
    %3996 = vmatprep.mubr.f32.mxu0 0.0
    %3997 = vmatmul.mubr.f32.gmra.mrb[0].mxu0 %v2753
    %v3998 = vpop.f32.mrb[0].mxu0
    %v3999 = vadd.f32 0.0, %v3998
    %v4000 = vpop.f32.mrb[0].mxu0
    %4001 = vmatprep.mubr.f32.mxu0 0.0
    %4002 = vmatmul.mubr.f32.gmra.mrb[0].mxu0 %v3614
    %v4003 = vpop.f32.mrb[0].mxu0
    %v4004 = vadd.f32 0.0, %v4003
    %v4005 = vpop.f32.mrb[0].mxu0
    %4006 = vmatprep.mubr.f32.mxu0 0.0
    %4007 = vmatmul.mubr.f32.gmra.mrb[0].mxu0 %v312
    %v4008 = vpop.f32.mrb[0].mxu0
    %v4009 = vadd.f32 0.0, %v4008
    %v4010 = vpop.f32.mrb[0].mxu0
    %4011 = vmatprep.mubr.f32.mxu0 0.0
    %4012 = vmatmul.mubr.f32.gmra.mrb[0].mxu0 %v315
    %v4013 = vpop.f32.mrb[0].mxu0
    %v4014 = vadd.f32 0.0, %v4013
    %v4015 = vpop.f32.mrb[0].mxu0
    %4016 = vmatprep.mubr.f32.mxu0 0.0
    %4017 = vmatmul.mubr.f32.gmra.mrb[0].mxu0 %v318
    %v4018 = vpop.f32.mrb[0].mxu0
    %v4019 = vadd.f32 0.0, %v4018
    %v4020 = vpop.f32.mrb[0].mxu0
    %4021 = vmatprep.mubr.f32.mxu0 0.0
    %4022 = vmatmul.mubr.f32.gmra.mrb[0].mxu0 %v321
    %v4023 = vpop.f32.mrb[0].mxu0
    %v4024 = vadd.f32 0.0, %v4023
    %v4025 = vpop.f32.mrb[0].mxu0
    %4026 = vmatprep.mubr.f32.mxu0 0.0
    %4027 = vmatmul.mubr.f32.gmra.mrb[0].mxu0 %v324
    %v4028 = vpop.f32.mrb[0].mxu0
    %v4029 = vadd.f32 0.0, %v4028
    %v4030 = vpop.f32.mrb[0].mxu0
    %4031 = vmatprep.mubr.f32.mxu0 0.0
    %4032 = vmatmul.mubr.f32.gmra.mrb[0].mxu0 %v327
    %v4033 = vpop.f32.mrb[0].mxu0
    %v4034 = vadd.f32 0.0, %v4033
    %v4035 = vpop.f32.mrb[0].mxu0
    %4036 = vmatprep.mubr.f32.mxu0 0.0
    %4037 = vmatmul.mubr.f32.gmra.mrb[0].mxu0 %v330
    %v4038 = vpop.f32.mrb[0].mxu0
    %v4039 = vadd.f32 0.0, %v4038
    %v4040 = vpop.f32.mrb[0].mxu0
    %4041 = vmatprep.mubr.f32.mxu0 0.0
    %4042 = vmatmul.mubr.f32.gmra.mrb[0].mxu0 %v333
    %v4043 = vpop.f32.mrb[0].mxu0
    %v4044 = vadd.f32 0.0, %v4043
    %v4045 = vpop.f32.mrb[0].mxu0
    %4046 = vmatprep.mubr.f32.mxu0 0.0
    %4047 = vmatmul.mubr.f32.gmra.mrb[0].mxu0 %v336
    %v4048 = vpop.f32.mrb[0].mxu0
    %v4049 = vadd.f32 0.0, %v4048
    %v4050 = vpop.f32.mrb[0].mxu0
    %4051 = vmatprep.mubr.f32.mxu0 0.0
    %4052 = vmatmul.mubr.f32.gmra.mrb[0].mxu0 %v339
    %v4053 = vpop.f32.mrb[0].mxu0
    %v4054 = vadd.f32 0.0, %v4053
    %v4055 = vpop.f32.mrb[0].mxu0
    %4056 = vmatprep.mubr.f32.mxu0 0.0
    %4057 = vmatmul.mubr.f32.gmra.mrb[0].mxu0 %v342
    %v4058 = vpop.f32.mrb[0].mxu0
    %v4059 = vadd.f32 0.0, %v4058
    %v4060 = vpop.f32.mrb[0].mxu0
    %4061 = vmatprep.mubr.f32.mxu0 0.0
    %4062 = vmatmul.mubr.f32.gmra.mrb[0].mxu0 %v345
    %v4063 = vpop.f32.mrb[0].mxu0
    %v4064 = vadd.f32 0.0, %v4063
    %v4065 = vpop.f32.mrb[0].mxu0
    %4066 = vmatprep.mubr.f32.mxu0 0.0
    %4067 = vmatmul.mubr.f32.gmra.mrb[0].mxu0 %v348
    %v4068 = vpop.f32.mrb[0].mxu0
    %v4069 = vadd.f32 0.0, %v4068
    %v4070 = vpop.f32.mrb[0].mxu0
    %4071 = vmatprep.mubr.f32.mxu0 0.0
    %4072 = vmatmul.mubr.f32.gmra.mrb[0].mxu0 %v351
    %v4073 = vpop.f32.mrb[0].mxu0
    %v4074 = vadd.f32 0.0, %v4073
    %v4075 = vpop.f32.mrb[0].mxu0
    %4076 = vmatprep.mubr.f32.mxu0 0.0
    %4077 = vmatmul.mubr.f32.gmra.mrb[0].mxu0 %v354
    %v4078 = vpop.f32.mrb[0].mxu0
    %v4079 = vadd.f32 0.0, %v4078
    %v4080 = vpop.f32.mrb[0].mxu0
    %4081 = vmatprep.mubr.f32.mxu0 0.0
    %4082 = vmatmul.mubr.f32.gmra.mrb[0].mxu0 %v357
    %v4083 = vpop.f32.mrb[0].mxu0
    %v4084 = vadd.f32 0.0, %v4083
    %v4085 = vpop.f32.mrb[0].mxu0
    %4086 = vmatprep.mubr.f32.mxu0 0.0
    %4087 = vmatmul.mubr.f32.gmra.mrb[0].mxu0 %v360
    %v4088 = vpop.f32.mrb[0].mxu0
    %v4089 = vadd.f32 0.0, %v4088
    %v4090 = vpop.f32.mrb[0].mxu0
    %4091 = vmatprep.mubr.f32.mxu0 0.0
    %4092 = vmatmul.mubr.f32.gmra.mrb[0].mxu0 %v363
    %v4093 = vpop.f32.mrb[0].mxu0
    %v4094 = vadd.f32 0.0, %v4093
    %v4095 = vpop.f32.mrb[0].mxu0
    %4096 = vmatprep.mubr.f32.mxu0 0.0
    %4097 = vmatmul.mubr.f32.gmra.mrb[0].mxu0 %v366
    %v4098 = vpop.f32.mrb[0].mxu0
    %v4099 = vadd.f32 0.0, %v4098
    %v4100 = vpop.f32.mrb[0].mxu0
    %4101 = vmatprep.mubr.f32.mxu0 0.0
    %4102 = vmatmul.mubr.f32.gmra.mrb[0].mxu0 %v369
    %v4103 = vpop.f32.mrb[0].mxu0
    %v4104 = vadd.f32 0.0, %v4103
    %v4105 = vpop.f32.mrb[0].mxu0
    %4106 = vmatprep.mubr.f32.mxu0 0.0
    %4107 = vmatmul.mubr.f32.gmra.mrb[0].mxu0 %v372
    %v4108 = vpop.f32.mrb[0].mxu0
    %v4109 = vadd.f32 0.0, %v4108
    %v4110 = vpop.f32.mrb[0].mxu0
    %4111 = vmatprep.mubr.f32.mxu0 0.0
    %4112 = vmatmul.mubr.f32.gmra.mrb[0].mxu0 %v375
    %v4113 = vpop.f32.mrb[0].mxu0
    %v4114 = vadd.f32 0.0, %v4113
    %v4115 = vpop.f32.mrb[0].mxu0
    %4116 = vmatprep.mubr.f32.mxu0 0.0
    %4117 = vmatmul.mubr.f32.gmra.mrb[0].mxu0 %v378
    %v4118 = vpop.f32.mrb[0].mxu0
    %v4119 = vadd.f32 0.0, %v4118
    %v4120 = vpop.f32.mrb[0].mxu0
    %4121 = vmatprep.mubr.f32.mxu0 0.0
    %4122 = vmatmul.mubr.f32.gmra.mrb[0].mxu0 %v381
    %v4123 = vpop.f32.mrb[0].mxu0
    %v4124 = vadd.f32 0.0, %v4123
    %v4125 = vpop.f32.mrb[0].mxu0
    %4126 = vmatprep.mubr.f32.mxu0 0.0
    %4127 = vmatmul.mubr.f32.gmra.mrb[0].mxu0 %v384
    %v4128 = vpop.f32.mrb[0].mxu0
    %v4129 = vadd.f32 0.0, %v4128
    %v4130 = vpop.f32.mrb[0].mxu0
    %4131 = vmatprep.mubr.f32.mxu0 0.0
    %4132 = vmatmul.mubr.f32.gmra.mrb[0].mxu0 %v387
    %v4133 = vpop.f32.mrb[0].mxu0
    %v4134 = vadd.f32 0.0, %v4133
    %v4135 = vpop.f32.mrb[0].mxu0
    %4136 = vmatprep.mubr.f32.mxu0 0.0
    %4137 = vmatmul.mubr.f32.gmra.mrb[0].mxu0 %v390
    %v4138 = vpop.f32.mrb[0].mxu0
    %v4139 = vadd.f32 0.0, %v4138
    %v4140 = vpop.f32.mrb[0].mxu0
    %4141 = vmatprep.mubr.f32.mxu0 0.0
    %4142 = vmatmul.mubr.f32.gmra.mrb[0].mxu0 %v393
    %v4143 = vpop.f32.mrb[0].mxu0
    %v4144 = vadd.f32 0.0, %v4143
    %v4145 = vpop.f32.mrb[0].mxu0
    %4146 = vmatprep.mubr.f32.mxu0 0.0
    %4147 = vmatmul.mubr.f32.gmra.mrb[0].mxu0 %v396
    %v4148 = vpop.f32.mrb[0].mxu0
    %v4149 = vadd.f32 0.0, %v4148
    %v4150 = vpop.f32.mrb[0].mxu0
    %4151 = vmatprep.mubr.f32.mxu0 0.0
    %4152 = vmatmul.mubr.f32.gmra.mrb[0].mxu0 %v399
    %v4153 = vpop.f32.mrb[0].mxu0
    %v4154 = vadd.f32 0.0, %v4153
    %v4155 = vpop.f32.mrb[0].mxu0
    %4156 = vmatprep.mubr.f32.mxu0 0.0
    %4157 = vmatmul.mubr.f32.gmra.mrb[0].mxu0 %v402
    %v4158 = vpop.f32.mrb[0].mxu0
    %v4159 = vadd.f32 0.0, %v4158
    %v4160 = vpop.f32.mrb[0].mxu0
    %4161 = vmatprep.mubr.f32.mxu0 0.0
    %4162 = vmatmul.mubr.f32.gmra.mrb[0].mxu0 %v405
    %v4163 = vpop.f32.mrb[0].mxu0
    %v4164 = vadd.f32 0.0, %v4163
    %v4165 = vpop.f32.mrb[0].mxu0
    %4166 = vmatprep.mubr.f32.mxu0 0.0
    %4167 = vmatmul.mubr.f32.gmra.mrb[0].mxu0 %v408
    %v4168 = vpop.f32.mrb[0].mxu0
    %v4169 = vadd.f32 0.0, %v4168
    %v4170 = vpop.f32.mrb[0].mxu0
    %4171 = vmatprep.mubr.f32.mxu0 0.0
    %4172 = vmatmul.mubr.f32.gmra.mrb[0].mxu0 %v411
    %v4173 = vpop.f32.mrb[0].mxu0
    %v4174 = vadd.f32 0.0, %v4173
    %v4175 = vpop.f32.mrb[0].mxu0
    %4176 = vmatprep.mubr.f32.mxu0 0.0
    %4177 = vmatmul.mubr.f32.gmra.mrb[0].mxu0 %v414
    %v4178 = vpop.f32.mrb[0].mxu0
    %v4179 = vadd.f32 0.0, %v4178
    %v4180 = vpop.f32.mrb[0].mxu0
    %4181 = vmatprep.mubr.f32.mxu0 0.0
    %4182 = vmatmul.mubr.f32.gmra.mrb[0].mxu0 %v417
    %v4183 = vpop.f32.mrb[0].mxu0
    %v4184 = vadd.f32 0.0, %v4183
    %v4185 = vpop.f32.mrb[0].mxu0
    %4186 = vmatprep.mubr.f32.mxu0 0.0
    %4187 = vmatmul.mubr.f32.gmra.mrb[0].mxu0 %v420
    %v4188 = vpop.f32.mrb[0].mxu0
    %v4189 = vadd.f32 0.0, %v4188
    %v4190 = vpop.f32.mrb[0].mxu0
    %4191 = vmatprep.mubr.f32.mxu0 0.0
    %4192 = vmatmul.mubr.f32.gmra.mrb[0].mxu0 %v423
    %v4193 = vpop.f32.mrb[0].mxu0
    %v4194 = vadd.f32 0.0, %v4193
    %v4195 = vpop.f32.mrb[0].mxu0
    %4196 = vmatprep.mubr.f32.mxu0 0.0
    %4197 = vmatmul.mubr.f32.gmra.mrb[0].mxu0 %v426
    %v4198 = vpop.f32.mrb[0].mxu0
    %v4199 = vadd.f32 0.0, %v4198
    %v4200 = vpop.f32.mrb[0].mxu0
    %4201 = vmatprep.mubr.f32.mxu0 0.0
    %4202 = vmatmul.mubr.f32.gmra.mrb[0].mxu0 %v429
    %v4203 = vpop.f32.mrb[0].mxu0
    %v4204 = vadd.f32 0.0, %v4203
    %v4205 = vpop.f32.mrb[0].mxu0
    %4206 = vmatprep.mubr.f32.mxu0 0.0
    %4207 = vmatmul.mubr.f32.gmra.mrb[0].mxu0 %v432
    %v4208 = vpop.f32.mrb[0].mxu0
    %v4209 = vadd.f32 0.0, %v4208
    %v4210 = vpop.f32.mrb[0].mxu0
    %4211 = vmatprep.mubr.f32.mxu0 0.0
    %4212 = vmatmul.mubr.f32.gmra.mrb[0].mxu0 %v435
    %v4213 = vpop.f32.mrb[0].mxu0
    %v4214 = vadd.f32 0.0, %v4213
    %v4215 = vpop.f32.mrb[0].mxu0
    %4216 = vmatprep.mubr.f32.mxu0 0.0
    %4217 = vmatmul.mubr.f32.gmra.mrb[0].mxu0 %v438
    %v4218 = vpop.f32.mrb[0].mxu0
    %v4219 = vadd.f32 0.0, %v4218
    %v4220 = vpop.f32.mrb[0].mxu0
    %4221 = vmatprep.mubr.f32.mxu0 0.0
    %4222 = vmatmul.mubr.f32.gmra.mrb[0].mxu0 %v441
    %v4223 = vpop.f32.mrb[0].mxu0
    %v4224 = vadd.f32 0.0, %v4223
    %v4225 = vpop.f32.mrb[0].mxu0
    %4226 = vmatprep.mubr.f32.mxu0 0.0
    %4227 = vmatmul.mubr.f32.gmra.mrb[0].mxu0 %v444
    %v4228 = vpop.f32.mrb[0].mxu0
    %v4229 = vadd.f32 0.0, %v4228
    %v4230 = vpop.f32.mrb[0].mxu0
    %4231 = vmatprep.mubr.f32.mxu0 0.0
    %4232 = vmatmul.mubr.f32.gmra.mrb[0].mxu0 %v447
    %v4233 = vpop.f32.mrb[0].mxu0
    %v4234 = vadd.f32 0.0, %v4233
    %v4235 = vpop.f32.mrb[0].mxu0
    %4236 = vmatprep.mubr.f32.mxu0 0.0
    %4237 = vmatmul.mubr.f32.gmra.mrb[0].mxu0 %v450
    %v4238 = vpop.f32.mrb[0].mxu0
    %v4239 = vadd.f32 0.0, %v4238
    %v4240 = vpop.f32.mrb[0].mxu0
    %4241 = vmatprep.mubr.f32.mxu0 0.0
    %4242 = vmatmul.mubr.f32.gmra.mrb[0].mxu0 %v453
    %v4243 = vpop.f32.mrb[0].mxu0
    %v4244 = vadd.f32 0.0, %v4243
    %v4245 = vpop.f32.mrb[0].mxu0
    %4246 = vmatprep.mubr.f32.mxu0 0.0
    %4247 = vmatmul.mubr.f32.gmra.mrb[0].mxu0 %v456
    %v4248 = vpop.f32.mrb[0].mxu0
    %v4249 = vadd.f32 0.0, %v4248
    %v4250 = vpop.f32.mrb[0].mxu0
    %4251 = vmatprep.mubr.f32.mxu0 0.0
    %4252 = vmatmul.mubr.f32.gmra.mrb[0].mxu0 %v459
    %v4253 = vpop.f32.mrb[0].mxu0
    %v4254 = vadd.f32 0.0, %v4253
    %v4255 = vpop.f32.mrb[0].mxu0
    %4256 = vmatprep.mubr.f32.mxu0 0.0
    %4257 = vmatmul.mubr.f32.gmra.mrb[0].mxu0 %v462
    %v4258 = vpop.f32.mrb[0].mxu0
    %v4259 = vadd.f32 0.0, %v4258
    %v4260 = vpop.f32.mrb[0].mxu0
    %4261 = vmatprep.mubr.f32.mxu0 0.0
    %4262 = vmatmul.mubr.f32.gmra.mrb[0].mxu0 %v465
    %v4263 = vpop.f32.mrb[0].mxu0
    %v4264 = vadd.f32 0.0, %v4263
    %v4265 = vpop.f32.mrb[0].mxu0
    %4266 = vmatprep.mubr.f32.mxu0 0.0
    %4267 = vmatmul.mubr.f32.gmra.mrb[0].mxu0 %v468
    %v4268 = vpop.f32.mrb[0].mxu0
    %v4269 = vadd.f32 0.0, %v4268
    %v4270 = vpop.f32.mrb[0].mxu0
    %4271 = vmatprep.mubr.f32.mxu0 0.0
    %4272 = vmatmul.mubr.f32.gmra.mrb[0].mxu0 %v471
    %v4273 = vpop.f32.mrb[0].mxu0
    %v4274 = vadd.f32 0.0, %v4273
    %v4275 = vpop.f32.mrb[0].mxu0
    %4276 = vmatprep.mubr.f32.mxu0 0.0
    %4277 = vmatmul.mubr.f32.gmra.mrb[0].mxu0 %v474
    %v4278 = vpop.f32.mrb[0].mxu0
    %v4279 = vadd.f32 0.0, %v4278
    %v4280 = vpop.f32.mrb[0].mxu0
    %4281 = vmatprep.mubr.f32.mxu0 0.0
    %4282 = vmatmul.mubr.f32.gmra.mrb[0].mxu0 %v477
    %v4283 = vpop.f32.mrb[0].mxu0
    %v4284 = vadd.f32 0.0, %v4283
    %v4285 = vpop.f32.mrb[0].mxu0
    %4286 = vmatprep.mubr.f32.mxu0 0.0
    %4287 = vmatmul.mubr.f32.gmra.mrb[0].mxu0 %v2756
    %v4288 = vpop.f32.mrb[0].mxu0
    %v4289 = vadd.f32 0.0, %v4288
    %v4290 = vpop.f32.mrb[0].mxu0
    %4291 = vmatprep.mubr.f32.mxu0 0.0
    %4292 = vmatmul.mubr.f32.gmra.mrb[0].mxu0 %v2759
    %v4293 = vpop.f32.mrb[0].mxu0
    %v4294 = vadd.f32 0.0, %v4293
    %v4295 = vpop.f32.mrb[0].mxu0
    %4296 = vmatprep.mubr.f32.mxu0 0.0
    %4297 = vmatmul.mubr.f32.gmra.mrb[0].mxu0 %v2762
    %v4298 = vpop.f32.mrb[0].mxu0
    %v4299 = vadd.f32 0.0, %v4298
    %v4300 = vpop.f32.mrb[0].mxu0
    %4301 = vmatprep.mubr.f32.mxu0 0.0
    %4302 = vmatmul.mubr.f32.gmra.mrb[0].mxu0 %v2765
    %v4303 = vpop.f32.mrb[0].mxu0
    %v4304 = vadd.f32 0.0, %v4303
    %v4305 = vpop.f32.mrb[0].mxu0
    %4306 = vmatprep.mubr.f32.mxu0 0.0
    %4307 = vmatmul.mubr.f32.gmra.mrb[0].mxu0 %v2768
    %v4308 = vpop.f32.mrb[0].mxu0
    %v4309 = vadd.f32 0.0, %v4308
    %v4310 = vpop.f32.mrb[0].mxu0
    %4311 = vmatprep.mubr.f32.mxu0 0.0
    %4312 = vmatmul.mubr.f32.gmra.mrb[0].mxu0 %v2771
    %v4313 = vpop.f32.mrb[0].mxu0
    %v4314 = vadd.f32 0.0, %v4313
    %v4315 = vpop.f32.mrb[0].mxu0
    %4316 = vmatprep.mubr.f32.mxu0 0.0
    %4317 = vmatmul.mubr.f32.gmra.mrb[0].mxu0 %v2774
    %v4318 = vpop.f32.mrb[0].mxu0
    %v4319 = vadd.f32 0.0, %v4318
    %v4320 = vpop.f32.mrb[0].mxu0
    %4321 = vmatprep.mubr.f32.mxu0 0.0
    %4322 = vmatmul.mubr.f32.gmra.mrb[0].mxu0 %v3617
    %v4323 = vpop.f32.mrb[0].mxu0
    %v4324 = vadd.f32 0.0, %v4323
    %v4325 = vpop.f32.mrb[0].mxu0
    %4326 = vdwg.mxu0
    %v4327 = vadd.f32 %v3484, %v3689
    %v4328 = vadd.f32 %v3485, %v3694
    %v4329 = vadd.f32 %v3486, %v3699
    %v4330 = vadd.f32 %v3487, %v3704
    %v4331 = vadd.f32 %v3488, %v3709
    %v4332 = vadd.f32 %v3489, %v3714
    %v4333 = vadd.f32 %v3490, %v3719
    %v4334 = vadd.f32 %v3491, %v3724
    %v4335 = vadd.f32 %v3492, %v3729
    %v4336 = vadd.f32 %v3493, %v3734
    %v4337 = vadd.f32 %v3494, %v3739
    %v4338 = vadd.f32 %v3495, %v3744
    %v4339 = vadd.f32 %v3496, %v3749
    %v4340 = vadd.f32 %v3497, %v3754
    %v4341 = vadd.f32 %v3498, %v3759
    %v4342 = vadd.f32 %v3499, %v3764
    %v4343 = vadd.f32 %v3500, %v3769
    %v4344 = vadd.f32 %v3501, %v3774
    %v4345 = vadd.f32 %v3502, %v3779
    %v4346 = vadd.f32 %v3503, %v3784
    %v4347 = vadd.f32 %v3504, %v3789
    %v4348 = vadd.f32 %v3505, %v3794
    %v4349 = vadd.f32 %v3506, %v3799
    %v4350 = vadd.f32 %v3507, %v3804
    %v4351 = vadd.f32 %v3508, %v3809
    %v4352 = vadd.f32 %v3509, %v3814
    %v4353 = vadd.f32 %v3510, %v3819
    %v4354 = vadd.f32 %v3511, %v3824
    %v4355 = vadd.f32 %v3512, %v3829
    %v4356 = vadd.f32 %v3513, %v3834
    %v4357 = vadd.f32 %v3514, %v3839
    %v4358 = vadd.f32 %v3515, %v3844
    %v4359 = vadd.f32 %v3516, %v3849
    %v4360 = vadd.f32 %v3517, %v3854
    %v4361 = vadd.f32 %v3518, %v3859
    %v4362 = vadd.f32 %v3519, %v3864
    %v4363 = vadd.f32 %v3520, %v3869
    %v4364 = vadd.f32 %v3521, %v3874
    %v4365 = vadd.f32 %v3522, %v3879
    %v4366 = vadd.f32 %v3523, %v3884
    %v4367 = vadd.f32 %v3524, %v3889
    %v4368 = vadd.f32 %v3525, %v3894
    %v4369 = vadd.f32 %v3526, %v3899
    %v4370 = vadd.f32 %v3527, %v3904
    %v4371 = vadd.f32 %v3528, %v3909
    %v4372 = vadd.f32 %v3529, %v3914
    %v4373 = vadd.f32 %v3530, %v3919
    %v4374 = vadd.f32 %v3531, %v3924
    %v4375 = vadd.f32 %v3532, %v3929
    %v4376 = vadd.f32 %v3533, %v3934
    %v4377 = vadd.f32 %v3534, %v3939
    %v4378 = vadd.f32 %v3535, %v3944
    %v4379 = vadd.f32 %v3536, %v3949
    %v4380 = vadd.f32 %v3537, %v3954
    %v4381 = vadd.f32 %v3538, %v3959
    %v4382 = vadd.f32 %v3539, %v3964
    %v4383 = vadd.f32 %v3540, %v3969
    %v4384 = vadd.f32 %v3541, %v3974
    %v4385 = vadd.f32 %v3542, %v3979
    %v4386 = vadd.f32 %v3543, %v3984
    %v4387 = vadd.f32 %v3544, %v3989
    %v4388 = vadd.f32 %v3545, %v3994
    %v4389 = vadd.f32 %v3546, %v3999
    %v4390 = vadd.f32 %v3547, %v4004
    %v4391 = vadd.f32 %v3548, %v4009
    %v4392 = vadd.f32 %v3549, %v4014
    %v4393 = vadd.f32 %v3550, %v4019
    %v4394 = vadd.f32 %v3551, %v4024
    %v4395 = vadd.f32 %v3552, %v4029
    %v4396 = vadd.f32 %v3553, %v4034
    %v4397 = vadd.f32 %v3554, %v4039
    %v4398 = vadd.f32 %v3555, %v4044
    %v4399 = vadd.f32 %v3556, %v4049
    %v4400 = vadd.f32 %v3557, %v4054
    %v4401 = vadd.f32 %v3558, %v4059
    %v4402 = vadd.f32 %v3559, %v4064
    %v4403 = vadd.f32 %v3560, %v4069
    %v4404 = vadd.f32 %v3561, %v4074
    %v4405 = vadd.f32 %v3562, %v4079
    %v4406 = vadd.f32 %v3563, %v4084
    %v4407 = vadd.f32 %v3564, %v4089
    %v4408 = vadd.f32 %v3565, %v4094
    %v4409 = vadd.f32 %v3566, %v4099
    %v4410 = vadd.f32 %v3567, %v4104
    %v4411 = vadd.f32 %v3568, %v4109
    %v4412 = vadd.f32 %v3569, %v4114
    %v4413 = vadd.f32 %v3570, %v4119
    %v4414 = vadd.f32 %v3571, %v4124
    %v4415 = vadd.f32 %v3572, %v4129
    %v4416 = vadd.f32 %v3573, %v4134
    %v4417 = vadd.f32 %v3574, %v4139
    %v4418 = vadd.f32 %v3575, %v4144
    %v4419 = vadd.f32 %v3576, %v4149
    %v4420 = vadd.f32 %v3577, %v4154
    %v4421 = vadd.f32 %v3578, %v4159
    %v4422 = vadd.f32 %v3579, %v4164
    %v4423 = vadd.f32 %v3580, %v4169
    %v4424 = vadd.f32 %v3581, %v4174
    %v4425 = vadd.f32 %v3582, %v4179
    %v4426 = vadd.f32 %v3583, %v4184
    %v4427 = vadd.f32 %v3584, %v4189
    %v4428 = vadd.f32 %v3585, %v4194
    %v4429 = vadd.f32 %v3586, %v4199
    %v4430 = vadd.f32 %v3587, %v4204
    %v4431 = vadd.f32 %v3588, %v4209
    %v4432 = vadd.f32 %v3589, %v4214
    %v4433 = vadd.f32 %v3590, %v4219
    %v4434 = vadd.f32 %v3591, %v4224
    %v4435 = vadd.f32 %v3592, %v4229
    %v4436 = vadd.f32 %v3593, %v4234
    %v4437 = vadd.f32 %v3594, %v4239
    %v4438 = vadd.f32 %v3595, %v4244
    %v4439 = vadd.f32 %v3596, %v4249
    %v4440 = vadd.f32 %v3597, %v4254
    %v4441 = vadd.f32 %v3598, %v4259
    %v4442 = vadd.f32 %v3599, %v4264
    %v4443 = vadd.f32 %v3600, %v4269
    %v4444 = vadd.f32 %v3601, %v4274
    %v4445 = vadd.f32 %v3602, %v4279
    %v4446 = vadd.f32 %v3603, %v4284
    %v4447 = vadd.f32 %v3604, %v4289
    %v4448 = vadd.f32 %v3605, %v4294
    %v4449 = vadd.f32 %v3606, %v4299
    %v4450 = vadd.f32 %v3607, %v4304
    %v4451 = vadd.f32 %v3608, %v4309
    %v4452 = vadd.f32 %v3609, %v4314
    %v4453 = vadd.f32 %v3610, %v4319
    %v4454 = vadd.f32 %v3611, %v4324
    %v4455 = vld [vmem:[%s1 + $0x14] sm:$0xf]
    %v4457 = vsel %vm479, %v4455, 0
    %4459 = vmatprep.subr.mxu0 0.0
    %4460 = vmatpush1.msra.mxu0 %v4457
    %4461 = vmatprep.subr.mxu0 0.0
    %4462 = vmatpush1.msra.mxu0 0.0
    %4463 = vmatprep.subr.mxu0 0.0
    %4464 = vmatpush1.msra.mxu0 0.0
    %4465 = vmatprep.subr.mxu0 0.0
    %4466 = vmatpush1.msra.mxu0 0.0
    %4467 = vmatprep.subr.mxu0 0.0
    %4468 = vmatpush1.msra.mxu0 0.0
    %4469 = vmatprep.subr.mxu0 0.0
    %4470 = vmatpush1.msra.mxu0 0.0
    %4471 = vmatprep.subr.mxu0 0.0
    %4472 = vmatpush1.msra.mxu0 0.0
    %4473 = vmatprep.subr.mxu0 0.0
    %4474 = vmatpush1.msra.mxu0 0.0
    %4475 = vmatprep.subr.mxu0 0.0
    %4476 = vmatpush1.msra.mxu0 0.0
    %4477 = vmatprep.subr.mxu0 0.0
    %4478 = vmatpush1.msra.mxu0 0.0
    %4479 = vmatprep.subr.mxu0 0.0
    %4480 = vmatpush1.msra.mxu0 0.0
    %4481 = vmatprep.subr.mxu0 0.0
    %4482 = vmatpush1.msra.mxu0 0.0
    %4483 = vmatprep.subr.mxu0 0.0
    %4484 = vmatpush1.msra.mxu0 0.0
    %4485 = vmatprep.subr.mxu0 0.0
    %4486 = vmatpush1.msra.mxu0 0.0
    %4487 = vmatprep.subr.mxu0 0.0
    %4488 = vmatpush1.msra.mxu0 0.0
    %4489 = vmatprep.subr.mxu0 0.0
    %4490 = vmatpush1.msra.mxu0 0.0
    %4491 = vmatprep.subr.mxu0 0.0
    %4492 = vmatpush1.msra.mxu0 0.0
    %4493 = vmatprep.subr.mxu0 0.0
    %4494 = vmatpush1.msra.mxu0 0.0
    %4495 = vmatprep.subr.mxu0 0.0
    %4496 = vmatpush1.msra.mxu0 0.0
    %4497 = vmatprep.subr.mxu0 0.0
    %4498 = vmatpush1.msra.mxu0 0.0
    %4499 = vmatprep.subr.mxu0 0.0
    %4500 = vmatpush1.msra.mxu0 0.0
    %4501 = vmatprep.subr.mxu0 0.0
    %4502 = vmatpush1.msra.mxu0 0.0
    %4503 = vmatprep.subr.mxu0 0.0
    %4504 = vmatpush1.msra.mxu0 0.0
    %4505 = vmatprep.subr.mxu0 0.0
    %4506 = vmatpush1.msra.mxu0 0.0
    %4507 = vmatprep.subr.mxu0 0.0
    %4508 = vmatpush1.msra.mxu0 0.0
    %4509 = vmatprep.subr.mxu0 0.0
    %4510 = vmatpush1.msra.mxu0 0.0
    %4511 = vmatprep.subr.mxu0 0.0
    %4512 = vmatpush1.msra.mxu0 0.0
    %4513 = vmatprep.subr.mxu0 0.0
    %4514 = vmatpush1.msra.mxu0 0.0
    %4515 = vmatprep.subr.mxu0 0.0
    %4516 = vmatpush1.msra.mxu0 0.0
    %4517 = vmatprep.subr.mxu0 0.0
    %4518 = vmatpush1.msra.mxu0 0.0
    %4519 = vmatprep.subr.mxu0 0.0
    %4520 = vmatpush1.msra.mxu0 0.0
    %4521 = vmatprep.subr.mxu0 0.0
    %4522 = vmatpush1.msra.mxu0 0.0
    %4523 = vmatprep.mubr.f32.mxu0 0.0
    %4524 = vmatmul.mubr.f32.gmra.mrb[0].mxu0 %v147
    %v4525 = vpop.f32.mrb[0].mxu0
    %v4526 = vadd.f32 0.0, %v4525
    %v4527 = vpop.f32.mrb[0].mxu0
    %4528 = vmatprep.mubr.f32.mxu0 0.0
    %4529 = vmatmul.mubr.f32.gmra.mrb[0].mxu0 %v150
    %v4530 = vpop.f32.mrb[0].mxu0
    %v4531 = vadd.f32 0.0, %v4530
    %v4532 = vpop.f32.mrb[0].mxu0
    %4533 = vmatprep.mubr.f32.mxu0 0.0
    %4534 = vmatmul.mubr.f32.gmra.mrb[0].mxu0 %v153
    %v4535 = vpop.f32.mrb[0].mxu0
    %v4536 = vadd.f32 0.0, %v4535
    %v4537 = vpop.f32.mrb[0].mxu0
    %4538 = vmatprep.mubr.f32.mxu0 0.0
    %4539 = vmatmul.mubr.f32.gmra.mrb[0].mxu0 %v156
    %v4540 = vpop.f32.mrb[0].mxu0
    %v4541 = vadd.f32 0.0, %v4540
    %v4542 = vpop.f32.mrb[0].mxu0
    %4543 = vmatprep.mubr.f32.mxu0 0.0
    %4544 = vmatmul.mubr.f32.gmra.mrb[0].mxu0 %v159
    %v4545 = vpop.f32.mrb[0].mxu0
    %v4546 = vadd.f32 0.0, %v4545
    %v4547 = vpop.f32.mrb[0].mxu0
    %4548 = vmatprep.mubr.f32.mxu0 0.0
    %4549 = vmatmul.mubr.f32.gmra.mrb[0].mxu0 %v162
    %v4550 = vpop.f32.mrb[0].mxu0
    %v4551 = vadd.f32 0.0, %v4550
    %v4552 = vpop.f32.mrb[0].mxu0
    %4553 = vmatprep.mubr.f32.mxu0 0.0
    %4554 = vmatmul.mubr.f32.gmra.mrb[0].mxu0 %v165
    %v4555 = vpop.f32.mrb[0].mxu0
    %v4556 = vadd.f32 0.0, %v4555
    %v4557 = vpop.f32.mrb[0].mxu0
    %4558 = vmatprep.mubr.f32.mxu0 0.0
    %4559 = vmatmul.mubr.f32.gmra.mrb[0].mxu0 %v165
    %v4560 = vpop.f32.mrb[0].mxu0
    %v4561 = vadd.f32 0.0, %v4560
    %v4562 = vpop.f32.mrb[0].mxu0
    %4563 = vmatprep.mubr.f32.mxu0 0.0
    %4564 = vmatmul.mubr.f32.gmra.mrb[0].mxu0 %v171
    %v4565 = vpop.f32.mrb[0].mxu0
    %v4566 = vadd.f32 0.0, %v4565
    %v4567 = vpop.f32.mrb[0].mxu0
    %4568 = vmatprep.mubr.f32.mxu0 0.0
    %4569 = vmatmul.mubr.f32.gmra.mrb[0].mxu0 %v174
    %v4570 = vpop.f32.mrb[0].mxu0
    %v4571 = vadd.f32 0.0, %v4570
    %v4572 = vpop.f32.mrb[0].mxu0
    %4573 = vmatprep.mubr.f32.mxu0 0.0
    %4574 = vmatmul.mubr.f32.gmra.mrb[0].mxu0 %v177
    %v4575 = vpop.f32.mrb[0].mxu0
    %v4576 = vadd.f32 0.0, %v4575
    %v4577 = vpop.f32.mrb[0].mxu0
    %4578 = vmatprep.mubr.f32.mxu0 0.0
    %4579 = vmatmul.mubr.f32.gmra.mrb[0].mxu0 %v180
    %v4580 = vpop.f32.mrb[0].mxu0
    %v4581 = vadd.f32 0.0, %v4580
    %v4582 = vpop.f32.mrb[0].mxu0
    %4583 = vmatprep.mubr.f32.mxu0 0.0
    %4584 = vmatmul.mubr.f32.gmra.mrb[0].mxu0 %v183
    %v4585 = vpop.f32.mrb[0].mxu0
    %v4586 = vadd.f32 0.0, %v4585
    %v4587 = vpop.f32.mrb[0].mxu0
    %4588 = vmatprep.mubr.f32.mxu0 0.0
    %4589 = vmatmul.mubr.f32.gmra.mrb[0].mxu0 %v186
    %v4590 = vpop.f32.mrb[0].mxu0
    %v4591 = vadd.f32 0.0, %v4590
    %v4592 = vpop.f32.mrb[0].mxu0
    %4593 = vmatprep.mubr.f32.mxu0 0.0
    %4594 = vmatmul.mubr.f32.gmra.mrb[0].mxu0 %v189
    %v4595 = vpop.f32.mrb[0].mxu0
    %v4596 = vadd.f32 0.0, %v4595
    %v4597 = vpop.f32.mrb[0].mxu0
    %4598 = vmatprep.mubr.f32.mxu0 0.0
    %4599 = vmatmul.mubr.f32.gmra.mrb[0].mxu0 %v189
    %v4600 = vpop.f32.mrb[0].mxu0
    %v4601 = vadd.f32 0.0, %v4600
    %v4602 = vpop.f32.mrb[0].mxu0
    %4603 = vmatprep.mubr.f32.mxu0 0.0
    %4604 = vmatmul.mubr.f32.gmra.mrb[0].mxu0 %v195
    %v4605 = vpop.f32.mrb[0].mxu0
    %v4606 = vadd.f32 0.0, %v4605
    %v4607 = vpop.f32.mrb[0].mxu0
    %4608 = vmatprep.mubr.f32.mxu0 0.0
    %4609 = vmatmul.mubr.f32.gmra.mrb[0].mxu0 %v198
    %v4610 = vpop.f32.mrb[0].mxu0
    %v4611 = vadd.f32 0.0, %v4610
    %v4612 = vpop.f32.mrb[0].mxu0
    %4613 = vmatprep.mubr.f32.mxu0 0.0
    %4614 = vmatmul.mubr.f32.gmra.mrb[0].mxu0 %v201
    %v4615 = vpop.f32.mrb[0].mxu0
    %v4616 = vadd.f32 0.0, %v4615
    %v4617 = vpop.f32.mrb[0].mxu0
    %4618 = vmatprep.mubr.f32.mxu0 0.0
    %4619 = vmatmul.mubr.f32.gmra.mrb[0].mxu0 %v204
    %v4620 = vpop.f32.mrb[0].mxu0
    %v4621 = vadd.f32 0.0, %v4620
    %v4622 = vpop.f32.mrb[0].mxu0
    %4623 = vmatprep.mubr.f32.mxu0 0.0
    %4624 = vmatmul.mubr.f32.gmra.mrb[0].mxu0 %v207
    %v4625 = vpop.f32.mrb[0].mxu0
    %v4626 = vadd.f32 0.0, %v4625
    %v4627 = vpop.f32.mrb[0].mxu0
    %4628 = vmatprep.mubr.f32.mxu0 0.0
    %4629 = vmatmul.mubr.f32.gmra.mrb[0].mxu0 %v210
    %v4630 = vpop.f32.mrb[0].mxu0
    %v4631 = vadd.f32 0.0, %v4630
    %v4632 = vpop.f32.mrb[0].mxu0
    %4633 = vmatprep.mubr.f32.mxu0 0.0
    %4634 = vmatmul.mubr.f32.gmra.mrb[0].mxu0 %v213
    %v4635 = vpop.f32.mrb[0].mxu0
    %v4636 = vadd.f32 0.0, %v4635
    %v4637 = vpop.f32.mrb[0].mxu0
    %4638 = vmatprep.mubr.f32.mxu0 0.0
    %4639 = vmatmul.mubr.f32.gmra.mrb[0].mxu0 %v213
    %v4640 = vpop.f32.mrb[0].mxu0
    %v4641 = vadd.f32 0.0, %v4640
    %v4642 = vpop.f32.mrb[0].mxu0
    %4643 = vmatprep.mubr.f32.mxu0 0.0
    %4644 = vmatmul.mubr.f32.gmra.mrb[0].mxu0 %v219
    %v4645 = vpop.f32.mrb[0].mxu0
    %v4646 = vadd.f32 0.0, %v4645
    %v4647 = vpop.f32.mrb[0].mxu0
    %4648 = vmatprep.mubr.f32.mxu0 0.0
    %4649 = vmatmul.mubr.f32.gmra.mrb[0].mxu0 %v222
    %v4650 = vpop.f32.mrb[0].mxu0
    %v4651 = vadd.f32 0.0, %v4650
    %v4652 = vpop.f32.mrb[0].mxu0
    %4653 = vmatprep.mubr.f32.mxu0 0.0
    %4654 = vmatmul.mubr.f32.gmra.mrb[0].mxu0 %v225
    %v4655 = vpop.f32.mrb[0].mxu0
    %v4656 = vadd.f32 0.0, %v4655
    %v4657 = vpop.f32.mrb[0].mxu0
    %4658 = vmatprep.mubr.f32.mxu0 0.0
    %4659 = vmatmul.mubr.f32.gmra.mrb[0].mxu0 %v228
    %v4660 = vpop.f32.mrb[0].mxu0
    %v4661 = vadd.f32 0.0, %v4660
    %v4662 = vpop.f32.mrb[0].mxu0
    %4663 = vmatprep.mubr.f32.mxu0 0.0
    %4664 = vmatmul.mubr.f32.gmra.mrb[0].mxu0 %v231
    %v4665 = vpop.f32.mrb[0].mxu0
    %v4666 = vadd.f32 0.0, %v4665
    %v4667 = vpop.f32.mrb[0].mxu0
    %4668 = vmatprep.mubr.f32.mxu0 0.0
    %4669 = vmatmul.mubr.f32.gmra.mrb[0].mxu0 %v234
    %v4670 = vpop.f32.mrb[0].mxu0
    %v4671 = vadd.f32 0.0, %v4670
    %v4672 = vpop.f32.mrb[0].mxu0
    %4673 = vmatprep.mubr.f32.mxu0 0.0
    %4674 = vmatmul.mubr.f32.gmra.mrb[0].mxu0 %v237
    %v4675 = vpop.f32.mrb[0].mxu0
    %v4676 = vadd.f32 0.0, %v4675
    %v4677 = vpop.f32.mrb[0].mxu0
    %4678 = vmatprep.mubr.f32.mxu0 0.0
    %4679 = vmatmul.mubr.f32.gmra.mrb[0].mxu0 %v237
    %v4680 = vpop.f32.mrb[0].mxu0
    %v4681 = vadd.f32 0.0, %v4680
    %v4682 = vpop.f32.mrb[0].mxu0
    %4683 = vmatprep.mubr.f32.mxu0 0.0
    %4684 = vmatmul.mubr.f32.gmra.mrb[0].mxu0 %v243
    %v4685 = vpop.f32.mrb[0].mxu0
    %v4686 = vadd.f32 0.0, %v4685
    %v4687 = vpop.f32.mrb[0].mxu0
    %4688 = vmatprep.mubr.f32.mxu0 0.0
    %4689 = vmatmul.mubr.f32.gmra.mrb[0].mxu0 %v246
    %v4690 = vpop.f32.mrb[0].mxu0
    %v4691 = vadd.f32 0.0, %v4690
    %v4692 = vpop.f32.mrb[0].mxu0
    %4693 = vmatprep.mubr.f32.mxu0 0.0
    %4694 = vmatmul.mubr.f32.gmra.mrb[0].mxu0 %v249
    %v4695 = vpop.f32.mrb[0].mxu0
    %v4696 = vadd.f32 0.0, %v4695
    %v4697 = vpop.f32.mrb[0].mxu0
    %4698 = vmatprep.mubr.f32.mxu0 0.0
    %4699 = vmatmul.mubr.f32.gmra.mrb[0].mxu0 %v252
    %v4700 = vpop.f32.mrb[0].mxu0
    %v4701 = vadd.f32 0.0, %v4700
    %v4702 = vpop.f32.mrb[0].mxu0
    %4703 = vmatprep.mubr.f32.mxu0 0.0
    %4704 = vmatmul.mubr.f32.gmra.mrb[0].mxu0 %v255
    %v4705 = vpop.f32.mrb[0].mxu0
    %v4706 = vadd.f32 0.0, %v4705
    %v4707 = vpop.f32.mrb[0].mxu0
    %4708 = vmatprep.mubr.f32.mxu0 0.0
    %4709 = vmatmul.mubr.f32.gmra.mrb[0].mxu0 %v258
    %v4710 = vpop.f32.mrb[0].mxu0
    %v4711 = vadd.f32 0.0, %v4710
    %v4712 = vpop.f32.mrb[0].mxu0
    %4713 = vmatprep.mubr.f32.mxu0 0.0
    %4714 = vmatmul.mubr.f32.gmra.mrb[0].mxu0 %v261
    %v4715 = vpop.f32.mrb[0].mxu0
    %v4716 = vadd.f32 0.0, %v4715
    %v4717 = vpop.f32.mrb[0].mxu0
    %4718 = vmatprep.mubr.f32.mxu0 0.0
    %4719 = vmatmul.mubr.f32.gmra.mrb[0].mxu0 %v261
    %v4720 = vpop.f32.mrb[0].mxu0
    %v4721 = vadd.f32 0.0, %v4720
    %v4722 = vpop.f32.mrb[0].mxu0
    %4723 = vmatprep.mubr.f32.mxu0 0.0
    %4724 = vmatmul.mubr.f32.gmra.mrb[0].mxu0 %v267
    %v4725 = vpop.f32.mrb[0].mxu0
    %v4726 = vadd.f32 0.0, %v4725
    %v4727 = vpop.f32.mrb[0].mxu0
    %4728 = vmatprep.mubr.f32.mxu0 0.0
    %4729 = vmatmul.mubr.f32.gmra.mrb[0].mxu0 %v270
    %v4730 = vpop.f32.mrb[0].mxu0
    %v4731 = vadd.f32 0.0, %v4730
    %v4732 = vpop.f32.mrb[0].mxu0
    %4733 = vmatprep.mubr.f32.mxu0 0.0
    %4734 = vmatmul.mubr.f32.gmra.mrb[0].mxu0 %v273
    %v4735 = vpop.f32.mrb[0].mxu0
    %v4736 = vadd.f32 0.0, %v4735
    %v4737 = vpop.f32.mrb[0].mxu0
    %4738 = vmatprep.mubr.f32.mxu0 0.0
    %4739 = vmatmul.mubr.f32.gmra.mrb[0].mxu0 %v276
    %v4740 = vpop.f32.mrb[0].mxu0
    %v4741 = vadd.f32 0.0, %v4740
    %v4742 = vpop.f32.mrb[0].mxu0
    %4743 = vmatprep.mubr.f32.mxu0 0.0
    %4744 = vmatmul.mubr.f32.gmra.mrb[0].mxu0 %v279
    %v4745 = vpop.f32.mrb[0].mxu0
    %v4746 = vadd.f32 0.0, %v4745
    %v4747 = vpop.f32.mrb[0].mxu0
    %4748 = vmatprep.mubr.f32.mxu0 0.0
    %4749 = vmatmul.mubr.f32.gmra.mrb[0].mxu0 %v282
    %v4750 = vpop.f32.mrb[0].mxu0
    %v4751 = vadd.f32 0.0, %v4750
    %v4752 = vpop.f32.mrb[0].mxu0
    %4753 = vmatprep.mubr.f32.mxu0 0.0
    %4754 = vmatmul.mubr.f32.gmra.mrb[0].mxu0 %v285
    %v4755 = vpop.f32.mrb[0].mxu0
    %v4756 = vadd.f32 0.0, %v4755
    %v4757 = vpop.f32.mrb[0].mxu0
    %4758 = vmatprep.mubr.f32.mxu0 0.0
    %4759 = vmatmul.mubr.f32.gmra.mrb[0].mxu0 %v285
    %v4760 = vpop.f32.mrb[0].mxu0
    %v4761 = vadd.f32 0.0, %v4760
    %v4762 = vpop.f32.mrb[0].mxu0
    %4763 = vmatprep.mubr.f32.mxu0 0.0
    %4764 = vmatmul.mubr.f32.gmra.mrb[0].mxu0 %v291
    %v4765 = vpop.f32.mrb[0].mxu0
    %v4766 = vadd.f32 0.0, %v4765
    %v4767 = vpop.f32.mrb[0].mxu0
    %4768 = vmatprep.mubr.f32.mxu0 0.0
    %4769 = vmatmul.mubr.f32.gmra.mrb[0].mxu0 %v294
    %v4770 = vpop.f32.mrb[0].mxu0
    %v4771 = vadd.f32 0.0, %v4770
    %v4772 = vpop.f32.mrb[0].mxu0
    %4773 = vmatprep.mubr.f32.mxu0 0.0
    %4774 = vmatmul.mubr.f32.gmra.mrb[0].mxu0 %v297
    %v4775 = vpop.f32.mrb[0].mxu0
    %v4776 = vadd.f32 0.0, %v4775
    %v4777 = vpop.f32.mrb[0].mxu0
    %4778 = vmatprep.mubr.f32.mxu0 0.0
    %4779 = vmatmul.mubr.f32.gmra.mrb[0].mxu0 %v300
    %v4780 = vpop.f32.mrb[0].mxu0
    %v4781 = vadd.f32 0.0, %v4780
    %v4782 = vpop.f32.mrb[0].mxu0
    %4783 = vmatprep.mubr.f32.mxu0 0.0
    %4784 = vmatmul.mubr.f32.gmra.mrb[0].mxu0 %v303
    %v4785 = vpop.f32.mrb[0].mxu0
    %v4786 = vadd.f32 0.0, %v4785
    %v4787 = vpop.f32.mrb[0].mxu0
    %4788 = vmatprep.mubr.f32.mxu0 0.0
    %4789 = vmatmul.mubr.f32.gmra.mrb[0].mxu0 %v306
    %v4790 = vpop.f32.mrb[0].mxu0
    %v4791 = vadd.f32 0.0, %v4790
    %v4792 = vpop.f32.mrb[0].mxu0
    %4793 = vmatprep.mubr.f32.mxu0 0.0
    %4794 = vmatmul.mubr.f32.gmra.mrb[0].mxu0 %v309
    %v4795 = vpop.f32.mrb[0].mxu0
    %v4796 = vadd.f32 0.0, %v4795
    %v4797 = vpop.f32.mrb[0].mxu0
    %4798 = vmatprep.mubr.f32.mxu0 0.0
    %4799 = vmatmul.mubr.f32.gmra.mrb[0].mxu0 %v309
    %v4800 = vpop.f32.mrb[0].mxu0
    %v4801 = vadd.f32 0.0, %v4800
    %v4802 = vpop.f32.mrb[0].mxu0
    %4803 = vmatprep.mubr.f32.mxu0 0.0
    %4804 = vmatmul.mubr.f32.gmra.mrb[0].mxu0 %v2738
    %v4805 = vpop.f32.mrb[0].mxu0
    %v4806 = vadd.f32 0.0, %v4805
    %v4807 = vpop.f32.mrb[0].mxu0
    %4808 = vmatprep.mubr.f32.mxu0 0.0
    %4809 = vmatmul.mubr.f32.gmra.mrb[0].mxu0 %v2741
    %v4810 = vpop.f32.mrb[0].mxu0
    %v4811 = vadd.f32 0.0, %v4810
    %v4812 = vpop.f32.mrb[0].mxu0
    %4813 = vmatprep.mubr.f32.mxu0 0.0
    %4814 = vmatmul.mubr.f32.gmra.mrb[0].mxu0 %v2744
    %v4815 = vpop.f32.mrb[0].mxu0
    %v4816 = vadd.f32 0.0, %v4815
    %v4817 = vpop.f32.mrb[0].mxu0
    %4818 = vmatprep.mubr.f32.mxu0 0.0
    %4819 = vmatmul.mubr.f32.gmra.mrb[0].mxu0 %v2747
    %v4820 = vpop.f32.mrb[0].mxu0
    %v4821 = vadd.f32 0.0, %v4820
    %v4822 = vpop.f32.mrb[0].mxu0
    %4823 = vmatprep.mubr.f32.mxu0 0.0
    %4824 = vmatmul.mubr.f32.gmra.mrb[0].mxu0 %v2750
    %v4825 = vpop.f32.mrb[0].mxu0
    %v4826 = vadd.f32 0.0, %v4825
    %v4827 = vpop.f32.mrb[0].mxu0
    %4828 = vmatprep.mubr.f32.mxu0 0.0
    %4829 = vmatmul.mubr.f32.gmra.mrb[0].mxu0 %v2753
    %v4830 = vpop.f32.mrb[0].mxu0
    %v4831 = vadd.f32 0.0, %v4830
    %v4832 = vpop.f32.mrb[0].mxu0
    %4833 = vmatprep.mubr.f32.mxu0 0.0
    %4834 = vmatmul.mubr.f32.gmra.mrb[0].mxu0 %v3614
    %v4835 = vpop.f32.mrb[0].mxu0
    %v4836 = vadd.f32 0.0, %v4835
    %v4837 = vpop.f32.mrb[0].mxu0
    %4838 = vmatprep.mubr.f32.mxu0 0.0
    %4839 = vmatmul.mubr.f32.gmra.mrb[0].mxu0 %v3614
    %v4840 = vpop.f32.mrb[0].mxu0
    %v4841 = vadd.f32 0.0, %v4840
    %v4842 = vpop.f32.mrb[0].mxu0
    %4843 = vmatprep.mubr.f32.mxu0 0.0
    %4844 = vmatmul.mubr.f32.gmra.mrb[0].mxu0 %v315
    %v4845 = vpop.f32.mrb[0].mxu0
    %v4846 = vadd.f32 0.0, %v4845
    %v4847 = vpop.f32.mrb[0].mxu0
    %4848 = vmatprep.mubr.f32.mxu0 0.0
    %4849 = vmatmul.mubr.f32.gmra.mrb[0].mxu0 %v318
    %v4850 = vpop.f32.mrb[0].mxu0
    %v4851 = vadd.f32 0.0, %v4850
    %v4852 = vpop.f32.mrb[0].mxu0
    %4853 = vmatprep.mubr.f32.mxu0 0.0
    %4854 = vmatmul.mubr.f32.gmra.mrb[0].mxu0 %v321
    %v4855 = vpop.f32.mrb[0].mxu0
    %v4856 = vadd.f32 0.0, %v4855
    %v4857 = vpop.f32.mrb[0].mxu0
    %4858 = vmatprep.mubr.f32.mxu0 0.0
    %4859 = vmatmul.mubr.f32.gmra.mrb[0].mxu0 %v324
    %v4860 = vpop.f32.mrb[0].mxu0
    %v4861 = vadd.f32 0.0, %v4860
    %v4862 = vpop.f32.mrb[0].mxu0
    %4863 = vmatprep.mubr.f32.mxu0 0.0
    %4864 = vmatmul.mubr.f32.gmra.mrb[0].mxu0 %v327
    %v4865 = vpop.f32.mrb[0].mxu0
    %v4866 = vadd.f32 0.0, %v4865
    %v4867 = vpop.f32.mrb[0].mxu0
    %4868 = vmatprep.mubr.f32.mxu0 0.0
    %4869 = vmatmul.mubr.f32.gmra.mrb[0].mxu0 %v330
    %v4870 = vpop.f32.mrb[0].mxu0
    %v4871 = vadd.f32 0.0, %v4870
    %v4872 = vpop.f32.mrb[0].mxu0
    %4873 = vmatprep.mubr.f32.mxu0 0.0
    %4874 = vmatmul.mubr.f32.gmra.mrb[0].mxu0 %v333
    %v4875 = vpop.f32.mrb[0].mxu0
    %v4876 = vadd.f32 0.0, %v4875
    %v4877 = vpop.f32.mrb[0].mxu0
    %4878 = vmatprep.mubr.f32.mxu0 0.0
    %4879 = vmatmul.mubr.f32.gmra.mrb[0].mxu0 %v333
    %v4880 = vpop.f32.mrb[0].mxu0
    %v4881 = vadd.f32 0.0, %v4880
    %v4882 = vpop.f32.mrb[0].mxu0
    %4883 = vmatprep.mubr.f32.mxu0 0.0
    %4884 = vmatmul.mubr.f32.gmra.mrb[0].mxu0 %v339
    %v4885 = vpop.f32.mrb[0].mxu0
    %v4886 = vadd.f32 0.0, %v4885
    %v4887 = vpop.f32.mrb[0].mxu0
    %4888 = vmatprep.mubr.f32.mxu0 0.0
    %4889 = vmatmul.mubr.f32.gmra.mrb[0].mxu0 %v342
    %v4890 = vpop.f32.mrb[0].mxu0
    %v4891 = vadd.f32 0.0, %v4890
    %v4892 = vpop.f32.mrb[0].mxu0
    %4893 = vmatprep.mubr.f32.mxu0 0.0
    %4894 = vmatmul.mubr.f32.gmra.mrb[0].mxu0 %v345
    %v4895 = vpop.f32.mrb[0].mxu0
    %v4896 = vadd.f32 0.0, %v4895
    %v4897 = vpop.f32.mrb[0].mxu0
    %4898 = vmatprep.mubr.f32.mxu0 0.0
    %4899 = vmatmul.mubr.f32.gmra.mrb[0].mxu0 %v348
    %v4900 = vpop.f32.mrb[0].mxu0
    %v4901 = vadd.f32 0.0, %v4900
    %v4902 = vpop.f32.mrb[0].mxu0
    %4903 = vmatprep.mubr.f32.mxu0 0.0
    %4904 = vmatmul.mubr.f32.gmra.mrb[0].mxu0 %v351
    %v4905 = vpop.f32.mrb[0].mxu0
    %v4906 = vadd.f32 0.0, %v4905
    %v4907 = vpop.f32.mrb[0].mxu0
    %4908 = vmatprep.mubr.f32.mxu0 0.0
    %4909 = vmatmul.mubr.f32.gmra.mrb[0].mxu0 %v354
    %v4910 = vpop.f32.mrb[0].mxu0
    %v4911 = vadd.f32 0.0, %v4910
    %v4912 = vpop.f32.mrb[0].mxu0
    %4913 = vmatprep.mubr.f32.mxu0 0.0
    %4914 = vmatmul.mubr.f32.gmra.mrb[0].mxu0 %v357
    %v4915 = vpop.f32.mrb[0].mxu0
    %v4916 = vadd.f32 0.0, %v4915
    %v4917 = vpop.f32.mrb[0].mxu0
    %4918 = vmatprep.mubr.f32.mxu0 0.0
    %4919 = vmatmul.mubr.f32.gmra.mrb[0].mxu0 %v357
    %v4920 = vpop.f32.mrb[0].mxu0
    %v4921 = vadd.f32 0.0, %v4920
    %v4922 = vpop.f32.mrb[0].mxu0
    %4923 = vmatprep.mubr.f32.mxu0 0.0
    %4924 = vmatmul.mubr.f32.gmra.mrb[0].mxu0 %v363
    %v4925 = vpop.f32.mrb[0].mxu0
    %v4926 = vadd.f32 0.0, %v4925
    %v4927 = vpop.f32.mrb[0].mxu0
    %4928 = vmatprep.mubr.f32.mxu0 0.0
    %4929 = vmatmul.mubr.f32.gmra.mrb[0].mxu0 %v366
    %v4930 = vpop.f32.mrb[0].mxu0
    %v4931 = vadd.f32 0.0, %v4930
    %v4932 = vpop.f32.mrb[0].mxu0
    %4933 = vmatprep.mubr.f32.mxu0 0.0
    %4934 = vmatmul.mubr.f32.gmra.mrb[0].mxu0 %v369
    %v4935 = vpop.f32.mrb[0].mxu0
    %v4936 = vadd.f32 0.0, %v4935
    %v4937 = vpop.f32.mrb[0].mxu0
    %4938 = vmatprep.mubr.f32.mxu0 0.0
    %4939 = vmatmul.mubr.f32.gmra.mrb[0].mxu0 %v372
    %v4940 = vpop.f32.mrb[0].mxu0
    %v4941 = vadd.f32 0.0, %v4940
    %v4942 = vpop.f32.mrb[0].mxu0
    %4943 = vmatprep.mubr.f32.mxu0 0.0
    %4944 = vmatmul.mubr.f32.gmra.mrb[0].mxu0 %v375
    %v4945 = vpop.f32.mrb[0].mxu0
    %v4946 = vadd.f32 0.0, %v4945
    %v4947 = vpop.f32.mrb[0].mxu0
    %4948 = vmatprep.mubr.f32.mxu0 0.0
    %4949 = vmatmul.mubr.f32.gmra.mrb[0].mxu0 %v378
    %v4950 = vpop.f32.mrb[0].mxu0
    %v4951 = vadd.f32 0.0, %v4950
    %v4952 = vpop.f32.mrb[0].mxu0
    %4953 = vmatprep.mubr.f32.mxu0 0.0
    %4954 = vmatmul.mubr.f32.gmra.mrb[0].mxu0 %v381
    %v4955 = vpop.f32.mrb[0].mxu0
    %v4956 = vadd.f32 0.0, %v4955
    %v4957 = vpop.f32.mrb[0].mxu0
    %4958 = vmatprep.mubr.f32.mxu0 0.0
    %4959 = vmatmul.mubr.f32.gmra.mrb[0].mxu0 %v381
    %v4960 = vpop.f32.mrb[0].mxu0
    %v4961 = vadd.f32 0.0, %v4960
    %v4962 = vpop.f32.mrb[0].mxu0
    %4963 = vmatprep.mubr.f32.mxu0 0.0
    %4964 = vmatmul.mubr.f32.gmra.mrb[0].mxu0 %v387
    %v4965 = vpop.f32.mrb[0].mxu0
    %v4966 = vadd.f32 0.0, %v4965
    %v4967 = vpop.f32.mrb[0].mxu0
    %4968 = vmatprep.mubr.f32.mxu0 0.0
    %4969 = vmatmul.mubr.f32.gmra.mrb[0].mxu0 %v390
    %v4970 = vpop.f32.mrb[0].mxu0
    %v4971 = vadd.f32 0.0, %v4970
    %v4972 = vpop.f32.mrb[0].mxu0
    %4973 = vmatprep.mubr.f32.mxu0 0.0
    %4974 = vmatmul.mubr.f32.gmra.mrb[0].mxu0 %v393
    %v4975 = vpop.f32.mrb[0].mxu0
    %v4976 = vadd.f32 0.0, %v4975
    %v4977 = vpop.f32.mrb[0].mxu0
    %4978 = vmatprep.mubr.f32.mxu0 0.0
    %4979 = vmatmul.mubr.f32.gmra.mrb[0].mxu0 %v396
    %v4980 = vpop.f32.mrb[0].mxu0
    %v4981 = vadd.f32 0.0, %v4980
    %v4982 = vpop.f32.mrb[0].mxu0
    %4983 = vmatprep.mubr.f32.mxu0 0.0
    %4984 = vmatmul.mubr.f32.gmra.mrb[0].mxu0 %v399
    %v4985 = vpop.f32.mrb[0].mxu0
    %v4986 = vadd.f32 0.0, %v4985
    %v4987 = vpop.f32.mrb[0].mxu0
    %4988 = vmatprep.mubr.f32.mxu0 0.0
    %4989 = vmatmul.mubr.f32.gmra.mrb[0].mxu0 %v402
    %v4990 = vpop.f32.mrb[0].mxu0
    %v4991 = vadd.f32 0.0, %v4990
    %v4992 = vpop.f32.mrb[0].mxu0
    %4993 = vmatprep.mubr.f32.mxu0 0.0
    %4994 = vmatmul.mubr.f32.gmra.mrb[0].mxu0 %v405
    %v4995 = vpop.f32.mrb[0].mxu0
    %v4996 = vadd.f32 0.0, %v4995
    %v4997 = vpop.f32.mrb[0].mxu0
    %4998 = vmatprep.mubr.f32.mxu0 0.0
    %4999 = vmatmul.mubr.f32.gmra.mrb[0].mxu0 %v405
    %v5000 = vpop.f32.mrb[0].mxu0
    %v5001 = vadd.f32 0.0, %v5000
    %v5002 = vpop.f32.mrb[0].mxu0
    %5003 = vmatprep.mubr.f32.mxu0 0.0
    %5004 = vmatmul.mubr.f32.gmra.mrb[0].mxu0 %v411
    %v5005 = vpop.f32.mrb[0].mxu0
    %v5006 = vadd.f32 0.0, %v5005
    %v5007 = vpop.f32.mrb[0].mxu0
    %5008 = vmatprep.mubr.f32.mxu0 0.0
    %5009 = vmatmul.mubr.f32.gmra.mrb[0].mxu0 %v414
    %v5010 = vpop.f32.mrb[0].mxu0
    %v5011 = vadd.f32 0.0, %v5010
    %v5012 = vpop.f32.mrb[0].mxu0
    %5013 = vmatprep.mubr.f32.mxu0 0.0
    %5014 = vmatmul.mubr.f32.gmra.mrb[0].mxu0 %v417
    %v5015 = vpop.f32.mrb[0].mxu0
    %v5016 = vadd.f32 0.0, %v5015
    %v5017 = vpop.f32.mrb[0].mxu0
    %5018 = vmatprep.mubr.f32.mxu0 0.0
    %5019 = vmatmul.mubr.f32.gmra.mrb[0].mxu0 %v420
    %v5020 = vpop.f32.mrb[0].mxu0
    %v5021 = vadd.f32 0.0, %v5020
    %v5022 = vpop.f32.mrb[0].mxu0
    %5023 = vmatprep.mubr.f32.mxu0 0.0
    %5024 = vmatmul.mubr.f32.gmra.mrb[0].mxu0 %v423
    %v5025 = vpop.f32.mrb[0].mxu0
    %v5026 = vadd.f32 0.0, %v5025
    %v5027 = vpop.f32.mrb[0].mxu0
    %5028 = vmatprep.mubr.f32.mxu0 0.0
    %5029 = vmatmul.mubr.f32.gmra.mrb[0].mxu0 %v426
    %v5030 = vpop.f32.mrb[0].mxu0
    %v5031 = vadd.f32 0.0, %v5030
    %v5032 = vpop.f32.mrb[0].mxu0
    %5033 = vmatprep.mubr.f32.mxu0 0.0
    %5034 = vmatmul.mubr.f32.gmra.mrb[0].mxu0 %v429
    %v5035 = vpop.f32.mrb[0].mxu0
    %v5036 = vadd.f32 0.0, %v5035
    %v5037 = vpop.f32.mrb[0].mxu0
    %5038 = vmatprep.mubr.f32.mxu0 0.0
    %5039 = vmatmul.mubr.f32.gmra.mrb[0].mxu0 %v429
    %v5040 = vpop.f32.mrb[0].mxu0
    %v5041 = vadd.f32 0.0, %v5040
    %v5042 = vpop.f32.mrb[0].mxu0
    %5043 = vmatprep.mubr.f32.mxu0 0.0
    %5044 = vmatmul.mubr.f32.gmra.mrb[0].mxu0 %v435
    %v5045 = vpop.f32.mrb[0].mxu0
    %v5046 = vadd.f32 0.0, %v5045
    %v5047 = vpop.f32.mrb[0].mxu0
    %5048 = vmatprep.mubr.f32.mxu0 0.0
    %5049 = vmatmul.mubr.f32.gmra.mrb[0].mxu0 %v438
    %v5050 = vpop.f32.mrb[0].mxu0
    %v5051 = vadd.f32 0.0, %v5050
    %v5052 = vpop.f32.mrb[0].mxu0
    %5053 = vmatprep.mubr.f32.mxu0 0.0
    %5054 = vmatmul.mubr.f32.gmra.mrb[0].mxu0 %v441
    %v5055 = vpop.f32.mrb[0].mxu0
    %v5056 = vadd.f32 0.0, %v5055
    %v5057 = vpop.f32.mrb[0].mxu0
    %5058 = vmatprep.mubr.f32.mxu0 0.0
    %5059 = vmatmul.mubr.f32.gmra.mrb[0].mxu0 %v444
    %v5060 = vpop.f32.mrb[0].mxu0
    %v5061 = vadd.f32 0.0, %v5060
    %v5062 = vpop.f32.mrb[0].mxu0
    %5063 = vmatprep.mubr.f32.mxu0 0.0
    %5064 = vmatmul.mubr.f32.gmra.mrb[0].mxu0 %v447
    %v5065 = vpop.f32.mrb[0].mxu0
    %v5066 = vadd.f32 0.0, %v5065
    %v5067 = vpop.f32.mrb[0].mxu0
    %5068 = vmatprep.mubr.f32.mxu0 0.0
    %5069 = vmatmul.mubr.f32.gmra.mrb[0].mxu0 %v450
    %v5070 = vpop.f32.mrb[0].mxu0
    %v5071 = vadd.f32 0.0, %v5070
    %v5072 = vpop.f32.mrb[0].mxu0
    %5073 = vmatprep.mubr.f32.mxu0 0.0
    %5074 = vmatmul.mubr.f32.gmra.mrb[0].mxu0 %v453
    %v5075 = vpop.f32.mrb[0].mxu0
    %v5076 = vadd.f32 0.0, %v5075
    %v5077 = vpop.f32.mrb[0].mxu0
    %5078 = vmatprep.mubr.f32.mxu0 0.0
    %5079 = vmatmul.mubr.f32.gmra.mrb[0].mxu0 %v453
    %v5080 = vpop.f32.mrb[0].mxu0
    %v5081 = vadd.f32 0.0, %v5080
    %v5082 = vpop.f32.mrb[0].mxu0
    %5083 = vmatprep.mubr.f32.mxu0 0.0
    %5084 = vmatmul.mubr.f32.gmra.mrb[0].mxu0 %v459
    %v5085 = vpop.f32.mrb[0].mxu0
    %v5086 = vadd.f32 0.0, %v5085
    %v5087 = vpop.f32.mrb[0].mxu0
    %5088 = vmatprep.mubr.f32.mxu0 0.0
    %5089 = vmatmul.mubr.f32.gmra.mrb[0].mxu0 %v462
    %v5090 = vpop.f32.mrb[0].mxu0
    %v5091 = vadd.f32 0.0, %v5090
    %v5092 = vpop.f32.mrb[0].mxu0
    %5093 = vmatprep.mubr.f32.mxu0 0.0
    %5094 = vmatmul.mubr.f32.gmra.mrb[0].mxu0 %v465
    %v5095 = vpop.f32.mrb[0].mxu0
    %v5096 = vadd.f32 0.0, %v5095
    %v5097 = vpop.f32.mrb[0].mxu0
    %5098 = vmatprep.mubr.f32.mxu0 0.0
    %5099 = vmatmul.mubr.f32.gmra.mrb[0].mxu0 %v468
    %v5100 = vpop.f32.mrb[0].mxu0
    %v5101 = vadd.f32 0.0, %v5100
    %v5102 = vpop.f32.mrb[0].mxu0
    %5103 = vmatprep.mubr.f32.mxu0 0.0
    %5104 = vmatmul.mubr.f32.gmra.mrb[0].mxu0 %v471
    %v5105 = vpop.f32.mrb[0].mxu0
    %v5106 = vadd.f32 0.0, %v5105
    %v5107 = vpop.f32.mrb[0].mxu0
    %5108 = vmatprep.mubr.f32.mxu0 0.0
    %5109 = vmatmul.mubr.f32.gmra.mrb[0].mxu0 %v474
    %v5110 = vpop.f32.mrb[0].mxu0
    %v5111 = vadd.f32 0.0, %v5110
    %v5112 = vpop.f32.mrb[0].mxu0
    %5113 = vmatprep.mubr.f32.mxu0 0.0
    %5114 = vmatmul.mubr.f32.gmra.mrb[0].mxu0 %v477
    %v5115 = vpop.f32.mrb[0].mxu0
    %v5116 = vadd.f32 0.0, %v5115
    %v5117 = vpop.f32.mrb[0].mxu0
    %5118 = vmatprep.mubr.f32.mxu0 0.0
    %5119 = vmatmul.mubr.f32.gmra.mrb[0].mxu0 %v477
    %v5120 = vpop.f32.mrb[0].mxu0
    %v5121 = vadd.f32 0.0, %v5120
    %v5122 = vpop.f32.mrb[0].mxu0
    %5123 = vmatprep.mubr.f32.mxu0 0.0
    %5124 = vmatmul.mubr.f32.gmra.mrb[0].mxu0 %v2759
    %v5125 = vpop.f32.mrb[0].mxu0
    %v5126 = vadd.f32 0.0, %v5125
    %v5127 = vpop.f32.mrb[0].mxu0
    %5128 = vmatprep.mubr.f32.mxu0 0.0
    %5129 = vmatmul.mubr.f32.gmra.mrb[0].mxu0 %v2762
    %v5130 = vpop.f32.mrb[0].mxu0
    %v5131 = vadd.f32 0.0, %v5130
    %v5132 = vpop.f32.mrb[0].mxu0
    %5133 = vmatprep.mubr.f32.mxu0 0.0
    %5134 = vmatmul.mubr.f32.gmra.mrb[0].mxu0 %v2765
    %v5135 = vpop.f32.mrb[0].mxu0
    %v5136 = vadd.f32 0.0, %v5135
    %v5137 = vpop.f32.mrb[0].mxu0
    %5138 = vmatprep.mubr.f32.mxu0 0.0
    %5139 = vmatmul.mubr.f32.gmra.mrb[0].mxu0 %v2768
    %v5140 = vpop.f32.mrb[0].mxu0
    %v5141 = vadd.f32 0.0, %v5140
    %v5142 = vpop.f32.mrb[0].mxu0
    %5143 = vmatprep.mubr.f32.mxu0 0.0
    %5144 = vmatmul.mubr.f32.gmra.mrb[0].mxu0 %v2771
    %v5145 = vpop.f32.mrb[0].mxu0
    %v5146 = vadd.f32 0.0, %v5145
    %v5147 = vpop.f32.mrb[0].mxu0
    %5148 = vmatprep.mubr.f32.mxu0 0.0
    %5149 = vmatmul.mubr.f32.gmra.mrb[0].mxu0 %v2774
    %v5150 = vpop.f32.mrb[0].mxu0
    %v5151 = vadd.f32 0.0, %v5150
    %v5152 = vpop.f32.mrb[0].mxu0
    %5153 = vmatprep.mubr.f32.mxu0 0.0
    %5154 = vmatmul.mubr.f32.gmra.mrb[0].mxu0 %v3617
    %v5155 = vpop.f32.mrb[0].mxu0
    %v5156 = vadd.f32 0.0, %v5155
    %v5157 = vpop.f32.mrb[0].mxu0
    %5158 = vmatprep.mubr.f32.mxu0 0.0
    %5159 = vmatmul.mubr.f32.gmra.mrb[0].mxu0 %v3617
    %v5160 = vpop.f32.mrb[0].mxu0
    %v5161 = vadd.f32 0.0, %v5160
    %v5162 = vpop.f32.mrb[0].mxu0
    %5163 = vdwg.mxu0
    %v5164 = vadd.f32 %v4327, %v4526
    %v5165 = vadd.f32 %v4328, %v4531
    %v5166 = vadd.f32 %v4329, %v4536
    %v5167 = vadd.f32 %v4330, %v4541
    %v5168 = vadd.f32 %v4331, %v4546
    %v5169 = vadd.f32 %v4332, %v4551
    %v5170 = vadd.f32 %v4333, %v4556
    %v5171 = vadd.f32 %v4334, %v4561
    %v5172 = vadd.f32 %v4335, %v4566
    %v5173 = vadd.f32 %v4336, %v4571
    %v5174 = vadd.f32 %v4337, %v4576
    %v5175 = vadd.f32 %v4338, %v4581
    %v5176 = vadd.f32 %v4339, %v4586
    %v5177 = vadd.f32 %v4340, %v4591
    %v5178 = vadd.f32 %v4341, %v4596
    %v5179 = vadd.f32 %v4342, %v4601
    %v5180 = vadd.f32 %v4343, %v4606
    %v5181 = vadd.f32 %v4344, %v4611
    %v5182 = vadd.f32 %v4345, %v4616
    %v5183 = vadd.f32 %v4346, %v4621
    %v5184 = vadd.f32 %v4347, %v4626
    %v5185 = vadd.f32 %v4348, %v4631
    %v5186 = vadd.f32 %v4349, %v4636
    %v5187 = vadd.f32 %v4350, %v4641
    %v5188 = vadd.f32 %v4351, %v4646
    %v5189 = vadd.f32 %v4352, %v4651
    %v5190 = vadd.f32 %v4353, %v4656
    %v5191 = vadd.f32 %v4354, %v4661
    %v5192 = vadd.f32 %v4355, %v4666
    %v5193 = vadd.f32 %v4356, %v4671
    %v5194 = vadd.f32 %v4357, %v4676
    %v5195 = vadd.f32 %v4358, %v4681
    %v5196 = vadd.f32 %v4359, %v4686
    %v5197 = vadd.f32 %v4360, %v4691
    %v5198 = vadd.f32 %v4361, %v4696
    %v5199 = vadd.f32 %v4362, %v4701
    %v5200 = vadd.f32 %v4363, %v4706
    %v5201 = vadd.f32 %v4364, %v4711
    %v5202 = vadd.f32 %v4365, %v4716
    %v5203 = vadd.f32 %v4366, %v4721
    %v5204 = vadd.f32 %v4367, %v4726
    %v5205 = vadd.f32 %v4368, %v4731
    %v5206 = vadd.f32 %v4369, %v4736
    %v5207 = vadd.f32 %v4370, %v4741
    %v5208 = vadd.f32 %v4371, %v4746
    %v5209 = vadd.f32 %v4372, %v4751
    %v5210 = vadd.f32 %v4373, %v4756
    %v5211 = vadd.f32 %v4374, %v4761
    %v5212 = vadd.f32 %v4375, %v4766
    %v5213 = vadd.f32 %v4376, %v4771
    %v5214 = vadd.f32 %v4377, %v4776
    %v5215 = vadd.f32 %v4378, %v4781
    %v5216 = vadd.f32 %v4379, %v4786
    %v5217 = vadd.f32 %v4380, %v4791
    %v5218 = vadd.f32 %v4381, %v4796
    %v5219 = vadd.f32 %v4382, %v4801
    %v5220 = vadd.f32 %v4383, %v4806
    %v5221 = vadd.f32 %v4384, %v4811
    %v5222 = vadd.f32 %v4385, %v4816
    %v5223 = vadd.f32 %v4386, %v4821
    %v5224 = vadd.f32 %v4387, %v4826
    %v5225 = vadd.f32 %v4388, %v4831
    %v5226 = vadd.f32 %v4389, %v4836
    %v5227 = vadd.f32 %v4390, %v4841
    %v5228 = vadd.f32 %v4391, %v4846
    %v5229 = vadd.f32 %v4392, %v4851
    %v5230 = vadd.f32 %v4393, %v4856
    %v5231 = vadd.f32 %v4394, %v4861
    %v5232 = vadd.f32 %v4395, %v4866
    %v5233 = vadd.f32 %v4396, %v4871
    %v5234 = vadd.f32 %v4397, %v4876
    %v5235 = vadd.f32 %v4398, %v4881
    %v5236 = vadd.f32 %v4399, %v4886
    %v5237 = vadd.f32 %v4400, %v4891
    %v5238 = vadd.f32 %v4401, %v4896
    %v5239 = vadd.f32 %v4402, %v4901
    %v5240 = vadd.f32 %v4403, %v4906
    %v5241 = vadd.f32 %v4404, %v4911
    %v5242 = vadd.f32 %v4405, %v4916
    %v5243 = vadd.f32 %v4406, %v4921
    %v5244 = vadd.f32 %v4407, %v4926
    %v5245 = vadd.f32 %v4408, %v4931
    %v5246 = vadd.f32 %v4409, %v4936
    %v5247 = vadd.f32 %v4410, %v4941
    %v5248 = vadd.f32 %v4411, %v4946
    %v5249 = vadd.f32 %v4412, %v4951
    %v5250 = vadd.f32 %v4413, %v4956
    %v5251 = vadd.f32 %v4414, %v4961
    %v5252 = vadd.f32 %v4415, %v4966
    %v5253 = vadd.f32 %v4416, %v4971
    %v5254 = vadd.f32 %v4417, %v4976
    %v5255 = vadd.f32 %v4418, %v4981
    %v5256 = vadd.f32 %v4419, %v4986
    %v5257 = vadd.f32 %v4420, %v4991
    %v5258 = vadd.f32 %v4421, %v4996
    %v5259 = vadd.f32 %v4422, %v5001
    %v5260 = vadd.f32 %v4423, %v5006
    %v5261 = vadd.f32 %v4424, %v5011
    %v5262 = vadd.f32 %v4425, %v5016
    %v5263 = vadd.f32 %v4426, %v5021
    %v5264 = vadd.f32 %v4427, %v5026
    %v5265 = vadd.f32 %v4428, %v5031
    %v5266 = vadd.f32 %v4429, %v5036
    %v5267 = vadd.f32 %v4430, %v5041
    %v5268 = vadd.f32 %v4431, %v5046
    %v5269 = vadd.f32 %v4432, %v5051
    %v5270 = vadd.f32 %v4433, %v5056
    %v5271 = vadd.f32 %v4434, %v5061
    %v5272 = vadd.f32 %v4435, %v5066
    %v5273 = vadd.f32 %v4436, %v5071
    %v5274 = vadd.f32 %v4437, %v5076
    %v5275 = vadd.f32 %v4438, %v5081
    %v5276 = vadd.f32 %v4439, %v5086
    %v5277 = vadd.f32 %v4440, %v5091
    %v5278 = vadd.f32 %v4441, %v5096
    %v5279 = vadd.f32 %v4442, %v5101
    %v5280 = vadd.f32 %v4443, %v5106
    %v5281 = vadd.f32 %v4444, %v5111
    %v5282 = vadd.f32 %v4445, %v5116
    %v5283 = vadd.f32 %v4446, %v5121
    %v5284 = vadd.f32 %v4447, %v5126
    %v5285 = vadd.f32 %v4448, %v5131
    %v5286 = vadd.f32 %v4449, %v5136
    %v5287 = vadd.f32 %v4450, %v5141
    %v5288 = vadd.f32 %v4451, %v5146
    %v5289 = vadd.f32 %v4452, %v5151
    %v5290 = vadd.f32 %v4453, %v5156
    %v5291 = vadd.f32 %v4454, %v5161
    %v5292 = vld [vmem:[%s1 + $0x18] sm:$0xf]
    %v5294 = vsel %vm479, %v5292, 0
    %5296 = vmatprep.subr.mxu0 0.0
    %5297 = vmatpush1.msra.mxu0 %v5294
    %5298 = vmatprep.subr.mxu0 0.0
    %5299 = vmatpush1.msra.mxu0 0.0
    %5300 = vmatprep.subr.mxu0 0.0
    %5301 = vmatpush1.msra.mxu0 0.0
    %5302 = vmatprep.subr.mxu0 0.0
    %5303 = vmatpush1.msra.mxu0 0.0
    %5304 = vmatprep.subr.mxu0 0.0
    %5305 = vmatpush1.msra.mxu0 0.0
    %5306 = vmatprep.subr.mxu0 0.0
    %5307 = vmatpush1.msra.mxu0 0.0
    %5308 = vmatprep.subr.mxu0 0.0
    %5309 = vmatpush1.msra.mxu0 0.0
    %5310 = vmatprep.subr.mxu0 0.0
    %5311 = vmatpush1.msra.mxu0 0.0
    %5312 = vmatprep.subr.mxu0 0.0
    %5313 = vmatpush1.msra.mxu0 0.0
    %5314 = vmatprep.subr.mxu0 0.0
    %5315 = vmatpush1.msra.mxu0 0.0
    %5316 = vmatprep.subr.mxu0 0.0
    %5317 = vmatpush1.msra.mxu0 0.0
    %5318 = vmatprep.subr.mxu0 0.0
    %5319 = vmatpush1.msra.mxu0 0.0
    %5320 = vmatprep.subr.mxu0 0.0
    %5321 = vmatpush1.msra.mxu0 0.0
    %5322 = vmatprep.subr.mxu0 0.0
    %5323 = vmatpush1.msra.mxu0 0.0
    %5324 = vmatprep.subr.mxu0 0.0
    %5325 = vmatpush1.msra.mxu0 0.0
    %5326 = vmatprep.subr.mxu0 0.0
    %5327 = vmatpush1.msra.mxu0 0.0
    %5328 = vmatprep.subr.mxu0 0.0
    %5329 = vmatpush1.msra.mxu0 0.0
    %5330 = vmatprep.subr.mxu0 0.0
    %5331 = vmatpush1.msra.mxu0 0.0
    %5332 = vmatprep.subr.mxu0 0.0
    %5333 = vmatpush1.msra.mxu0 0.0
    %5334 = vmatprep.subr.mxu0 0.0
    %5335 = vmatpush1.msra.mxu0 0.0
    %5336 = vmatprep.subr.mxu0 0.0
    %5337 = vmatpush1.msra.mxu0 0.0
    %5338 = vmatprep.subr.mxu0 0.0
    %5339 = vmatpush1.msra.mxu0 0.0
    %5340 = vmatprep.subr.mxu0 0.0
    %5341 = vmatpush1.msra.mxu0 0.0
    %5342 = vmatprep.subr.mxu0 0.0
    %5343 = vmatpush1.msra.mxu0 0.0
    %5344 = vmatprep.subr.mxu0 0.0
    %5345 = vmatpush1.msra.mxu0 0.0
    %5346 = vmatprep.subr.mxu0 0.0
    %5347 = vmatpush1.msra.mxu0 0.0
    %5348 = vmatprep.subr.mxu0 0.0
    %5349 = vmatpush1.msra.mxu0 0.0
    %5350 = vmatprep.subr.mxu0 0.0
    %5351 = vmatpush1.msra.mxu0 0.0
    %5352 = vmatprep.subr.mxu0 0.0
    %5353 = vmatpush1.msra.mxu0 0.0
    %5354 = vmatprep.subr.mxu0 0.0
    %5355 = vmatpush1.msra.mxu0 0.0
    %5356 = vmatprep.subr.mxu0 0.0
    %5357 = vmatpush1.msra.mxu0 0.0
    %5358 = vmatprep.subr.mxu0 0.0
    %5359 = vmatpush1.msra.mxu0 0.0
    %5360 = vmatprep.mubr.f32.mxu0 0.0
    %5361 = vmatmul.mubr.f32.gmra.mrb[0].mxu0 %v168
    %v5362 = vpop.f32.mrb[0].mxu0
    %v5363 = vadd.f32 0.0, %v5362
    %v5364 = vpop.f32.mrb[0].mxu0
    %5365 = vmatprep.mubr.f32.mxu0 0.0
    %5366 = vmatmul.mubr.f32.gmra.mrb[0].mxu0 %v168
    %v5367 = vpop.f32.mrb[0].mxu0
    %v5368 = vadd.f32 0.0, %v5367
    %v5369 = vpop.f32.mrb[0].mxu0
    %5370 = vmatprep.mubr.f32.mxu0 0.0
    %5371 = vmatmul.mubr.f32.gmra.mrb[0].mxu0 %v171
    %v5372 = vpop.f32.mrb[0].mxu0
    %v5373 = vadd.f32 0.0, %v5372
    %v5374 = vpop.f32.mrb[0].mxu0
    %5375 = vmatprep.mubr.f32.mxu0 0.0
    %5376 = vmatmul.mubr.f32.gmra.mrb[0].mxu0 %v174
    %v5377 = vpop.f32.mrb[0].mxu0
    %v5378 = vadd.f32 0.0, %v5377
    %v5379 = vpop.f32.mrb[0].mxu0
    %5380 = vmatprep.mubr.f32.mxu0 0.0
    %5381 = vmatmul.mubr.f32.gmra.mrb[0].mxu0 %v177
    %v5382 = vpop.f32.mrb[0].mxu0
    %v5383 = vadd.f32 0.0, %v5382
    %v5384 = vpop.f32.mrb[0].mxu0
    %5385 = vmatprep.mubr.f32.mxu0 0.0
    %5386 = vmatmul.mubr.f32.gmra.mrb[0].mxu0 %v180
    %v5387 = vpop.f32.mrb[0].mxu0
    %v5388 = vadd.f32 0.0, %v5387
    %v5389 = vpop.f32.mrb[0].mxu0
    %5390 = vmatprep.mubr.f32.mxu0 0.0
    %5391 = vmatmul.mubr.f32.gmra.mrb[0].mxu0 %v183
    %v5392 = vpop.f32.mrb[0].mxu0
    %v5393 = vadd.f32 0.0, %v5392
    %v5394 = vpop.f32.mrb[0].mxu0
    %5395 = vmatprep.mubr.f32.mxu0 0.0
    %5396 = vmatmul.mubr.f32.gmra.mrb[0].mxu0 %v186
    %v5397 = vpop.f32.mrb[0].mxu0
    %v5398 = vadd.f32 0.0, %v5397
    %v5399 = vpop.f32.mrb[0].mxu0
    %5400 = vmatprep.mubr.f32.mxu0 0.0
    %5401 = vmatmul.mubr.f32.gmra.mrb[0].mxu0 %v192
    %v5402 = vpop.f32.mrb[0].mxu0
    %v5403 = vadd.f32 0.0, %v5402
    %v5404 = vpop.f32.mrb[0].mxu0
    %5405 = vmatprep.mubr.f32.mxu0 0.0
    %5406 = vmatmul.mubr.f32.gmra.mrb[0].mxu0 %v192
    %v5407 = vpop.f32.mrb[0].mxu0
    %v5408 = vadd.f32 0.0, %v5407
    %v5409 = vpop.f32.mrb[0].mxu0
    %5410 = vmatprep.mubr.f32.mxu0 0.0
    %5411 = vmatmul.mubr.f32.gmra.mrb[0].mxu0 %v195
    %v5412 = vpop.f32.mrb[0].mxu0
    %v5413 = vadd.f32 0.0, %v5412
    %v5414 = vpop.f32.mrb[0].mxu0
    %5415 = vmatprep.mubr.f32.mxu0 0.0
    %5416 = vmatmul.mubr.f32.gmra.mrb[0].mxu0 %v198
    %v5417 = vpop.f32.mrb[0].mxu0
    %v5418 = vadd.f32 0.0, %v5417
    %v5419 = vpop.f32.mrb[0].mxu0
    %5420 = vmatprep.mubr.f32.mxu0 0.0
    %5421 = vmatmul.mubr.f32.gmra.mrb[0].mxu0 %v201
    %v5422 = vpop.f32.mrb[0].mxu0
    %v5423 = vadd.f32 0.0, %v5422
    %v5424 = vpop.f32.mrb[0].mxu0
    %5425 = vmatprep.mubr.f32.mxu0 0.0
    %5426 = vmatmul.mubr.f32.gmra.mrb[0].mxu0 %v204
    %v5427 = vpop.f32.mrb[0].mxu0
    %v5428 = vadd.f32 0.0, %v5427
    %v5429 = vpop.f32.mrb[0].mxu0
    %5430 = vmatprep.mubr.f32.mxu0 0.0
    %5431 = vmatmul.mubr.f32.gmra.mrb[0].mxu0 %v207
    %v5432 = vpop.f32.mrb[0].mxu0
    %v5433 = vadd.f32 0.0, %v5432
    %v5434 = vpop.f32.mrb[0].mxu0
    %5435 = vmatprep.mubr.f32.mxu0 0.0
    %5436 = vmatmul.mubr.f32.gmra.mrb[0].mxu0 %v210
    %v5437 = vpop.f32.mrb[0].mxu0
    %v5438 = vadd.f32 0.0, %v5437
    %v5439 = vpop.f32.mrb[0].mxu0
    %5440 = vmatprep.mubr.f32.mxu0 0.0
    %5441 = vmatmul.mubr.f32.gmra.mrb[0].mxu0 %v216
    %v5442 = vpop.f32.mrb[0].mxu0
    %v5443 = vadd.f32 0.0, %v5442
    %v5444 = vpop.f32.mrb[0].mxu0
    %5445 = vmatprep.mubr.f32.mxu0 0.0
    %5446 = vmatmul.mubr.f32.gmra.mrb[0].mxu0 %v216
    %v5447 = vpop.f32.mrb[0].mxu0
    %v5448 = vadd.f32 0.0, %v5447
    %v5449 = vpop.f32.mrb[0].mxu0
    %5450 = vmatprep.mubr.f32.mxu0 0.0
    %5451 = vmatmul.mubr.f32.gmra.mrb[0].mxu0 %v219
    %v5452 = vpop.f32.mrb[0].mxu0
    %v5453 = vadd.f32 0.0, %v5452
    %v5454 = vpop.f32.mrb[0].mxu0
    %5455 = vmatprep.mubr.f32.mxu0 0.0
    %5456 = vmatmul.mubr.f32.gmra.mrb[0].mxu0 %v222
    %v5457 = vpop.f32.mrb[0].mxu0
    %v5458 = vadd.f32 0.0, %v5457
    %v5459 = vpop.f32.mrb[0].mxu0
    %5460 = vmatprep.mubr.f32.mxu0 0.0
    %5461 = vmatmul.mubr.f32.gmra.mrb[0].mxu0 %v225
    %v5462 = vpop.f32.mrb[0].mxu0
    %v5463 = vadd.f32 0.0, %v5462
    %v5464 = vpop.f32.mrb[0].mxu0
    %5465 = vmatprep.mubr.f32.mxu0 0.0
    %5466 = vmatmul.mubr.f32.gmra.mrb[0].mxu0 %v228
    %v5467 = vpop.f32.mrb[0].mxu0
    %v5468 = vadd.f32 0.0, %v5467
    %v5469 = vpop.f32.mrb[0].mxu0
    %5470 = vmatprep.mubr.f32.mxu0 0.0
    %5471 = vmatmul.mubr.f32.gmra.mrb[0].mxu0 %v231
    %v5472 = vpop.f32.mrb[0].mxu0
    %v5473 = vadd.f32 0.0, %v5472
    %v5474 = vpop.f32.mrb[0].mxu0
    %5475 = vmatprep.mubr.f32.mxu0 0.0
    %5476 = vmatmul.mubr.f32.gmra.mrb[0].mxu0 %v234
    %v5477 = vpop.f32.mrb[0].mxu0
    %v5478 = vadd.f32 0.0, %v5477
    %v5479 = vpop.f32.mrb[0].mxu0
    %5480 = vmatprep.mubr.f32.mxu0 0.0
    %5481 = vmatmul.mubr.f32.gmra.mrb[0].mxu0 %v240
    %v5482 = vpop.f32.mrb[0].mxu0
    %v5483 = vadd.f32 0.0, %v5482
    %v5484 = vpop.f32.mrb[0].mxu0
    %5485 = vmatprep.mubr.f32.mxu0 0.0
    %5486 = vmatmul.mubr.f32.gmra.mrb[0].mxu0 %v240
    %v5487 = vpop.f32.mrb[0].mxu0
    %v5488 = vadd.f32 0.0, %v5487
    %v5489 = vpop.f32.mrb[0].mxu0
    %5490 = vmatprep.mubr.f32.mxu0 0.0
    %5491 = vmatmul.mubr.f32.gmra.mrb[0].mxu0 %v243
    %v5492 = vpop.f32.mrb[0].mxu0
    %v5493 = vadd.f32 0.0, %v5492
    %v5494 = vpop.f32.mrb[0].mxu0
    %5495 = vmatprep.mubr.f32.mxu0 0.0
    %5496 = vmatmul.mubr.f32.gmra.mrb[0].mxu0 %v246
    %v5497 = vpop.f32.mrb[0].mxu0
    %v5498 = vadd.f32 0.0, %v5497
    %v5499 = vpop.f32.mrb[0].mxu0
    %5500 = vmatprep.mubr.f32.mxu0 0.0
    %5501 = vmatmul.mubr.f32.gmra.mrb[0].mxu0 %v249
    %v5502 = vpop.f32.mrb[0].mxu0
    %v5503 = vadd.f32 0.0, %v5502
    %v5504 = vpop.f32.mrb[0].mxu0
    %5505 = vmatprep.mubr.f32.mxu0 0.0
    %5506 = vmatmul.mubr.f32.gmra.mrb[0].mxu0 %v252
    %v5507 = vpop.f32.mrb[0].mxu0
    %v5508 = vadd.f32 0.0, %v5507
    %v5509 = vpop.f32.mrb[0].mxu0
    %5510 = vmatprep.mubr.f32.mxu0 0.0
    %5511 = vmatmul.mubr.f32.gmra.mrb[0].mxu0 %v255
    %v5512 = vpop.f32.mrb[0].mxu0
    %v5513 = vadd.f32 0.0, %v5512
    %v5514 = vpop.f32.mrb[0].mxu0
    %5515 = vmatprep.mubr.f32.mxu0 0.0
    %5516 = vmatmul.mubr.f32.gmra.mrb[0].mxu0 %v258
    %v5517 = vpop.f32.mrb[0].mxu0
    %v5518 = vadd.f32 0.0, %v5517
    %v5519 = vpop.f32.mrb[0].mxu0
    %5520 = vmatprep.mubr.f32.mxu0 0.0
    %5521 = vmatmul.mubr.f32.gmra.mrb[0].mxu0 %v264
    %v5522 = vpop.f32.mrb[0].mxu0
    %v5523 = vadd.f32 0.0, %v5522
    %v5524 = vpop.f32.mrb[0].mxu0
    %5525 = vmatprep.mubr.f32.mxu0 0.0
    %5526 = vmatmul.mubr.f32.gmra.mrb[0].mxu0 %v264
    %v5527 = vpop.f32.mrb[0].mxu0
    %v5528 = vadd.f32 0.0, %v5527
    %v5529 = vpop.f32.mrb[0].mxu0
    %5530 = vmatprep.mubr.f32.mxu0 0.0
    %5531 = vmatmul.mubr.f32.gmra.mrb[0].mxu0 %v267
    %v5532 = vpop.f32.mrb[0].mxu0
    %v5533 = vadd.f32 0.0, %v5532
    %v5534 = vpop.f32.mrb[0].mxu0
    %5535 = vmatprep.mubr.f32.mxu0 0.0
    %5536 = vmatmul.mubr.f32.gmra.mrb[0].mxu0 %v270
    %v5537 = vpop.f32.mrb[0].mxu0
    %v5538 = vadd.f32 0.0, %v5537
    %v5539 = vpop.f32.mrb[0].mxu0
    %5540 = vmatprep.mubr.f32.mxu0 0.0
    %5541 = vmatmul.mubr.f32.gmra.mrb[0].mxu0 %v273
    %v5542 = vpop.f32.mrb[0].mxu0
    %v5543 = vadd.f32 0.0, %v5542
    %v5544 = vpop.f32.mrb[0].mxu0
    %5545 = vmatprep.mubr.f32.mxu0 0.0
    %5546 = vmatmul.mubr.f32.gmra.mrb[0].mxu0 %v276
    %v5547 = vpop.f32.mrb[0].mxu0
    %v5548 = vadd.f32 0.0, %v5547
    %v5549 = vpop.f32.mrb[0].mxu0
    %5550 = vmatprep.mubr.f32.mxu0 0.0
    %5551 = vmatmul.mubr.f32.gmra.mrb[0].mxu0 %v279
    %v5552 = vpop.f32.mrb[0].mxu0
    %v5553 = vadd.f32 0.0, %v5552
    %v5554 = vpop.f32.mrb[0].mxu0
    %5555 = vmatprep.mubr.f32.mxu0 0.0
    %5556 = vmatmul.mubr.f32.gmra.mrb[0].mxu0 %v282
    %v5557 = vpop.f32.mrb[0].mxu0
    %v5558 = vadd.f32 0.0, %v5557
    %v5559 = vpop.f32.mrb[0].mxu0
    %5560 = vmatprep.mubr.f32.mxu0 0.0
    %5561 = vmatmul.mubr.f32.gmra.mrb[0].mxu0 %v288
    %v5562 = vpop.f32.mrb[0].mxu0
    %v5563 = vadd.f32 0.0, %v5562
    %v5564 = vpop.f32.mrb[0].mxu0
    %5565 = vmatprep.mubr.f32.mxu0 0.0
    %5566 = vmatmul.mubr.f32.gmra.mrb[0].mxu0 %v288
    %v5567 = vpop.f32.mrb[0].mxu0
    %v5568 = vadd.f32 0.0, %v5567
    %v5569 = vpop.f32.mrb[0].mxu0
    %5570 = vmatprep.mubr.f32.mxu0 0.0
    %5571 = vmatmul.mubr.f32.gmra.mrb[0].mxu0 %v291
    %v5572 = vpop.f32.mrb[0].mxu0
    %v5573 = vadd.f32 0.0, %v5572
    %v5574 = vpop.f32.mrb[0].mxu0
    %5575 = vmatprep.mubr.f32.mxu0 0.0
    %5576 = vmatmul.mubr.f32.gmra.mrb[0].mxu0 %v294
    %v5577 = vpop.f32.mrb[0].mxu0
    %v5578 = vadd.f32 0.0, %v5577
    %v5579 = vpop.f32.mrb[0].mxu0
    %5580 = vmatprep.mubr.f32.mxu0 0.0
    %5581 = vmatmul.mubr.f32.gmra.mrb[0].mxu0 %v297
    %v5582 = vpop.f32.mrb[0].mxu0
    %v5583 = vadd.f32 0.0, %v5582
    %v5584 = vpop.f32.mrb[0].mxu0
    %5585 = vmatprep.mubr.f32.mxu0 0.0
    %5586 = vmatmul.mubr.f32.gmra.mrb[0].mxu0 %v300
    %v5587 = vpop.f32.mrb[0].mxu0
    %v5588 = vadd.f32 0.0, %v5587
    %v5589 = vpop.f32.mrb[0].mxu0
    %5590 = vmatprep.mubr.f32.mxu0 0.0
    %5591 = vmatmul.mubr.f32.gmra.mrb[0].mxu0 %v303
    %v5592 = vpop.f32.mrb[0].mxu0
    %v5593 = vadd.f32 0.0, %v5592
    %v5594 = vpop.f32.mrb[0].mxu0
    %5595 = vmatprep.mubr.f32.mxu0 0.0
    %5596 = vmatmul.mubr.f32.gmra.mrb[0].mxu0 %v306
    %v5597 = vpop.f32.mrb[0].mxu0
    %v5598 = vadd.f32 0.0, %v5597
    %v5599 = vpop.f32.mrb[0].mxu0
    %5600 = vmatprep.mubr.f32.mxu0 0.0
    %5601 = vmatmul.mubr.f32.gmra.mrb[0].mxu0 %v2735
    %v5602 = vpop.f32.mrb[0].mxu0
    %v5603 = vadd.f32 0.0, %v5602
    %v5604 = vpop.f32.mrb[0].mxu0
    %5605 = vmatprep.mubr.f32.mxu0 0.0
    %5606 = vmatmul.mubr.f32.gmra.mrb[0].mxu0 %v2735
    %v5607 = vpop.f32.mrb[0].mxu0
    %v5608 = vadd.f32 0.0, %v5607
    %v5609 = vpop.f32.mrb[0].mxu0
    %5610 = vmatprep.mubr.f32.mxu0 0.0
    %5611 = vmatmul.mubr.f32.gmra.mrb[0].mxu0 %v2738
    %v5612 = vpop.f32.mrb[0].mxu0
    %v5613 = vadd.f32 0.0, %v5612
    %v5614 = vpop.f32.mrb[0].mxu0
    %5615 = vmatprep.mubr.f32.mxu0 0.0
    %5616 = vmatmul.mubr.f32.gmra.mrb[0].mxu0 %v2741
    %v5617 = vpop.f32.mrb[0].mxu0
    %v5618 = vadd.f32 0.0, %v5617
    %v5619 = vpop.f32.mrb[0].mxu0
    %5620 = vmatprep.mubr.f32.mxu0 0.0
    %5621 = vmatmul.mubr.f32.gmra.mrb[0].mxu0 %v2744
    %v5622 = vpop.f32.mrb[0].mxu0
    %v5623 = vadd.f32 0.0, %v5622
    %v5624 = vpop.f32.mrb[0].mxu0
    %5625 = vmatprep.mubr.f32.mxu0 0.0
    %5626 = vmatmul.mubr.f32.gmra.mrb[0].mxu0 %v2747
    %v5627 = vpop.f32.mrb[0].mxu0
    %v5628 = vadd.f32 0.0, %v5627
    %v5629 = vpop.f32.mrb[0].mxu0
    %5630 = vmatprep.mubr.f32.mxu0 0.0
    %5631 = vmatmul.mubr.f32.gmra.mrb[0].mxu0 %v2750
    %v5632 = vpop.f32.mrb[0].mxu0
    %v5633 = vadd.f32 0.0, %v5632
    %v5634 = vpop.f32.mrb[0].mxu0
    %5635 = vmatprep.mubr.f32.mxu0 0.0
    %5636 = vmatmul.mubr.f32.gmra.mrb[0].mxu0 %v2753
    %v5637 = vpop.f32.mrb[0].mxu0
    %v5638 = vadd.f32 0.0, %v5637
    %v5639 = vpop.f32.mrb[0].mxu0
    %5640 = vmatprep.mubr.f32.mxu0 0.0
    %5641 = vmatmul.mubr.f32.gmra.mrb[0].mxu0 %v2735
    %v5642 = vpop.f32.mrb[0].mxu0
    %v5643 = vadd.f32 0.0, %v5642
    %v5644 = vpop.f32.mrb[0].mxu0
    %5645 = vmatprep.mubr.f32.mxu0 0.0
    %5646 = vmatmul.mubr.f32.gmra.mrb[0].mxu0 %v2735
    %v5647 = vpop.f32.mrb[0].mxu0
    %v5648 = vadd.f32 0.0, %v5647
    %v5649 = vpop.f32.mrb[0].mxu0
    %5650 = vmatprep.mubr.f32.mxu0 0.0
    %5651 = vmatmul.mubr.f32.gmra.mrb[0].mxu0 %v2738
    %v5652 = vpop.f32.mrb[0].mxu0
    %v5653 = vadd.f32 0.0, %v5652
    %v5654 = vpop.f32.mrb[0].mxu0
    %5655 = vmatprep.mubr.f32.mxu0 0.0
    %5656 = vmatmul.mubr.f32.gmra.mrb[0].mxu0 %v2741
    %v5657 = vpop.f32.mrb[0].mxu0
    %v5658 = vadd.f32 0.0, %v5657
    %v5659 = vpop.f32.mrb[0].mxu0
    %5660 = vmatprep.mubr.f32.mxu0 0.0
    %5661 = vmatmul.mubr.f32.gmra.mrb[0].mxu0 %v2744
    %v5662 = vpop.f32.mrb[0].mxu0
    %v5663 = vadd.f32 0.0, %v5662
    %v5664 = vpop.f32.mrb[0].mxu0
    %5665 = vmatprep.mubr.f32.mxu0 0.0
    %5666 = vmatmul.mubr.f32.gmra.mrb[0].mxu0 %v2747
    %v5667 = vpop.f32.mrb[0].mxu0
    %v5668 = vadd.f32 0.0, %v5667
    %v5669 = vpop.f32.mrb[0].mxu0
    %5670 = vmatprep.mubr.f32.mxu0 0.0
    %5671 = vmatmul.mubr.f32.gmra.mrb[0].mxu0 %v2750
    %v5672 = vpop.f32.mrb[0].mxu0
    %v5673 = vadd.f32 0.0, %v5672
    %v5674 = vpop.f32.mrb[0].mxu0
    %5675 = vmatprep.mubr.f32.mxu0 0.0
    %5676 = vmatmul.mubr.f32.gmra.mrb[0].mxu0 %v2753
    %v5677 = vpop.f32.mrb[0].mxu0
    %v5678 = vadd.f32 0.0, %v5677
    %v5679 = vpop.f32.mrb[0].mxu0
    %5680 = vmatprep.mubr.f32.mxu0 0.0
    %5681 = vmatmul.mubr.f32.gmra.mrb[0].mxu0 %v336
    %v5682 = vpop.f32.mrb[0].mxu0
    %v5683 = vadd.f32 0.0, %v5682
    %v5684 = vpop.f32.mrb[0].mxu0
    %5685 = vmatprep.mubr.f32.mxu0 0.0
    %5686 = vmatmul.mubr.f32.gmra.mrb[0].mxu0 %v336
    %v5687 = vpop.f32.mrb[0].mxu0
    %v5688 = vadd.f32 0.0, %v5687
    %v5689 = vpop.f32.mrb[0].mxu0
    %5690 = vmatprep.mubr.f32.mxu0 0.0
    %5691 = vmatmul.mubr.f32.gmra.mrb[0].mxu0 %v339
    %v5692 = vpop.f32.mrb[0].mxu0
    %v5693 = vadd.f32 0.0, %v5692
    %v5694 = vpop.f32.mrb[0].mxu0
    %5695 = vmatprep.mubr.f32.mxu0 0.0
    %5696 = vmatmul.mubr.f32.gmra.mrb[0].mxu0 %v342
    %v5697 = vpop.f32.mrb[0].mxu0
    %v5698 = vadd.f32 0.0, %v5697
    %v5699 = vpop.f32.mrb[0].mxu0
    %5700 = vmatprep.mubr.f32.mxu0 0.0
    %5701 = vmatmul.mubr.f32.gmra.mrb[0].mxu0 %v345
    %v5702 = vpop.f32.mrb[0].mxu0
    %v5703 = vadd.f32 0.0, %v5702
    %v5704 = vpop.f32.mrb[0].mxu0
    %5705 = vmatprep.mubr.f32.mxu0 0.0
    %5706 = vmatmul.mubr.f32.gmra.mrb[0].mxu0 %v348
    %v5707 = vpop.f32.mrb[0].mxu0
    %v5708 = vadd.f32 0.0, %v5707
    %v5709 = vpop.f32.mrb[0].mxu0
    %5710 = vmatprep.mubr.f32.mxu0 0.0
    %5711 = vmatmul.mubr.f32.gmra.mrb[0].mxu0 %v351
    %v5712 = vpop.f32.mrb[0].mxu0
    %v5713 = vadd.f32 0.0, %v5712
    %v5714 = vpop.f32.mrb[0].mxu0
    %5715 = vmatprep.mubr.f32.mxu0 0.0
    %5716 = vmatmul.mubr.f32.gmra.mrb[0].mxu0 %v354
    %v5717 = vpop.f32.mrb[0].mxu0
    %v5718 = vadd.f32 0.0, %v5717
    %v5719 = vpop.f32.mrb[0].mxu0
    %5720 = vmatprep.mubr.f32.mxu0 0.0
    %5721 = vmatmul.mubr.f32.gmra.mrb[0].mxu0 %v360
    %v5722 = vpop.f32.mrb[0].mxu0
    %v5723 = vadd.f32 0.0, %v5722
    %v5724 = vpop.f32.mrb[0].mxu0
    %5725 = vmatprep.mubr.f32.mxu0 0.0
    %5726 = vmatmul.mubr.f32.gmra.mrb[0].mxu0 %v360
    %v5727 = vpop.f32.mrb[0].mxu0
    %v5728 = vadd.f32 0.0, %v5727
    %v5729 = vpop.f32.mrb[0].mxu0
    %5730 = vmatprep.mubr.f32.mxu0 0.0
    %5731 = vmatmul.mubr.f32.gmra.mrb[0].mxu0 %v363
    %v5732 = vpop.f32.mrb[0].mxu0
    %v5733 = vadd.f32 0.0, %v5732
    %v5734 = vpop.f32.mrb[0].mxu0
    %5735 = vmatprep.mubr.f32.mxu0 0.0
    %5736 = vmatmul.mubr.f32.gmra.mrb[0].mxu0 %v366
    %v5737 = vpop.f32.mrb[0].mxu0
    %v5738 = vadd.f32 0.0, %v5737
    %v5739 = vpop.f32.mrb[0].mxu0
    %5740 = vmatprep.mubr.f32.mxu0 0.0
    %5741 = vmatmul.mubr.f32.gmra.mrb[0].mxu0 %v369
    %v5742 = vpop.f32.mrb[0].mxu0
    %v5743 = vadd.f32 0.0, %v5742
    %v5744 = vpop.f32.mrb[0].mxu0
    %5745 = vmatprep.mubr.f32.mxu0 0.0
    %5746 = vmatmul.mubr.f32.gmra.mrb[0].mxu0 %v372
    %v5747 = vpop.f32.mrb[0].mxu0
    %v5748 = vadd.f32 0.0, %v5747
    %v5749 = vpop.f32.mrb[0].mxu0
    %5750 = vmatprep.mubr.f32.mxu0 0.0
    %5751 = vmatmul.mubr.f32.gmra.mrb[0].mxu0 %v375
    %v5752 = vpop.f32.mrb[0].mxu0
    %v5753 = vadd.f32 0.0, %v5752
    %v5754 = vpop.f32.mrb[0].mxu0
    %5755 = vmatprep.mubr.f32.mxu0 0.0
    %5756 = vmatmul.mubr.f32.gmra.mrb[0].mxu0 %v378
    %v5757 = vpop.f32.mrb[0].mxu0
    %v5758 = vadd.f32 0.0, %v5757
    %v5759 = vpop.f32.mrb[0].mxu0
    %5760 = vmatprep.mubr.f32.mxu0 0.0
    %5761 = vmatmul.mubr.f32.gmra.mrb[0].mxu0 %v384
    %v5762 = vpop.f32.mrb[0].mxu0
    %v5763 = vadd.f32 0.0, %v5762
    %v5764 = vpop.f32.mrb[0].mxu0
    %5765 = vmatprep.mubr.f32.mxu0 0.0
    %5766 = vmatmul.mubr.f32.gmra.mrb[0].mxu0 %v384
    %v5767 = vpop.f32.mrb[0].mxu0
    %v5768 = vadd.f32 0.0, %v5767
    %v5769 = vpop.f32.mrb[0].mxu0
    %5770 = vmatprep.mubr.f32.mxu0 0.0
    %5771 = vmatmul.mubr.f32.gmra.mrb[0].mxu0 %v387
    %v5772 = vpop.f32.mrb[0].mxu0
    %v5773 = vadd.f32 0.0, %v5772
    %v5774 = vpop.f32.mrb[0].mxu0
    %5775 = vmatprep.mubr.f32.mxu0 0.0
    %5776 = vmatmul.mubr.f32.gmra.mrb[0].mxu0 %v390
    %v5777 = vpop.f32.mrb[0].mxu0
    %v5778 = vadd.f32 0.0, %v5777
    %v5779 = vpop.f32.mrb[0].mxu0
    %5780 = vmatprep.mubr.f32.mxu0 0.0
    %5781 = vmatmul.mubr.f32.gmra.mrb[0].mxu0 %v393
    %v5782 = vpop.f32.mrb[0].mxu0
    %v5783 = vadd.f32 0.0, %v5782
    %v5784 = vpop.f32.mrb[0].mxu0
    %5785 = vmatprep.mubr.f32.mxu0 0.0
    %5786 = vmatmul.mubr.f32.gmra.mrb[0].mxu0 %v396
    %v5787 = vpop.f32.mrb[0].mxu0
    %v5788 = vadd.f32 0.0, %v5787
    %v5789 = vpop.f32.mrb[0].mxu0
    %5790 = vmatprep.mubr.f32.mxu0 0.0
    %5791 = vmatmul.mubr.f32.gmra.mrb[0].mxu0 %v399
    %v5792 = vpop.f32.mrb[0].mxu0
    %v5793 = vadd.f32 0.0, %v5792
    %v5794 = vpop.f32.mrb[0].mxu0
    %5795 = vmatprep.mubr.f32.mxu0 0.0
    %5796 = vmatmul.mubr.f32.gmra.mrb[0].mxu0 %v402
    %v5797 = vpop.f32.mrb[0].mxu0
    %v5798 = vadd.f32 0.0, %v5797
    %v5799 = vpop.f32.mrb[0].mxu0
    %5800 = vmatprep.mubr.f32.mxu0 0.0
    %5801 = vmatmul.mubr.f32.gmra.mrb[0].mxu0 %v408
    %v5802 = vpop.f32.mrb[0].mxu0
    %v5803 = vadd.f32 0.0, %v5802
    %v5804 = vpop.f32.mrb[0].mxu0
    %5805 = vmatprep.mubr.f32.mxu0 0.0
    %5806 = vmatmul.mubr.f32.gmra.mrb[0].mxu0 %v408
    %v5807 = vpop.f32.mrb[0].mxu0
    %v5808 = vadd.f32 0.0, %v5807
    %v5809 = vpop.f32.mrb[0].mxu0
    %5810 = vmatprep.mubr.f32.mxu0 0.0
    %5811 = vmatmul.mubr.f32.gmra.mrb[0].mxu0 %v411
    %v5812 = vpop.f32.mrb[0].mxu0
    %v5813 = vadd.f32 0.0, %v5812
    %v5814 = vpop.f32.mrb[0].mxu0
    %5815 = vmatprep.mubr.f32.mxu0 0.0
    %5816 = vmatmul.mubr.f32.gmra.mrb[0].mxu0 %v414
    %v5817 = vpop.f32.mrb[0].mxu0
    %v5818 = vadd.f32 0.0, %v5817
    %v5819 = vpop.f32.mrb[0].mxu0
    %5820 = vmatprep.mubr.f32.mxu0 0.0
    %5821 = vmatmul.mubr.f32.gmra.mrb[0].mxu0 %v417
    %v5822 = vpop.f32.mrb[0].mxu0
    %v5823 = vadd.f32 0.0, %v5822
    %v5824 = vpop.f32.mrb[0].mxu0
    %5825 = vmatprep.mubr.f32.mxu0 0.0
    %5826 = vmatmul.mubr.f32.gmra.mrb[0].mxu0 %v420
    %v5827 = vpop.f32.mrb[0].mxu0
    %v5828 = vadd.f32 0.0, %v5827
    %v5829 = vpop.f32.mrb[0].mxu0
    %5830 = vmatprep.mubr.f32.mxu0 0.0
    %5831 = vmatmul.mubr.f32.gmra.mrb[0].mxu0 %v423
    %v5832 = vpop.f32.mrb[0].mxu0
    %v5833 = vadd.f32 0.0, %v5832
    %v5834 = vpop.f32.mrb[0].mxu0
    %5835 = vmatprep.mubr.f32.mxu0 0.0
    %5836 = vmatmul.mubr.f32.gmra.mrb[0].mxu0 %v426
    %v5837 = vpop.f32.mrb[0].mxu0
    %v5838 = vadd.f32 0.0, %v5837
    %v5839 = vpop.f32.mrb[0].mxu0
    %5840 = vmatprep.mubr.f32.mxu0 0.0
    %5841 = vmatmul.mubr.f32.gmra.mrb[0].mxu0 %v432
    %v5842 = vpop.f32.mrb[0].mxu0
    %v5843 = vadd.f32 0.0, %v5842
    %v5844 = vpop.f32.mrb[0].mxu0
    %5845 = vmatprep.mubr.f32.mxu0 0.0
    %5846 = vmatmul.mubr.f32.gmra.mrb[0].mxu0 %v432
    %v5847 = vpop.f32.mrb[0].mxu0
    %v5848 = vadd.f32 0.0, %v5847
    %v5849 = vpop.f32.mrb[0].mxu0
    %5850 = vmatprep.mubr.f32.mxu0 0.0
    %5851 = vmatmul.mubr.f32.gmra.mrb[0].mxu0 %v435
    %v5852 = vpop.f32.mrb[0].mxu0
    %v5853 = vadd.f32 0.0, %v5852
    %v5854 = vpop.f32.mrb[0].mxu0
    %5855 = vmatprep.mubr.f32.mxu0 0.0
    %5856 = vmatmul.mubr.f32.gmra.mrb[0].mxu0 %v438
    %v5857 = vpop.f32.mrb[0].mxu0
    %v5858 = vadd.f32 0.0, %v5857
    %v5859 = vpop.f32.mrb[0].mxu0
    %5860 = vmatprep.mubr.f32.mxu0 0.0
    %5861 = vmatmul.mubr.f32.gmra.mrb[0].mxu0 %v441
    %v5862 = vpop.f32.mrb[0].mxu0
    %v5863 = vadd.f32 0.0, %v5862
    %v5864 = vpop.f32.mrb[0].mxu0
    %5865 = vmatprep.mubr.f32.mxu0 0.0
    %5866 = vmatmul.mubr.f32.gmra.mrb[0].mxu0 %v444
    %v5867 = vpop.f32.mrb[0].mxu0
    %v5868 = vadd.f32 0.0, %v5867
    %v5869 = vpop.f32.mrb[0].mxu0
    %5870 = vmatprep.mubr.f32.mxu0 0.0
    %5871 = vmatmul.mubr.f32.gmra.mrb[0].mxu0 %v447
    %v5872 = vpop.f32.mrb[0].mxu0
    %v5873 = vadd.f32 0.0, %v5872
    %v5874 = vpop.f32.mrb[0].mxu0
    %5875 = vmatprep.mubr.f32.mxu0 0.0
    %5876 = vmatmul.mubr.f32.gmra.mrb[0].mxu0 %v450
    %v5877 = vpop.f32.mrb[0].mxu0
    %v5878 = vadd.f32 0.0, %v5877
    %v5879 = vpop.f32.mrb[0].mxu0
    %5880 = vmatprep.mubr.f32.mxu0 0.0
    %5881 = vmatmul.mubr.f32.gmra.mrb[0].mxu0 %v456
    %v5882 = vpop.f32.mrb[0].mxu0
    %v5883 = vadd.f32 0.0, %v5882
    %v5884 = vpop.f32.mrb[0].mxu0
    %5885 = vmatprep.mubr.f32.mxu0 0.0
    %5886 = vmatmul.mubr.f32.gmra.mrb[0].mxu0 %v456
    %v5887 = vpop.f32.mrb[0].mxu0
    %v5888 = vadd.f32 0.0, %v5887
    %v5889 = vpop.f32.mrb[0].mxu0
    %5890 = vmatprep.mubr.f32.mxu0 0.0
    %5891 = vmatmul.mubr.f32.gmra.mrb[0].mxu0 %v459
    %v5892 = vpop.f32.mrb[0].mxu0
    %v5893 = vadd.f32 0.0, %v5892
    %v5894 = vpop.f32.mrb[0].mxu0
    %5895 = vmatprep.mubr.f32.mxu0 0.0
    %5896 = vmatmul.mubr.f32.gmra.mrb[0].mxu0 %v462
    %v5897 = vpop.f32.mrb[0].mxu0
    %v5898 = vadd.f32 0.0, %v5897
    %v5899 = vpop.f32.mrb[0].mxu0
    %5900 = vmatprep.mubr.f32.mxu0 0.0
    %5901 = vmatmul.mubr.f32.gmra.mrb[0].mxu0 %v465
    %v5902 = vpop.f32.mrb[0].mxu0
    %v5903 = vadd.f32 0.0, %v5902
    %v5904 = vpop.f32.mrb[0].mxu0
    %5905 = vmatprep.mubr.f32.mxu0 0.0
    %5906 = vmatmul.mubr.f32.gmra.mrb[0].mxu0 %v468
    %v5907 = vpop.f32.mrb[0].mxu0
    %v5908 = vadd.f32 0.0, %v5907
    %v5909 = vpop.f32.mrb[0].mxu0
    %5910 = vmatprep.mubr.f32.mxu0 0.0
    %5911 = vmatmul.mubr.f32.gmra.mrb[0].mxu0 %v471
    %v5912 = vpop.f32.mrb[0].mxu0
    %v5913 = vadd.f32 0.0, %v5912
    %v5914 = vpop.f32.mrb[0].mxu0
    %5915 = vmatprep.mubr.f32.mxu0 0.0
    %5916 = vmatmul.mubr.f32.gmra.mrb[0].mxu0 %v474
    %v5917 = vpop.f32.mrb[0].mxu0
    %v5918 = vadd.f32 0.0, %v5917
    %v5919 = vpop.f32.mrb[0].mxu0
    %5920 = vmatprep.mubr.f32.mxu0 0.0
    %5921 = vmatmul.mubr.f32.gmra.mrb[0].mxu0 %v2756
    %v5922 = vpop.f32.mrb[0].mxu0
    %v5923 = vadd.f32 0.0, %v5922
    %v5924 = vpop.f32.mrb[0].mxu0
    %5925 = vmatprep.mubr.f32.mxu0 0.0
    %5926 = vmatmul.mubr.f32.gmra.mrb[0].mxu0 %v2756
    %v5927 = vpop.f32.mrb[0].mxu0
    %v5928 = vadd.f32 0.0, %v5927
    %v5929 = vpop.f32.mrb[0].mxu0
    %5930 = vmatprep.mubr.f32.mxu0 0.0
    %5931 = vmatmul.mubr.f32.gmra.mrb[0].mxu0 %v2759
    %v5932 = vpop.f32.mrb[0].mxu0
    %v5933 = vadd.f32 0.0, %v5932
    %v5934 = vpop.f32.mrb[0].mxu0
    %5935 = vmatprep.mubr.f32.mxu0 0.0
    %5936 = vmatmul.mubr.f32.gmra.mrb[0].mxu0 %v2762
    %v5937 = vpop.f32.mrb[0].mxu0
    %v5938 = vadd.f32 0.0, %v5937
    %v5939 = vpop.f32.mrb[0].mxu0
    %5940 = vmatprep.mubr.f32.mxu0 0.0
    %5941 = vmatmul.mubr.f32.gmra.mrb[0].mxu0 %v2765
    %v5942 = vpop.f32.mrb[0].mxu0
    %v5943 = vadd.f32 0.0, %v5942
    %v5944 = vpop.f32.mrb[0].mxu0
    %5945 = vmatprep.mubr.f32.mxu0 0.0
    %5946 = vmatmul.mubr.f32.gmra.mrb[0].mxu0 %v2768
    %v5947 = vpop.f32.mrb[0].mxu0
    %v5948 = vadd.f32 0.0, %v5947
    %v5949 = vpop.f32.mrb[0].mxu0
    %5950 = vmatprep.mubr.f32.mxu0 0.0
    %5951 = vmatmul.mubr.f32.gmra.mrb[0].mxu0 %v2771
    %v5952 = vpop.f32.mrb[0].mxu0
    %v5953 = vadd.f32 0.0, %v5952
    %v5954 = vpop.f32.mrb[0].mxu0
    %5955 = vmatprep.mubr.f32.mxu0 0.0
    %5956 = vmatmul.mubr.f32.gmra.mrb[0].mxu0 %v2774
    %v5957 = vpop.f32.mrb[0].mxu0
    %v5958 = vadd.f32 0.0, %v5957
    %v5959 = vpop.f32.mrb[0].mxu0
    %5960 = vmatprep.mubr.f32.mxu0 0.0
    %5961 = vmatmul.mubr.f32.gmra.mrb[0].mxu0 %v2756
    %v5962 = vpop.f32.mrb[0].mxu0
    %v5963 = vadd.f32 0.0, %v5962
    %v5964 = vpop.f32.mrb[0].mxu0
    %5965 = vmatprep.mubr.f32.mxu0 0.0
    %5966 = vmatmul.mubr.f32.gmra.mrb[0].mxu0 %v2756
    %v5967 = vpop.f32.mrb[0].mxu0
    %v5968 = vadd.f32 0.0, %v5967
    %v5969 = vpop.f32.mrb[0].mxu0
    %5970 = vmatprep.mubr.f32.mxu0 0.0
    %5971 = vmatmul.mubr.f32.gmra.mrb[0].mxu0 %v2759
    %v5972 = vpop.f32.mrb[0].mxu0
    %v5973 = vadd.f32 0.0, %v5972
    %v5974 = vpop.f32.mrb[0].mxu0
    %5975 = vmatprep.mubr.f32.mxu0 0.0
    %5976 = vmatmul.mubr.f32.gmra.mrb[0].mxu0 %v2762
    %v5977 = vpop.f32.mrb[0].mxu0
    %v5978 = vadd.f32 0.0, %v5977
    %v5979 = vpop.f32.mrb[0].mxu0
    %5980 = vmatprep.mubr.f32.mxu0 0.0
    %5981 = vmatmul.mubr.f32.gmra.mrb[0].mxu0 %v2765
    %v5982 = vpop.f32.mrb[0].mxu0
    %v5983 = vadd.f32 0.0, %v5982
    %v5984 = vpop.f32.mrb[0].mxu0
    %5985 = vmatprep.mubr.f32.mxu0 0.0
    %5986 = vmatmul.mubr.f32.gmra.mrb[0].mxu0 %v2768
    %v5987 = vpop.f32.mrb[0].mxu0
    %v5988 = vadd.f32 0.0, %v5987
    %v5989 = vpop.f32.mrb[0].mxu0
    %5990 = vmatprep.mubr.f32.mxu0 0.0
    %5991 = vmatmul.mubr.f32.gmra.mrb[0].mxu0 %v2771
    %v5992 = vpop.f32.mrb[0].mxu0
    %v5993 = vadd.f32 0.0, %v5992
    %v5994 = vpop.f32.mrb[0].mxu0
    %5995 = vmatprep.mubr.f32.mxu0 0.0
    %5996 = vmatmul.mubr.f32.gmra.mrb[0].mxu0 %v2774
    %v5997 = vpop.f32.mrb[0].mxu0
    %v5998 = vadd.f32 0.0, %v5997
    %v5999 = vpop.f32.mrb[0].mxu0
    %6000 = vdwg.mxu0
    %v6001 = vadd.f32 %v5164, %v5363
    %v6002 = vadd.f32 %v5165, %v5368
    %v6003 = vadd.f32 %v5166, %v5373
    %v6004 = vadd.f32 %v5167, %v5378
    %v6005 = vadd.f32 %v5168, %v5383
    %v6006 = vadd.f32 %v5169, %v5388
    %v6007 = vadd.f32 %v5170, %v5393
    %v6008 = vadd.f32 %v5171, %v5398
    %v6009 = vadd.f32 %v5172, %v5403
    %v6010 = vadd.f32 %v5173, %v5408
    %v6011 = vadd.f32 %v5174, %v5413
    %v6012 = vadd.f32 %v5175, %v5418
    %v6013 = vadd.f32 %v5176, %v5423
    %v6014 = vadd.f32 %v5177, %v5428
    %v6015 = vadd.f32 %v5178, %v5433
    %v6016 = vadd.f32 %v5179, %v5438
    %v6017 = vadd.f32 %v5180, %v5443
    %v6018 = vadd.f32 %v5181, %v5448
    %v6019 = vadd.f32 %v5182, %v5453
    %v6020 = vadd.f32 %v5183, %v5458
    %v6021 = vadd.f32 %v5184, %v5463
    %v6022 = vadd.f32 %v5185, %v5468
    %v6023 = vadd.f32 %v5186, %v5473
    %v6024 = vadd.f32 %v5187, %v5478
    %v6025 = vadd.f32 %v5188, %v5483
    %v6026 = vadd.f32 %v5189, %v5488
    %v6027 = vadd.f32 %v5190, %v5493
    %v6028 = vadd.f32 %v5191, %v5498
    %v6029 = vadd.f32 %v5192, %v5503
    %v6030 = vadd.f32 %v5193, %v5508
    %v6031 = vadd.f32 %v5194, %v5513
    %v6032 = vadd.f32 %v5195, %v5518
    %v6033 = vadd.f32 %v5196, %v5523
    %v6034 = vadd.f32 %v5197, %v5528
    %v6035 = vadd.f32 %v5198, %v5533
    %v6036 = vadd.f32 %v5199, %v5538
    %v6037 = vadd.f32 %v5200, %v5543
    %v6038 = vadd.f32 %v5201, %v5548
    %v6039 = vadd.f32 %v5202, %v5553
    %v6040 = vadd.f32 %v5203, %v5558
    %v6041 = vadd.f32 %v5204, %v5563
    %v6042 = vadd.f32 %v5205, %v5568
    %v6043 = vadd.f32 %v5206, %v5573
    %v6044 = vadd.f32 %v5207, %v5578
    %v6045 = vadd.f32 %v5208, %v5583
    %v6046 = vadd.f32 %v5209, %v5588
    %v6047 = vadd.f32 %v5210, %v5593
    %v6048 = vadd.f32 %v5211, %v5598
    %v6049 = vadd.f32 %v5212, %v5603
    %v6050 = vadd.f32 %v5213, %v5608
    %v6051 = vadd.f32 %v5214, %v5613
    %v6052 = vadd.f32 %v5215, %v5618
    %v6053 = vadd.f32 %v5216, %v5623
    %v6054 = vadd.f32 %v5217, %v5628
    %v6055 = vadd.f32 %v5218, %v5633
    %v6056 = vadd.f32 %v5219, %v5638
    %v6057 = vadd.f32 %v5220, %v5643
    %v6058 = vadd.f32 %v5221, %v5648
    %v6059 = vadd.f32 %v5222, %v5653
    %v6060 = vadd.f32 %v5223, %v5658
    %v6061 = vadd.f32 %v5224, %v5663
    %v6062 = vadd.f32 %v5225, %v5668
    %v6063 = vadd.f32 %v5226, %v5673
    %v6064 = vadd.f32 %v5227, %v5678
    %v6065 = vadd.f32 %v5228, %v5683
    %v6066 = vadd.f32 %v5229, %v5688
    %v6067 = vadd.f32 %v5230, %v5693
    %v6068 = vadd.f32 %v5231, %v5698
    %v6069 = vadd.f32 %v5232, %v5703
    %v6070 = vadd.f32 %v5233, %v5708
    %v6071 = vadd.f32 %v5234, %v5713
    %v6072 = vadd.f32 %v5235, %v5718
    %v6073 = vadd.f32 %v5236, %v5723
    %v6074 = vadd.f32 %v5237, %v5728
    %v6075 = vadd.f32 %v5238, %v5733
    %v6076 = vadd.f32 %v5239, %v5738
    %v6077 = vadd.f32 %v5240, %v5743
    %v6078 = vadd.f32 %v5241, %v5748
    %v6079 = vadd.f32 %v5242, %v5753
    %v6080 = vadd.f32 %v5243, %v5758
    %v6081 = vadd.f32 %v5244, %v5763
    %v6082 = vadd.f32 %v5245, %v5768
    %v6083 = vadd.f32 %v5246, %v5773
    %v6084 = vadd.f32 %v5247, %v5778
    %v6085 = vadd.f32 %v5248, %v5783
    %v6086 = vadd.f32 %v5249, %v5788
    %v6087 = vadd.f32 %v5250, %v5793
    %v6088 = vadd.f32 %v5251, %v5798
    %v6089 = vadd.f32 %v5252, %v5803
    %v6090 = vadd.f32 %v5253, %v5808
    %v6091 = vadd.f32 %v5254, %v5813
    %v6092 = vadd.f32 %v5255, %v5818
    %v6093 = vadd.f32 %v5256, %v5823
    %v6094 = vadd.f32 %v5257, %v5828
    %v6095 = vadd.f32 %v5258, %v5833
    %v6096 = vadd.f32 %v5259, %v5838
    %v6097 = vadd.f32 %v5260, %v5843
    %v6098 = vadd.f32 %v5261, %v5848
    %v6099 = vadd.f32 %v5262, %v5853
    %v6100 = vadd.f32 %v5263, %v5858
    %v6101 = vadd.f32 %v5264, %v5863
    %v6102 = vadd.f32 %v5265, %v5868
    %v6103 = vadd.f32 %v5266, %v5873
    %v6104 = vadd.f32 %v5267, %v5878
    %v6105 = vadd.f32 %v5268, %v5883
    %v6106 = vadd.f32 %v5269, %v5888
    %v6107 = vadd.f32 %v5270, %v5893
    %v6108 = vadd.f32 %v5271, %v5898
    %v6109 = vadd.f32 %v5272, %v5903
    %v6110 = vadd.f32 %v5273, %v5908
    %v6111 = vadd.f32 %v5274, %v5913
    %v6112 = vadd.f32 %v5275, %v5918
    %v6113 = vadd.f32 %v5276, %v5923
    %v6114 = vadd.f32 %v5277, %v5928
    %v6115 = vadd.f32 %v5278, %v5933
    %v6116 = vadd.f32 %v5279, %v5938
    %v6117 = vadd.f32 %v5280, %v5943
    %v6118 = vadd.f32 %v5281, %v5948
    %v6119 = vadd.f32 %v5282, %v5953
    %v6120 = vadd.f32 %v5283, %v5958
    %v6121 = vadd.f32 %v5284, %v5963
    %v6122 = vadd.f32 %v5285, %v5968
    %v6123 = vadd.f32 %v5286, %v5973
    %v6124 = vadd.f32 %v5287, %v5978
    %v6125 = vadd.f32 %v5288, %v5983
    %v6126 = vadd.f32 %v5289, %v5988
    %v6127 = vadd.f32 %v5290, %v5993
    %v6128 = vadd.f32 %v5291, %v5998
    %v6129 = vld [vmem:[%s1 + $0x1c] sm:$0xf]
    %v6131 = vsel %vm479, %v6129, 0
    %6133 = vmatprep.subr.mxu0 0.0
    %6134 = vmatpush1.msra.mxu0 %v6131
    %6135 = vmatprep.subr.mxu0 0.0
    %6136 = vmatpush1.msra.mxu0 0.0
    %6137 = vmatprep.subr.mxu0 0.0
    %6138 = vmatpush1.msra.mxu0 0.0
    %6139 = vmatprep.subr.mxu0 0.0
    %6140 = vmatpush1.msra.mxu0 0.0
    %6141 = vmatprep.subr.mxu0 0.0
    %6142 = vmatpush1.msra.mxu0 0.0
    %6143 = vmatprep.subr.mxu0 0.0
    %6144 = vmatpush1.msra.mxu0 0.0
    %6145 = vmatprep.subr.mxu0 0.0
    %6146 = vmatpush1.msra.mxu0 0.0
    %6147 = vmatprep.subr.mxu0 0.0
    %6148 = vmatpush1.msra.mxu0 0.0
    %6149 = vmatprep.subr.mxu0 0.0
    %6150 = vmatpush1.msra.mxu0 0.0
    %6151 = vmatprep.subr.mxu0 0.0
    %6152 = vmatpush1.msra.mxu0 0.0
    %6153 = vmatprep.subr.mxu0 0.0
    %6154 = vmatpush1.msra.mxu0 0.0
    %6155 = vmatprep.subr.mxu0 0.0
    %6156 = vmatpush1.msra.mxu0 0.0
    %6157 = vmatprep.subr.mxu0 0.0
    %6158 = vmatpush1.msra.mxu0 0.0
    %6159 = vmatprep.subr.mxu0 0.0
    %6160 = vmatpush1.msra.mxu0 0.0
    %6161 = vmatprep.subr.mxu0 0.0
    %6162 = vmatpush1.msra.mxu0 0.0
    %6163 = vmatprep.subr.mxu0 0.0
    %6164 = vmatpush1.msra.mxu0 0.0
    %6165 = vmatprep.subr.mxu0 0.0
    %6166 = vmatpush1.msra.mxu0 0.0
    %6167 = vmatprep.subr.mxu0 0.0
    %6168 = vmatpush1.msra.mxu0 0.0
    %6169 = vmatprep.subr.mxu0 0.0
    %6170 = vmatpush1.msra.mxu0 0.0
    %6171 = vmatprep.subr.mxu0 0.0
    %6172 = vmatpush1.msra.mxu0 0.0
    %6173 = vmatprep.subr.mxu0 0.0
    %6174 = vmatpush1.msra.mxu0 0.0
    %6175 = vmatprep.subr.mxu0 0.0
    %6176 = vmatpush1.msra.mxu0 0.0
    %6177 = vmatprep.subr.mxu0 0.0
    %6178 = vmatpush1.msra.mxu0 0.0
    %6179 = vmatprep.subr.mxu0 0.0
    %6180 = vmatpush1.msra.mxu0 0.0
    %6181 = vmatprep.subr.mxu0 0.0
    %6182 = vmatpush1.msra.mxu0 0.0
    %6183 = vmatprep.subr.mxu0 0.0
    %6184 = vmatpush1.msra.mxu0 0.0
    %6185 = vmatprep.subr.mxu0 0.0
    %6186 = vmatpush1.msra.mxu0 0.0
    %6187 = vmatprep.subr.mxu0 0.0
    %6188 = vmatpush1.msra.mxu0 0.0
    %6189 = vmatprep.subr.mxu0 0.0
    %6190 = vmatpush1.msra.mxu0 0.0
    %6191 = vmatprep.subr.mxu0 0.0
    %6192 = vmatpush1.msra.mxu0 0.0
    %6193 = vmatprep.subr.mxu0 0.0
    %6194 = vmatpush1.msra.mxu0 0.0
    %6195 = vmatprep.subr.mxu0 0.0
    %6196 = vmatpush1.msra.mxu0 0.0
    %6197 = vmatprep.mubr.f32.mxu0 0.0
    %6198 = vmatmul.mubr.f32.gmra.mrb[0].mxu0 %v168
    %v6199 = vpop.f32.mrb[0].mxu0
    %v6200 = vadd.f32 0.0, %v6199
    %v6201 = vpop.f32.mrb[0].mxu0
    %6202 = vmatprep.mubr.f32.mxu0 0.0
    %6203 = vmatmul.mubr.f32.gmra.mrb[0].mxu0 %v171
    %v6204 = vpop.f32.mrb[0].mxu0
    %v6205 = vadd.f32 0.0, %v6204
    %v6206 = vpop.f32.mrb[0].mxu0
    %6207 = vmatprep.mubr.f32.mxu0 0.0
    %6208 = vmatmul.mubr.f32.gmra.mrb[0].mxu0 %v174
    %v6209 = vpop.f32.mrb[0].mxu0
    %v6210 = vadd.f32 0.0, %v6209
    %v6211 = vpop.f32.mrb[0].mxu0
    %6212 = vmatprep.mubr.f32.mxu0 0.0
    %6213 = vmatmul.mubr.f32.gmra.mrb[0].mxu0 %v177
    %v6214 = vpop.f32.mrb[0].mxu0
    %v6215 = vadd.f32 0.0, %v6214
    %v6216 = vpop.f32.mrb[0].mxu0
    %6217 = vmatprep.mubr.f32.mxu0 0.0
    %6218 = vmatmul.mubr.f32.gmra.mrb[0].mxu0 %v180
    %v6219 = vpop.f32.mrb[0].mxu0
    %v6220 = vadd.f32 0.0, %v6219
    %v6221 = vpop.f32.mrb[0].mxu0
    %6222 = vmatprep.mubr.f32.mxu0 0.0
    %6223 = vmatmul.mubr.f32.gmra.mrb[0].mxu0 %v183
    %v6224 = vpop.f32.mrb[0].mxu0
    %v6225 = vadd.f32 0.0, %v6224
    %v6226 = vpop.f32.mrb[0].mxu0
    %6227 = vmatprep.mubr.f32.mxu0 0.0
    %6228 = vmatmul.mubr.f32.gmra.mrb[0].mxu0 %v186
    %v6229 = vpop.f32.mrb[0].mxu0
    %v6230 = vadd.f32 0.0, %v6229
    %v6231 = vpop.f32.mrb[0].mxu0
    %6232 = vmatprep.mubr.f32.mxu0 0.0
    %6233 = vmatmul.mubr.f32.gmra.mrb[0].mxu0 %v189
    %v6234 = vpop.f32.mrb[0].mxu0
    %v6235 = vadd.f32 0.0, %v6234
    %v6236 = vpop.f32.mrb[0].mxu0
    %6237 = vmatprep.mubr.f32.mxu0 0.0
    %6238 = vmatmul.mubr.f32.gmra.mrb[0].mxu0 %v192
    %v6239 = vpop.f32.mrb[0].mxu0
    %v6240 = vadd.f32 0.0, %v6239
    %v6241 = vpop.f32.mrb[0].mxu0
    %6242 = vmatprep.mubr.f32.mxu0 0.0
    %6243 = vmatmul.mubr.f32.gmra.mrb[0].mxu0 %v195
    %v6244 = vpop.f32.mrb[0].mxu0
    %v6245 = vadd.f32 0.0, %v6244
    %v6246 = vpop.f32.mrb[0].mxu0
    %6247 = vmatprep.mubr.f32.mxu0 0.0
    %6248 = vmatmul.mubr.f32.gmra.mrb[0].mxu0 %v198
    %v6249 = vpop.f32.mrb[0].mxu0
    %v6250 = vadd.f32 0.0, %v6249
    %v6251 = vpop.f32.mrb[0].mxu0
    %6252 = vmatprep.mubr.f32.mxu0 0.0
    %6253 = vmatmul.mubr.f32.gmra.mrb[0].mxu0 %v201
    %v6254 = vpop.f32.mrb[0].mxu0
    %v6255 = vadd.f32 0.0, %v6254
    %v6256 = vpop.f32.mrb[0].mxu0
    %6257 = vmatprep.mubr.f32.mxu0 0.0
    %6258 = vmatmul.mubr.f32.gmra.mrb[0].mxu0 %v204
    %v6259 = vpop.f32.mrb[0].mxu0
    %v6260 = vadd.f32 0.0, %v6259
    %v6261 = vpop.f32.mrb[0].mxu0
    %6262 = vmatprep.mubr.f32.mxu0 0.0
    %6263 = vmatmul.mubr.f32.gmra.mrb[0].mxu0 %v207
    %v6264 = vpop.f32.mrb[0].mxu0
    %v6265 = vadd.f32 0.0, %v6264
    %v6266 = vpop.f32.mrb[0].mxu0
    %6267 = vmatprep.mubr.f32.mxu0 0.0
    %6268 = vmatmul.mubr.f32.gmra.mrb[0].mxu0 %v210
    %v6269 = vpop.f32.mrb[0].mxu0
    %v6270 = vadd.f32 0.0, %v6269
    %v6271 = vpop.f32.mrb[0].mxu0
    %6272 = vmatprep.mubr.f32.mxu0 0.0
    %6273 = vmatmul.mubr.f32.gmra.mrb[0].mxu0 %v213
    %v6274 = vpop.f32.mrb[0].mxu0
    %v6275 = vadd.f32 0.0, %v6274
    %v6276 = vpop.f32.mrb[0].mxu0
    %6277 = vmatprep.mubr.f32.mxu0 0.0
    %6278 = vmatmul.mubr.f32.gmra.mrb[0].mxu0 %v216
    %v6279 = vpop.f32.mrb[0].mxu0
    %v6280 = vadd.f32 0.0, %v6279
    %v6281 = vpop.f32.mrb[0].mxu0
    %6282 = vmatprep.mubr.f32.mxu0 0.0
    %6283 = vmatmul.mubr.f32.gmra.mrb[0].mxu0 %v219
    %v6284 = vpop.f32.mrb[0].mxu0
    %v6285 = vadd.f32 0.0, %v6284
    %v6286 = vpop.f32.mrb[0].mxu0
    %6287 = vmatprep.mubr.f32.mxu0 0.0
    %6288 = vmatmul.mubr.f32.gmra.mrb[0].mxu0 %v222
    %v6289 = vpop.f32.mrb[0].mxu0
    %v6290 = vadd.f32 0.0, %v6289
    %v6291 = vpop.f32.mrb[0].mxu0
    %6292 = vmatprep.mubr.f32.mxu0 0.0
    %6293 = vmatmul.mubr.f32.gmra.mrb[0].mxu0 %v225
    %v6294 = vpop.f32.mrb[0].mxu0
    %v6295 = vadd.f32 0.0, %v6294
    %v6296 = vpop.f32.mrb[0].mxu0
    %6297 = vmatprep.mubr.f32.mxu0 0.0
    %6298 = vmatmul.mubr.f32.gmra.mrb[0].mxu0 %v228
    %v6299 = vpop.f32.mrb[0].mxu0
    %v6300 = vadd.f32 0.0, %v6299
    %v6301 = vpop.f32.mrb[0].mxu0
    %6302 = vmatprep.mubr.f32.mxu0 0.0
    %6303 = vmatmul.mubr.f32.gmra.mrb[0].mxu0 %v231
    %v6304 = vpop.f32.mrb[0].mxu0
    %v6305 = vadd.f32 0.0, %v6304
    %v6306 = vpop.f32.mrb[0].mxu0
    %6307 = vmatprep.mubr.f32.mxu0 0.0
    %6308 = vmatmul.mubr.f32.gmra.mrb[0].mxu0 %v234
    %v6309 = vpop.f32.mrb[0].mxu0
    %v6310 = vadd.f32 0.0, %v6309
    %v6311 = vpop.f32.mrb[0].mxu0
    %6312 = vmatprep.mubr.f32.mxu0 0.0
    %6313 = vmatmul.mubr.f32.gmra.mrb[0].mxu0 %v237
    %v6314 = vpop.f32.mrb[0].mxu0
    %v6315 = vadd.f32 0.0, %v6314
    %v6316 = vpop.f32.mrb[0].mxu0
    %6317 = vmatprep.mubr.f32.mxu0 0.0
    %6318 = vmatmul.mubr.f32.gmra.mrb[0].mxu0 %v240
    %v6319 = vpop.f32.mrb[0].mxu0
    %v6320 = vadd.f32 0.0, %v6319
    %v6321 = vpop.f32.mrb[0].mxu0
    %6322 = vmatprep.mubr.f32.mxu0 0.0
    %6323 = vmatmul.mubr.f32.gmra.mrb[0].mxu0 %v243
    %v6324 = vpop.f32.mrb[0].mxu0
    %v6325 = vadd.f32 0.0, %v6324
    %v6326 = vpop.f32.mrb[0].mxu0
    %6327 = vmatprep.mubr.f32.mxu0 0.0
    %6328 = vmatmul.mubr.f32.gmra.mrb[0].mxu0 %v246
    %v6329 = vpop.f32.mrb[0].mxu0
    %v6330 = vadd.f32 0.0, %v6329
    %v6331 = vpop.f32.mrb[0].mxu0
    %6332 = vmatprep.mubr.f32.mxu0 0.0
    %6333 = vmatmul.mubr.f32.gmra.mrb[0].mxu0 %v249
    %v6334 = vpop.f32.mrb[0].mxu0
    %v6335 = vadd.f32 0.0, %v6334
    %v6336 = vpop.f32.mrb[0].mxu0
    %6337 = vmatprep.mubr.f32.mxu0 0.0
    %6338 = vmatmul.mubr.f32.gmra.mrb[0].mxu0 %v252
    %v6339 = vpop.f32.mrb[0].mxu0
    %v6340 = vadd.f32 0.0, %v6339
    %v6341 = vpop.f32.mrb[0].mxu0
    %6342 = vmatprep.mubr.f32.mxu0 0.0
    %6343 = vmatmul.mubr.f32.gmra.mrb[0].mxu0 %v255
    %v6344 = vpop.f32.mrb[0].mxu0
    %v6345 = vadd.f32 0.0, %v6344
    %v6346 = vpop.f32.mrb[0].mxu0
    %6347 = vmatprep.mubr.f32.mxu0 0.0
    %6348 = vmatmul.mubr.f32.gmra.mrb[0].mxu0 %v258
    %v6349 = vpop.f32.mrb[0].mxu0
    %v6350 = vadd.f32 0.0, %v6349
    %v6351 = vpop.f32.mrb[0].mxu0
    %6352 = vmatprep.mubr.f32.mxu0 0.0
    %6353 = vmatmul.mubr.f32.gmra.mrb[0].mxu0 %v261
    %v6354 = vpop.f32.mrb[0].mxu0
    %v6355 = vadd.f32 0.0, %v6354
    %v6356 = vpop.f32.mrb[0].mxu0
    %6357 = vmatprep.mubr.f32.mxu0 0.0
    %6358 = vmatmul.mubr.f32.gmra.mrb[0].mxu0 %v264
    %v6359 = vpop.f32.mrb[0].mxu0
    %v6360 = vadd.f32 0.0, %v6359
    %v6361 = vpop.f32.mrb[0].mxu0
    %6362 = vmatprep.mubr.f32.mxu0 0.0
    %6363 = vmatmul.mubr.f32.gmra.mrb[0].mxu0 %v267
    %v6364 = vpop.f32.mrb[0].mxu0
    %v6365 = vadd.f32 0.0, %v6364
    %v6366 = vpop.f32.mrb[0].mxu0
    %6367 = vmatprep.mubr.f32.mxu0 0.0
    %6368 = vmatmul.mubr.f32.gmra.mrb[0].mxu0 %v270
    %v6369 = vpop.f32.mrb[0].mxu0
    %v6370 = vadd.f32 0.0, %v6369
    %v6371 = vpop.f32.mrb[0].mxu0
    %6372 = vmatprep.mubr.f32.mxu0 0.0
    %6373 = vmatmul.mubr.f32.gmra.mrb[0].mxu0 %v273
    %v6374 = vpop.f32.mrb[0].mxu0
    %v6375 = vadd.f32 0.0, %v6374
    %v6376 = vpop.f32.mrb[0].mxu0
    %6377 = vmatprep.mubr.f32.mxu0 0.0
    %6378 = vmatmul.mubr.f32.gmra.mrb[0].mxu0 %v276
    %v6379 = vpop.f32.mrb[0].mxu0
    %v6380 = vadd.f32 0.0, %v6379
    %v6381 = vpop.f32.mrb[0].mxu0
    %6382 = vmatprep.mubr.f32.mxu0 0.0
    %6383 = vmatmul.mubr.f32.gmra.mrb[0].mxu0 %v279
    %v6384 = vpop.f32.mrb[0].mxu0
    %v6385 = vadd.f32 0.0, %v6384
    %v6386 = vpop.f32.mrb[0].mxu0
    %6387 = vmatprep.mubr.f32.mxu0 0.0
    %6388 = vmatmul.mubr.f32.gmra.mrb[0].mxu0 %v282
    %v6389 = vpop.f32.mrb[0].mxu0
    %v6390 = vadd.f32 0.0, %v6389
    %v6391 = vpop.f32.mrb[0].mxu0
    %6392 = vmatprep.mubr.f32.mxu0 0.0
    %6393 = vmatmul.mubr.f32.gmra.mrb[0].mxu0 %v285
    %v6394 = vpop.f32.mrb[0].mxu0
    %v6395 = vadd.f32 0.0, %v6394
    %v6396 = vpop.f32.mrb[0].mxu0
    %6397 = vmatprep.mubr.f32.mxu0 0.0
    %6398 = vmatmul.mubr.f32.gmra.mrb[0].mxu0 %v288
    %v6399 = vpop.f32.mrb[0].mxu0
    %v6400 = vadd.f32 0.0, %v6399
    %v6401 = vpop.f32.mrb[0].mxu0
    %6402 = vmatprep.mubr.f32.mxu0 0.0
    %6403 = vmatmul.mubr.f32.gmra.mrb[0].mxu0 %v291
    %v6404 = vpop.f32.mrb[0].mxu0
    %v6405 = vadd.f32 0.0, %v6404
    %v6406 = vpop.f32.mrb[0].mxu0
    %6407 = vmatprep.mubr.f32.mxu0 0.0
    %6408 = vmatmul.mubr.f32.gmra.mrb[0].mxu0 %v294
    %v6409 = vpop.f32.mrb[0].mxu0
    %v6410 = vadd.f32 0.0, %v6409
    %v6411 = vpop.f32.mrb[0].mxu0
    %6412 = vmatprep.mubr.f32.mxu0 0.0
    %6413 = vmatmul.mubr.f32.gmra.mrb[0].mxu0 %v297
    %v6414 = vpop.f32.mrb[0].mxu0
    %v6415 = vadd.f32 0.0, %v6414
    %v6416 = vpop.f32.mrb[0].mxu0
    %6417 = vmatprep.mubr.f32.mxu0 0.0
    %6418 = vmatmul.mubr.f32.gmra.mrb[0].mxu0 %v300
    %v6419 = vpop.f32.mrb[0].mxu0
    %v6420 = vadd.f32 0.0, %v6419
    %v6421 = vpop.f32.mrb[0].mxu0
    %6422 = vmatprep.mubr.f32.mxu0 0.0
    %6423 = vmatmul.mubr.f32.gmra.mrb[0].mxu0 %v303
    %v6424 = vpop.f32.mrb[0].mxu0
    %v6425 = vadd.f32 0.0, %v6424
    %v6426 = vpop.f32.mrb[0].mxu0
    %6427 = vmatprep.mubr.f32.mxu0 0.0
    %6428 = vmatmul.mubr.f32.gmra.mrb[0].mxu0 %v306
    %v6429 = vpop.f32.mrb[0].mxu0
    %v6430 = vadd.f32 0.0, %v6429
    %v6431 = vpop.f32.mrb[0].mxu0
    %6432 = vmatprep.mubr.f32.mxu0 0.0
    %6433 = vmatmul.mubr.f32.gmra.mrb[0].mxu0 %v309
    %v6434 = vpop.f32.mrb[0].mxu0
    %v6435 = vadd.f32 0.0, %v6434
    %v6436 = vpop.f32.mrb[0].mxu0
    %6437 = vmatprep.mubr.f32.mxu0 0.0
    %6438 = vmatmul.mubr.f32.gmra.mrb[0].mxu0 %v2735
    %v6439 = vpop.f32.mrb[0].mxu0
    %v6440 = vadd.f32 0.0, %v6439
    %v6441 = vpop.f32.mrb[0].mxu0
    %6442 = vmatprep.mubr.f32.mxu0 0.0
    %6443 = vmatmul.mubr.f32.gmra.mrb[0].mxu0 %v2738
    %v6444 = vpop.f32.mrb[0].mxu0
    %v6445 = vadd.f32 0.0, %v6444
    %v6446 = vpop.f32.mrb[0].mxu0
    %6447 = vmatprep.mubr.f32.mxu0 0.0
    %6448 = vmatmul.mubr.f32.gmra.mrb[0].mxu0 %v2741
    %v6449 = vpop.f32.mrb[0].mxu0
    %v6450 = vadd.f32 0.0, %v6449
    %v6451 = vpop.f32.mrb[0].mxu0
    %6452 = vmatprep.mubr.f32.mxu0 0.0
    %6453 = vmatmul.mubr.f32.gmra.mrb[0].mxu0 %v2744
    %v6454 = vpop.f32.mrb[0].mxu0
    %v6455 = vadd.f32 0.0, %v6454
    %v6456 = vpop.f32.mrb[0].mxu0
    %6457 = vmatprep.mubr.f32.mxu0 0.0
    %6458 = vmatmul.mubr.f32.gmra.mrb[0].mxu0 %v2747
    %v6459 = vpop.f32.mrb[0].mxu0
    %v6460 = vadd.f32 0.0, %v6459
    %v6461 = vpop.f32.mrb[0].mxu0
    %6462 = vmatprep.mubr.f32.mxu0 0.0
    %6463 = vmatmul.mubr.f32.gmra.mrb[0].mxu0 %v2750
    %v6464 = vpop.f32.mrb[0].mxu0
    %v6465 = vadd.f32 0.0, %v6464
    %v6466 = vpop.f32.mrb[0].mxu0
    %6467 = vmatprep.mubr.f32.mxu0 0.0
    %6468 = vmatmul.mubr.f32.gmra.mrb[0].mxu0 %v2753
    %v6469 = vpop.f32.mrb[0].mxu0
    %v6470 = vadd.f32 0.0, %v6469
    %v6471 = vpop.f32.mrb[0].mxu0
    %6472 = vmatprep.mubr.f32.mxu0 0.0
    %6473 = vmatmul.mubr.f32.gmra.mrb[0].mxu0 %v3614
    %v6474 = vpop.f32.mrb[0].mxu0
    %v6475 = vadd.f32 0.0, %v6474
    %v6476 = vpop.f32.mrb[0].mxu0
    %6477 = vmatprep.mubr.f32.mxu0 0.0
    %6478 = vmatmul.mubr.f32.gmra.mrb[0].mxu0 %v2735
    %v6479 = vpop.f32.mrb[0].mxu0
    %v6480 = vadd.f32 0.0, %v6479
    %v6481 = vpop.f32.mrb[0].mxu0
    %6482 = vmatprep.mubr.f32.mxu0 0.0
    %6483 = vmatmul.mubr.f32.gmra.mrb[0].mxu0 %v2738
    %v6484 = vpop.f32.mrb[0].mxu0
    %v6485 = vadd.f32 0.0, %v6484
    %v6486 = vpop.f32.mrb[0].mxu0
    %6487 = vmatprep.mubr.f32.mxu0 0.0
    %6488 = vmatmul.mubr.f32.gmra.mrb[0].mxu0 %v2741
    %v6489 = vpop.f32.mrb[0].mxu0
    %v6490 = vadd.f32 0.0, %v6489
    %v6491 = vpop.f32.mrb[0].mxu0
    %6492 = vmatprep.mubr.f32.mxu0 0.0
    %6493 = vmatmul.mubr.f32.gmra.mrb[0].mxu0 %v2744
    %v6494 = vpop.f32.mrb[0].mxu0
    %v6495 = vadd.f32 0.0, %v6494
    %v6496 = vpop.f32.mrb[0].mxu0
    %6497 = vmatprep.mubr.f32.mxu0 0.0
    %6498 = vmatmul.mubr.f32.gmra.mrb[0].mxu0 %v2747
    %v6499 = vpop.f32.mrb[0].mxu0
    %v6500 = vadd.f32 0.0, %v6499
    %v6501 = vpop.f32.mrb[0].mxu0
    %6502 = vmatprep.mubr.f32.mxu0 0.0
    %6503 = vmatmul.mubr.f32.gmra.mrb[0].mxu0 %v2750
    %v6504 = vpop.f32.mrb[0].mxu0
    %v6505 = vadd.f32 0.0, %v6504
    %v6506 = vpop.f32.mrb[0].mxu0
    %6507 = vmatprep.mubr.f32.mxu0 0.0
    %6508 = vmatmul.mubr.f32.gmra.mrb[0].mxu0 %v2753
    %v6509 = vpop.f32.mrb[0].mxu0
    %v6510 = vadd.f32 0.0, %v6509
    %v6511 = vpop.f32.mrb[0].mxu0
    %6512 = vmatprep.mubr.f32.mxu0 0.0
    %6513 = vmatmul.mubr.f32.gmra.mrb[0].mxu0 %v3614
    %v6514 = vpop.f32.mrb[0].mxu0
    %v6515 = vadd.f32 0.0, %v6514
    %v6516 = vpop.f32.mrb[0].mxu0
    %6517 = vmatprep.mubr.f32.mxu0 0.0
    %6518 = vmatmul.mubr.f32.gmra.mrb[0].mxu0 %v336
    %v6519 = vpop.f32.mrb[0].mxu0
    %v6520 = vadd.f32 0.0, %v6519
    %v6521 = vpop.f32.mrb[0].mxu0
    %6522 = vmatprep.mubr.f32.mxu0 0.0
    %6523 = vmatmul.mubr.f32.gmra.mrb[0].mxu0 %v339
    %v6524 = vpop.f32.mrb[0].mxu0
    %v6525 = vadd.f32 0.0, %v6524
    %v6526 = vpop.f32.mrb[0].mxu0
    %6527 = vmatprep.mubr.f32.mxu0 0.0
    %6528 = vmatmul.mubr.f32.gmra.mrb[0].mxu0 %v342
    %v6529 = vpop.f32.mrb[0].mxu0
    %v6530 = vadd.f32 0.0, %v6529
    %v6531 = vpop.f32.mrb[0].mxu0
    %6532 = vmatprep.mubr.f32.mxu0 0.0
    %6533 = vmatmul.mubr.f32.gmra.mrb[0].mxu0 %v345
    %v6534 = vpop.f32.mrb[0].mxu0
    %v6535 = vadd.f32 0.0, %v6534
    %v6536 = vpop.f32.mrb[0].mxu0
    %6537 = vmatprep.mubr.f32.mxu0 0.0
    %6538 = vmatmul.mubr.f32.gmra.mrb[0].mxu0 %v348
    %v6539 = vpop.f32.mrb[0].mxu0
    %v6540 = vadd.f32 0.0, %v6539
    %v6541 = vpop.f32.mrb[0].mxu0
    %6542 = vmatprep.mubr.f32.mxu0 0.0
    %6543 = vmatmul.mubr.f32.gmra.mrb[0].mxu0 %v351
    %v6544 = vpop.f32.mrb[0].mxu0
    %v6545 = vadd.f32 0.0, %v6544
    %v6546 = vpop.f32.mrb[0].mxu0
    %6547 = vmatprep.mubr.f32.mxu0 0.0
    %6548 = vmatmul.mubr.f32.gmra.mrb[0].mxu0 %v354
    %v6549 = vpop.f32.mrb[0].mxu0
    %v6550 = vadd.f32 0.0, %v6549
    %v6551 = vpop.f32.mrb[0].mxu0
    %6552 = vmatprep.mubr.f32.mxu0 0.0
    %6553 = vmatmul.mubr.f32.gmra.mrb[0].mxu0 %v357
    %v6554 = vpop.f32.mrb[0].mxu0
    %v6555 = vadd.f32 0.0, %v6554
    %v6556 = vpop.f32.mrb[0].mxu0
    %6557 = vmatprep.mubr.f32.mxu0 0.0
    %6558 = vmatmul.mubr.f32.gmra.mrb[0].mxu0 %v360
    %v6559 = vpop.f32.mrb[0].mxu0
    %v6560 = vadd.f32 0.0, %v6559
    %v6561 = vpop.f32.mrb[0].mxu0
    %6562 = vmatprep.mubr.f32.mxu0 0.0
    %6563 = vmatmul.mubr.f32.gmra.mrb[0].mxu0 %v363
    %v6564 = vpop.f32.mrb[0].mxu0
    %v6565 = vadd.f32 0.0, %v6564
    %v6566 = vpop.f32.mrb[0].mxu0
    %6567 = vmatprep.mubr.f32.mxu0 0.0
    %6568 = vmatmul.mubr.f32.gmra.mrb[0].mxu0 %v366
    %v6569 = vpop.f32.mrb[0].mxu0
    %v6570 = vadd.f32 0.0, %v6569
    %v6571 = vpop.f32.mrb[0].mxu0
    %6572 = vmatprep.mubr.f32.mxu0 0.0
    %6573 = vmatmul.mubr.f32.gmra.mrb[0].mxu0 %v369
    %v6574 = vpop.f32.mrb[0].mxu0
    %v6575 = vadd.f32 0.0, %v6574
    %v6576 = vpop.f32.mrb[0].mxu0
    %6577 = vmatprep.mubr.f32.mxu0 0.0
    %6578 = vmatmul.mubr.f32.gmra.mrb[0].mxu0 %v372
    %v6579 = vpop.f32.mrb[0].mxu0
    %v6580 = vadd.f32 0.0, %v6579
    %v6581 = vpop.f32.mrb[0].mxu0
    %6582 = vmatprep.mubr.f32.mxu0 0.0
    %6583 = vmatmul.mubr.f32.gmra.mrb[0].mxu0 %v375
    %v6584 = vpop.f32.mrb[0].mxu0
    %v6585 = vadd.f32 0.0, %v6584
    %v6586 = vpop.f32.mrb[0].mxu0
    %6587 = vmatprep.mubr.f32.mxu0 0.0
    %6588 = vmatmul.mubr.f32.gmra.mrb[0].mxu0 %v378
    %v6589 = vpop.f32.mrb[0].mxu0
    %v6590 = vadd.f32 0.0, %v6589
    %v6591 = vpop.f32.mrb[0].mxu0
    %6592 = vmatprep.mubr.f32.mxu0 0.0
    %6593 = vmatmul.mubr.f32.gmra.mrb[0].mxu0 %v381
    %v6594 = vpop.f32.mrb[0].mxu0
    %v6595 = vadd.f32 0.0, %v6594
    %v6596 = vpop.f32.mrb[0].mxu0
    %6597 = vmatprep.mubr.f32.mxu0 0.0
    %6598 = vmatmul.mubr.f32.gmra.mrb[0].mxu0 %v384
    %v6599 = vpop.f32.mrb[0].mxu0
    %v6600 = vadd.f32 0.0, %v6599
    %v6601 = vpop.f32.mrb[0].mxu0
    %6602 = vmatprep.mubr.f32.mxu0 0.0
    %6603 = vmatmul.mubr.f32.gmra.mrb[0].mxu0 %v387
    %v6604 = vpop.f32.mrb[0].mxu0
    %v6605 = vadd.f32 0.0, %v6604
    %v6606 = vpop.f32.mrb[0].mxu0
    %6607 = vmatprep.mubr.f32.mxu0 0.0
    %6608 = vmatmul.mubr.f32.gmra.mrb[0].mxu0 %v390
    %v6609 = vpop.f32.mrb[0].mxu0
    %v6610 = vadd.f32 0.0, %v6609
    %v6611 = vpop.f32.mrb[0].mxu0
    %6612 = vmatprep.mubr.f32.mxu0 0.0
    %6613 = vmatmul.mubr.f32.gmra.mrb[0].mxu0 %v393
    %v6614 = vpop.f32.mrb[0].mxu0
    %v6615 = vadd.f32 0.0, %v6614
    %v6616 = vpop.f32.mrb[0].mxu0
    %6617 = vmatprep.mubr.f32.mxu0 0.0
    %6618 = vmatmul.mubr.f32.gmra.mrb[0].mxu0 %v396
    %v6619 = vpop.f32.mrb[0].mxu0
    %v6620 = vadd.f32 0.0, %v6619
    %v6621 = vpop.f32.mrb[0].mxu0
    %6622 = vmatprep.mubr.f32.mxu0 0.0
    %6623 = vmatmul.mubr.f32.gmra.mrb[0].mxu0 %v399
    %v6624 = vpop.f32.mrb[0].mxu0
    %v6625 = vadd.f32 0.0, %v6624
    %v6626 = vpop.f32.mrb[0].mxu0
    %6627 = vmatprep.mubr.f32.mxu0 0.0
    %6628 = vmatmul.mubr.f32.gmra.mrb[0].mxu0 %v402
    %v6629 = vpop.f32.mrb[0].mxu0
    %v6630 = vadd.f32 0.0, %v6629
    %v6631 = vpop.f32.mrb[0].mxu0
    %6632 = vmatprep.mubr.f32.mxu0 0.0
    %6633 = vmatmul.mubr.f32.gmra.mrb[0].mxu0 %v405
    %v6634 = vpop.f32.mrb[0].mxu0
    %v6635 = vadd.f32 0.0, %v6634
    %v6636 = vpop.f32.mrb[0].mxu0
    %6637 = vmatprep.mubr.f32.mxu0 0.0
    %6638 = vmatmul.mubr.f32.gmra.mrb[0].mxu0 %v408
    %v6639 = vpop.f32.mrb[0].mxu0
    %v6640 = vadd.f32 0.0, %v6639
    %v6641 = vpop.f32.mrb[0].mxu0
    %6642 = vmatprep.mubr.f32.mxu0 0.0
    %6643 = vmatmul.mubr.f32.gmra.mrb[0].mxu0 %v411
    %v6644 = vpop.f32.mrb[0].mxu0
    %v6645 = vadd.f32 0.0, %v6644
    %v6646 = vpop.f32.mrb[0].mxu0
    %6647 = vmatprep.mubr.f32.mxu0 0.0
    %6648 = vmatmul.mubr.f32.gmra.mrb[0].mxu0 %v414
    %v6649 = vpop.f32.mrb[0].mxu0
    %v6650 = vadd.f32 0.0, %v6649
    %v6651 = vpop.f32.mrb[0].mxu0
    %6652 = vmatprep.mubr.f32.mxu0 0.0
    %6653 = vmatmul.mubr.f32.gmra.mrb[0].mxu0 %v417
    %v6654 = vpop.f32.mrb[0].mxu0
    %v6655 = vadd.f32 0.0, %v6654
    %v6656 = vpop.f32.mrb[0].mxu0
    %6657 = vmatprep.mubr.f32.mxu0 0.0
    %6658 = vmatmul.mubr.f32.gmra.mrb[0].mxu0 %v420
    %v6659 = vpop.f32.mrb[0].mxu0
    %v6660 = vadd.f32 0.0, %v6659
    %v6661 = vpop.f32.mrb[0].mxu0
    %6662 = vmatprep.mubr.f32.mxu0 0.0
    %6663 = vmatmul.mubr.f32.gmra.mrb[0].mxu0 %v423
    %v6664 = vpop.f32.mrb[0].mxu0
    %v6665 = vadd.f32 0.0, %v6664
    %v6666 = vpop.f32.mrb[0].mxu0
    %6667 = vmatprep.mubr.f32.mxu0 0.0
    %6668 = vmatmul.mubr.f32.gmra.mrb[0].mxu0 %v426
    %v6669 = vpop.f32.mrb[0].mxu0
    %v6670 = vadd.f32 0.0, %v6669
    %v6671 = vpop.f32.mrb[0].mxu0
    %6672 = vmatprep.mubr.f32.mxu0 0.0
    %6673 = vmatmul.mubr.f32.gmra.mrb[0].mxu0 %v429
    %v6674 = vpop.f32.mrb[0].mxu0
    %v6675 = vadd.f32 0.0, %v6674
    %v6676 = vpop.f32.mrb[0].mxu0
    %6677 = vmatprep.mubr.f32.mxu0 0.0
    %6678 = vmatmul.mubr.f32.gmra.mrb[0].mxu0 %v432
    %v6679 = vpop.f32.mrb[0].mxu0
    %v6680 = vadd.f32 0.0, %v6679
    %v6681 = vpop.f32.mrb[0].mxu0
    %6682 = vmatprep.mubr.f32.mxu0 0.0
    %6683 = vmatmul.mubr.f32.gmra.mrb[0].mxu0 %v435
    %v6684 = vpop.f32.mrb[0].mxu0
    %v6685 = vadd.f32 0.0, %v6684
    %v6686 = vpop.f32.mrb[0].mxu0
    %6687 = vmatprep.mubr.f32.mxu0 0.0
    %6688 = vmatmul.mubr.f32.gmra.mrb[0].mxu0 %v438
    %v6689 = vpop.f32.mrb[0].mxu0
    %v6690 = vadd.f32 0.0, %v6689
    %v6691 = vpop.f32.mrb[0].mxu0
    %6692 = vmatprep.mubr.f32.mxu0 0.0
    %6693 = vmatmul.mubr.f32.gmra.mrb[0].mxu0 %v441
    %v6694 = vpop.f32.mrb[0].mxu0
    %v6695 = vadd.f32 0.0, %v6694
    %v6696 = vpop.f32.mrb[0].mxu0
    %6697 = vmatprep.mubr.f32.mxu0 0.0
    %6698 = vmatmul.mubr.f32.gmra.mrb[0].mxu0 %v444
    %v6699 = vpop.f32.mrb[0].mxu0
    %v6700 = vadd.f32 0.0, %v6699
    %v6701 = vpop.f32.mrb[0].mxu0
    %6702 = vmatprep.mubr.f32.mxu0 0.0
    %6703 = vmatmul.mubr.f32.gmra.mrb[0].mxu0 %v447
    %v6704 = vpop.f32.mrb[0].mxu0
    %v6705 = vadd.f32 0.0, %v6704
    %v6706 = vpop.f32.mrb[0].mxu0
    %6707 = vmatprep.mubr.f32.mxu0 0.0
    %6708 = vmatmul.mubr.f32.gmra.mrb[0].mxu0 %v450
    %v6709 = vpop.f32.mrb[0].mxu0
    %v6710 = vadd.f32 0.0, %v6709
    %v6711 = vpop.f32.mrb[0].mxu0
    %6712 = vmatprep.mubr.f32.mxu0 0.0
    %6713 = vmatmul.mubr.f32.gmra.mrb[0].mxu0 %v453
    %v6714 = vpop.f32.mrb[0].mxu0
    %v6715 = vadd.f32 0.0, %v6714
    %v6716 = vpop.f32.mrb[0].mxu0
    %6717 = vmatprep.mubr.f32.mxu0 0.0
    %6718 = vmatmul.mubr.f32.gmra.mrb[0].mxu0 %v456
    %v6719 = vpop.f32.mrb[0].mxu0
    %v6720 = vadd.f32 0.0, %v6719
    %v6721 = vpop.f32.mrb[0].mxu0
    %6722 = vmatprep.mubr.f32.mxu0 0.0
    %6723 = vmatmul.mubr.f32.gmra.mrb[0].mxu0 %v459
    %v6724 = vpop.f32.mrb[0].mxu0
    %v6725 = vadd.f32 0.0, %v6724
    %v6726 = vpop.f32.mrb[0].mxu0
    %6727 = vmatprep.mubr.f32.mxu0 0.0
    %6728 = vmatmul.mubr.f32.gmra.mrb[0].mxu0 %v462
    %v6729 = vpop.f32.mrb[0].mxu0
    %v6730 = vadd.f32 0.0, %v6729
    %v6731 = vpop.f32.mrb[0].mxu0
    %6732 = vmatprep.mubr.f32.mxu0 0.0
    %6733 = vmatmul.mubr.f32.gmra.mrb[0].mxu0 %v465
    %v6734 = vpop.f32.mrb[0].mxu0
    %v6735 = vadd.f32 0.0, %v6734
    %v6736 = vpop.f32.mrb[0].mxu0
    %6737 = vmatprep.mubr.f32.mxu0 0.0
    %6738 = vmatmul.mubr.f32.gmra.mrb[0].mxu0 %v468
    %v6739 = vpop.f32.mrb[0].mxu0
    %v6740 = vadd.f32 0.0, %v6739
    %v6741 = vpop.f32.mrb[0].mxu0
    %6742 = vmatprep.mubr.f32.mxu0 0.0
    %6743 = vmatmul.mubr.f32.gmra.mrb[0].mxu0 %v471
    %v6744 = vpop.f32.mrb[0].mxu0
    %v6745 = vadd.f32 0.0, %v6744
    %v6746 = vpop.f32.mrb[0].mxu0
    %6747 = vmatprep.mubr.f32.mxu0 0.0
    %6748 = vmatmul.mubr.f32.gmra.mrb[0].mxu0 %v474
    %v6749 = vpop.f32.mrb[0].mxu0
    %v6750 = vadd.f32 0.0, %v6749
    %v6751 = vpop.f32.mrb[0].mxu0
    %6752 = vmatprep.mubr.f32.mxu0 0.0
    %6753 = vmatmul.mubr.f32.gmra.mrb[0].mxu0 %v477
    %v6754 = vpop.f32.mrb[0].mxu0
    %v6755 = vadd.f32 0.0, %v6754
    %v6756 = vpop.f32.mrb[0].mxu0
    %6757 = vmatprep.mubr.f32.mxu0 0.0
    %6758 = vmatmul.mubr.f32.gmra.mrb[0].mxu0 %v2756
    %v6759 = vpop.f32.mrb[0].mxu0
    %v6760 = vadd.f32 0.0, %v6759
    %v6761 = vpop.f32.mrb[0].mxu0
    %6762 = vmatprep.mubr.f32.mxu0 0.0
    %6763 = vmatmul.mubr.f32.gmra.mrb[0].mxu0 %v2759
    %v6764 = vpop.f32.mrb[0].mxu0
    %v6765 = vadd.f32 0.0, %v6764
    %v6766 = vpop.f32.mrb[0].mxu0
    %6767 = vmatprep.mubr.f32.mxu0 0.0
    %6768 = vmatmul.mubr.f32.gmra.mrb[0].mxu0 %v2762
    %v6769 = vpop.f32.mrb[0].mxu0
    %v6770 = vadd.f32 0.0, %v6769
    %v6771 = vpop.f32.mrb[0].mxu0
    %6772 = vmatprep.mubr.f32.mxu0 0.0
    %6773 = vmatmul.mubr.f32.gmra.mrb[0].mxu0 %v2765
    %v6774 = vpop.f32.mrb[0].mxu0
    %v6775 = vadd.f32 0.0, %v6774
    %v6776 = vpop.f32.mrb[0].mxu0
    %6777 = vmatprep.mubr.f32.mxu0 0.0
    %6778 = vmatmul.mubr.f32.gmra.mrb[0].mxu0 %v2768
    %v6779 = vpop.f32.mrb[0].mxu0
    %v6780 = vadd.f32 0.0, %v6779
    %v6781 = vpop.f32.mrb[0].mxu0
    %6782 = vmatprep.mubr.f32.mxu0 0.0
    %6783 = vmatmul.mubr.f32.gmra.mrb[0].mxu0 %v2771
    %v6784 = vpop.f32.mrb[0].mxu0
    %v6785 = vadd.f32 0.0, %v6784
    %v6786 = vpop.f32.mrb[0].mxu0
    %6787 = vmatprep.mubr.f32.mxu0 0.0
    %6788 = vmatmul.mubr.f32.gmra.mrb[0].mxu0 %v2774
    %v6789 = vpop.f32.mrb[0].mxu0
    %v6790 = vadd.f32 0.0, %v6789
    %v6791 = vpop.f32.mrb[0].mxu0
    %6792 = vmatprep.mubr.f32.mxu0 0.0
    %6793 = vmatmul.mubr.f32.gmra.mrb[0].mxu0 %v3617
    %v6794 = vpop.f32.mrb[0].mxu0
    %v6795 = vadd.f32 0.0, %v6794
    %v6796 = vpop.f32.mrb[0].mxu0
    %6797 = vmatprep.mubr.f32.mxu0 0.0
    %6798 = vmatmul.mubr.f32.gmra.mrb[0].mxu0 %v2756
    %v6799 = vpop.f32.mrb[0].mxu0
    %v6800 = vadd.f32 0.0, %v6799
    %v6801 = vpop.f32.mrb[0].mxu0
    %6802 = vmatprep.mubr.f32.mxu0 0.0
    %6803 = vmatmul.mubr.f32.gmra.mrb[0].mxu0 %v2759
    %v6804 = vpop.f32.mrb[0].mxu0
    %v6805 = vadd.f32 0.0, %v6804
    %v6806 = vpop.f32.mrb[0].mxu0
    %6807 = vmatprep.mubr.f32.mxu0 0.0
    %6808 = vmatmul.mubr.f32.gmra.mrb[0].mxu0 %v2762
    %v6809 = vpop.f32.mrb[0].mxu0
    %v6810 = vadd.f32 0.0, %v6809
    %v6811 = vpop.f32.mrb[0].mxu0
    %6812 = vmatprep.mubr.f32.mxu0 0.0
    %6813 = vmatmul.mubr.f32.gmra.mrb[0].mxu0 %v2765
    %v6814 = vpop.f32.mrb[0].mxu0
    %v6815 = vadd.f32 0.0, %v6814
    %v6816 = vpop.f32.mrb[0].mxu0
    %6817 = vmatprep.mubr.f32.mxu0 0.0
    %6818 = vmatmul.mubr.f32.gmra.mrb[0].mxu0 %v2768
    %v6819 = vpop.f32.mrb[0].mxu0
    %v6820 = vadd.f32 0.0, %v6819
    %v6821 = vpop.f32.mrb[0].mxu0
    %6822 = vmatprep.mubr.f32.mxu0 0.0
    %6823 = vmatmul.mubr.f32.gmra.mrb[0].mxu0 %v2771
    %v6824 = vpop.f32.mrb[0].mxu0
    %v6825 = vadd.f32 0.0, %v6824
    %v6826 = vpop.f32.mrb[0].mxu0
    %6827 = vmatprep.mubr.f32.mxu0 0.0
    %6828 = vmatmul.mubr.f32.gmra.mrb[0].mxu0 %v2774
    %v6829 = vpop.f32.mrb[0].mxu0
    %v6830 = vadd.f32 0.0, %v6829
    %v6831 = vpop.f32.mrb[0].mxu0
    %6832 = vmatprep.mubr.f32.mxu0 0.0
    %6833 = vmatmul.mubr.f32.gmra.mrb[0].mxu0 %v3617
    %v6834 = vpop.f32.mrb[0].mxu0
    %v6835 = vadd.f32 0.0, %v6834
    %v6836 = vpop.f32.mrb[0].mxu0
    %6837 = vdwg.mxu0
    %v6838 = vadd.f32 %v6001, %v6200
    %v6839 = vadd.f32 %v6002, %v6205
    %v6840 = vadd.f32 %v6003, %v6210
    %v6841 = vadd.f32 %v6004, %v6215
    %v6842 = vadd.f32 %v6005, %v6220
    %v6843 = vadd.f32 %v6006, %v6225
    %v6844 = vadd.f32 %v6007, %v6230
    %v6845 = vadd.f32 %v6008, %v6235
    %v6846 = vadd.f32 %v6009, %v6240
    %v6847 = vadd.f32 %v6010, %v6245
    %v6848 = vadd.f32 %v6011, %v6250
    %v6849 = vadd.f32 %v6012, %v6255
    %v6850 = vadd.f32 %v6013, %v6260
    %v6851 = vadd.f32 %v6014, %v6265
    %v6852 = vadd.f32 %v6015, %v6270
    %v6853 = vadd.f32 %v6016, %v6275
    %v6854 = vadd.f32 %v6017, %v6280
    %v6855 = vadd.f32 %v6018, %v6285
    %v6856 = vadd.f32 %v6019, %v6290
    %v6857 = vadd.f32 %v6020, %v6295
    %v6858 = vadd.f32 %v6021, %v6300
    %v6859 = vadd.f32 %v6022, %v6305
    %v6860 = vadd.f32 %v6023, %v6310
    %v6861 = vadd.f32 %v6024, %v6315
    %v6862 = vadd.f32 %v6025, %v6320
    %v6863 = vadd.f32 %v6026, %v6325
    %v6864 = vadd.f32 %v6027, %v6330
    %v6865 = vadd.f32 %v6028, %v6335
    %v6866 = vadd.f32 %v6029, %v6340
    %v6867 = vadd.f32 %v6030, %v6345
    %v6868 = vadd.f32 %v6031, %v6350
    %v6869 = vadd.f32 %v6032, %v6355
    %v6870 = vadd.f32 %v6033, %v6360
    %v6871 = vadd.f32 %v6034, %v6365
    %v6872 = vadd.f32 %v6035, %v6370
    %v6873 = vadd.f32 %v6036, %v6375
    %v6874 = vadd.f32 %v6037, %v6380
    %v6875 = vadd.f32 %v6038, %v6385
    %v6876 = vadd.f32 %v6039, %v6390
    %v6877 = vadd.f32 %v6040, %v6395
    %v6878 = vadd.f32 %v6041, %v6400
    %v6879 = vadd.f32 %v6042, %v6405
    %v6880 = vadd.f32 %v6043, %v6410
    %v6881 = vadd.f32 %v6044, %v6415
    %v6882 = vadd.f32 %v6045, %v6420
    %v6883 = vadd.f32 %v6046, %v6425
    %v6884 = vadd.f32 %v6047, %v6430
    %v6885 = vadd.f32 %v6048, %v6435
    %v6886 = vadd.f32 %v6049, %v6440
    %v6887 = vadd.f32 %v6050, %v6445
    %v6888 = vadd.f32 %v6051, %v6450
    %v6889 = vadd.f32 %v6052, %v6455
    %v6890 = vadd.f32 %v6053, %v6460
    %v6891 = vadd.f32 %v6054, %v6465
    %v6892 = vadd.f32 %v6055, %v6470
    %v6893 = vadd.f32 %v6056, %v6475
    %v6894 = vadd.f32 %v6057, %v6480
    %v6895 = vadd.f32 %v6058, %v6485
    %v6896 = vadd.f32 %v6059, %v6490
    %v6897 = vadd.f32 %v6060, %v6495
    %v6898 = vadd.f32 %v6061, %v6500
    %v6899 = vadd.f32 %v6062, %v6505
    %v6900 = vadd.f32 %v6063, %v6510
    %v6901 = vadd.f32 %v6064, %v6515
    %v6902 = vadd.f32 %v6065, %v6520
    %v6903 = vadd.f32 %v6066, %v6525
    %v6904 = vadd.f32 %v6067, %v6530
    %v6905 = vadd.f32 %v6068, %v6535
    %v6906 = vadd.f32 %v6069, %v6540
    %v6907 = vadd.f32 %v6070, %v6545
    %v6908 = vadd.f32 %v6071, %v6550
    %v6909 = vadd.f32 %v6072, %v6555
    %v6910 = vadd.f32 %v6073, %v6560
    %v6911 = vadd.f32 %v6074, %v6565
    %v6912 = vadd.f32 %v6075, %v6570
    %v6913 = vadd.f32 %v6076, %v6575
    %v6914 = vadd.f32 %v6077, %v6580
    %v6915 = vadd.f32 %v6078, %v6585
    %v6916 = vadd.f32 %v6079, %v6590
    %v6917 = vadd.f32 %v6080, %v6595
    %v6918 = vadd.f32 %v6081, %v6600
    %v6919 = vadd.f32 %v6082, %v6605
    %v6920 = vadd.f32 %v6083, %v6610
    %v6921 = vadd.f32 %v6084, %v6615
    %v6922 = vadd.f32 %v6085, %v6620
    %v6923 = vadd.f32 %v6086, %v6625
    %v6924 = vadd.f32 %v6087, %v6630
    %v6925 = vadd.f32 %v6088, %v6635
    %v6926 = vadd.f32 %v6089, %v6640
    %v6927 = vadd.f32 %v6090, %v6645
    %v6928 = vadd.f32 %v6091, %v6650
    %v6929 = vadd.f32 %v6092, %v6655
    %v6930 = vadd.f32 %v6093, %v6660
    %v6931 = vadd.f32 %v6094, %v6665
    %v6932 = vadd.f32 %v6095, %v6670
    %v6933 = vadd.f32 %v6096, %v6675
    %v6934 = vadd.f32 %v6097, %v6680
    %v6935 = vadd.f32 %v6098, %v6685
    %v6936 = vadd.f32 %v6099, %v6690
    %v6937 = vadd.f32 %v6100, %v6695
    %v6938 = vadd.f32 %v6101, %v6700
    %v6939 = vadd.f32 %v6102, %v6705
    %v6940 = vadd.f32 %v6103, %v6710
    %v6941 = vadd.f32 %v6104, %v6715
    %v6942 = vadd.f32 %v6105, %v6720
    %v6943 = vadd.f32 %v6106, %v6725
    %v6944 = vadd.f32 %v6107, %v6730
    %v6945 = vadd.f32 %v6108, %v6735
    %v6946 = vadd.f32 %v6109, %v6740
    %v6947 = vadd.f32 %v6110, %v6745
    %v6948 = vadd.f32 %v6111, %v6750
    %v6949 = vadd.f32 %v6112, %v6755
    %v6950 = vadd.f32 %v6113, %v6760
    %v6951 = vadd.f32 %v6114, %v6765
    %v6952 = vadd.f32 %v6115, %v6770
    %v6953 = vadd.f32 %v6116, %v6775
    %v6954 = vadd.f32 %v6117, %v6780
    %v6955 = vadd.f32 %v6118, %v6785
    %v6956 = vadd.f32 %v6119, %v6790
    %v6957 = vadd.f32 %v6120, %v6795
    %v6958 = vadd.f32 %v6121, %v6800
    %v6959 = vadd.f32 %v6122, %v6805
    %v6960 = vadd.f32 %v6123, %v6810
    %v6961 = vadd.f32 %v6124, %v6815
    %v6962 = vadd.f32 %v6125, %v6820
    %v6963 = vadd.f32 %v6126, %v6825
    %v6964 = vadd.f32 %v6127, %v6830
    %v6965 = vadd.f32 %v6128, %v6835
    %v6966 = vld [vmem:[%s1 + $0x20] sm:$0xf]
    %v6968 = vsel %vm479, %v6966, 0
    %6970 = vmatprep.subr.mxu0 0.0
    %6971 = vmatpush1.msra.mxu0 %v6968
    %6972 = vmatprep.subr.mxu0 0.0
    %6973 = vmatpush1.msra.mxu0 0.0
    %6974 = vmatprep.subr.mxu0 0.0
    %6975 = vmatpush1.msra.mxu0 0.0
    %6976 = vmatprep.subr.mxu0 0.0
    %6977 = vmatpush1.msra.mxu0 0.0
    %6978 = vmatprep.subr.mxu0 0.0
    %6979 = vmatpush1.msra.mxu0 0.0
    %6980 = vmatprep.subr.mxu0 0.0
    %6981 = vmatpush1.msra.mxu0 0.0
    %6982 = vmatprep.subr.mxu0 0.0
    %6983 = vmatpush1.msra.mxu0 0.0
    %6984 = vmatprep.subr.mxu0 0.0
    %6985 = vmatpush1.msra.mxu0 0.0
    %6986 = vmatprep.subr.mxu0 0.0
    %6987 = vmatpush1.msra.mxu0 0.0
    %6988 = vmatprep.subr.mxu0 0.0
    %6989 = vmatpush1.msra.mxu0 0.0
    %6990 = vmatprep.subr.mxu0 0.0
    %6991 = vmatpush1.msra.mxu0 0.0
    %6992 = vmatprep.subr.mxu0 0.0
    %6993 = vmatpush1.msra.mxu0 0.0
    %6994 = vmatprep.subr.mxu0 0.0
    %6995 = vmatpush1.msra.mxu0 0.0
    %6996 = vmatprep.subr.mxu0 0.0
    %6997 = vmatpush1.msra.mxu0 0.0
    %6998 = vmatprep.subr.mxu0 0.0
    %6999 = vmatpush1.msra.mxu0 0.0
    %7000 = vmatprep.subr.mxu0 0.0
    %7001 = vmatpush1.msra.mxu0 0.0
    %7002 = vmatprep.subr.mxu0 0.0
    %7003 = vmatpush1.msra.mxu0 0.0
    %7004 = vmatprep.subr.mxu0 0.0
    %7005 = vmatpush1.msra.mxu0 0.0
    %7006 = vmatprep.subr.mxu0 0.0
    %7007 = vmatpush1.msra.mxu0 0.0
    %7008 = vmatprep.subr.mxu0 0.0
    %7009 = vmatpush1.msra.mxu0 0.0
    %7010 = vmatprep.subr.mxu0 0.0
    %7011 = vmatpush1.msra.mxu0 0.0
    %7012 = vmatprep.subr.mxu0 0.0
    %7013 = vmatpush1.msra.mxu0 0.0
    %7014 = vmatprep.subr.mxu0 0.0
    %7015 = vmatpush1.msra.mxu0 0.0
    %7016 = vmatprep.subr.mxu0 0.0
    %7017 = vmatpush1.msra.mxu0 0.0
    %7018 = vmatprep.subr.mxu0 0.0
    %7019 = vmatpush1.msra.mxu0 0.0
    %7020 = vmatprep.subr.mxu0 0.0
    %7021 = vmatpush1.msra.mxu0 0.0
    %7022 = vmatprep.subr.mxu0 0.0
    %7023 = vmatpush1.msra.mxu0 0.0
    %7024 = vmatprep.subr.mxu0 0.0
    %7025 = vmatpush1.msra.mxu0 0.0
    %7026 = vmatprep.subr.mxu0 0.0
    %7027 = vmatpush1.msra.mxu0 0.0
    %7028 = vmatprep.subr.mxu0 0.0
    %7029 = vmatpush1.msra.mxu0 0.0
    %7030 = vmatprep.subr.mxu0 0.0
    %7031 = vmatpush1.msra.mxu0 0.0
    %7032 = vmatprep.subr.mxu0 0.0
    %7033 = vmatpush1.msra.mxu0 0.0
    %7034 = vmatprep.mubr.f32.mxu0 0.0
    %7035 = vmatmul.mubr.f32.gmra.mrb[0].mxu0 %v171
    %v7036 = vpop.f32.mrb[0].mxu0
    %v7037 = vadd.f32 0.0, %v7036
    %v7038 = vpop.f32.mrb[0].mxu0
    %7039 = vmatprep.mubr.f32.mxu0 0.0
    %7040 = vmatmul.mubr.f32.gmra.mrb[0].mxu0 %v174
    %v7041 = vpop.f32.mrb[0].mxu0
    %v7042 = vadd.f32 0.0, %v7041
    %v7043 = vpop.f32.mrb[0].mxu0
    %7044 = vmatprep.mubr.f32.mxu0 0.0
    %7045 = vmatmul.mubr.f32.gmra.mrb[0].mxu0 %v177
    %v7046 = vpop.f32.mrb[0].mxu0
    %v7047 = vadd.f32 0.0, %v7046
    %v7048 = vpop.f32.mrb[0].mxu0
    %7049 = vmatprep.mubr.f32.mxu0 0.0
    %7050 = vmatmul.mubr.f32.gmra.mrb[0].mxu0 %v180
    %v7051 = vpop.f32.mrb[0].mxu0
    %v7052 = vadd.f32 0.0, %v7051
    %v7053 = vpop.f32.mrb[0].mxu0
    %7054 = vmatprep.mubr.f32.mxu0 0.0
    %7055 = vmatmul.mubr.f32.gmra.mrb[0].mxu0 %v183
    %v7056 = vpop.f32.mrb[0].mxu0
    %v7057 = vadd.f32 0.0, %v7056
    %v7058 = vpop.f32.mrb[0].mxu0
    %7059 = vmatprep.mubr.f32.mxu0 0.0
    %7060 = vmatmul.mubr.f32.gmra.mrb[0].mxu0 %v186
    %v7061 = vpop.f32.mrb[0].mxu0
    %v7062 = vadd.f32 0.0, %v7061
    %v7063 = vpop.f32.mrb[0].mxu0
    %7064 = vmatprep.mubr.f32.mxu0 0.0
    %7065 = vmatmul.mubr.f32.gmra.mrb[0].mxu0 %v189
    %v7066 = vpop.f32.mrb[0].mxu0
    %v7067 = vadd.f32 0.0, %v7066
    %v7068 = vpop.f32.mrb[0].mxu0
    %7069 = vmatprep.mubr.f32.mxu0 0.0
    %7070 = vmatmul.mubr.f32.gmra.mrb[0].mxu0 %v189
    %v7071 = vpop.f32.mrb[0].mxu0
    %v7072 = vadd.f32 0.0, %v7071
    %v7073 = vpop.f32.mrb[0].mxu0
    %7074 = vmatprep.mubr.f32.mxu0 0.0
    %7075 = vmatmul.mubr.f32.gmra.mrb[0].mxu0 %v195
    %v7076 = vpop.f32.mrb[0].mxu0
    %v7077 = vadd.f32 0.0, %v7076
    %v7078 = vpop.f32.mrb[0].mxu0
    %7079 = vmatprep.mubr.f32.mxu0 0.0
    %7080 = vmatmul.mubr.f32.gmra.mrb[0].mxu0 %v198
    %v7081 = vpop.f32.mrb[0].mxu0
    %v7082 = vadd.f32 0.0, %v7081
    %v7083 = vpop.f32.mrb[0].mxu0
    %7084 = vmatprep.mubr.f32.mxu0 0.0
    %7085 = vmatmul.mubr.f32.gmra.mrb[0].mxu0 %v201
    %v7086 = vpop.f32.mrb[0].mxu0
    %v7087 = vadd.f32 0.0, %v7086
    %v7088 = vpop.f32.mrb[0].mxu0
    %7089 = vmatprep.mubr.f32.mxu0 0.0
    %7090 = vmatmul.mubr.f32.gmra.mrb[0].mxu0 %v204
    %v7091 = vpop.f32.mrb[0].mxu0
    %v7092 = vadd.f32 0.0, %v7091
    %v7093 = vpop.f32.mrb[0].mxu0
    %7094 = vmatprep.mubr.f32.mxu0 0.0
    %7095 = vmatmul.mubr.f32.gmra.mrb[0].mxu0 %v207
    %v7096 = vpop.f32.mrb[0].mxu0
    %v7097 = vadd.f32 0.0, %v7096
    %v7098 = vpop.f32.mrb[0].mxu0
    %7099 = vmatprep.mubr.f32.mxu0 0.0
    %7100 = vmatmul.mubr.f32.gmra.mrb[0].mxu0 %v210
    %v7101 = vpop.f32.mrb[0].mxu0
    %v7102 = vadd.f32 0.0, %v7101
    %v7103 = vpop.f32.mrb[0].mxu0
    %7104 = vmatprep.mubr.f32.mxu0 0.0
    %7105 = vmatmul.mubr.f32.gmra.mrb[0].mxu0 %v213
    %v7106 = vpop.f32.mrb[0].mxu0
    %v7107 = vadd.f32 0.0, %v7106
    %v7108 = vpop.f32.mrb[0].mxu0
    %7109 = vmatprep.mubr.f32.mxu0 0.0
    %7110 = vmatmul.mubr.f32.gmra.mrb[0].mxu0 %v213
    %v7111 = vpop.f32.mrb[0].mxu0
    %v7112 = vadd.f32 0.0, %v7111
    %v7113 = vpop.f32.mrb[0].mxu0
    %7114 = vmatprep.mubr.f32.mxu0 0.0
    %7115 = vmatmul.mubr.f32.gmra.mrb[0].mxu0 %v219
    %v7116 = vpop.f32.mrb[0].mxu0
    %v7117 = vadd.f32 0.0, %v7116
    %v7118 = vpop.f32.mrb[0].mxu0
    %7119 = vmatprep.mubr.f32.mxu0 0.0
    %7120 = vmatmul.mubr.f32.gmra.mrb[0].mxu0 %v222
    %v7121 = vpop.f32.mrb[0].mxu0
    %v7122 = vadd.f32 0.0, %v7121
    %v7123 = vpop.f32.mrb[0].mxu0
    %7124 = vmatprep.mubr.f32.mxu0 0.0
    %7125 = vmatmul.mubr.f32.gmra.mrb[0].mxu0 %v225
    %v7126 = vpop.f32.mrb[0].mxu0
    %v7127 = vadd.f32 0.0, %v7126
    %v7128 = vpop.f32.mrb[0].mxu0
    %7129 = vmatprep.mubr.f32.mxu0 0.0
    %7130 = vmatmul.mubr.f32.gmra.mrb[0].mxu0 %v228
    %v7131 = vpop.f32.mrb[0].mxu0
    %v7132 = vadd.f32 0.0, %v7131
    %v7133 = vpop.f32.mrb[0].mxu0
    %7134 = vmatprep.mubr.f32.mxu0 0.0
    %7135 = vmatmul.mubr.f32.gmra.mrb[0].mxu0 %v231
    %v7136 = vpop.f32.mrb[0].mxu0
    %v7137 = vadd.f32 0.0, %v7136
    %v7138 = vpop.f32.mrb[0].mxu0
    %7139 = vmatprep.mubr.f32.mxu0 0.0
    %7140 = vmatmul.mubr.f32.gmra.mrb[0].mxu0 %v234
    %v7141 = vpop.f32.mrb[0].mxu0
    %v7142 = vadd.f32 0.0, %v7141
    %v7143 = vpop.f32.mrb[0].mxu0
    %7144 = vmatprep.mubr.f32.mxu0 0.0
    %7145 = vmatmul.mubr.f32.gmra.mrb[0].mxu0 %v237
    %v7146 = vpop.f32.mrb[0].mxu0
    %v7147 = vadd.f32 0.0, %v7146
    %v7148 = vpop.f32.mrb[0].mxu0
    %7149 = vmatprep.mubr.f32.mxu0 0.0
    %7150 = vmatmul.mubr.f32.gmra.mrb[0].mxu0 %v237
    %v7151 = vpop.f32.mrb[0].mxu0
    %v7152 = vadd.f32 0.0, %v7151
    %v7153 = vpop.f32.mrb[0].mxu0
    %7154 = vmatprep.mubr.f32.mxu0 0.0
    %7155 = vmatmul.mubr.f32.gmra.mrb[0].mxu0 %v243
    %v7156 = vpop.f32.mrb[0].mxu0
    %v7157 = vadd.f32 0.0, %v7156
    %v7158 = vpop.f32.mrb[0].mxu0
    %7159 = vmatprep.mubr.f32.mxu0 0.0
    %7160 = vmatmul.mubr.f32.gmra.mrb[0].mxu0 %v246
    %v7161 = vpop.f32.mrb[0].mxu0
    %v7162 = vadd.f32 0.0, %v7161
    %v7163 = vpop.f32.mrb[0].mxu0
    %7164 = vmatprep.mubr.f32.mxu0 0.0
    %7165 = vmatmul.mubr.f32.gmra.mrb[0].mxu0 %v249
    %v7166 = vpop.f32.mrb[0].mxu0
    %v7167 = vadd.f32 0.0, %v7166
    %v7168 = vpop.f32.mrb[0].mxu0
    %7169 = vmatprep.mubr.f32.mxu0 0.0
    %7170 = vmatmul.mubr.f32.gmra.mrb[0].mxu0 %v252
    %v7171 = vpop.f32.mrb[0].mxu0
    %v7172 = vadd.f32 0.0, %v7171
    %v7173 = vpop.f32.mrb[0].mxu0
    %7174 = vmatprep.mubr.f32.mxu0 0.0
    %7175 = vmatmul.mubr.f32.gmra.mrb[0].mxu0 %v255
    %v7176 = vpop.f32.mrb[0].mxu0
    %v7177 = vadd.f32 0.0, %v7176
    %v7178 = vpop.f32.mrb[0].mxu0
    %7179 = vmatprep.mubr.f32.mxu0 0.0
    %7180 = vmatmul.mubr.f32.gmra.mrb[0].mxu0 %v258
    %v7181 = vpop.f32.mrb[0].mxu0
    %v7182 = vadd.f32 0.0, %v7181
    %v7183 = vpop.f32.mrb[0].mxu0
    %7184 = vmatprep.mubr.f32.mxu0 0.0
    %7185 = vmatmul.mubr.f32.gmra.mrb[0].mxu0 %v261
    %v7186 = vpop.f32.mrb[0].mxu0
    %v7187 = vadd.f32 0.0, %v7186
    %v7188 = vpop.f32.mrb[0].mxu0
    %7189 = vmatprep.mubr.f32.mxu0 0.0
    %7190 = vmatmul.mubr.f32.gmra.mrb[0].mxu0 %v261
    %v7191 = vpop.f32.mrb[0].mxu0
    %v7192 = vadd.f32 0.0, %v7191
    %v7193 = vpop.f32.mrb[0].mxu0
    %7194 = vmatprep.mubr.f32.mxu0 0.0
    %7195 = vmatmul.mubr.f32.gmra.mrb[0].mxu0 %v267
    %v7196 = vpop.f32.mrb[0].mxu0
    %v7197 = vadd.f32 0.0, %v7196
    %v7198 = vpop.f32.mrb[0].mxu0
    %7199 = vmatprep.mubr.f32.mxu0 0.0
    %7200 = vmatmul.mubr.f32.gmra.mrb[0].mxu0 %v270
    %v7201 = vpop.f32.mrb[0].mxu0
    %v7202 = vadd.f32 0.0, %v7201
    %v7203 = vpop.f32.mrb[0].mxu0
    %7204 = vmatprep.mubr.f32.mxu0 0.0
    %7205 = vmatmul.mubr.f32.gmra.mrb[0].mxu0 %v273
    %v7206 = vpop.f32.mrb[0].mxu0
    %v7207 = vadd.f32 0.0, %v7206
    %v7208 = vpop.f32.mrb[0].mxu0
    %7209 = vmatprep.mubr.f32.mxu0 0.0
    %7210 = vmatmul.mubr.f32.gmra.mrb[0].mxu0 %v276
    %v7211 = vpop.f32.mrb[0].mxu0
    %v7212 = vadd.f32 0.0, %v7211
    %v7213 = vpop.f32.mrb[0].mxu0
    %7214 = vmatprep.mubr.f32.mxu0 0.0
    %7215 = vmatmul.mubr.f32.gmra.mrb[0].mxu0 %v279
    %v7216 = vpop.f32.mrb[0].mxu0
    %v7217 = vadd.f32 0.0, %v7216
    %v7218 = vpop.f32.mrb[0].mxu0
    %7219 = vmatprep.mubr.f32.mxu0 0.0
    %7220 = vmatmul.mubr.f32.gmra.mrb[0].mxu0 %v282
    %v7221 = vpop.f32.mrb[0].mxu0
    %v7222 = vadd.f32 0.0, %v7221
    %v7223 = vpop.f32.mrb[0].mxu0
    %7224 = vmatprep.mubr.f32.mxu0 0.0
    %7225 = vmatmul.mubr.f32.gmra.mrb[0].mxu0 %v285
    %v7226 = vpop.f32.mrb[0].mxu0
    %v7227 = vadd.f32 0.0, %v7226
    %v7228 = vpop.f32.mrb[0].mxu0
    %7229 = vmatprep.mubr.f32.mxu0 0.0
    %7230 = vmatmul.mubr.f32.gmra.mrb[0].mxu0 %v285
    %v7231 = vpop.f32.mrb[0].mxu0
    %v7232 = vadd.f32 0.0, %v7231
    %v7233 = vpop.f32.mrb[0].mxu0
    %7234 = vmatprep.mubr.f32.mxu0 0.0
    %7235 = vmatmul.mubr.f32.gmra.mrb[0].mxu0 %v291
    %v7236 = vpop.f32.mrb[0].mxu0
    %v7237 = vadd.f32 0.0, %v7236
    %v7238 = vpop.f32.mrb[0].mxu0
    %7239 = vmatprep.mubr.f32.mxu0 0.0
    %7240 = vmatmul.mubr.f32.gmra.mrb[0].mxu0 %v294
    %v7241 = vpop.f32.mrb[0].mxu0
    %v7242 = vadd.f32 0.0, %v7241
    %v7243 = vpop.f32.mrb[0].mxu0
    %7244 = vmatprep.mubr.f32.mxu0 0.0
    %7245 = vmatmul.mubr.f32.gmra.mrb[0].mxu0 %v297
    %v7246 = vpop.f32.mrb[0].mxu0
    %v7247 = vadd.f32 0.0, %v7246
    %v7248 = vpop.f32.mrb[0].mxu0
    %7249 = vmatprep.mubr.f32.mxu0 0.0
    %7250 = vmatmul.mubr.f32.gmra.mrb[0].mxu0 %v300
    %v7251 = vpop.f32.mrb[0].mxu0
    %v7252 = vadd.f32 0.0, %v7251
    %v7253 = vpop.f32.mrb[0].mxu0
    %7254 = vmatprep.mubr.f32.mxu0 0.0
    %7255 = vmatmul.mubr.f32.gmra.mrb[0].mxu0 %v303
    %v7256 = vpop.f32.mrb[0].mxu0
    %v7257 = vadd.f32 0.0, %v7256
    %v7258 = vpop.f32.mrb[0].mxu0
    %7259 = vmatprep.mubr.f32.mxu0 0.0
    %7260 = vmatmul.mubr.f32.gmra.mrb[0].mxu0 %v306
    %v7261 = vpop.f32.mrb[0].mxu0
    %v7262 = vadd.f32 0.0, %v7261
    %v7263 = vpop.f32.mrb[0].mxu0
    %7264 = vmatprep.mubr.f32.mxu0 0.0
    %7265 = vmatmul.mubr.f32.gmra.mrb[0].mxu0 %v309
    %v7266 = vpop.f32.mrb[0].mxu0
    %v7267 = vadd.f32 0.0, %v7266
    %v7268 = vpop.f32.mrb[0].mxu0
    %7269 = vmatprep.mubr.f32.mxu0 0.0
    %7270 = vmatmul.mubr.f32.gmra.mrb[0].mxu0 %v309
    %v7271 = vpop.f32.mrb[0].mxu0
    %v7272 = vadd.f32 0.0, %v7271
    %v7273 = vpop.f32.mrb[0].mxu0
    %7274 = vmatprep.mubr.f32.mxu0 0.0
    %7275 = vmatmul.mubr.f32.gmra.mrb[0].mxu0 %v2738
    %v7276 = vpop.f32.mrb[0].mxu0
    %v7277 = vadd.f32 0.0, %v7276
    %v7278 = vpop.f32.mrb[0].mxu0
    %7279 = vmatprep.mubr.f32.mxu0 0.0
    %7280 = vmatmul.mubr.f32.gmra.mrb[0].mxu0 %v2741
    %v7281 = vpop.f32.mrb[0].mxu0
    %v7282 = vadd.f32 0.0, %v7281
    %v7283 = vpop.f32.mrb[0].mxu0
    %7284 = vmatprep.mubr.f32.mxu0 0.0
    %7285 = vmatmul.mubr.f32.gmra.mrb[0].mxu0 %v2744
    %v7286 = vpop.f32.mrb[0].mxu0
    %v7287 = vadd.f32 0.0, %v7286
    %v7288 = vpop.f32.mrb[0].mxu0
    %7289 = vmatprep.mubr.f32.mxu0 0.0
    %7290 = vmatmul.mubr.f32.gmra.mrb[0].mxu0 %v2747
    %v7291 = vpop.f32.mrb[0].mxu0
    %v7292 = vadd.f32 0.0, %v7291
    %v7293 = vpop.f32.mrb[0].mxu0
    %7294 = vmatprep.mubr.f32.mxu0 0.0
    %7295 = vmatmul.mubr.f32.gmra.mrb[0].mxu0 %v2750
    %v7296 = vpop.f32.mrb[0].mxu0
    %v7297 = vadd.f32 0.0, %v7296
    %v7298 = vpop.f32.mrb[0].mxu0
    %7299 = vmatprep.mubr.f32.mxu0 0.0
    %7300 = vmatmul.mubr.f32.gmra.mrb[0].mxu0 %v2753
    %v7301 = vpop.f32.mrb[0].mxu0
    %v7302 = vadd.f32 0.0, %v7301
    %v7303 = vpop.f32.mrb[0].mxu0
    %7304 = vmatprep.mubr.f32.mxu0 0.0
    %7305 = vmatmul.mubr.f32.gmra.mrb[0].mxu0 %v3614
    %v7306 = vpop.f32.mrb[0].mxu0
    %v7307 = vadd.f32 0.0, %v7306
    %v7308 = vpop.f32.mrb[0].mxu0
    %7309 = vmatprep.mubr.f32.mxu0 0.0
    %7310 = vmatmul.mubr.f32.gmra.mrb[0].mxu0 %v3614
    %v7311 = vpop.f32.mrb[0].mxu0
    %v7312 = vadd.f32 0.0, %v7311
    %v7313 = vpop.f32.mrb[0].mxu0
    %7314 = vmatprep.mubr.f32.mxu0 0.0
    %7315 = vmatmul.mubr.f32.gmra.mrb[0].mxu0 %v2738
    %v7316 = vpop.f32.mrb[0].mxu0
    %v7317 = vadd.f32 0.0, %v7316
    %v7318 = vpop.f32.mrb[0].mxu0
    %7319 = vmatprep.mubr.f32.mxu0 0.0
    %7320 = vmatmul.mubr.f32.gmra.mrb[0].mxu0 %v2741
    %v7321 = vpop.f32.mrb[0].mxu0
    %v7322 = vadd.f32 0.0, %v7321
    %v7323 = vpop.f32.mrb[0].mxu0
    %7324 = vmatprep.mubr.f32.mxu0 0.0
    %7325 = vmatmul.mubr.f32.gmra.mrb[0].mxu0 %v2744
    %v7326 = vpop.f32.mrb[0].mxu0
    %v7327 = vadd.f32 0.0, %v7326
    %v7328 = vpop.f32.mrb[0].mxu0
    %7329 = vmatprep.mubr.f32.mxu0 0.0
    %7330 = vmatmul.mubr.f32.gmra.mrb[0].mxu0 %v2747
    %v7331 = vpop.f32.mrb[0].mxu0
    %v7332 = vadd.f32 0.0, %v7331
    %v7333 = vpop.f32.mrb[0].mxu0
    %7334 = vmatprep.mubr.f32.mxu0 0.0
    %7335 = vmatmul.mubr.f32.gmra.mrb[0].mxu0 %v2750
    %v7336 = vpop.f32.mrb[0].mxu0
    %v7337 = vadd.f32 0.0, %v7336
    %v7338 = vpop.f32.mrb[0].mxu0
    %7339 = vmatprep.mubr.f32.mxu0 0.0
    %7340 = vmatmul.mubr.f32.gmra.mrb[0].mxu0 %v2753
    %v7341 = vpop.f32.mrb[0].mxu0
    %v7342 = vadd.f32 0.0, %v7341
    %v7343 = vpop.f32.mrb[0].mxu0
    %7344 = vmatprep.mubr.f32.mxu0 0.0
    %7345 = vmatmul.mubr.f32.gmra.mrb[0].mxu0 %v3614
    %v7346 = vpop.f32.mrb[0].mxu0
    %v7347 = vadd.f32 0.0, %v7346
    %v7348 = vpop.f32.mrb[0].mxu0
    %7349 = vmatprep.mubr.f32.mxu0 0.0
    %7350 = vmatmul.mubr.f32.gmra.mrb[0].mxu0 %v3614
    %v7351 = vpop.f32.mrb[0].mxu0
    %v7352 = vadd.f32 0.0, %v7351
    %v7353 = vpop.f32.mrb[0].mxu0
    %7354 = vmatprep.mubr.f32.mxu0 0.0
    %7355 = vmatmul.mubr.f32.gmra.mrb[0].mxu0 %v339
    %v7356 = vpop.f32.mrb[0].mxu0
    %v7357 = vadd.f32 0.0, %v7356
    %v7358 = vpop.f32.mrb[0].mxu0
    %7359 = vmatprep.mubr.f32.mxu0 0.0
    %7360 = vmatmul.mubr.f32.gmra.mrb[0].mxu0 %v342
    %v7361 = vpop.f32.mrb[0].mxu0
    %v7362 = vadd.f32 0.0, %v7361
    %v7363 = vpop.f32.mrb[0].mxu0
    %7364 = vmatprep.mubr.f32.mxu0 0.0
    %7365 = vmatmul.mubr.f32.gmra.mrb[0].mxu0 %v345
    %v7366 = vpop.f32.mrb[0].mxu0
    %v7367 = vadd.f32 0.0, %v7366
    %v7368 = vpop.f32.mrb[0].mxu0
    %7369 = vmatprep.mubr.f32.mxu0 0.0
    %7370 = vmatmul.mubr.f32.gmra.mrb[0].mxu0 %v348
    %v7371 = vpop.f32.mrb[0].mxu0
    %v7372 = vadd.f32 0.0, %v7371
    %v7373 = vpop.f32.mrb[0].mxu0
    %7374 = vmatprep.mubr.f32.mxu0 0.0
    %7375 = vmatmul.mubr.f32.gmra.mrb[0].mxu0 %v351
    %v7376 = vpop.f32.mrb[0].mxu0
    %v7377 = vadd.f32 0.0, %v7376
    %v7378 = vpop.f32.mrb[0].mxu0
    %7379 = vmatprep.mubr.f32.mxu0 0.0
    %7380 = vmatmul.mubr.f32.gmra.mrb[0].mxu0 %v354
    %v7381 = vpop.f32.mrb[0].mxu0
    %v7382 = vadd.f32 0.0, %v7381
    %v7383 = vpop.f32.mrb[0].mxu0
    %7384 = vmatprep.mubr.f32.mxu0 0.0
    %7385 = vmatmul.mubr.f32.gmra.mrb[0].mxu0 %v357
    %v7386 = vpop.f32.mrb[0].mxu0
    %v7387 = vadd.f32 0.0, %v7386
    %v7388 = vpop.f32.mrb[0].mxu0
    %7389 = vmatprep.mubr.f32.mxu0 0.0
    %7390 = vmatmul.mubr.f32.gmra.mrb[0].mxu0 %v357
    %v7391 = vpop.f32.mrb[0].mxu0
    %v7392 = vadd.f32 0.0, %v7391
    %v7393 = vpop.f32.mrb[0].mxu0
    %7394 = vmatprep.mubr.f32.mxu0 0.0
    %7395 = vmatmul.mubr.f32.gmra.mrb[0].mxu0 %v363
    %v7396 = vpop.f32.mrb[0].mxu0
    %v7397 = vadd.f32 0.0, %v7396
    %v7398 = vpop.f32.mrb[0].mxu0
    %7399 = vmatprep.mubr.f32.mxu0 0.0
    %7400 = vmatmul.mubr.f32.gmra.mrb[0].mxu0 %v366
    %v7401 = vpop.f32.mrb[0].mxu0
    %v7402 = vadd.f32 0.0, %v7401
    %v7403 = vpop.f32.mrb[0].mxu0
    %7404 = vmatprep.mubr.f32.mxu0 0.0
    %7405 = vmatmul.mubr.f32.gmra.mrb[0].mxu0 %v369
    %v7406 = vpop.f32.mrb[0].mxu0
    %v7407 = vadd.f32 0.0, %v7406
    %v7408 = vpop.f32.mrb[0].mxu0
    %7409 = vmatprep.mubr.f32.mxu0 0.0
    %7410 = vmatmul.mubr.f32.gmra.mrb[0].mxu0 %v372
    %v7411 = vpop.f32.mrb[0].mxu0
    %v7412 = vadd.f32 0.0, %v7411
    %v7413 = vpop.f32.mrb[0].mxu0
    %7414 = vmatprep.mubr.f32.mxu0 0.0
    %7415 = vmatmul.mubr.f32.gmra.mrb[0].mxu0 %v375
    %v7416 = vpop.f32.mrb[0].mxu0
    %v7417 = vadd.f32 0.0, %v7416
    %v7418 = vpop.f32.mrb[0].mxu0
    %7419 = vmatprep.mubr.f32.mxu0 0.0
    %7420 = vmatmul.mubr.f32.gmra.mrb[0].mxu0 %v378
    %v7421 = vpop.f32.mrb[0].mxu0
    %v7422 = vadd.f32 0.0, %v7421
    %v7423 = vpop.f32.mrb[0].mxu0
    %7424 = vmatprep.mubr.f32.mxu0 0.0
    %7425 = vmatmul.mubr.f32.gmra.mrb[0].mxu0 %v381
    %v7426 = vpop.f32.mrb[0].mxu0
    %v7427 = vadd.f32 0.0, %v7426
    %v7428 = vpop.f32.mrb[0].mxu0
    %7429 = vmatprep.mubr.f32.mxu0 0.0
    %7430 = vmatmul.mubr.f32.gmra.mrb[0].mxu0 %v381
    %v7431 = vpop.f32.mrb[0].mxu0
    %v7432 = vadd.f32 0.0, %v7431
    %v7433 = vpop.f32.mrb[0].mxu0
    %7434 = vmatprep.mubr.f32.mxu0 0.0
    %7435 = vmatmul.mubr.f32.gmra.mrb[0].mxu0 %v387
    %v7436 = vpop.f32.mrb[0].mxu0
    %v7437 = vadd.f32 0.0, %v7436
    %v7438 = vpop.f32.mrb[0].mxu0
    %7439 = vmatprep.mubr.f32.mxu0 0.0
    %7440 = vmatmul.mubr.f32.gmra.mrb[0].mxu0 %v390
    %v7441 = vpop.f32.mrb[0].mxu0
    %v7442 = vadd.f32 0.0, %v7441
    %v7443 = vpop.f32.mrb[0].mxu0
    %7444 = vmatprep.mubr.f32.mxu0 0.0
    %7445 = vmatmul.mubr.f32.gmra.mrb[0].mxu0 %v393
    %v7446 = vpop.f32.mrb[0].mxu0
    %v7447 = vadd.f32 0.0, %v7446
    %v7448 = vpop.f32.mrb[0].mxu0
    %7449 = vmatprep.mubr.f32.mxu0 0.0
    %7450 = vmatmul.mubr.f32.gmra.mrb[0].mxu0 %v396
    %v7451 = vpop.f32.mrb[0].mxu0
    %v7452 = vadd.f32 0.0, %v7451
    %v7453 = vpop.f32.mrb[0].mxu0
    %7454 = vmatprep.mubr.f32.mxu0 0.0
    %7455 = vmatmul.mubr.f32.gmra.mrb[0].mxu0 %v399
    %v7456 = vpop.f32.mrb[0].mxu0
    %v7457 = vadd.f32 0.0, %v7456
    %v7458 = vpop.f32.mrb[0].mxu0
    %7459 = vmatprep.mubr.f32.mxu0 0.0
    %7460 = vmatmul.mubr.f32.gmra.mrb[0].mxu0 %v402
    %v7461 = vpop.f32.mrb[0].mxu0
    %v7462 = vadd.f32 0.0, %v7461
    %v7463 = vpop.f32.mrb[0].mxu0
    %7464 = vmatprep.mubr.f32.mxu0 0.0
    %7465 = vmatmul.mubr.f32.gmra.mrb[0].mxu0 %v405
    %v7466 = vpop.f32.mrb[0].mxu0
    %v7467 = vadd.f32 0.0, %v7466
    %v7468 = vpop.f32.mrb[0].mxu0
    %7469 = vmatprep.mubr.f32.mxu0 0.0
    %7470 = vmatmul.mubr.f32.gmra.mrb[0].mxu0 %v405
    %v7471 = vpop.f32.mrb[0].mxu0
    %v7472 = vadd.f32 0.0, %v7471
    %v7473 = vpop.f32.mrb[0].mxu0
    %7474 = vmatprep.mubr.f32.mxu0 0.0
    %7475 = vmatmul.mubr.f32.gmra.mrb[0].mxu0 %v411
    %v7476 = vpop.f32.mrb[0].mxu0
    %v7477 = vadd.f32 0.0, %v7476
    %v7478 = vpop.f32.mrb[0].mxu0
    %7479 = vmatprep.mubr.f32.mxu0 0.0
    %7480 = vmatmul.mubr.f32.gmra.mrb[0].mxu0 %v414
    %v7481 = vpop.f32.mrb[0].mxu0
    %v7482 = vadd.f32 0.0, %v7481
    %v7483 = vpop.f32.mrb[0].mxu0
    %7484 = vmatprep.mubr.f32.mxu0 0.0
    %7485 = vmatmul.mubr.f32.gmra.mrb[0].mxu0 %v417
    %v7486 = vpop.f32.mrb[0].mxu0
    %v7487 = vadd.f32 0.0, %v7486
    %v7488 = vpop.f32.mrb[0].mxu0
    %7489 = vmatprep.mubr.f32.mxu0 0.0
    %7490 = vmatmul.mubr.f32.gmra.mrb[0].mxu0 %v420
    %v7491 = vpop.f32.mrb[0].mxu0
    %v7492 = vadd.f32 0.0, %v7491
    %v7493 = vpop.f32.mrb[0].mxu0
    %7494 = vmatprep.mubr.f32.mxu0 0.0
    %7495 = vmatmul.mubr.f32.gmra.mrb[0].mxu0 %v423
    %v7496 = vpop.f32.mrb[0].mxu0
    %v7497 = vadd.f32 0.0, %v7496
    %v7498 = vpop.f32.mrb[0].mxu0
    %7499 = vmatprep.mubr.f32.mxu0 0.0
    %7500 = vmatmul.mubr.f32.gmra.mrb[0].mxu0 %v426
    %v7501 = vpop.f32.mrb[0].mxu0
    %v7502 = vadd.f32 0.0, %v7501
    %v7503 = vpop.f32.mrb[0].mxu0
    %7504 = vmatprep.mubr.f32.mxu0 0.0
    %7505 = vmatmul.mubr.f32.gmra.mrb[0].mxu0 %v429
    %v7506 = vpop.f32.mrb[0].mxu0
    %v7507 = vadd.f32 0.0, %v7506
    %v7508 = vpop.f32.mrb[0].mxu0
    %7509 = vmatprep.mubr.f32.mxu0 0.0
    %7510 = vmatmul.mubr.f32.gmra.mrb[0].mxu0 %v429
    %v7511 = vpop.f32.mrb[0].mxu0
    %v7512 = vadd.f32 0.0, %v7511
    %v7513 = vpop.f32.mrb[0].mxu0
    %7514 = vmatprep.mubr.f32.mxu0 0.0
    %7515 = vmatmul.mubr.f32.gmra.mrb[0].mxu0 %v435
    %v7516 = vpop.f32.mrb[0].mxu0
    %v7517 = vadd.f32 0.0, %v7516
    %v7518 = vpop.f32.mrb[0].mxu0
    %7519 = vmatprep.mubr.f32.mxu0 0.0
    %7520 = vmatmul.mubr.f32.gmra.mrb[0].mxu0 %v438
    %v7521 = vpop.f32.mrb[0].mxu0
    %v7522 = vadd.f32 0.0, %v7521
    %v7523 = vpop.f32.mrb[0].mxu0
    %7524 = vmatprep.mubr.f32.mxu0 0.0
    %7525 = vmatmul.mubr.f32.gmra.mrb[0].mxu0 %v441
    %v7526 = vpop.f32.mrb[0].mxu0
    %v7527 = vadd.f32 0.0, %v7526
    %v7528 = vpop.f32.mrb[0].mxu0
    %7529 = vmatprep.mubr.f32.mxu0 0.0
    %7530 = vmatmul.mubr.f32.gmra.mrb[0].mxu0 %v444
    %v7531 = vpop.f32.mrb[0].mxu0
    %v7532 = vadd.f32 0.0, %v7531
    %v7533 = vpop.f32.mrb[0].mxu0
    %7534 = vmatprep.mubr.f32.mxu0 0.0
    %7535 = vmatmul.mubr.f32.gmra.mrb[0].mxu0 %v447
    %v7536 = vpop.f32.mrb[0].mxu0
    %v7537 = vadd.f32 0.0, %v7536
    %v7538 = vpop.f32.mrb[0].mxu0
    %7539 = vmatprep.mubr.f32.mxu0 0.0
    %7540 = vmatmul.mubr.f32.gmra.mrb[0].mxu0 %v450
    %v7541 = vpop.f32.mrb[0].mxu0
    %v7542 = vadd.f32 0.0, %v7541
    %v7543 = vpop.f32.mrb[0].mxu0
    %7544 = vmatprep.mubr.f32.mxu0 0.0
    %7545 = vmatmul.mubr.f32.gmra.mrb[0].mxu0 %v453
    %v7546 = vpop.f32.mrb[0].mxu0
    %v7547 = vadd.f32 0.0, %v7546
    %v7548 = vpop.f32.mrb[0].mxu0
    %7549 = vmatprep.mubr.f32.mxu0 0.0
    %7550 = vmatmul.mubr.f32.gmra.mrb[0].mxu0 %v453
    %v7551 = vpop.f32.mrb[0].mxu0
    %v7552 = vadd.f32 0.0, %v7551
    %v7553 = vpop.f32.mrb[0].mxu0
    %7554 = vmatprep.mubr.f32.mxu0 0.0
    %7555 = vmatmul.mubr.f32.gmra.mrb[0].mxu0 %v459
    %v7556 = vpop.f32.mrb[0].mxu0
    %v7557 = vadd.f32 0.0, %v7556
    %v7558 = vpop.f32.mrb[0].mxu0
    %7559 = vmatprep.mubr.f32.mxu0 0.0
    %7560 = vmatmul.mubr.f32.gmra.mrb[0].mxu0 %v462
    %v7561 = vpop.f32.mrb[0].mxu0
    %v7562 = vadd.f32 0.0, %v7561
    %v7563 = vpop.f32.mrb[0].mxu0
    %7564 = vmatprep.mubr.f32.mxu0 0.0
    %7565 = vmatmul.mubr.f32.gmra.mrb[0].mxu0 %v465
    %v7566 = vpop.f32.mrb[0].mxu0
    %v7567 = vadd.f32 0.0, %v7566
    %v7568 = vpop.f32.mrb[0].mxu0
    %7569 = vmatprep.mubr.f32.mxu0 0.0
    %7570 = vmatmul.mubr.f32.gmra.mrb[0].mxu0 %v468
    %v7571 = vpop.f32.mrb[0].mxu0
    %v7572 = vadd.f32 0.0, %v7571
    %v7573 = vpop.f32.mrb[0].mxu0
    %7574 = vmatprep.mubr.f32.mxu0 0.0
    %7575 = vmatmul.mubr.f32.gmra.mrb[0].mxu0 %v471
    %v7576 = vpop.f32.mrb[0].mxu0
    %v7577 = vadd.f32 0.0, %v7576
    %v7578 = vpop.f32.mrb[0].mxu0
    %7579 = vmatprep.mubr.f32.mxu0 0.0
    %7580 = vmatmul.mubr.f32.gmra.mrb[0].mxu0 %v474
    %v7581 = vpop.f32.mrb[0].mxu0
    %v7582 = vadd.f32 0.0, %v7581
    %v7583 = vpop.f32.mrb[0].mxu0
    %7584 = vmatprep.mubr.f32.mxu0 0.0
    %7585 = vmatmul.mubr.f32.gmra.mrb[0].mxu0 %v477
    %v7586 = vpop.f32.mrb[0].mxu0
    %v7587 = vadd.f32 0.0, %v7586
    %v7588 = vpop.f32.mrb[0].mxu0
    %7589 = vmatprep.mubr.f32.mxu0 0.0
    %7590 = vmatmul.mubr.f32.gmra.mrb[0].mxu0 %v477
    %v7591 = vpop.f32.mrb[0].mxu0
    %v7592 = vadd.f32 0.0, %v7591
    %v7593 = vpop.f32.mrb[0].mxu0
    %7594 = vmatprep.mubr.f32.mxu0 0.0
    %7595 = vmatmul.mubr.f32.gmra.mrb[0].mxu0 %v2759
    %v7596 = vpop.f32.mrb[0].mxu0
    %v7597 = vadd.f32 0.0, %v7596
    %v7598 = vpop.f32.mrb[0].mxu0
    %7599 = vmatprep.mubr.f32.mxu0 0.0
    %7600 = vmatmul.mubr.f32.gmra.mrb[0].mxu0 %v2762
    %v7601 = vpop.f32.mrb[0].mxu0
    %v7602 = vadd.f32 0.0, %v7601
    %v7603 = vpop.f32.mrb[0].mxu0
    %7604 = vmatprep.mubr.f32.mxu0 0.0
    %7605 = vmatmul.mubr.f32.gmra.mrb[0].mxu0 %v2765
    %v7606 = vpop.f32.mrb[0].mxu0
    %v7607 = vadd.f32 0.0, %v7606
    %v7608 = vpop.f32.mrb[0].mxu0
    %7609 = vmatprep.mubr.f32.mxu0 0.0
    %7610 = vmatmul.mubr.f32.gmra.mrb[0].mxu0 %v2768
    %v7611 = vpop.f32.mrb[0].mxu0
    %v7612 = vadd.f32 0.0, %v7611
    %v7613 = vpop.f32.mrb[0].mxu0
    %7614 = vmatprep.mubr.f32.mxu0 0.0
    %7615 = vmatmul.mubr.f32.gmra.mrb[0].mxu0 %v2771
    %v7616 = vpop.f32.mrb[0].mxu0
    %v7617 = vadd.f32 0.0, %v7616
    %v7618 = vpop.f32.mrb[0].mxu0
    %7619 = vmatprep.mubr.f32.mxu0 0.0
    %7620 = vmatmul.mubr.f32.gmra.mrb[0].mxu0 %v2774
    %v7621 = vpop.f32.mrb[0].mxu0
    %v7622 = vadd.f32 0.0, %v7621
    %v7623 = vpop.f32.mrb[0].mxu0
    %7624 = vmatprep.mubr.f32.mxu0 0.0
    %7625 = vmatmul.mubr.f32.gmra.mrb[0].mxu0 %v3617
    %v7626 = vpop.f32.mrb[0].mxu0
    %v7627 = vadd.f32 0.0, %v7626
    %v7628 = vpop.f32.mrb[0].mxu0
    %7629 = vmatprep.mubr.f32.mxu0 0.0
    %7630 = vmatmul.mubr.f32.gmra.mrb[0].mxu0 %v3617
    %v7631 = vpop.f32.mrb[0].mxu0
    %v7632 = vadd.f32 0.0, %v7631
    %v7633 = vpop.f32.mrb[0].mxu0
    %7634 = vmatprep.mubr.f32.mxu0 0.0
    %7635 = vmatmul.mubr.f32.gmra.mrb[0].mxu0 %v2759
    %v7636 = vpop.f32.mrb[0].mxu0
    %v7637 = vadd.f32 0.0, %v7636
    %v7638 = vpop.f32.mrb[0].mxu0
    %7639 = vmatprep.mubr.f32.mxu0 0.0
    %7640 = vmatmul.mubr.f32.gmra.mrb[0].mxu0 %v2762
    %v7641 = vpop.f32.mrb[0].mxu0
    %v7642 = vadd.f32 0.0, %v7641
    %v7643 = vpop.f32.mrb[0].mxu0
    %7644 = vmatprep.mubr.f32.mxu0 0.0
    %7645 = vmatmul.mubr.f32.gmra.mrb[0].mxu0 %v2765
    %v7646 = vpop.f32.mrb[0].mxu0
    %v7647 = vadd.f32 0.0, %v7646
    %v7648 = vpop.f32.mrb[0].mxu0
    %7649 = vmatprep.mubr.f32.mxu0 0.0
    %7650 = vmatmul.mubr.f32.gmra.mrb[0].mxu0 %v2768
    %v7651 = vpop.f32.mrb[0].mxu0
    %v7652 = vadd.f32 0.0, %v7651
    %v7653 = vpop.f32.mrb[0].mxu0
    %7654 = vmatprep.mubr.f32.mxu0 0.0
    %7655 = vmatmul.mubr.f32.gmra.mrb[0].mxu0 %v2771
    %v7656 = vpop.f32.mrb[0].mxu0
    %v7657 = vadd.f32 0.0, %v7656
    %v7658 = vpop.f32.mrb[0].mxu0
    %7659 = vmatprep.mubr.f32.mxu0 0.0
    %7660 = vmatmul.mubr.f32.gmra.mrb[0].mxu0 %v2774
    %v7661 = vpop.f32.mrb[0].mxu0
    %v7662 = vadd.f32 0.0, %v7661
    %v7663 = vpop.f32.mrb[0].mxu0
    %7664 = vmatprep.mubr.f32.mxu0 0.0
    %7665 = vmatmul.mubr.f32.gmra.mrb[0].mxu0 %v3617
    %v7666 = vpop.f32.mrb[0].mxu0
    %v7667 = vadd.f32 0.0, %v7666
    %v7668 = vpop.f32.mrb[0].mxu0
    %7669 = vmatprep.mubr.f32.mxu0 0.0
    %7670 = vmatmul.mubr.f32.gmra.mrb[0].mxu0 %v3617
    %v7671 = vpop.f32.mrb[0].mxu0
    %v7672 = vadd.f32 0.0, %v7671
    %v7673 = vpop.f32.mrb[0].mxu0
    %7674 = vdwg.mxu0
    %v7675 = vadd.f32 %v6838, %v7037
    %v7676 = vadd.f32 %v6839, %v7042
    %v7677 = vadd.f32 %v6840, %v7047
    %v7678 = vadd.f32 %v6841, %v7052
    %v7679 = vadd.f32 %v6842, %v7057
    %v7680 = vadd.f32 %v6843, %v7062
    %v7681 = vadd.f32 %v6844, %v7067
    %v7682 = vadd.f32 %v6845, %v7072
    %v7683 = vadd.f32 %v6846, %v7077
    %v7684 = vadd.f32 %v6847, %v7082
    %v7685 = vadd.f32 %v6848, %v7087
    %v7686 = vadd.f32 %v6849, %v7092
    %v7687 = vadd.f32 %v6850, %v7097
    %v7688 = vadd.f32 %v6851, %v7102
    %v7689 = vadd.f32 %v6852, %v7107
    %v7690 = vadd.f32 %v6853, %v7112
    %v7691 = vadd.f32 %v6854, %v7117
    %v7692 = vadd.f32 %v6855, %v7122
    %v7693 = vadd.f32 %v6856, %v7127
    %v7694 = vadd.f32 %v6857, %v7132
    %v7695 = vadd.f32 %v6858, %v7137
    %v7696 = vadd.f32 %v6859, %v7142
    %v7697 = vadd.f32 %v6860, %v7147
    %v7698 = vadd.f32 %v6861, %v7152
    %v7699 = vadd.f32 %v6862, %v7157
    %v7700 = vadd.f32 %v6863, %v7162
    %v7701 = vadd.f32 %v6864, %v7167
    %v7702 = vadd.f32 %v6865, %v7172
    %v7703 = vadd.f32 %v6866, %v7177
    %v7704 = vadd.f32 %v6867, %v7182
    %v7705 = vadd.f32 %v6868, %v7187
    %v7706 = vadd.f32 %v6869, %v7192
    %v7707 = vadd.f32 %v6870, %v7197
    %v7708 = vadd.f32 %v6871, %v7202
    %v7709 = vadd.f32 %v6872, %v7207
    %v7710 = vadd.f32 %v6873, %v7212
    %v7711 = vadd.f32 %v6874, %v7217
    %v7712 = vadd.f32 %v6875, %v7222
    %v7713 = vadd.f32 %v6876, %v7227
    %v7714 = vadd.f32 %v6877, %v7232
    %v7715 = vadd.f32 %v6878, %v7237
    %v7716 = vadd.f32 %v6879, %v7242
    %v7717 = vadd.f32 %v6880, %v7247
    %v7718 = vadd.f32 %v6881, %v7252
    %v7719 = vadd.f32 %v6882, %v7257
    %v7720 = vadd.f32 %v6883, %v7262
    %v7721 = vadd.f32 %v6884, %v7267
    %v7722 = vadd.f32 %v6885, %v7272
    %v7723 = vadd.f32 %v6886, %v7277
    %v7724 = vadd.f32 %v6887, %v7282
    %v7725 = vadd.f32 %v6888, %v7287
    %v7726 = vadd.f32 %v6889, %v7292
    %v7727 = vadd.f32 %v6890, %v7297
    %v7728 = vadd.f32 %v6891, %v7302
    %v7729 = vadd.f32 %v6892, %v7307
    %v7730 = vadd.f32 %v6893, %v7312
    %v7731 = vadd.f32 %v6894, %v7317
    %v7732 = vadd.f32 %v6895, %v7322
    %v7733 = vadd.f32 %v6896, %v7327
    %v7734 = vadd.f32 %v6897, %v7332
    %v7735 = vadd.f32 %v6898, %v7337
    %v7736 = vadd.f32 %v6899, %v7342
    %v7737 = vadd.f32 %v6900, %v7347
    %v7738 = vadd.f32 %v6901, %v7352
    %v7739 = vadd.f32 %v6902, %v7357
    %v7740 = vadd.f32 %v6903, %v7362
    %v7741 = vadd.f32 %v6904, %v7367
    %v7742 = vadd.f32 %v6905, %v7372
    %v7743 = vadd.f32 %v6906, %v7377
    %v7744 = vadd.f32 %v6907, %v7382
    %v7745 = vadd.f32 %v6908, %v7387
    %v7746 = vadd.f32 %v6909, %v7392
    %v7747 = vadd.f32 %v6910, %v7397
    %v7748 = vadd.f32 %v6911, %v7402
    %v7749 = vadd.f32 %v6912, %v7407
    %v7750 = vadd.f32 %v6913, %v7412
    %v7751 = vadd.f32 %v6914, %v7417
    %v7752 = vadd.f32 %v6915, %v7422
    %v7753 = vadd.f32 %v6916, %v7427
    %v7754 = vadd.f32 %v6917, %v7432
    %v7755 = vadd.f32 %v6918, %v7437
    %v7756 = vadd.f32 %v6919, %v7442
    %v7757 = vadd.f32 %v6920, %v7447
    %v7758 = vadd.f32 %v6921, %v7452
    %v7759 = vadd.f32 %v6922, %v7457
    %v7760 = vadd.f32 %v6923, %v7462
    %v7761 = vadd.f32 %v6924, %v7467
    %v7762 = vadd.f32 %v6925, %v7472
    %v7763 = vadd.f32 %v6926, %v7477
    %v7764 = vadd.f32 %v6927, %v7482
    %v7765 = vadd.f32 %v6928, %v7487
    %v7766 = vadd.f32 %v6929, %v7492
    %v7767 = vadd.f32 %v6930, %v7497
    %v7768 = vadd.f32 %v6931, %v7502
    %v7769 = vadd.f32 %v6932, %v7507
    %v7770 = vadd.f32 %v6933, %v7512
    %v7771 = vadd.f32 %v6934, %v7517
    %v7772 = vadd.f32 %v6935, %v7522
    %v7773 = vadd.f32 %v6936, %v7527
    %v7774 = vadd.f32 %v6937, %v7532
    %v7775 = vadd.f32 %v6938, %v7537
    %v7776 = vadd.f32 %v6939, %v7542
    %v7777 = vadd.f32 %v6940, %v7547
    %v7778 = vadd.f32 %v6941, %v7552
    %v7779 = vadd.f32 %v6942, %v7557
    %v7780 = vadd.f32 %v6943, %v7562
    %v7781 = vadd.f32 %v6944, %v7567
    %v7782 = vadd.f32 %v6945, %v7572
    %v7783 = vadd.f32 %v6946, %v7577
    %v7784 = vadd.f32 %v6947, %v7582
    %v7785 = vadd.f32 %v6948, %v7587
    %v7786 = vadd.f32 %v6949, %v7592
    %v7787 = vadd.f32 %v6950, %v7597
    %v7788 = vadd.f32 %v6951, %v7602
    %v7789 = vadd.f32 %v6952, %v7607
    %v7790 = vadd.f32 %v6953, %v7612
    %v7791 = vadd.f32 %v6954, %v7617
    %v7792 = vadd.f32 %v6955, %v7622
    %v7793 = vadd.f32 %v6956, %v7627
    %v7794 = vadd.f32 %v6957, %v7632
    %v7795 = vadd.f32 %v6958, %v7637
    %v7796 = vadd.f32 %v6959, %v7642
    %v7797 = vadd.f32 %v6960, %v7647
    %v7798 = vadd.f32 %v6961, %v7652
    %v7799 = vadd.f32 %v6962, %v7657
    %v7800 = vadd.f32 %v6963, %v7662
    %v7801 = vadd.f32 %v6964, %v7667
    %v7802 = vadd.f32 %v6965, %v7672
    %vm7803 = vcmask 261120
    %7804 = vst.msk [vmem:[#allocation2] sm:$0xff] %vm7803, %v7675
    %7805 = vst.msk [vmem:[#allocation2 + $0x8] sm:$0xff] %vm7803, %v7676
    %7806 = vst.msk [vmem:[#allocation2 + $0x10] sm:$0xff] %vm7803, %v7677
    %7807 = vst.msk [vmem:[#allocation2 + $0x18] sm:$0xff] %vm7803, %v7678
    %7808 = vst.msk [vmem:[#allocation2 + $0x20] sm:$0xff] %vm7803, %v7679
    %7809 = vst.msk [vmem:[#allocation2 + $0x28] sm:$0xff] %vm7803, %v7680
    %7810 = vst.msk [vmem:[#allocation2 + $0x30] sm:$0xff] %vm7803, %v7681
    %7811 = vst.msk [vmem:[#allocation2 + $0x38] sm:$0xff] %vm7803, %v7682
    %7812 = vst.msk [vmem:[#allocation2 + $0x40] sm:$0xff] %vm7803, %v7683
    %7813 = vst.msk [vmem:[#allocation2 + $0x48] sm:$0xff] %vm7803, %v7684
    %7814 = vst.msk [vmem:[#allocation2 + $0x50] sm:$0xff] %vm7803, %v7685
    %7815 = vst.msk [vmem:[#allocation2 + $0x58] sm:$0xff] %vm7803, %v7686
    %7816 = vst.msk [vmem:[#allocation2 + $0x60] sm:$0xff] %vm7803, %v7687
    %7817 = vst.msk [vmem:[#allocation2 + $0x68] sm:$0xff] %vm7803, %v7688
    %7818 = vst.msk [vmem:[#allocation2 + $0x70] sm:$0xff] %vm7803, %v7689
    %7819 = vst.msk [vmem:[#allocation2 + $0x78] sm:$0xff] %vm7803, %v7690
    %7820 = vst.msk [vmem:[#allocation2 + $0x80] sm:$0xff] %vm7803, %v7691
    %7821 = vst.msk [vmem:[#allocation2 + $0x88] sm:$0xff] %vm7803, %v7692
    %7822 = vst.msk [vmem:[#allocation2 + $0x90] sm:$0xff] %vm7803, %v7693
    %7823 = vst.msk [vmem:[#allocation2 + $0x98] sm:$0xff] %vm7803, %v7694
    %7824 = vst.msk [vmem:[#allocation2 + $0xa0] sm:$0xff] %vm7803, %v7695
    %7825 = vst.msk [vmem:[#allocation2 + $0xa8] sm:$0xff] %vm7803, %v7696
    %7826 = vst.msk [vmem:[#allocation2 + $0xb0] sm:$0xff] %vm7803, %v7697
    %7827 = vst.msk [vmem:[#allocation2 + $0xb8] sm:$0xff] %vm7803, %v7698
    %7828 = vst.msk [vmem:[#allocation2 + $0xc0] sm:$0xff] %vm7803, %v7699
    %7829 = vst.msk [vmem:[#allocation2 + $0xc8] sm:$0xff] %vm7803, %v7700
    %7830 = vst.msk [vmem:[#allocation2 + $0xd0] sm:$0xff] %vm7803, %v7701
    %7831 = vst.msk [vmem:[#allocation2 + $0xd8] sm:$0xff] %vm7803, %v7702
    %7832 = vst.msk [vmem:[#allocation2 + $0xe0] sm:$0xff] %vm7803, %v7703
    %7833 = vst.msk [vmem:[#allocation2 + $0xe8] sm:$0xff] %vm7803, %v7704
    %7834 = vst.msk [vmem:[#allocation2 + $0xf0] sm:$0xff] %vm7803, %v7705
    %7835 = vst.msk [vmem:[#allocation2 + $0xf8] sm:$0xff] %vm7803, %v7706
    %7836 = vst.msk [vmem:[#allocation2 + $0x100] sm:$0xff] %vm7803, %v7707
    %7837 = vst.msk [vmem:[#allocation2 + $0x108] sm:$0xff] %vm7803, %v7708
    %7838 = vst.msk [vmem:[#allocation2 + $0x110] sm:$0xff] %vm7803, %v7709
    %7839 = vst.msk [vmem:[#allocation2 + $0x118] sm:$0xff] %vm7803, %v7710
    %7840 = vst.msk [vmem:[#allocation2 + $0x120] sm:$0xff] %vm7803, %v7711
    %7841 = vst.msk [vmem:[#allocation2 + $0x128] sm:$0xff] %vm7803, %v7712
    %7842 = vst.msk [vmem:[#allocation2 + $0x130] sm:$0xff] %vm7803, %v7713
    %7843 = vst.msk [vmem:[#allocation2 + $0x138] sm:$0xff] %vm7803, %v7714
    %7844 = vst.msk [vmem:[#allocation2 + $0x140] sm:$0xff] %vm7803, %v7715
    %7845 = vst.msk [vmem:[#allocation2 + $0x148] sm:$0xff] %vm7803, %v7716
    %7846 = vst.msk [vmem:[#allocation2 + $0x150] sm:$0xff] %vm7803, %v7717
    %7847 = vst.msk [vmem:[#allocation2 + $0x158] sm:$0xff] %vm7803, %v7718
    %7848 = vst.msk [vmem:[#allocation2 + $0x160] sm:$0xff] %vm7803, %v7719
    %7849 = vst.msk [vmem:[#allocation2 + $0x168] sm:$0xff] %vm7803, %v7720
    %7850 = vst.msk [vmem:[#allocation2 + $0x170] sm:$0xff] %vm7803, %v7721
    %7851 = vst.msk [vmem:[#allocation2 + $0x178] sm:$0xff] %vm7803, %v7722
    %7852 = vst.msk [vmem:[#allocation2 + $0x180] sm:$0xff] %vm7803, %v7723
    %7853 = vst.msk [vmem:[#allocation2 + $0x188] sm:$0xff] %vm7803, %v7724
    %7854 = vst.msk [vmem:[#allocation2 + $0x190] sm:$0xff] %vm7803, %v7725
    %7855 = vst.msk [vmem:[#allocation2 + $0x198] sm:$0xff] %vm7803, %v7726
    %7856 = vst.msk [vmem:[#allocation2 + $0x1a0] sm:$0xff] %vm7803, %v7727
    %7857 = vst.msk [vmem:[#allocation2 + $0x1a8] sm:$0xff] %vm7803, %v7728
    %7858 = vst.msk [vmem:[#allocation2 + $0x1b0] sm:$0xff] %vm7803, %v7729
    %7859 = vst.msk [vmem:[#allocation2 + $0x1b8] sm:$0xff] %vm7803, %v7730
    %7860 = vst.msk [vmem:[#allocation2 + $0x1c0] sm:$0xff] %vm7803, %v7731
    %7861 = vst.msk [vmem:[#allocation2 + $0x1c8] sm:$0xff] %vm7803, %v7732
    %7862 = vst.msk [vmem:[#allocation2 + $0x1d0] sm:$0xff] %vm7803, %v7733
    %7863 = vst.msk [vmem:[#allocation2 + $0x1d8] sm:$0xff] %vm7803, %v7734
    %7864 = vst.msk [vmem:[#allocation2 + $0x1e0] sm:$0xff] %vm7803, %v7735
    %7865 = vst.msk [vmem:[#allocation2 + $0x1e8] sm:$0xff] %vm7803, %v7736
    %7866 = vst.msk [vmem:[#allocation2 + $0x1f0] sm:$0xff] %vm7803, %v7737
    %7867 = vst.msk [vmem:[#allocation2 + $0x1f8] sm:$0xff] %vm7803, %v7738
    %7868 = vst.msk [vmem:[#allocation2 + $0x200] sm:$0xff] %vm7803, %v7739
    %7869 = vst.msk [vmem:[#allocation2 + $0x208] sm:$0xff] %vm7803, %v7740
    %7870 = vst.msk [vmem:[#allocation2 + $0x210] sm:$0xff] %vm7803, %v7741
    %7871 = vst.msk [vmem:[#allocation2 + $0x218] sm:$0xff] %vm7803, %v7742
    %7872 = vst.msk [vmem:[#allocation2 + $0x220] sm:$0xff] %vm7803, %v7743
    %7873 = vst.msk [vmem:[#allocation2 + $0x228] sm:$0xff] %vm7803, %v7744
    %7874 = vst.msk [vmem:[#allocation2 + $0x230] sm:$0xff] %vm7803, %v7745
    %7875 = vst.msk [vmem:[#allocation2 + $0x238] sm:$0xff] %vm7803, %v7746
    %7876 = vst.msk [vmem:[#allocation2 + $0x240] sm:$0xff] %vm7803, %v7747
    %7877 = vst.msk [vmem:[#allocation2 + $0x248] sm:$0xff] %vm7803, %v7748
    %7878 = vst.msk [vmem:[#allocation2 + $0x250] sm:$0xff] %vm7803, %v7749
    %7879 = vst.msk [vmem:[#allocation2 + $0x258] sm:$0xff] %vm7803, %v7750
    %7880 = vst.msk [vmem:[#allocation2 + $0x260] sm:$0xff] %vm7803, %v7751
    %7881 = vst.msk [vmem:[#allocation2 + $0x268] sm:$0xff] %vm7803, %v7752
    %7882 = vst.msk [vmem:[#allocation2 + $0x270] sm:$0xff] %vm7803, %v7753
    %7883 = vst.msk [vmem:[#allocation2 + $0x278] sm:$0xff] %vm7803, %v7754
    %7884 = vst.msk [vmem:[#allocation2 + $0x280] sm:$0xff] %vm7803, %v7755
    %7885 = vst.msk [vmem:[#allocation2 + $0x288] sm:$0xff] %vm7803, %v7756
    %7886 = vst.msk [vmem:[#allocation2 + $0x290] sm:$0xff] %vm7803, %v7757
    %7887 = vst.msk [vmem:[#allocation2 + $0x298] sm:$0xff] %vm7803, %v7758
    %7888 = vst.msk [vmem:[#allocation2 + $0x2a0] sm:$0xff] %vm7803, %v7759
    %7889 = vst.msk [vmem:[#allocation2 + $0x2a8] sm:$0xff] %vm7803, %v7760
    %7890 = vst.msk [vmem:[#allocation2 + $0x2b0] sm:$0xff] %vm7803, %v7761
    %7891 = vst.msk [vmem:[#allocation2 + $0x2b8] sm:$0xff] %vm7803, %v7762
    %7892 = vst.msk [vmem:[#allocation2 + $0x2c0] sm:$0xff] %vm7803, %v7763
    %7893 = vst.msk [vmem:[#allocation2 + $0x2c8] sm:$0xff] %vm7803, %v7764
    %7894 = vst.msk [vmem:[#allocation2 + $0x2d0] sm:$0xff] %vm7803, %v7765
    %7895 = vst.msk [vmem:[#allocation2 + $0x2d8] sm:$0xff] %vm7803, %v7766
    %7896 = vst.msk [vmem:[#allocation2 + $0x2e0] sm:$0xff] %vm7803, %v7767
    %7897 = vst.msk [vmem:[#allocation2 + $0x2e8] sm:$0xff] %vm7803, %v7768
    %7898 = vst.msk [vmem:[#allocation2 + $0x2f0] sm:$0xff] %vm7803, %v7769
    %7899 = vst.msk [vmem:[#allocation2 + $0x2f8] sm:$0xff] %vm7803, %v7770
    %7900 = vst.msk [vmem:[#allocation2 + $0x300] sm:$0xff] %vm7803, %v7771
    %7901 = vst.msk [vmem:[#allocation2 + $0x308] sm:$0xff] %vm7803, %v7772
    %7902 = vst.msk [vmem:[#allocation2 + $0x310] sm:$0xff] %vm7803, %v7773
    %7903 = vst.msk [vmem:[#allocation2 + $0x318] sm:$0xff] %vm7803, %v7774
    %7904 = vst.msk [vmem:[#allocation2 + $0x320] sm:$0xff] %vm7803, %v7775
    %7905 = vst.msk [vmem:[#allocation2 + $0x328] sm:$0xff] %vm7803, %v7776
    %7906 = vst.msk [vmem:[#allocation2 + $0x330] sm:$0xff] %vm7803, %v7777
    %7907 = vst.msk [vmem:[#allocation2 + $0x338] sm:$0xff] %vm7803, %v7778
    %7908 = vst.msk [vmem:[#allocation2 + $0x340] sm:$0xff] %vm7803, %v7779
    %7909 = vst.msk [vmem:[#allocation2 + $0x348] sm:$0xff] %vm7803, %v7780
    %7910 = vst.msk [vmem:[#allocation2 + $0x350] sm:$0xff] %vm7803, %v7781
    %7911 = vst.msk [vmem:[#allocation2 + $0x358] sm:$0xff] %vm7803, %v7782
    %7912 = vst.msk [vmem:[#allocation2 + $0x360] sm:$0xff] %vm7803, %v7783
    %7913 = vst.msk [vmem:[#allocation2 + $0x368] sm:$0xff] %vm7803, %v7784
    %7914 = vst.msk [vmem:[#allocation2 + $0x370] sm:$0xff] %vm7803, %v7785
    %7915 = vst.msk [vmem:[#allocation2 + $0x378] sm:$0xff] %vm7803, %v7786
    %7916 = vst.msk [vmem:[#allocation2 + $0x380] sm:$0xff] %vm7803, %v7787
    %7917 = vst.msk [vmem:[#allocation2 + $0x388] sm:$0xff] %vm7803, %v7788
    %7918 = vst.msk [vmem:[#allocation2 + $0x390] sm:$0xff] %vm7803, %v7789
    %7919 = vst.msk [vmem:[#allocation2 + $0x398] sm:$0xff] %vm7803, %v7790
    %7920 = vst.msk [vmem:[#allocation2 + $0x3a0] sm:$0xff] %vm7803, %v7791
    %7921 = vst.msk [vmem:[#allocation2 + $0x3a8] sm:$0xff] %vm7803, %v7792
    %7922 = vst.msk [vmem:[#allocation2 + $0x3b0] sm:$0xff] %vm7803, %v7793
    %7923 = vst.msk [vmem:[#allocation2 + $0x3b8] sm:$0xff] %vm7803, %v7794
    %7924 = vst.msk [vmem:[#allocation2 + $0x3c0] sm:$0xff] %vm7803, %v7795
    %7925 = vst.msk [vmem:[#allocation2 + $0x3c8] sm:$0xff] %vm7803, %v7796
    %7926 = vst.msk [vmem:[#allocation2 + $0x3d0] sm:$0xff] %vm7803, %v7797
    %7927 = vst.msk [vmem:[#allocation2 + $0x3d8] sm:$0xff] %vm7803, %v7798
    %7928 = vst.msk [vmem:[#allocation2 + $0x3e0] sm:$0xff] %vm7803, %v7799
    %7929 = vst.msk [vmem:[#allocation2 + $0x3e8] sm:$0xff] %vm7803, %v7800
    %7930 = vst.msk [vmem:[#allocation2 + $0x3f0] sm:$0xff] %vm7803, %v7801
    %7931 = vst.msk [vmem:[#allocation2 + $0x3f8] sm:$0xff] %vm7803, %v7802
    // Predicated region
    $region10: #{tpu_custom_call.1} parent=1 // pred_check
      _
    $region11: #{tpu_custom_call.1} parent=1 // pred_check_branch
      %7933 = sbr.rel (0) target = $region13
    $region12: #{tpu_custom_call.1} parent=1 // pred_region
      %s7935 = ssub.s32 16384, 16384
      %7936 = vsyncadd [#allocation3], %s7935
      %s7937 = sshll.u32 [#allocation2], 4
      %s7938 = int_to_ptr.vmem [resolvable:$true] %s7937
      %7943 = dma.vmem_to_hbm [thread:$0]  %s7938, 16384, %s2, [#allocation3], 128, 128, 8
    $region13: #{tpu_custom_call.1} parent=1 // pred_fallthru
      _
    // Predicated region
    $region14: #{tpu_custom_call.1} parent=1 // pred_check
      _
    $region15: #{tpu_custom_call.1} parent=1 // pred_check_branch
      %7945 = sbr.rel (0) target = $region17
    $region16: #{tpu_custom_call.1} parent=1 // pred_region
      %7946 = dma.done [#allocation3], 16384
    $region17: #{tpu_custom_call.1} parent=1 // pred_fallthru
      _
    %7947 = vsyncpa [#allocation3], 1

</llo_original>
